<compile_context>
chip_gen: v6e
topology: v6e:2x2x1
jax: 0.10.0
libtpu: 0.0.40
codegen_flags: <defaults>
</compile_context>

<pallas_src>
import jax
import jax.numpy as jnp
from jax.experimental import pallas as pl
from jax.experimental.pallas import tpu as pltpu

_VMEM_LIMIT = 32 * 1024 * 1024  # plenty of headroom on v5e/v6e/v7x


def _round_up(n, m):
    return ((n + m - 1) // m) * m


# ----------------------------------------------------------------------------
# Kernel 1: conv1 + BN1 + pool + ReLU + conv2 + BN2 + pool + ReLU  (per image)
# ----------------------------------------------------------------------------
def _conv_fused_kernel(p1_ref, w1_ref, s1_ref, w2_ref, s2_ref, o_ref):
    # conv1 as im2col matmul: (768, 32) @ (32, 128) -> (768, 128) f32.
    # Rows are ordered (dy, dx, oh1h, ow1h[0..15]); BN scale is folded into w1.
    y1 = jnp.dot(p1_ref[...], w1_ref[...], preferred_element_type=jnp.float32)
    y1 = y1 + s1_ref[...]

    # 2x2 max-pool == elementwise max over the four (dy, dx) row slabs; ReLU.
    pooled1 = jnp.maximum(jnp.max(y1.reshape(4, 192, 128), axis=0), 0.0)
    pooled1 = pooled1.reshape(12, 16, 128)        # (h, w_pad[12->16], c_pad)

    # conv2: in-kernel im2col via static slices of the VMEM-resident map.
    # Patch columns are (tap, cin) => K = 25 * 128 = 3200 (lane aligned).
    pieces = [pooled1[i:i + 8, j:j + 8, :].reshape(64, 128)
              for i in range(5) for j in range(5)]
    patches2 = jnp.concatenate(pieces, axis=1).astype(jnp.bfloat16)  # (64, 3200)
    y2 = jnp.dot(patches2, w2_ref[...], preferred_element_type=jnp.float32)
    y2 = y2 + s2_ref[...]                          # rows = (oh2, ow2) row-major

    # 2x2 max-pool + ReLU.  Width pairs: max with the next row (valid at even
    # ow2); height pairs: tile-aligned group max.  Odd-ow2 rows are don't-care;
    # the matching fc1 weight rows are zero.
    y2_next = jnp.concatenate([y2[1:, :], y2[:1, :]], axis=0)
    m = jnp.maximum(y2, y2_next)
    m = jnp.max(m.reshape(4, 2, 8, 128), axis=1)   # pool oh2 pairs -> (4, 8, 128)
    m = jnp.maximum(m, 0.0)
    o_ref[...] = m.reshape(32, 128).astype(o_ref.dtype)


def conv_fused(patches1, conv1_wm, bn1_shift, conv2_wm, bn2_shift):
    B = patches1.shape[0]
    return pl.pallas_call(
        _conv_fused_kernel,
        out_shape=jax.ShapeDtypeStruct((B, 32, 128), jnp.bfloat16),
        grid=(B,),
        in_specs=[
            pl.BlockSpec((None, 768, 32), lambda b: (b, 0, 0)),
            pl.BlockSpec((32, 128), lambda b: (0, 0)),
            pl.BlockSpec((1, 128), lambda b: (0, 0)),
            pl.BlockSpec((3200, 128), lambda b: (0, 0)),
            pl.BlockSpec((1, 128), lambda b: (0, 0)),
        ],
        out_specs=pl.BlockSpec((None, 32, 128), lambda b: (b, 0, 0)),
        compiler_params=pltpu.CompilerParams(
            dimension_semantics=("parallel",),
            vmem_limit_bytes=_VMEM_LIMIT),
    )(patches1, conv1_wm, bn1_shift, conv2_wm, bn2_shift)


# ----------------------------------------------------------------------------
# Kernel 2: fc1 + ReLU + fc2 (fused, single fat row block)
# ----------------------------------------------------------------------------
def _fc_fused_kernel(x_ref, w1_ref, b1_ref, w2_ref, b2_ref, o_ref):
    h = jnp.dot(x_ref[...], w1_ref[...], preferred_element_type=jnp.float32)
    h = jnp.maximum(h + b1_ref[...], 0.0)
    out = jnp.dot(h.astype(jnp.bfloat16), w2_ref[...],
                  preferred_element_type=jnp.float32)
    o_ref[...] = (out + b2_ref[...]).astype(o_ref.dtype)


def fc_fused(x, w1, b1, w2, b2):
    M, K1 = x.shape
    N1 = w1.shape[1]
    N2 = w2.shape[1]
    # One fat row block for small M (the usual case here); 256-row tiles with a
    # parallel grid otherwise.
    if M <= 512:
        Mp = _round_up(M, 16)
        tm = Mp
    else:
        Mp = _round_up(M, 256)
        tm = 256
    if Mp != M:
        x = jnp.pad(x, ((0, Mp - M), (0, 0)))
    x = x.astype(jnp.bfloat16)
    out = pl.pallas_call(
        _fc_fused_kernel,
        out_shape=jax.ShapeDtypeStruct((Mp, N2), jnp.float32),
        grid=(Mp // tm,),
        in_specs=[
            pl.BlockSpec((tm, K1), lambda i: (i, 0)),
            pl.BlockSpec((K1, N1), lambda i: (0, 0)),
            pl.BlockSpec((1, N1), lambda i: (0, 0)),
            pl.BlockSpec((N1, N2), lambda i: (0, 0)),
            pl.BlockSpec((1, N2), lambda i: (0, 0)),
        ],
        out_specs=pl.BlockSpec((tm, N2), lambda i: (i, 0)),
        compiler_params=pltpu.CompilerParams(
            dimension_semantics=("parallel",),
            vmem_limit_bytes=_VMEM_LIMIT),
    )(x, w1, b1, w2, b2)
    return out[:M]


# ----------------------------------------------------------------------------
# Host-side glue
# ----------------------------------------------------------------------------
def conv1_patches(x):
    """im2col for conv1 (5x5 valid, Cin=1), rows ordered as four (dy, dx) pool
    slabs of (oh1h, ow1h) with ow1h zero-padded 12->16 and K padded 25->32."""
    B = x.shape[0]
    cols = [x[:, i:i + 24, j:j + 24] for i in range(5) for j in range(5)]
    P = jnp.stack(cols, axis=-1)                    # (B, oh1, ow1, 25)
    P = P.reshape(B, 12, 2, 12, 2, 25)              # (B, oh1h, dy, ow1h, dx, k)
    P = jnp.transpose(P, (0, 2, 4, 1, 3, 5))        # (B, dy, dx, oh1h, ow1h, k)
    P = jnp.pad(P, ((0, 0), (0, 0), (0, 0), (0, 0), (0, 4), (0, 7)))
    return P.reshape(B, 768, 32).astype(jnp.bfloat16)


def prepare_params(p, eps=1e-5):
    """One-time prep: fold BN into conv weights, pad K/N to TPU-friendly sizes,
    cast to bf16, pre-permute fc1 rows to the kernel's flattening order."""
    # conv1 + BN1 (scale folded into weight columns; per-channel shift kept).
    s1 = p["bn1_gamma"] / jnp.sqrt(p["bn1_var"] + eps)
    sh1 = p["bn1_beta"] + (p["conv1_b"] - p["bn1_mean"]) * s1
    w1 = jnp.transpose(p["conv1_w"], (2, 3, 1, 0)).reshape(25, 32) * s1[None, :]
    conv1_wm = (jnp.zeros((32, 128), jnp.float32)
                .at[:25, :32].set(w1).astype(jnp.bfloat16))
    bn1_shift = jnp.zeros((1, 128), jnp.float32).at[0, :32].set(sh1)

    # conv2 + BN2; patch-column order is (tap = i*5+j, cin padded to 128).
    s2 = p["bn2_gamma"] / jnp.sqrt(p["bn2_var"] + eps)
    sh2 = p["bn2_beta"] + (p["conv2_b"] - p["bn2_mean"]) * s2
    w2 = jnp.transpose(p["conv2_w"], (2, 3, 1, 0)) * s2[None, None, None, :]
    conv2_wm = (jnp.zeros((5, 5, 128, 128), jnp.float32)
                .at[:, :, :32, :64].set(w2)
                .reshape(3200, 128).astype(jnp.bfloat16))
    bn2_shift = jnp.zeros((1, 128), jnp.float32).at[0, :64].set(sh2)

    # fc1: rows re-ordered to the kernel's (h, ow2, ch) flattening of the
    # (B, 32, 128) fc-input slab; odd-ow2 / padded-channel rows are zero so the
    # slab's don't-care rows contribute nothing.
    w1t = p["fc1_w"].T.reshape(64, 4, 4, 512)       # (c, h, w, n) NCHW flatten
    fc1_wm = (jnp.zeros((4, 8, 128, 512), jnp.float32)
              .at[:, 0::2, :64, :].set(jnp.transpose(w1t, (1, 2, 0, 3)))
              .reshape(4096, 512).astype(jnp.bfloat16))
    fc1_b = p["fc1_b"].reshape(1, 512).astype(jnp.float32)

    fc2_wm = (jnp.zeros((512, 128), jnp.float32)
              .at[:, :10].set(p["fc2_w"].T).astype(jnp.bfloat16))
    fc2_b = jnp.zeros((1, 128), jnp.float32).at[0, :10].set(p["fc2_b"])

    return dict(conv1_wm=conv1_wm, bn1_shift=bn1_shift,
                conv2_wm=conv2_wm, bn2_shift=bn2_shift,
                fc1_wm=fc1_wm, fc1_b=fc1_b, fc2_wm=fc2_wm, fc2_b=fc2_b)


def lenet5_forward(x_nchw, pp):
    B = x_nchw.shape[0]
    x = x_nchw[:, 0, :, :].astype(jnp.float32)               # (B, 28, 28)

    # conv stack: one kernel, one image per grid step, everything on-chip.
    patches1 = conv1_patches(x)                               # (B, 768, 32) bf16
    fc_in = conv_fused(patches1, pp["conv1_wm"], pp["bn1_shift"],
                       pp["conv2_wm"], pp["bn2_shift"])       # (B, 32, 128) bf16

    # Flatten is a contiguous reshape (fc1 weights were pre-permuted to match).
    flat = fc_in.reshape(B, 4096)

    # fc1 (4096->512) + ReLU + fc2 (512->10), fused.
    logits = fc_fused(flat, pp["fc1_wm"], pp["fc1_b"], pp["fc2_wm"], pp["fc2_b"])
    return logits[:, :10]


def init_params(key):
    ks = jax.random.split(key, 12)

    def rnd(k, shape, scale=0.1):
        return scale * jax.random.normal(k, shape, jnp.float32)

    return dict(
        conv1_w=rnd(ks[0], (32, 1, 5, 5)),
        conv1_b=rnd(ks[1], (32,)),
        bn1_gamma=1.0 + rnd(ks[2], (32,)),
        bn1_beta=rnd(ks[3], (32,)),
        bn1_mean=jnp.zeros((32,), jnp.float32),
        bn1_var=jnp.ones((32,), jnp.float32),
        conv2_w=rnd(ks[4], (64, 32, 5, 5), 0.05),
        conv2_b=rnd(ks[5], (64,)),
        bn2_gamma=1.0 + rnd(ks[6], (64,)),
        bn2_beta=rnd(ks[7], (64,)),
        bn2_mean=jnp.zeros((64,), jnp.float32),
        bn2_var=jnp.ones((64,), jnp.float32),
        fc1_w=rnd(ks[8], (512, 1024), 0.03),
        fc1_b=rnd(ks[9], (512,)),
        fc2_w=rnd(ks[10], (10, 512), 0.03),
        fc2_b=rnd(ks[11], (10,)),
    )


if __name__ == "__main__":
    key = jax.random.PRNGKey(0)
    k_x, k_p = jax.random.split(key)
    # MNIST-like input: fc1 expects 1024 = 64*4*4 => 28x28 spatial, 1 channel.
    x = jax.random.normal(k_x, (2, 1, 28, 28), jnp.float32)
    params = init_params(k_p)
    pp = prepare_params(params)   # one-time: BN fold, padding, bf16, permutes

    fwd = jax.jit(lenet5_forward)
    out = jax.block_until_ready(fwd(x, pp))

    assert out.shape == (2, 10), out.shape
    assert bool(jnp.all(jnp.isfinite(out)))
    print("KERNEL_OK")
</pallas_src>

<mosaic_0001>
module attributes {stable_mosaic.version = 11 : i64} {
  func.func @_conv_fused_kernel(%arg0: i32, %arg1: memref<1x768x32xbf16, #tpu.memory_space<vmem>>, %arg2: memref<32x128xbf16, #tpu.memory_space<vmem>>, %arg3: memref<1x128xf32, #tpu.memory_space<vmem>>, %arg4: memref<3200x128xbf16, #tpu.memory_space<vmem>>, %arg5: memref<1x128xf32, #tpu.memory_space<vmem>>, %arg6: memref<1x32x128xbf16, #tpu.memory_space<vmem>>) attributes {dimension_semantics = [#tpu.dimension_semantics<parallel>], iteration_bounds = array<i64: 2>, scalar_prefetch = 0 : i64, scratch_operands = 0 : i64, tpu.core_type = #tpu.core_type<tc>, window_params = [{transform_indices = @transform_0, window_bounds = array<i64: 1, 768, 32>}, {pipeline_mode = #tpu.pipeline_mode<synchronous>, transform_indices = @transform_1, window_bounds = array<i64: 32, 128>}, {pipeline_mode = #tpu.pipeline_mode<synchronous>, transform_indices = @transform_2, window_bounds = array<i64: 1, 128>}, {pipeline_mode = #tpu.pipeline_mode<synchronous>, transform_indices = @transform_3, window_bounds = array<i64: 3200, 128>}, {pipeline_mode = #tpu.pipeline_mode<synchronous>, transform_indices = @transform_4, window_bounds = array<i64: 1, 128>}, {transform_indices = @transform_5, window_bounds = array<i64: 1, 32, 128>}]} {
    %c0 = arith.constant 0 : index
    %c0_0 = arith.constant 0 : index
    %c0_1 = arith.constant 0 : index
    %0 = vector.load %arg1[%c0, %c0_0, %c0_1] : memref<1x768x32xbf16, #tpu.memory_space<vmem>>, vector<1x768x32xbf16>
    %1 = vector.shape_cast %0 : vector<1x768x32xbf16> to vector<768x32xbf16>
    %c0_2 = arith.constant 0 : index
    %c0_3 = arith.constant 0 : index
    %2 = vector.load %arg2[%c0_2, %c0_3] : memref<32x128xbf16, #tpu.memory_space<vmem>>, vector<32x128xbf16>
    %cst = arith.constant dense<0.000000e+00> : vector<768x128xf32>
    %3 = tpu.matmul %1, %2, %cst {dimension_numbers = #tpu.dot_dimension_numbers<[1], [0], [0], [1], [0, 0, 1, 1], [], []>} : vector<768x32xbf16>, vector<32x128xbf16>, vector<768x128xf32> -> vector<768x128xf32>
    %c0_4 = arith.constant 0 : index
    %c0_5 = arith.constant 0 : index
    %4 = vector.load %arg3[%c0_4, %c0_5] : memref<1x128xf32, #tpu.memory_space<vmem>>, vector<1x128xf32>
    %5 = vector.broadcast %4 : vector<1x128xf32> to vector<768x128xf32>
    %6 = arith.addf %3, %5 : vector<768x128xf32>
    %7 = vector.shape_cast %6 : vector<768x128xf32> to vector<4x192x128xf32>
    %cst_6 = arith.constant dense<0xFF800000> : vector<192x128xf32>
    %8 = vector.multi_reduction <maximumf>, %7, %cst_6 [0] : vector<4x192x128xf32> to vector<192x128xf32>
    %cst_7 = arith.constant 0.000000e+00 : f32
    %9 = vector.broadcast %cst_7 : f32 to vector<192x128xf32>
    %10 = arith.maximumf %8, %9 : vector<192x128xf32>
    %11 = vector.shape_cast %10 : vector<192x128xf32> to vector<12x16x128xf32>
    %12 = vector.extract_strided_slice %11 {offsets = [0, 0, 0], sizes = [8, 8, 128], strides = [1, 1, 1]} : vector<12x16x128xf32> to vector<8x8x128xf32>
    %13 = vector.shape_cast %12 : vector<8x8x128xf32> to vector<64x128xf32>
    %14 = vector.extract_strided_slice %11 {offsets = [0, 1, 0], sizes = [8, 8, 128], strides = [1, 1, 1]} : vector<12x16x128xf32> to vector<8x8x128xf32>
    %15 = vector.shape_cast %14 : vector<8x8x128xf32> to vector<64x128xf32>
    %16 = vector.extract_strided_slice %11 {offsets = [0, 2, 0], sizes = [8, 8, 128], strides = [1, 1, 1]} : vector<12x16x128xf32> to vector<8x8x128xf32>
    %17 = vector.shape_cast %16 : vector<8x8x128xf32> to vector<64x128xf32>
    %18 = vector.extract_strided_slice %11 {offsets = [0, 3, 0], sizes = [8, 8, 128], strides = [1, 1, 1]} : vector<12x16x128xf32> to vector<8x8x128xf32>
    %19 = vector.shape_cast %18 : vector<8x8x128xf32> to vector<64x128xf32>
    %20 = vector.extract_strided_slice %11 {offsets = [0, 4, 0], sizes = [8, 8, 128], strides = [1, 1, 1]} : vector<12x16x128xf32> to vector<8x8x128xf32>
    %21 = vector.shape_cast %20 : vector<8x8x128xf32> to vector<64x128xf32>
    %22 = vector.extract_strided_slice %11 {offsets = [1, 0, 0], sizes = [8, 8, 128], strides = [1, 1, 1]} : vector<12x16x128xf32> to vector<8x8x128xf32>
    %23 = vector.shape_cast %22 : vector<8x8x128xf32> to vector<64x128xf32>
    %24 = vector.extract_strided_slice %11 {offsets = [1, 1, 0], sizes = [8, 8, 128], strides = [1, 1, 1]} : vector<12x16x128xf32> to vector<8x8x128xf32>
    %25 = vector.shape_cast %24 : vector<8x8x128xf32> to vector<64x128xf32>
    %26 = vector.extract_strided_slice %11 {offsets = [1, 2, 0], sizes = [8, 8, 128], strides = [1, 1, 1]} : vector<12x16x128xf32> to vector<8x8x128xf32>
    %27 = vector.shape_cast %26 : vector<8x8x128xf32> to vector<64x128xf32>
    %28 = vector.extract_strided_slice %11 {offsets = [1, 3, 0], sizes = [8, 8, 128], strides = [1, 1, 1]} : vector<12x16x128xf32> to vector<8x8x128xf32>
    %29 = vector.shape_cast %28 : vector<8x8x128xf32> to vector<64x128xf32>
    %30 = vector.extract_strided_slice %11 {offsets = [1, 4, 0], sizes = [8, 8, 128], strides = [1, 1, 1]} : vector<12x16x128xf32> to vector<8x8x128xf32>
    %31 = vector.shape_cast %30 : vector<8x8x128xf32> to vector<64x128xf32>
    %32 = vector.extract_strided_slice %11 {offsets = [2, 0, 0], sizes = [8, 8, 128], strides = [1, 1, 1]} : vector<12x16x128xf32> to vector<8x8x128xf32>
    %33 = vector.shape_cast %32 : vector<8x8x128xf32> to vector<64x128xf32>
    %34 = vector.extract_strided_slice %11 {offsets = [2, 1, 0], sizes = [8, 8, 128], strides = [1, 1, 1]} : vector<12x16x128xf32> to vector<8x8x128xf32>
    %35 = vector.shape_cast %34 : vector<8x8x128xf32> to vector<64x128xf32>
    %36 = vector.extract_strided_slice %11 {offsets = [2, 2, 0], sizes = [8, 8, 128], strides = [1, 1, 1]} : vector<12x16x128xf32> to vector<8x8x128xf32>
    %37 = vector.shape_cast %36 : vector<8x8x128xf32> to vector<64x128xf32>
    %38 = vector.extract_strided_slice %11 {offsets = [2, 3, 0], sizes = [8, 8, 128], strides = [1, 1, 1]} : vector<12x16x128xf32> to vector<8x8x128xf32>
    %39 = vector.shape_cast %38 : vector<8x8x128xf32> to vector<64x128xf32>
    %40 = vector.extract_strided_slice %11 {offsets = [2, 4, 0], sizes = [8, 8, 128], strides = [1, 1, 1]} : vector<12x16x128xf32> to vector<8x8x128xf32>
    %41 = vector.shape_cast %40 : vector<8x8x128xf32> to vector<64x128xf32>
    %42 = vector.extract_strided_slice %11 {offsets = [3, 0, 0], sizes = [8, 8, 128], strides = [1, 1, 1]} : vector<12x16x128xf32> to vector<8x8x128xf32>
    %43 = vector.shape_cast %42 : vector<8x8x128xf32> to vector<64x128xf32>
    %44 = vector.extract_strided_slice %11 {offsets = [3, 1, 0], sizes = [8, 8, 128], strides = [1, 1, 1]} : vector<12x16x128xf32> to vector<8x8x128xf32>
    %45 = vector.shape_cast %44 : vector<8x8x128xf32> to vector<64x128xf32>
    %46 = vector.extract_strided_slice %11 {offsets = [3, 2, 0], sizes = [8, 8, 128], strides = [1, 1, 1]} : vector<12x16x128xf32> to vector<8x8x128xf32>
    %47 = vector.shape_cast %46 : vector<8x8x128xf32> to vector<64x128xf32>
    %48 = vector.extract_strided_slice %11 {offsets = [3, 3, 0], sizes = [8, 8, 128], strides = [1, 1, 1]} : vector<12x16x128xf32> to vector<8x8x128xf32>
    %49 = vector.shape_cast %48 : vector<8x8x128xf32> to vector<64x128xf32>
    %50 = vector.extract_strided_slice %11 {offsets = [3, 4, 0], sizes = [8, 8, 128], strides = [1, 1, 1]} : vector<12x16x128xf32> to vector<8x8x128xf32>
    %51 = vector.shape_cast %50 : vector<8x8x128xf32> to vector<64x128xf32>
    %52 = vector.extract_strided_slice %11 {offsets = [4, 0, 0], sizes = [8, 8, 128], strides = [1, 1, 1]} : vector<12x16x128xf32> to vector<8x8x128xf32>
    %53 = vector.shape_cast %52 : vector<8x8x128xf32> to vector<64x128xf32>
    %54 = vector.extract_strided_slice %11 {offsets = [4, 1, 0], sizes = [8, 8, 128], strides = [1, 1, 1]} : vector<12x16x128xf32> to vector<8x8x128xf32>
    %55 = vector.shape_cast %54 : vector<8x8x128xf32> to vector<64x128xf32>
    %56 = vector.extract_strided_slice %11 {offsets = [4, 2, 0], sizes = [8, 8, 128], strides = [1, 1, 1]} : vector<12x16x128xf32> to vector<8x8x128xf32>
    %57 = vector.shape_cast %56 : vector<8x8x128xf32> to vector<64x128xf32>
    %58 = vector.extract_strided_slice %11 {offsets = [4, 3, 0], sizes = [8, 8, 128], strides = [1, 1, 1]} : vector<12x16x128xf32> to vector<8x8x128xf32>
    %59 = vector.shape_cast %58 : vector<8x8x128xf32> to vector<64x128xf32>
    %60 = vector.extract_strided_slice %11 {offsets = [4, 4, 0], sizes = [8, 8, 128], strides = [1, 1, 1]} : vector<12x16x128xf32> to vector<8x8x128xf32>
    %61 = vector.shape_cast %60 : vector<8x8x128xf32> to vector<64x128xf32>
    %62 = tpu.concatenate %13, %15, %17, %19, %21, %23, %25, %27, %29, %31, %33, %35, %37, %39, %41, %43 in 1 : vector<64x128xf32>, vector<64x128xf32>, vector<64x128xf32>, vector<64x128xf32>, vector<64x128xf32>, vector<64x128xf32>, vector<64x128xf32>, vector<64x128xf32>, vector<64x128xf32>, vector<64x128xf32>, vector<64x128xf32>, vector<64x128xf32>, vector<64x128xf32>, vector<64x128xf32>, vector<64x128xf32>, vector<64x128xf32> -> vector<64x2048xf32>
    %63 = tpu.concatenate %45, %47, %49, %51, %53, %55, %57, %59, %61 in 1 : vector<64x128xf32>, vector<64x128xf32>, vector<64x128xf32>, vector<64x128xf32>, vector<64x128xf32>, vector<64x128xf32>, vector<64x128xf32>, vector<64x128xf32>, vector<64x128xf32> -> vector<64x1152xf32>
    %64 = tpu.concatenate %62, %63 in 1 : vector<64x2048xf32>, vector<64x1152xf32> -> vector<64x3200xf32>
    %65 = arith.truncf %64 : vector<64x3200xf32> to vector<64x3200xbf16>
    %c0_8 = arith.constant 0 : index
    %c0_9 = arith.constant 0 : index
    %66 = vector.load %arg4[%c0_8, %c0_9] : memref<3200x128xbf16, #tpu.memory_space<vmem>>, vector<3200x128xbf16>
    %cst_10 = arith.constant dense<0.000000e+00> : vector<64x128xf32>
    %67 = tpu.matmul %65, %66, %cst_10 {dimension_numbers = #tpu.dot_dimension_numbers<[1], [0], [0], [1], [0, 0, 1, 1], [], []>} : vector<64x3200xbf16>, vector<3200x128xbf16>, vector<64x128xf32> -> vector<64x128xf32>
    %c0_11 = arith.constant 0 : index
    %c0_12 = arith.constant 0 : index
    %68 = vector.load %arg5[%c0_11, %c0_12] : memref<1x128xf32, #tpu.memory_space<vmem>>, vector<1x128xf32>
    %69 = vector.broadcast %68 : vector<1x128xf32> to vector<64x128xf32>
    %70 = arith.addf %67, %69 : vector<64x128xf32>
    %71 = vector.extract_strided_slice %70 {offsets = [1, 0], sizes = [63, 128], strides = [1, 1]} : vector<64x128xf32> to vector<63x128xf32>
    %72 = vector.extract_strided_slice %70 {offsets = [0, 0], sizes = [1, 128], strides = [1, 1]} : vector<64x128xf32> to vector<1x128xf32>
    %73 = tpu.concatenate %71, %72 in 0 : vector<63x128xf32>, vector<1x128xf32> -> vector<64x128xf32>
    %74 = arith.maximumf %70, %73 : vector<64x128xf32>
    %75 = vector.shape_cast %74 : vector<64x128xf32> to vector<4x2x8x128xf32>
    %cst_13 = arith.constant dense<0xFF800000> : vector<4x8x128xf32>
    %76 = vector.multi_reduction <maximumf>, %75, %cst_13 [1] : vector<4x2x8x128xf32> to vector<4x8x128xf32>
    %cst_14 = arith.constant 0.000000e+00 : f32
    %77 = vector.broadcast %cst_14 : f32 to vector<4x8x128xf32>
    %78 = arith.maximumf %76, %77 : vector<4x8x128xf32>
    %79 = vector.shape_cast %78 : vector<4x8x128xf32> to vector<32x128xf32>
    %80 = arith.truncf %79 : vector<32x128xf32> to vector<32x128xbf16>
    %c0_15 = arith.constant 0 : index
    %c0_16 = arith.constant 0 : index
    %c0_17 = arith.constant 0 : index
    %81 = vector.load %arg6[%c0_15, %c0_16, %c0_17] : memref<1x32x128xbf16, #tpu.memory_space<vmem>>, vector<1x32x128xbf16>
    %82 = vector.shape_cast %81 : vector<1x32x128xbf16> to vector<32x128xbf16>
    %83 = vector.shape_cast %80 : vector<32x128xbf16> to vector<1x32x128xbf16>
    tpu.vector_store %arg6[%c0_15, %c0_16, %c0_17], %83 {strides = array<i32>} : memref<1x32x128xbf16, #tpu.memory_space<vmem>>, vector<1x32x128xbf16>,
    return
  }
  func.func @transform_0(%arg0: i32) -> (i32, i32, i32) {
    %c0_i32 = arith.constant 0 : i32
    %c0_i32_0 = arith.constant 0 : i32
    %c0_i32_1 = arith.constant 0 : i32
    return %arg0, %c0_i32, %c0_i32_0 : i32, i32, i32
  }
  func.func @transform_1(%arg0: i32) -> (i32, i32) {
    %c0_i32 = arith.constant 0 : i32
    %c0_i32_0 = arith.constant 0 : i32
    %c0_i32_1 = arith.constant 0 : i32
    return %c0_i32, %c0_i32_0 : i32, i32
  }
  func.func @transform_2(%arg0: i32) -> (i32, i32) {
    %c0_i32 = arith.constant 0 : i32
    %c0_i32_0 = arith.constant 0 : i32
    %c0_i32_1 = arith.constant 0 : i32
    return %c0_i32, %c0_i32_0 : i32, i32
  }
  func.func @transform_3(%arg0: i32) -> (i32, i32) {
    %c0_i32 = arith.constant 0 : i32
    %c0_i32_0 = arith.constant 0 : i32
    %c0_i32_1 = arith.constant 0 : i32
    return %c0_i32, %c0_i32_0 : i32, i32
  }
  func.func @transform_4(%arg0: i32) -> (i32, i32) {
    %c0_i32 = arith.constant 0 : i32
    %c0_i32_0 = arith.constant 0 : i32
    %c0_i32_1 = arith.constant 0 : i32
    return %c0_i32, %c0_i32_0 : i32, i32
  }
  func.func @transform_5(%arg0: i32) -> (i32, i32, i32) {
    %c0_i32 = arith.constant 0 : i32
    %c0_i32_0 = arith.constant 0 : i32
    %c0_i32_1 = arith.constant 0 : i32
    return %arg0, %c0_i32, %c0_i32_0 : i32, i32, i32
  }
}

module attributes {stable_mosaic.version = 11 : i64} {
  func.func @_fc_fused_kernel(%arg0: i32, %arg1: memref<16x4096xbf16, #tpu.memory_space<vmem>>, %arg2: memref<4096x512xbf16, #tpu.memory_space<vmem>>, %arg3: memref<1x512xf32, #tpu.memory_space<vmem>>, %arg4: memref<512x128xbf16, #tpu.memory_space<vmem>>, %arg5: memref<1x128xf32, #tpu.memory_space<vmem>>, %arg6: memref<16x128xf32, #tpu.memory_space<vmem>>) attributes {dimension_semantics = [#tpu.dimension_semantics<parallel>], iteration_bounds = array<i64: 1>, scalar_prefetch = 0 : i64, scratch_operands = 0 : i64, tpu.core_type = #tpu.core_type<tc>, window_params = [{transform_indices = @transform_0, window_bounds = array<i64: 16, 4096>}, {pipeline_mode = #tpu.pipeline_mode<synchronous>, transform_indices = @transform_1, window_bounds = array<i64: 4096, 512>}, {pipeline_mode = #tpu.pipeline_mode<synchronous>, transform_indices = @transform_2, window_bounds = array<i64: 1, 512>}, {pipeline_mode = #tpu.pipeline_mode<synchronous>, transform_indices = @transform_3, window_bounds = array<i64: 512, 128>}, {pipeline_mode = #tpu.pipeline_mode<synchronous>, transform_indices = @transform_4, window_bounds = array<i64: 1, 128>}, {transform_indices = @transform_5, window_bounds = array<i64: 16, 128>}]} {
    %c0 = arith.constant 0 : index
    %c0_0 = arith.constant 0 : index
    %0 = vector.load %arg1[%c0, %c0_0] : memref<16x4096xbf16, #tpu.memory_space<vmem>>, vector<16x4096xbf16>
    %c0_1 = arith.constant 0 : index
    %c0_2 = arith.constant 0 : index
    %1 = vector.load %arg2[%c0_1, %c0_2] : memref<4096x512xbf16, #tpu.memory_space<vmem>>, vector<4096x512xbf16>
    %cst = arith.constant dense<0.000000e+00> : vector<16x512xf32>
    %2 = tpu.matmul %0, %1, %cst {dimension_numbers = #tpu.dot_dimension_numbers<[1], [0], [0], [1], [0, 0, 1, 1], [], []>} : vector<16x4096xbf16>, vector<4096x512xbf16>, vector<16x512xf32> -> vector<16x512xf32>
    %c0_3 = arith.constant 0 : index
    %c0_4 = arith.constant 0 : index
    %3 = vector.load %arg3[%c0_3, %c0_4] : memref<1x512xf32, #tpu.memory_space<vmem>>, vector<1x512xf32>
    %4 = vector.broadcast %3 : vector<1x512xf32> to vector<16x512xf32>
    %5 = arith.addf %2, %4 : vector<16x512xf32>
    %cst_5 = arith.constant 0.000000e+00 : f32
    %6 = vector.broadcast %cst_5 : f32 to vector<16x512xf32>
    %7 = arith.maximumf %5, %6 : vector<16x512xf32>
    %8 = arith.truncf %7 : vector<16x512xf32> to vector<16x512xbf16>
    %c0_6 = arith.constant 0 : index
    %c0_7 = arith.constant 0 : index
    %9 = vector.load %arg4[%c0_6, %c0_7] : memref<512x128xbf16, #tpu.memory_space<vmem>>, vector<512x128xbf16>
    %cst_8 = arith.constant dense<0.000000e+00> : vector<16x128xf32>
    %10 = tpu.matmul %8, %9, %cst_8 {dimension_numbers = #tpu.dot_dimension_numbers<[1], [0], [0], [1], [0, 0, 1, 1], [], []>} : vector<16x512xbf16>, vector<512x128xbf16>, vector<16x128xf32> -> vector<16x128xf32>
    %c0_9 = arith.constant 0 : index
    %c0_10 = arith.constant 0 : index
    %11 = vector.load %arg5[%c0_9, %c0_10] : memref<1x128xf32, #tpu.memory_space<vmem>>, vector<1x128xf32>
    %12 = vector.broadcast %11 : vector<1x128xf32> to vector<16x128xf32>
    %13 = arith.addf %10, %12 : vector<16x128xf32>
    %c0_11 = arith.constant 0 : index
    %c0_12 = arith.constant 0 : index
    %14 = vector.load %arg6[%c0_11, %c0_12] : memref<16x128xf32, #tpu.memory_space<vmem>>, vector<16x128xf32>
    tpu.vector_store %arg6[%c0_11, %c0_12], %13 {strides = array<i32>} : memref<16x128xf32, #tpu.memory_space<vmem>>, vector<16x128xf32>,
    return
  }
  func.func @transform_0(%arg0: i32) -> (i32, i32) {
    %c0_i32 = arith.constant 0 : i32
    %c0_i32_0 = arith.constant 0 : i32
    return %arg0, %c0_i32 : i32, i32
  }
  func.func @transform_1(%arg0: i32) -> (i32, i32) {
    %c0_i32 = arith.constant 0 : i32
    %c0_i32_0 = arith.constant 0 : i32
    %c0_i32_1 = arith.constant 0 : i32
    return %c0_i32, %c0_i32_0 : i32, i32
  }
  func.func @transform_2(%arg0: i32) -> (i32, i32) {
    %c0_i32 = arith.constant 0 : i32
    %c0_i32_0 = arith.constant 0 : i32
    %c0_i32_1 = arith.constant 0 : i32
    return %c0_i32, %c0_i32_0 : i32, i32
  }
  func.func @transform_3(%arg0: i32) -> (i32, i32) {
    %c0_i32 = arith.constant 0 : i32
    %c0_i32_0 = arith.constant 0 : i32
    %c0_i32_1 = arith.constant 0 : i32
    return %c0_i32, %c0_i32_0 : i32, i32
  }
  func.func @transform_4(%arg0: i32) -> (i32, i32) {
    %c0_i32 = arith.constant 0 : i32
    %c0_i32_0 = arith.constant 0 : i32
    %c0_i32_1 = arith.constant 0 : i32
    return %c0_i32, %c0_i32_0 : i32, i32
  }
  func.func @transform_5(%arg0: i32) -> (i32, i32) {
    %c0_i32 = arith.constant 0 : i32
    %c0_i32_0 = arith.constant 0 : i32
    return %arg0, %c0_i32 : i32, i32
  }
}

</mosaic_0001>

<llo_original>
// kernel: lenet5_forward.2
$region0: #{lenet5_forward.2}
  #allocation0 [shape = 'u32[]', space=smem, size = 0x4, offset = 0x4, fixed_abs, tag = 'smem constant byte address 0x4 - core index']
  #allocation1 [shape = 'u32[144,128]{1,0:T(1,128)}', space=vmem, size = 0x12000, scoped, tag = 'internal scratch']
  %s0 = inlined_call_operand.vmem [shape: bf16[2,768,32], index: 0, kind: input, shape index: {}]
  %s1 = inlined_call_operand.vmem [shape: bf16[32,128], index: 1, kind: input, shape index: {}]
  %s2 = inlined_call_operand.vmem [shape: f32[1,128], index: 2, kind: input, shape index: {}]
  %s3 = inlined_call_operand.vmem [shape: bf16[3200,128], index: 3, kind: input, shape index: {}]
  %s4 = inlined_call_operand.vmem [shape: f32[1,128], index: 4, kind: input, shape index: {}]
  %s5 = inlined_call_operand.vmem [shape: bf16[2,32,128], index: 5, kind: output, shape index: {}]
  %s6 = sld [smem:[#allocation0]]
  $region53: #{lenet5_forward.2} parent=0
    _
  %s8 = ssub.s32 1, %s6
  %s9 = scalar_select 0, %s8, %s6
  loop: start=0, step=1, limit=4
  $region2: #{lenet5_forward.2} parent=0 // loop_pre_header
    _
  $region3: #{lenet5_forward.2} parent=0 // loop_header
    %s11 = sphi 0, %s15
    %p12 = scmp.ge.s32.totalorder %s11, 4
    %s21 = sphi 0, %s23
    %s24 = sphi 0, %s21
    %s25 = sphi 0, %s24
    %s41 = sphi 0, %s25
    %s45 = sphi 0, %s45
    %s47 = sphi 0, %s45
    %s48 = sphi 0, %s47
    %s62 = sphi 0, %s48
    %s66 = sphi 0, %s66
    %s68 = sphi 0, %s66
    %s69 = sphi 0, %s68
    %s83 = sphi 0, %s69
    %s87 = sphi 0, %s87
    %s89 = sphi 0, %s87
    %s90 = sphi 0, %s89
    %s104 = sphi 0, %s90
    %s108 = sphi 0, %s108
    %s110 = sphi 0, %s108
    %s111 = sphi 0, %s110
    %s125 = sphi 0, %s111
    %s131 = sphi 0, %s133
    %s134 = sphi 0, %s131
    %s135 = sphi 0, %s134
    %s151 = sphi 0, %s135
  $region4: #{lenet5_forward.2} parent=0 // loop_header_branch
    %14 = sbr.rel (%p12) target = $region8
  $region5: #{lenet5_forward.2} parent=0 // loop_body
    %s16 = ssub.s32 %s11, 1
    %s17 = ssub.s32 %s11, 2
    %s18 = sadd.s32 %s11, 1
    %s19 = ssub.s32 %s11, %s18
    %p20 = scmp.eq.s32.totalorder %s19, 0
    %s22 = sadd.s32 %s21, 1
    %s23 = scalar_select %p20, %s21, %s22
    %p26 = pneg %p20
    %p27 = scmp.eq.s32.totalorder %s11, 1
    %p28 = por %p26, %p27
    %p29 = scmp.ne.s32.totalorder %s21, %s24
    %p30 = scmp.eq.s32.totalorder %s11, 0
    %p31 = por %p29, %p30
    %p32 = scmp.ne.s32.totalorder %s21, %s24
    %p33 = scmp.eq.s32.totalorder %s16, 1
    %p34 = por %p32, %p33
    %p35 = scmp.ne.s32.totalorder %s24, %s25
    %p36 = scmp.eq.s32.totalorder %s16, 0
    %p37 = por %p35, %p36
    %p38 = scmp.ne.s32.totalorder %s24, %s25
    %p39 = scmp.eq.s32.totalorder %s17, 1
    %p40 = por %p38, %p39
    %p42 = scmp.ne.s32.totalorder %s25, %s41
    %p43 = scmp.eq.s32.totalorder %s17, 0
    %p44 = por %p42, %p43
    %s46 = sadd.s32 %s45, 1
    %p49 = scmp.eq.s32.totalorder %s11, 1
    %p50 = scmp.ne.s32.totalorder %s45, %s47
    %p51 = scmp.eq.s32.totalorder %s11, 0
    %p52 = por %p50, %p51
    %p53 = scmp.ne.s32.totalorder %s45, %s47
    %p54 = scmp.eq.s32.totalorder %s16, 1
    %p55 = por %p53, %p54
    %p56 = scmp.ne.s32.totalorder %s47, %s48
    %p57 = scmp.eq.s32.totalorder %s16, 0
    %p58 = por %p56, %p57
    %p59 = scmp.ne.s32.totalorder %s47, %s48
    %p60 = scmp.eq.s32.totalorder %s17, 1
    %p61 = por %p59, %p60
    %p63 = scmp.ne.s32.totalorder %s48, %s62
    %p64 = scmp.eq.s32.totalorder %s17, 0
    %p65 = por %p63, %p64
    %s67 = sadd.s32 %s66, 1
    %p70 = scmp.eq.s32.totalorder %s11, 1
    %p71 = scmp.ne.s32.totalorder %s66, %s68
    %p72 = scmp.eq.s32.totalorder %s11, 0
    %p73 = por %p71, %p72
    %p74 = scmp.ne.s32.totalorder %s66, %s68
    %p75 = scmp.eq.s32.totalorder %s16, 1
    %p76 = por %p74, %p75
    %p77 = scmp.ne.s32.totalorder %s68, %s69
    %p78 = scmp.eq.s32.totalorder %s16, 0
    %p79 = por %p77, %p78
    %p80 = scmp.ne.s32.totalorder %s68, %s69
    %p81 = scmp.eq.s32.totalorder %s17, 1
    %p82 = por %p80, %p81
    %p84 = scmp.ne.s32.totalorder %s69, %s83
    %p85 = scmp.eq.s32.totalorder %s17, 0
    %p86 = por %p84, %p85
    %s88 = sadd.s32 %s87, 1
    %p91 = scmp.eq.s32.totalorder %s11, 1
    %p92 = scmp.ne.s32.totalorder %s87, %s89
    %p93 = scmp.eq.s32.totalorder %s11, 0
    %p94 = por %p92, %p93
    %p95 = scmp.ne.s32.totalorder %s87, %s89
    %p96 = scmp.eq.s32.totalorder %s16, 1
    %p97 = por %p95, %p96
    %p98 = scmp.ne.s32.totalorder %s89, %s90
    %p99 = scmp.eq.s32.totalorder %s16, 0
    %p100 = por %p98, %p99
    %p101 = scmp.ne.s32.totalorder %s89, %s90
    %p102 = scmp.eq.s32.totalorder %s17, 1
    %p103 = por %p101, %p102
    %p105 = scmp.ne.s32.totalorder %s90, %s104
    %p106 = scmp.eq.s32.totalorder %s17, 0
    %p107 = por %p105, %p106
    %s109 = sadd.s32 %s108, 1
    %p112 = scmp.eq.s32.totalorder %s11, 1
    %p113 = scmp.ne.s32.totalorder %s108, %s110
    %p114 = scmp.eq.s32.totalorder %s11, 0
    %p115 = por %p113, %p114
    %p116 = scmp.ne.s32.totalorder %s108, %s110
    %p117 = scmp.eq.s32.totalorder %s16, 1
    %p118 = por %p116, %p117
    %p119 = scmp.ne.s32.totalorder %s110, %s111
    %p120 = scmp.eq.s32.totalorder %s16, 0
    %p121 = por %p119, %p120
    %p122 = scmp.ne.s32.totalorder %s110, %s111
    %p123 = scmp.eq.s32.totalorder %s17, 1
    %p124 = por %p122, %p123
    %p126 = scmp.ne.s32.totalorder %s111, %s125
    %p127 = scmp.eq.s32.totalorder %s17, 0
    %p128 = por %p126, %p127
    %s129 = ssub.s32 %s11, %s18
    %p130 = scmp.eq.s32.totalorder %s129, 0
    %s132 = sadd.s32 %s131, 1
    %s133 = scalar_select %p130, %s131, %s132
    %p136 = pneg %p130
    %p137 = scmp.eq.s32.totalorder %s11, 1
    %p138 = por %p136, %p137
    %p139 = scmp.ne.s32.totalorder %s131, %s134
    %p140 = scmp.eq.s32.totalorder %s11, 0
    %p141 = por %p139, %p140
    %p142 = scmp.ne.s32.totalorder %s131, %s134
    %p143 = scmp.eq.s32.totalorder %s16, 1
    %p144 = por %p142, %p143
    %p145 = scmp.ne.s32.totalorder %s134, %s135
    %p146 = scmp.eq.s32.totalorder %s16, 0
    %p147 = por %p145, %p146
    %p148 = scmp.ne.s32.totalorder %s134, %s135
    %p149 = scmp.eq.s32.totalorder %s17, 1
    %p150 = por %p148, %p149
    %p152 = scmp.ne.s32.totalorder %s135, %s151
    %p153 = scmp.eq.s32.totalorder %s17, 0
    %p154 = por %p152, %p153
    %p155 = scmp.le.s32.totalorder 1, %s11
    %p156 = scmp.lt.s32.totalorder %s11, 3
    %p157 = pnand %p155, %p156
    %p158 = pneg %p157
    // Predicated region
    $region9: #{lenet5_forward.2} parent=5 // pred_check
      _
    $region10: #{lenet5_forward.2} parent=5 // pred_check_branch
      %160 = sbr.rel (%p157) target = $region12
    $region11: #{lenet5_forward.2} parent=5 // pred_region
      %s161 = ssub.s32 %s11, 1
      // Predicated region
      $region13: #{lenet5_forward.2} parent=11 // pred_check
        %p162 = pneg %p58
      $region14: #{lenet5_forward.2} parent=11 // pred_check_branch
        %164 = sbr.rel (%p162) target = $region16
      $region15: #{lenet5_forward.2} parent=11 // pred_region
        _
      $region16: #{lenet5_forward.2} parent=11 // pred_fallthru
        _
      // Predicated region
      $region17: #{lenet5_forward.2} parent=11 // pred_check
        %p165 = pneg %p79
      $region18: #{lenet5_forward.2} parent=11 // pred_check_branch
        %167 = sbr.rel (%p165) target = $region20
      $region19: #{lenet5_forward.2} parent=11 // pred_region
        _
      $region20: #{lenet5_forward.2} parent=11 // pred_fallthru
        _
      // Predicated region
      $region21: #{lenet5_forward.2} parent=11 // pred_check
        %p168 = pneg %p100
      $region22: #{lenet5_forward.2} parent=11 // pred_check_branch
        %170 = sbr.rel (%p168) target = $region24
      $region23: #{lenet5_forward.2} parent=11 // pred_region
        _
      $region24: #{lenet5_forward.2} parent=11 // pred_fallthru
        _
      // Predicated region
      $region25: #{lenet5_forward.2} parent=11 // pred_check
        %p171 = pneg %p121
      $region26: #{lenet5_forward.2} parent=11 // pred_check_branch
        %173 = sbr.rel (%p171) target = $region28
      $region27: #{lenet5_forward.2} parent=11 // pred_region
        _
      $region28: #{lenet5_forward.2} parent=11 // pred_fallthru
        _
    $region12: #{lenet5_forward.2} parent=5 // pred_fallthru
      _
    %p174 = scmp.lt.s32.totalorder %s11, 2
    // Predicated region
    $region29: #{lenet5_forward.2} parent=5 // pred_check
      %p175 = pneg %p174
    $region30: #{lenet5_forward.2} parent=5 // pred_check_branch
      %177 = sbr.rel (%p175) target = $region32
    $region31: #{lenet5_forward.2} parent=5 // pred_region
      // Predicated region
      $region33: #{lenet5_forward.2} parent=31 // pred_check
        %p178 = pneg %p31
      $region34: #{lenet5_forward.2} parent=31 // pred_check_branch
        %180 = sbr.rel (%p178) target = $region36
      $region35: #{lenet5_forward.2} parent=31 // pred_region
        %p181 = scmp.lt.s32.totalorder %s11, 1
        %s182 = scalar_select %p181, %s11, 1
        %s183 = smul.addr %s182, 96
        %s184 = smul.addr %s183, 4
        %s185 = scalar_lea.vmem %s0, %s184
      $region36: #{lenet5_forward.2} parent=31 // pred_fallthru
        _
    $region32: #{lenet5_forward.2} parent=5 // pred_fallthru
      _
    %p186 = scmp.le.s32.totalorder 1, %s11
    %p187 = scmp.lt.s32.totalorder %s11, 3
    %p188 = pnand %p186, %p187
    %p189 = pneg %p188
    // Predicated region
    $region37: #{lenet5_forward.2} parent=5 // pred_check
      _
    $region38: #{lenet5_forward.2} parent=5 // pred_check_branch
      %191 = sbr.rel (%p188) target = $region40
    $region39: #{lenet5_forward.2} parent=5 // pred_region
      %s192 = ssub.s32 %s11, 1
      %p193 = scmp.lt.s32.totalorder %s16, 1
      %s194 = scalar_select %p193, %s16, 1
      %s195 = smul.addr %s194, 96
      %s196 = smul.addr %s195, 4
      %s197 = scalar_lea.vmem %s0, %s196
      %p198 = pneg %p37
      %p199 = pneg %p34
      %p200 = pneg %p58
      %p201 = pneg %p55
      %p202 = pneg %p79
      %p203 = pneg %p76
      %p204 = pneg %p100
      %p205 = pneg %p97
      %p206 = pneg %p121
      %p207 = pneg %p118
      %p208 = pneg %p147
      %p209 = pneg %p144
      %p210 = scmp.lt.s32.totalorder %s16, 1
      %s211 = scalar_select %p210, %s16, 1
      %s212 = smul.addr %s211, 4
      %s213 = smul.addr %s212, 4
      %s214 = scalar_lea.vmem %s5, %s213
      %p215 = scmp.lt.s32.totalorder %s16, 1
      %s216 = scalar_select %p215, %s16, 1
      %s217 = smul.addr %s216, 96
      %s218 = smul.addr %s217, 4
      %s219 = scalar_lea.vmem %s0, %s218
      %p220 = scmp.lt.s32.totalorder %s16, 1
      %s221 = scalar_select %p220, %s16, 1
      %s222 = smul.addr %s221, 4
      %s223 = smul.addr %s222, 4
      %s224 = scalar_lea.vmem %s5, %s223
      %v226 = vld [vmem:[%s219] sm:$0xf]
      %v227 = vld [vmem:[%s219 + $0x4] sm:$0xf]
      %v228 = vld [vmem:[%s219 + $0x8] sm:$0xf]
      %v229 = vld [vmem:[%s219 + $0xc] sm:$0xf]
      %v230 = vld [vmem:[%s219 + $0x10] sm:$0xf]
      %v231 = vld [vmem:[%s219 + $0x14] sm:$0xf]
      %v232 = vld [vmem:[%s219 + $0x18] sm:$0xf]
      %v233 = vld [vmem:[%s219 + $0x1c] sm:$0xf]
      %v234 = vld [vmem:[%s219 + $0x20] sm:$0xf]
      %v235 = vld [vmem:[%s219 + $0x24] sm:$0xf]
      %v236 = vld [vmem:[%s219 + $0x28] sm:$0xf]
      %v237 = vld [vmem:[%s219 + $0x2c] sm:$0xf]
      %v238 = vld [vmem:[%s219 + $0x30] sm:$0xf]
      %v239 = vld [vmem:[%s219 + $0x34] sm:$0xf]
      %v240 = vld [vmem:[%s219 + $0x38] sm:$0xf]
      %v241 = vld [vmem:[%s219 + $0x3c] sm:$0xf]
      %v242 = vld [vmem:[%s219 + $0x40] sm:$0xf]
      %v243 = vld [vmem:[%s219 + $0x44] sm:$0xf]
      %v244 = vld [vmem:[%s219 + $0x48] sm:$0xf]
      %v245 = vld [vmem:[%s219 + $0x4c] sm:$0xf]
      %v246 = vld [vmem:[%s219 + $0x50] sm:$0xf]
      %v247 = vld [vmem:[%s219 + $0x54] sm:$0xf]
      %v248 = vld [vmem:[%s219 + $0x58] sm:$0xf]
      %v249 = vld [vmem:[%s219 + $0x5c] sm:$0xf]
      %v250 = vld [vmem:[%s219 + $0x60] sm:$0xf]
      %v251 = vld [vmem:[%s219 + $0x64] sm:$0xf]
      %v252 = vld [vmem:[%s219 + $0x68] sm:$0xf]
      %v253 = vld [vmem:[%s219 + $0x6c] sm:$0xf]
      %v254 = vld [vmem:[%s219 + $0x70] sm:$0xf]
      %v255 = vld [vmem:[%s219 + $0x74] sm:$0xf]
      %v256 = vld [vmem:[%s219 + $0x78] sm:$0xf]
      %v257 = vld [vmem:[%s219 + $0x7c] sm:$0xf]
      %v258 = vld [vmem:[%s219 + $0x80] sm:$0xf]
      %v259 = vld [vmem:[%s219 + $0x84] sm:$0xf]
      %v260 = vld [vmem:[%s219 + $0x88] sm:$0xf]
      %v261 = vld [vmem:[%s219 + $0x8c] sm:$0xf]
      %v262 = vld [vmem:[%s219 + $0x90] sm:$0xf]
      %v263 = vld [vmem:[%s219 + $0x94] sm:$0xf]
      %v264 = vld [vmem:[%s219 + $0x98] sm:$0xf]
      %v265 = vld [vmem:[%s219 + $0x9c] sm:$0xf]
      %v266 = vld [vmem:[%s219 + $0xa0] sm:$0xf]
      %v267 = vld [vmem:[%s219 + $0xa4] sm:$0xf]
      %v268 = vld [vmem:[%s219 + $0xa8] sm:$0xf]
      %v269 = vld [vmem:[%s219 + $0xac] sm:$0xf]
      %v270 = vld [vmem:[%s219 + $0xb0] sm:$0xf]
      %v271 = vld [vmem:[%s219 + $0xb4] sm:$0xf]
      %v272 = vld [vmem:[%s219 + $0xb8] sm:$0xf]
      %v273 = vld [vmem:[%s219 + $0xbc] sm:$0xf]
      %v274 = vld [vmem:[%s219 + $0xc0] sm:$0xf]
      %v275 = vld [vmem:[%s219 + $0xc4] sm:$0xf]
      %v276 = vld [vmem:[%s219 + $0xc8] sm:$0xf]
      %v277 = vld [vmem:[%s219 + $0xcc] sm:$0xf]
      %v278 = vld [vmem:[%s219 + $0xd0] sm:$0xf]
      %v279 = vld [vmem:[%s219 + $0xd4] sm:$0xf]
      %v280 = vld [vmem:[%s219 + $0xd8] sm:$0xf]
      %v281 = vld [vmem:[%s219 + $0xdc] sm:$0xf]
      %v282 = vld [vmem:[%s219 + $0xe0] sm:$0xf]
      %v283 = vld [vmem:[%s219 + $0xe4] sm:$0xf]
      %v284 = vld [vmem:[%s219 + $0xe8] sm:$0xf]
      %v285 = vld [vmem:[%s219 + $0xec] sm:$0xf]
      %v286 = vld [vmem:[%s219 + $0xf0] sm:$0xf]
      %v287 = vld [vmem:[%s219 + $0xf4] sm:$0xf]
      %v288 = vld [vmem:[%s219 + $0xf8] sm:$0xf]
      %v289 = vld [vmem:[%s219 + $0xfc] sm:$0xf]
      %v290 = vld [vmem:[%s219 + $0x100] sm:$0xf]
      %v291 = vld [vmem:[%s219 + $0x104] sm:$0xf]
      %v292 = vld [vmem:[%s219 + $0x108] sm:$0xf]
      %v293 = vld [vmem:[%s219 + $0x10c] sm:$0xf]
      %v294 = vld [vmem:[%s219 + $0x110] sm:$0xf]
      %v295 = vld [vmem:[%s219 + $0x114] sm:$0xf]
      %v296 = vld [vmem:[%s219 + $0x118] sm:$0xf]
      %v297 = vld [vmem:[%s219 + $0x11c] sm:$0xf]
      %v298 = vld [vmem:[%s219 + $0x120] sm:$0xf]
      %v299 = vld [vmem:[%s219 + $0x124] sm:$0xf]
      %v300 = vld [vmem:[%s219 + $0x128] sm:$0xf]
      %v301 = vld [vmem:[%s219 + $0x12c] sm:$0xf]
      %v302 = vld [vmem:[%s219 + $0x130] sm:$0xf]
      %v303 = vld [vmem:[%s219 + $0x134] sm:$0xf]
      %v304 = vld [vmem:[%s219 + $0x138] sm:$0xf]
      %v305 = vld [vmem:[%s219 + $0x13c] sm:$0xf]
      %v306 = vld [vmem:[%s219 + $0x140] sm:$0xf]
      %v307 = vld [vmem:[%s219 + $0x144] sm:$0xf]
      %v308 = vld [vmem:[%s219 + $0x148] sm:$0xf]
      %v309 = vld [vmem:[%s219 + $0x14c] sm:$0xf]
      %v310 = vld [vmem:[%s219 + $0x150] sm:$0xf]
      %v311 = vld [vmem:[%s219 + $0x154] sm:$0xf]
      %v312 = vld [vmem:[%s219 + $0x158] sm:$0xf]
      %v313 = vld [vmem:[%s219 + $0x15c] sm:$0xf]
      %v314 = vld [vmem:[%s219 + $0x160] sm:$0xf]
      %v315 = vld [vmem:[%s219 + $0x164] sm:$0xf]
      %v316 = vld [vmem:[%s219 + $0x168] sm:$0xf]
      %v317 = vld [vmem:[%s219 + $0x16c] sm:$0xf]
      %v318 = vld [vmem:[%s219 + $0x170] sm:$0xf]
      %v319 = vld [vmem:[%s219 + $0x174] sm:$0xf]
      %v320 = vld [vmem:[%s219 + $0x178] sm:$0xf]
      %v321 = vld [vmem:[%s219 + $0x17c] sm:$0xf]
      %v322 = vld [vmem:[%s1] sm:$0xf]
      %v323 = vld [vmem:[%s1 + $0x4] sm:$0xf]
      %v324 = vld [vmem:[%s1 + $0x8] sm:$0xf]
      %v325 = vld [vmem:[%s1 + $0xc] sm:$0xf]
      %v326 = vld [vmem:[%s2] sm:$0x1]
      %v328 = vlaneseq
      %v329 = vshrl.u32 %v328, 7
      %v330 = vsub.s32 0, %v329
      %v331 = vrot.slane %v326, %v330
      %v429 = vunpack.c.l.b16 %v226
      %v430 = vunpack.c.l.b16 %v227
      %v431 = vunpack.c.l.b16 %v228
      %v432 = vunpack.c.l.b16 %v229
      %v433 = vunpack.c.l.b16 %v230
      %v434 = vunpack.c.l.b16 %v231
      %v435 = vunpack.c.l.b16 %v232
      %v436 = vunpack.c.l.b16 %v233
      %v437 = vunpack.c.l.b16 %v234
      %v438 = vunpack.c.l.b16 %v235
      %v439 = vunpack.c.l.b16 %v236
      %v440 = vunpack.c.l.b16 %v237
      %v441 = vunpack.c.l.b16 %v238
      %v442 = vunpack.c.l.b16 %v239
      %v443 = vunpack.c.l.b16 %v240
      %v444 = vunpack.c.l.b16 %v241
      %v445 = vunpack.c.l.b16 %v242
      %v446 = vunpack.c.l.b16 %v243
      %v447 = vunpack.c.l.b16 %v244
      %v448 = vunpack.c.l.b16 %v245
      %v449 = vunpack.c.l.b16 %v246
      %v450 = vunpack.c.l.b16 %v247
      %v451 = vunpack.c.l.b16 %v248
      %v452 = vunpack.c.l.b16 %v249
      %v453 = vunpack.c.l.b16 %v250
      %v454 = vunpack.c.l.b16 %v251
      %v455 = vunpack.c.l.b16 %v252
      %v456 = vunpack.c.l.b16 %v253
      %v457 = vunpack.c.l.b16 %v254
      %v458 = vunpack.c.l.b16 %v255
      %v459 = vunpack.c.l.b16 %v256
      %v460 = vunpack.c.l.b16 %v257
      %v461 = vunpack.c.l.b16 %v258
      %v462 = vunpack.c.l.b16 %v259
      %v463 = vunpack.c.l.b16 %v260
      %v464 = vunpack.c.l.b16 %v261
      %v465 = vunpack.c.l.b16 %v262
      %v466 = vunpack.c.l.b16 %v263
      %v467 = vunpack.c.l.b16 %v264
      %v468 = vunpack.c.l.b16 %v265
      %v469 = vunpack.c.l.b16 %v266
      %v470 = vunpack.c.l.b16 %v267
      %v471 = vunpack.c.l.b16 %v268
      %v472 = vunpack.c.l.b16 %v269
      %v473 = vunpack.c.l.b16 %v270
      %v474 = vunpack.c.l.b16 %v271
      %v475 = vunpack.c.l.b16 %v272
      %v476 = vunpack.c.l.b16 %v273
      %v477 = vunpack.c.l.b16 %v274
      %v478 = vunpack.c.l.b16 %v275
      %v479 = vunpack.c.l.b16 %v276
      %v480 = vunpack.c.l.b16 %v277
      %v481 = vunpack.c.l.b16 %v278
      %v482 = vunpack.c.l.b16 %v279
      %v483 = vunpack.c.l.b16 %v280
      %v484 = vunpack.c.l.b16 %v281
      %v485 = vunpack.c.l.b16 %v282
      %v486 = vunpack.c.l.b16 %v283
      %v487 = vunpack.c.l.b16 %v284
      %v488 = vunpack.c.l.b16 %v285
      %v489 = vunpack.c.l.b16 %v286
      %v490 = vunpack.c.l.b16 %v287
      %v491 = vunpack.c.l.b16 %v288
      %v492 = vunpack.c.l.b16 %v289
      %v493 = vunpack.c.l.b16 %v290
      %v494 = vunpack.c.l.b16 %v291
      %v495 = vunpack.c.l.b16 %v292
      %v496 = vunpack.c.l.b16 %v293
      %v497 = vunpack.c.l.b16 %v294
      %v498 = vunpack.c.l.b16 %v295
      %v499 = vunpack.c.l.b16 %v296
      %v500 = vunpack.c.l.b16 %v297
      %v501 = vunpack.c.l.b16 %v298
      %v502 = vunpack.c.l.b16 %v299
      %v503 = vunpack.c.l.b16 %v300
      %v504 = vunpack.c.l.b16 %v301
      %v505 = vunpack.c.l.b16 %v302
      %v506 = vunpack.c.l.b16 %v303
      %v507 = vunpack.c.l.b16 %v304
      %v508 = vunpack.c.l.b16 %v305
      %v509 = vunpack.c.l.b16 %v306
      %v510 = vunpack.c.l.b16 %v307
      %v511 = vunpack.c.l.b16 %v308
      %v512 = vunpack.c.l.b16 %v309
      %v513 = vunpack.c.l.b16 %v310
      %v514 = vunpack.c.l.b16 %v311
      %v515 = vunpack.c.l.b16 %v312
      %v516 = vunpack.c.l.b16 %v313
      %v517 = vunpack.c.l.b16 %v314
      %v518 = vunpack.c.l.b16 %v315
      %v519 = vunpack.c.l.b16 %v316
      %v520 = vunpack.c.l.b16 %v317
      %v521 = vunpack.c.l.b16 %v318
      %v522 = vunpack.c.l.b16 %v319
      %v523 = vunpack.c.l.b16 %v320
      %v524 = vunpack.c.l.b16 %v321
      %v525 = vpack.c.b16 %v430, %v429
      %v526 = vpack.c.b16 %v432, %v431
      %v527 = vpack.c.b16 %v434, %v433
      %v528 = vpack.c.b16 %v436, %v435
      %v529 = vpack.c.b16 %v438, %v437
      %v530 = vpack.c.b16 %v440, %v439
      %v531 = vpack.c.b16 %v442, %v441
      %v532 = vpack.c.b16 %v444, %v443
      %v533 = vpack.c.b16 %v446, %v445
      %v534 = vpack.c.b16 %v448, %v447
      %v535 = vpack.c.b16 %v450, %v449
      %v536 = vpack.c.b16 %v452, %v451
      %v537 = vpack.c.b16 %v454, %v453
      %v538 = vpack.c.b16 %v456, %v455
      %v539 = vpack.c.b16 %v458, %v457
      %v540 = vpack.c.b16 %v460, %v459
      %v541 = vpack.c.b16 %v462, %v461
      %v542 = vpack.c.b16 %v464, %v463
      %v543 = vpack.c.b16 %v466, %v465
      %v544 = vpack.c.b16 %v468, %v467
      %v545 = vpack.c.b16 %v470, %v469
      %v546 = vpack.c.b16 %v472, %v471
      %v547 = vpack.c.b16 %v474, %v473
      %v548 = vpack.c.b16 %v476, %v475
      %v549 = vpack.c.b16 %v478, %v477
      %v550 = vpack.c.b16 %v480, %v479
      %v551 = vpack.c.b16 %v482, %v481
      %v552 = vpack.c.b16 %v484, %v483
      %v553 = vpack.c.b16 %v486, %v485
      %v554 = vpack.c.b16 %v488, %v487
      %v555 = vpack.c.b16 %v490, %v489
      %v556 = vpack.c.b16 %v492, %v491
      %v557 = vpack.c.b16 %v494, %v493
      %v558 = vpack.c.b16 %v496, %v495
      %v559 = vpack.c.b16 %v498, %v497
      %v560 = vpack.c.b16 %v500, %v499
      %v561 = vpack.c.b16 %v502, %v501
      %v562 = vpack.c.b16 %v504, %v503
      %v563 = vpack.c.b16 %v506, %v505
      %v564 = vpack.c.b16 %v508, %v507
      %v565 = vpack.c.b16 %v510, %v509
      %v566 = vpack.c.b16 %v512, %v511
      %v567 = vpack.c.b16 %v514, %v513
      %v568 = vpack.c.b16 %v516, %v515
      %v569 = vpack.c.b16 %v518, %v517
      %v570 = vpack.c.b16 %v520, %v519
      %v571 = vpack.c.b16 %v522, %v521
      %v572 = vpack.c.b16 %v524, %v523
      %v577 = vunpack.c.l.b16 %v322
      %v578 = vunpack.c.l.b16 %v323
      %v579 = vunpack.c.l.b16 %v324
      %v580 = vunpack.c.l.b16 %v325
      %v581 = vpack.c.b16 %v578, %v577
      %v582 = vpack.c.b16 %v580, %v579
      %vm585 = vcmask 261120
      %v587 = vsel %vm585, %v525, 0
      %v590 = vsel %vm585, %v526, 0
      %v593 = vsel %vm585, %v527, 0
      %v596 = vsel %vm585, %v528, 0
      %v599 = vsel %vm585, %v529, 0
      %v602 = vsel %vm585, %v530, 0
      %v605 = vsel %vm585, %v531, 0
      %v608 = vsel %vm585, %v532, 0
      %v611 = vsel %vm585, %v533, 0
      %v614 = vsel %vm585, %v534, 0
      %v617 = vsel %vm585, %v535, 0
      %v620 = vsel %vm585, %v536, 0
      %v623 = vsel %vm585, %v537, 0
      %v626 = vsel %vm585, %v538, 0
      %v629 = vsel %vm585, %v539, 0
      %v632 = vsel %vm585, %v540, 0
      %v635 = vsel %vm585, %v541, 0
      %v638 = vsel %vm585, %v542, 0
      %v641 = vsel %vm585, %v543, 0
      %v644 = vsel %vm585, %v544, 0
      %v647 = vsel %vm585, %v545, 0
      %v650 = vsel %vm585, %v546, 0
      %v653 = vsel %vm585, %v547, 0
      %v656 = vsel %vm585, %v548, 0
      %v659 = vsel %vm585, %v549, 0
      %v662 = vsel %vm585, %v550, 0
      %v665 = vsel %vm585, %v551, 0
      %v668 = vsel %vm585, %v552, 0
      %v671 = vsel %vm585, %v553, 0
      %v674 = vsel %vm585, %v554, 0
      %v677 = vsel %vm585, %v555, 0
      %v680 = vsel %vm585, %v556, 0
      %v683 = vsel %vm585, %v557, 0
      %v686 = vsel %vm585, %v558, 0
      %v689 = vsel %vm585, %v559, 0
      %v692 = vsel %vm585, %v560, 0
      %v695 = vsel %vm585, %v561, 0
      %v698 = vsel %vm585, %v562, 0
      %v701 = vsel %vm585, %v563, 0
      %v704 = vsel %vm585, %v564, 0
      %v707 = vsel %vm585, %v565, 0
      %v710 = vsel %vm585, %v566, 0
      %v713 = vsel %vm585, %v567, 0
      %v716 = vsel %vm585, %v568, 0
      %v719 = vsel %vm585, %v569, 0
      %v722 = vsel %vm585, %v570, 0
      %v725 = vsel %vm585, %v571, 0
      %v728 = vsel %vm585, %v572, 0
      %730 = vmatprep.subr.bf16.mxu0 0
      %731 = vmatpush1.bf16.msra.mxu0 0
      %732 = vmatprep.subr.bf16.mxu0 0
      %733 = vmatpush1.bf16.msra.mxu0 0
      %734 = vmatprep.subr.bf16.mxu0 0
      %735 = vmatpush1.bf16.msra.mxu0 0
      %736 = vmatprep.subr.bf16.mxu0 0
      %737 = vmatpush1.bf16.msra.mxu0 0
      %738 = vmatprep.subr.bf16.mxu0 0
      %739 = vmatpush1.bf16.msra.mxu0 0
      %740 = vmatprep.subr.bf16.mxu0 0
      %741 = vmatpush1.bf16.msra.mxu0 0
      %742 = vmatprep.subr.bf16.mxu0 0
      %743 = vmatpush1.bf16.msra.mxu0 %v582
      %744 = vmatprep.subr.bf16.mxu0 0
      %745 = vmatpush1.bf16.msra.mxu0 %v581
      %746 = vmatprep.subr.bf16.mxu0 0
      %747 = vmatpush2.bf16.msra.mxu0 0
      %748 = vmatprep.subr.bf16.mxu0 0
      %749 = vmatpush2.bf16.msra.mxu0 0
      %750 = vmatprep.subr.bf16.mxu0 0
      %751 = vmatpush2.bf16.msra.mxu0 0
      %752 = vmatprep.subr.bf16.mxu0 0
      %753 = vmatpush2.bf16.msra.mxu0 0
      %754 = vmatprep.subr.bf16.mxu0 0
      %755 = vmatpush2.bf16.msra.mxu0 0
      %756 = vmatprep.subr.bf16.mxu0 0
      %757 = vmatpush2.bf16.msra.mxu0 0
      %758 = vmatprep.subr.bf16.mxu0 0
      %759 = vmatpush2.bf16.msra.mxu0 0
      %760 = vmatprep.subr.bf16.mxu0 0
      %761 = vmatpush2.bf16.msra.mxu0 0
      %762 = vmatprep.mubr.bf16.mxu0 0
      %763 = vmatmul.mubr.bf16.gmra.mxu0 %v587
      %v764 = vpop.f32.mrf.mxu0
      %v765 = vadd.f32 %v331, %v764
      %v766 = vpop.f32.mrf.mxu0
      %v767 = vpop.f32.mrf.mxu0
      %v768 = vadd.f32 %v331, %v767
      %v769 = vpop.f32.mrf.mxu0
      %770 = vmatprep.mubr.bf16.mxu0 0
      %771 = vmatmul.mubr.bf16.gmra.mxu0 %v590
      %v772 = vpop.f32.mrf.mxu0
      %v773 = vadd.f32 %v331, %v772
      %v774 = vpop.f32.mrf.mxu0
      %v775 = vpop.f32.mrf.mxu0
      %v776 = vadd.f32 %v331, %v775
      %v777 = vpop.f32.mrf.mxu0
      %778 = vmatprep.mubr.bf16.mxu0 0
      %779 = vmatmul.mubr.bf16.gmra.mxu0 %v593
      %v780 = vpop.f32.mrf.mxu0
      %v781 = vadd.f32 %v331, %v780
      %v782 = vpop.f32.mrf.mxu0
      %v783 = vpop.f32.mrf.mxu0
      %v784 = vadd.f32 %v331, %v783
      %v785 = vpop.f32.mrf.mxu0
      %786 = vmatprep.mubr.bf16.mxu0 0
      %787 = vmatmul.mubr.bf16.gmra.mxu0 %v596
      %v788 = vpop.f32.mrf.mxu0
      %v789 = vadd.f32 %v331, %v788
      %v790 = vpop.f32.mrf.mxu0
      %v791 = vpop.f32.mrf.mxu0
      %v792 = vadd.f32 %v331, %v791
      %v793 = vpop.f32.mrf.mxu0
      %794 = vmatprep.mubr.bf16.mxu0 0
      %795 = vmatmul.mubr.bf16.gmra.mxu0 %v599
      %v796 = vpop.f32.mrf.mxu0
      %v797 = vadd.f32 %v331, %v796
      %v798 = vpop.f32.mrf.mxu0
      %v799 = vpop.f32.mrf.mxu0
      %v800 = vadd.f32 %v331, %v799
      %v801 = vpop.f32.mrf.mxu0
      %802 = vmatprep.mubr.bf16.mxu0 0
      %803 = vmatmul.mubr.bf16.gmra.mxu0 %v602
      %v804 = vpop.f32.mrf.mxu0
      %v805 = vadd.f32 %v331, %v804
      %v806 = vpop.f32.mrf.mxu0
      %v807 = vpop.f32.mrf.mxu0
      %v808 = vadd.f32 %v331, %v807
      %v809 = vpop.f32.mrf.mxu0
      %810 = vmatprep.mubr.bf16.mxu0 0
      %811 = vmatmul.mubr.bf16.gmra.mxu0 %v605
      %v812 = vpop.f32.mrf.mxu0
      %v813 = vadd.f32 %v331, %v812
      %v814 = vpop.f32.mrf.mxu0
      %v815 = vpop.f32.mrf.mxu0
      %v816 = vadd.f32 %v331, %v815
      %v817 = vpop.f32.mrf.mxu0
      %818 = vmatprep.mubr.bf16.mxu0 0
      %819 = vmatmul.mubr.bf16.gmra.mxu0 %v608
      %v820 = vpop.f32.mrf.mxu0
      %v821 = vadd.f32 %v331, %v820
      %v822 = vpop.f32.mrf.mxu0
      %v823 = vpop.f32.mrf.mxu0
      %v824 = vadd.f32 %v331, %v823
      %v825 = vpop.f32.mrf.mxu0
      %826 = vmatprep.mubr.bf16.mxu0 0
      %827 = vmatmul.mubr.bf16.gmra.mxu0 %v611
      %v828 = vpop.f32.mrf.mxu0
      %v829 = vadd.f32 %v331, %v828
      %v830 = vpop.f32.mrf.mxu0
      %v831 = vpop.f32.mrf.mxu0
      %v832 = vadd.f32 %v331, %v831
      %v833 = vpop.f32.mrf.mxu0
      %834 = vmatprep.mubr.bf16.mxu0 0
      %835 = vmatmul.mubr.bf16.gmra.mxu0 %v614
      %v836 = vpop.f32.mrf.mxu0
      %v837 = vadd.f32 %v331, %v836
      %v838 = vpop.f32.mrf.mxu0
      %v839 = vpop.f32.mrf.mxu0
      %v840 = vadd.f32 %v331, %v839
      %v841 = vpop.f32.mrf.mxu0
      %842 = vmatprep.mubr.bf16.mxu0 0
      %843 = vmatmul.mubr.bf16.gmra.mxu0 %v617
      %v844 = vpop.f32.mrf.mxu0
      %v845 = vadd.f32 %v331, %v844
      %v846 = vpop.f32.mrf.mxu0
      %v847 = vpop.f32.mrf.mxu0
      %v848 = vadd.f32 %v331, %v847
      %v849 = vpop.f32.mrf.mxu0
      %850 = vmatprep.mubr.bf16.mxu0 0
      %851 = vmatmul.mubr.bf16.gmra.mxu0 %v620
      %v852 = vpop.f32.mrf.mxu0
      %v853 = vadd.f32 %v331, %v852
      %v854 = vpop.f32.mrf.mxu0
      %v855 = vpop.f32.mrf.mxu0
      %v856 = vadd.f32 %v331, %v855
      %v857 = vpop.f32.mrf.mxu0
      %858 = vmatprep.mubr.bf16.mxu0 0
      %859 = vmatmul.mubr.bf16.gmra.mxu0 %v623
      %v860 = vpop.f32.mrf.mxu0
      %v861 = vadd.f32 %v331, %v860
      %v862 = vpop.f32.mrf.mxu0
      %v863 = vpop.f32.mrf.mxu0
      %v864 = vadd.f32 %v331, %v863
      %v865 = vpop.f32.mrf.mxu0
      %866 = vmatprep.mubr.bf16.mxu0 0
      %867 = vmatmul.mubr.bf16.gmra.mxu0 %v626
      %v868 = vpop.f32.mrf.mxu0
      %v869 = vadd.f32 %v331, %v868
      %v870 = vpop.f32.mrf.mxu0
      %v871 = vpop.f32.mrf.mxu0
      %v872 = vadd.f32 %v331, %v871
      %v873 = vpop.f32.mrf.mxu0
      %874 = vmatprep.mubr.bf16.mxu0 0
      %875 = vmatmul.mubr.bf16.gmra.mxu0 %v629
      %v876 = vpop.f32.mrf.mxu0
      %v877 = vadd.f32 %v331, %v876
      %v878 = vpop.f32.mrf.mxu0
      %v879 = vpop.f32.mrf.mxu0
      %v880 = vadd.f32 %v331, %v879
      %v881 = vpop.f32.mrf.mxu0
      %882 = vmatprep.mubr.bf16.mxu0 0
      %883 = vmatmul.mubr.bf16.gmra.mxu0 %v632
      %v884 = vpop.f32.mrf.mxu0
      %v885 = vadd.f32 %v331, %v884
      %v886 = vpop.f32.mrf.mxu0
      %v887 = vpop.f32.mrf.mxu0
      %v888 = vadd.f32 %v331, %v887
      %v889 = vpop.f32.mrf.mxu0
      %890 = vmatprep.mubr.bf16.mxu0 0
      %891 = vmatmul.mubr.bf16.gmra.mxu0 %v635
      %v892 = vpop.f32.mrf.mxu0
      %v893 = vadd.f32 %v331, %v892
      %v894 = vpop.f32.mrf.mxu0
      %v895 = vpop.f32.mrf.mxu0
      %v896 = vadd.f32 %v331, %v895
      %v897 = vpop.f32.mrf.mxu0
      %898 = vmatprep.mubr.bf16.mxu0 0
      %899 = vmatmul.mubr.bf16.gmra.mxu0 %v638
      %v900 = vpop.f32.mrf.mxu0
      %v901 = vadd.f32 %v331, %v900
      %v902 = vpop.f32.mrf.mxu0
      %v903 = vpop.f32.mrf.mxu0
      %v904 = vadd.f32 %v331, %v903
      %v905 = vpop.f32.mrf.mxu0
      %906 = vmatprep.mubr.bf16.mxu0 0
      %907 = vmatmul.mubr.bf16.gmra.mxu0 %v641
      %v908 = vpop.f32.mrf.mxu0
      %v909 = vadd.f32 %v331, %v908
      %v910 = vpop.f32.mrf.mxu0
      %v911 = vpop.f32.mrf.mxu0
      %v912 = vadd.f32 %v331, %v911
      %v913 = vpop.f32.mrf.mxu0
      %914 = vmatprep.mubr.bf16.mxu0 0
      %915 = vmatmul.mubr.bf16.gmra.mxu0 %v644
      %v916 = vpop.f32.mrf.mxu0
      %v917 = vadd.f32 %v331, %v916
      %v918 = vpop.f32.mrf.mxu0
      %v919 = vpop.f32.mrf.mxu0
      %v920 = vadd.f32 %v331, %v919
      %v921 = vpop.f32.mrf.mxu0
      %922 = vmatprep.mubr.bf16.mxu0 0
      %923 = vmatmul.mubr.bf16.gmra.mxu0 %v647
      %v924 = vpop.f32.mrf.mxu0
      %v925 = vadd.f32 %v331, %v924
      %v926 = vpop.f32.mrf.mxu0
      %v927 = vpop.f32.mrf.mxu0
      %v928 = vadd.f32 %v331, %v927
      %v929 = vpop.f32.mrf.mxu0
      %930 = vmatprep.mubr.bf16.mxu0 0
      %931 = vmatmul.mubr.bf16.gmra.mxu0 %v650
      %v932 = vpop.f32.mrf.mxu0
      %v933 = vadd.f32 %v331, %v932
      %v934 = vpop.f32.mrf.mxu0
      %v935 = vpop.f32.mrf.mxu0
      %v936 = vadd.f32 %v331, %v935
      %v937 = vpop.f32.mrf.mxu0
      %938 = vmatprep.mubr.bf16.mxu0 0
      %939 = vmatmul.mubr.bf16.gmra.mxu0 %v653
      %v940 = vpop.f32.mrf.mxu0
      %v941 = vadd.f32 %v331, %v940
      %v942 = vpop.f32.mrf.mxu0
      %v943 = vpop.f32.mrf.mxu0
      %v944 = vadd.f32 %v331, %v943
      %v945 = vpop.f32.mrf.mxu0
      %946 = vmatprep.mubr.bf16.mxu0 0
      %947 = vmatmul.mubr.bf16.gmra.mxu0 %v656
      %v948 = vpop.f32.mrf.mxu0
      %v949 = vadd.f32 %v331, %v948
      %v950 = vpop.f32.mrf.mxu0
      %v951 = vpop.f32.mrf.mxu0
      %v952 = vadd.f32 %v331, %v951
      %v953 = vpop.f32.mrf.mxu0
      %954 = vmatprep.mubr.bf16.mxu0 0
      %955 = vmatmul.mubr.bf16.gmra.mxu0 %v659
      %v956 = vpop.f32.mrf.mxu0
      %v957 = vadd.f32 %v331, %v956
      %v958 = vpop.f32.mrf.mxu0
      %v959 = vpop.f32.mrf.mxu0
      %v960 = vadd.f32 %v331, %v959
      %v961 = vpop.f32.mrf.mxu0
      %962 = vmatprep.mubr.bf16.mxu0 0
      %963 = vmatmul.mubr.bf16.gmra.mxu0 %v662
      %v964 = vpop.f32.mrf.mxu0
      %v965 = vadd.f32 %v331, %v964
      %v966 = vpop.f32.mrf.mxu0
      %v967 = vpop.f32.mrf.mxu0
      %v968 = vadd.f32 %v331, %v967
      %v969 = vpop.f32.mrf.mxu0
      %970 = vmatprep.mubr.bf16.mxu0 0
      %971 = vmatmul.mubr.bf16.gmra.mxu0 %v665
      %v972 = vpop.f32.mrf.mxu0
      %v973 = vadd.f32 %v331, %v972
      %v974 = vpop.f32.mrf.mxu0
      %v975 = vpop.f32.mrf.mxu0
      %v976 = vadd.f32 %v331, %v975
      %v977 = vpop.f32.mrf.mxu0
      %978 = vmatprep.mubr.bf16.mxu0 0
      %979 = vmatmul.mubr.bf16.gmra.mxu0 %v668
      %v980 = vpop.f32.mrf.mxu0
      %v981 = vadd.f32 %v331, %v980
      %v982 = vpop.f32.mrf.mxu0
      %v983 = vpop.f32.mrf.mxu0
      %v984 = vadd.f32 %v331, %v983
      %v985 = vpop.f32.mrf.mxu0
      %986 = vmatprep.mubr.bf16.mxu0 0
      %987 = vmatmul.mubr.bf16.gmra.mxu0 %v671
      %v988 = vpop.f32.mrf.mxu0
      %v989 = vadd.f32 %v331, %v988
      %v990 = vpop.f32.mrf.mxu0
      %v991 = vpop.f32.mrf.mxu0
      %v992 = vadd.f32 %v331, %v991
      %v993 = vpop.f32.mrf.mxu0
      %994 = vmatprep.mubr.bf16.mxu0 0
      %995 = vmatmul.mubr.bf16.gmra.mxu0 %v674
      %v996 = vpop.f32.mrf.mxu0
      %v997 = vadd.f32 %v331, %v996
      %v998 = vpop.f32.mrf.mxu0
      %v999 = vpop.f32.mrf.mxu0
      %v1000 = vadd.f32 %v331, %v999
      %v1001 = vpop.f32.mrf.mxu0
      %1002 = vmatprep.mubr.bf16.mxu0 0
      %1003 = vmatmul.mubr.bf16.gmra.mxu0 %v677
      %v1004 = vpop.f32.mrf.mxu0
      %v1005 = vadd.f32 %v331, %v1004
      %v1006 = vpop.f32.mrf.mxu0
      %v1007 = vpop.f32.mrf.mxu0
      %v1008 = vadd.f32 %v331, %v1007
      %v1009 = vpop.f32.mrf.mxu0
      %1010 = vmatprep.mubr.bf16.mxu0 0
      %1011 = vmatmul.mubr.bf16.gmra.mxu0 %v680
      %v1012 = vpop.f32.mrf.mxu0
      %v1013 = vadd.f32 %v331, %v1012
      %v1014 = vpop.f32.mrf.mxu0
      %v1015 = vpop.f32.mrf.mxu0
      %v1016 = vadd.f32 %v331, %v1015
      %v1017 = vpop.f32.mrf.mxu0
      %1018 = vmatprep.mubr.bf16.mxu0 0
      %1019 = vmatmul.mubr.bf16.gmra.mxu0 %v683
      %v1020 = vpop.f32.mrf.mxu0
      %v1021 = vadd.f32 %v331, %v1020
      %v1022 = vpop.f32.mrf.mxu0
      %v1023 = vpop.f32.mrf.mxu0
      %v1024 = vadd.f32 %v331, %v1023
      %v1025 = vpop.f32.mrf.mxu0
      %1026 = vmatprep.mubr.bf16.mxu0 0
      %1027 = vmatmul.mubr.bf16.gmra.mxu0 %v686
      %v1028 = vpop.f32.mrf.mxu0
      %v1029 = vadd.f32 %v331, %v1028
      %v1030 = vpop.f32.mrf.mxu0
      %v1031 = vpop.f32.mrf.mxu0
      %v1032 = vadd.f32 %v331, %v1031
      %v1033 = vpop.f32.mrf.mxu0
      %1034 = vmatprep.mubr.bf16.mxu0 0
      %1035 = vmatmul.mubr.bf16.gmra.mxu0 %v689
      %v1036 = vpop.f32.mrf.mxu0
      %v1037 = vadd.f32 %v331, %v1036
      %v1038 = vpop.f32.mrf.mxu0
      %v1039 = vpop.f32.mrf.mxu0
      %v1040 = vadd.f32 %v331, %v1039
      %v1041 = vpop.f32.mrf.mxu0
      %1042 = vmatprep.mubr.bf16.mxu0 0
      %1043 = vmatmul.mubr.bf16.gmra.mxu0 %v692
      %v1044 = vpop.f32.mrf.mxu0
      %v1045 = vadd.f32 %v331, %v1044
      %v1046 = vpop.f32.mrf.mxu0
      %v1047 = vpop.f32.mrf.mxu0
      %v1048 = vadd.f32 %v331, %v1047
      %v1049 = vpop.f32.mrf.mxu0
      %1050 = vmatprep.mubr.bf16.mxu0 0
      %1051 = vmatmul.mubr.bf16.gmra.mxu0 %v695
      %v1052 = vpop.f32.mrf.mxu0
      %v1053 = vadd.f32 %v331, %v1052
      %v1054 = vpop.f32.mrf.mxu0
      %v1055 = vpop.f32.mrf.mxu0
      %v1056 = vadd.f32 %v331, %v1055
      %v1057 = vpop.f32.mrf.mxu0
      %1058 = vmatprep.mubr.bf16.mxu0 0
      %1059 = vmatmul.mubr.bf16.gmra.mxu0 %v698
      %v1060 = vpop.f32.mrf.mxu0
      %v1061 = vadd.f32 %v331, %v1060
      %v1062 = vpop.f32.mrf.mxu0
      %v1063 = vpop.f32.mrf.mxu0
      %v1064 = vadd.f32 %v331, %v1063
      %v1065 = vpop.f32.mrf.mxu0
      %1066 = vmatprep.mubr.bf16.mxu0 0
      %1067 = vmatmul.mubr.bf16.gmra.mxu0 %v701
      %v1068 = vpop.f32.mrf.mxu0
      %v1069 = vadd.f32 %v331, %v1068
      %v1070 = vpop.f32.mrf.mxu0
      %v1071 = vpop.f32.mrf.mxu0
      %v1072 = vadd.f32 %v331, %v1071
      %v1073 = vpop.f32.mrf.mxu0
      %1074 = vmatprep.mubr.bf16.mxu0 0
      %1075 = vmatmul.mubr.bf16.gmra.mxu0 %v704
      %v1076 = vpop.f32.mrf.mxu0
      %v1077 = vadd.f32 %v331, %v1076
      %v1078 = vpop.f32.mrf.mxu0
      %v1079 = vpop.f32.mrf.mxu0
      %v1080 = vadd.f32 %v331, %v1079
      %v1081 = vpop.f32.mrf.mxu0
      %1082 = vmatprep.mubr.bf16.mxu0 0
      %1083 = vmatmul.mubr.bf16.gmra.mxu0 %v707
      %v1084 = vpop.f32.mrf.mxu0
      %v1085 = vadd.f32 %v331, %v1084
      %v1086 = vpop.f32.mrf.mxu0
      %v1087 = vpop.f32.mrf.mxu0
      %v1088 = vadd.f32 %v331, %v1087
      %v1089 = vpop.f32.mrf.mxu0
      %1090 = vmatprep.mubr.bf16.mxu0 0
      %1091 = vmatmul.mubr.bf16.gmra.mxu0 %v710
      %v1092 = vpop.f32.mrf.mxu0
      %v1093 = vadd.f32 %v331, %v1092
      %v1094 = vpop.f32.mrf.mxu0
      %v1095 = vpop.f32.mrf.mxu0
      %v1096 = vadd.f32 %v331, %v1095
      %v1097 = vpop.f32.mrf.mxu0
      %1098 = vmatprep.mubr.bf16.mxu0 0
      %1099 = vmatmul.mubr.bf16.gmra.mxu0 %v713
      %v1100 = vpop.f32.mrf.mxu0
      %v1101 = vadd.f32 %v331, %v1100
      %v1102 = vpop.f32.mrf.mxu0
      %v1103 = vpop.f32.mrf.mxu0
      %v1104 = vadd.f32 %v331, %v1103
      %v1105 = vpop.f32.mrf.mxu0
      %1106 = vmatprep.mubr.bf16.mxu0 0
      %1107 = vmatmul.mubr.bf16.gmra.mxu0 %v716
      %v1108 = vpop.f32.mrf.mxu0
      %v1109 = vadd.f32 %v331, %v1108
      %v1110 = vpop.f32.mrf.mxu0
      %v1111 = vpop.f32.mrf.mxu0
      %v1112 = vadd.f32 %v331, %v1111
      %v1113 = vpop.f32.mrf.mxu0
      %1114 = vmatprep.mubr.bf16.mxu0 0
      %1115 = vmatmul.mubr.bf16.gmra.mxu0 %v719
      %v1116 = vpop.f32.mrf.mxu0
      %v1117 = vadd.f32 %v331, %v1116
      %v1118 = vpop.f32.mrf.mxu0
      %v1119 = vpop.f32.mrf.mxu0
      %v1120 = vadd.f32 %v331, %v1119
      %v1121 = vpop.f32.mrf.mxu0
      %1122 = vmatprep.mubr.bf16.mxu0 0
      %1123 = vmatmul.mubr.bf16.gmra.mxu0 %v722
      %v1124 = vpop.f32.mrf.mxu0
      %v1125 = vadd.f32 %v331, %v1124
      %v1126 = vpop.f32.mrf.mxu0
      %v1127 = vpop.f32.mrf.mxu0
      %v1128 = vadd.f32 %v331, %v1127
      %v1129 = vpop.f32.mrf.mxu0
      %1130 = vmatprep.mubr.bf16.mxu0 0
      %1131 = vmatmul.mubr.bf16.gmra.mxu0 %v725
      %v1132 = vpop.f32.mrf.mxu0
      %v1133 = vadd.f32 %v331, %v1132
      %v1134 = vpop.f32.mrf.mxu0
      %v1135 = vpop.f32.mrf.mxu0
      %v1136 = vadd.f32 %v331, %v1135
      %v1137 = vpop.f32.mrf.mxu0
      %1138 = vmatprep.mubr.bf16.mxu0 0
      %1139 = vmatmul.mubr.bf16.gmra.mxu0 %v728
      %v1140 = vpop.f32.mrf.mxu0
      %v1141 = vadd.f32 %v331, %v1140
      %v1142 = vpop.f32.mrf.mxu0
      %v1143 = vpop.f32.mrf.mxu0
      %v1144 = vadd.f32 %v331, %v1143
      %v1145 = vpop.f32.mrf.mxu0
      %1146 = vdwg.mxu0
      %v1147 = vmax.f32 %v765, %v861
      %v1148 = vmax.f32 %v1147, %v957
      %v1149 = vmax.f32 %v1148, %v1053
      %v1150 = vmax.f32 %v768, %v864
      %v1151 = vmax.f32 %v1150, %v960
      %v1152 = vmax.f32 %v1151, %v1056
      %v1153 = vmax.f32 %v773, %v869
      %v1154 = vmax.f32 %v1153, %v965
      %v1155 = vmax.f32 %v1154, %v1061
      %v1156 = vmax.f32 %v776, %v872
      %v1157 = vmax.f32 %v1156, %v968
      %v1158 = vmax.f32 %v1157, %v1064
      %v1159 = vmax.f32 %v781, %v877
      %v1160 = vmax.f32 %v1159, %v973
      %v1161 = vmax.f32 %v1160, %v1069
      %v1162 = vmax.f32 %v784, %v880
      %v1163 = vmax.f32 %v1162, %v976
      %v1164 = vmax.f32 %v1163, %v1072
      %v1165 = vmax.f32 %v789, %v885
      %v1166 = vmax.f32 %v1165, %v981
      %v1167 = vmax.f32 %v1166, %v1077
      %v1168 = vmax.f32 %v792, %v888
      %v1169 = vmax.f32 %v1168, %v984
      %v1170 = vmax.f32 %v1169, %v1080
      %v1171 = vmax.f32 %v797, %v893
      %v1172 = vmax.f32 %v1171, %v989
      %v1173 = vmax.f32 %v1172, %v1085
      %v1174 = vmax.f32 %v800, %v896
      %v1175 = vmax.f32 %v1174, %v992
      %v1176 = vmax.f32 %v1175, %v1088
      %v1177 = vmax.f32 %v805, %v901
      %v1178 = vmax.f32 %v1177, %v997
      %v1179 = vmax.f32 %v1178, %v1093
      %v1180 = vmax.f32 %v808, %v904
      %v1181 = vmax.f32 %v1180, %v1000
      %v1182 = vmax.f32 %v1181, %v1096
      %v1183 = vmax.f32 %v813, %v909
      %v1184 = vmax.f32 %v1183, %v1005
      %v1185 = vmax.f32 %v1184, %v1101
      %v1186 = vmax.f32 %v816, %v912
      %v1187 = vmax.f32 %v1186, %v1008
      %v1188 = vmax.f32 %v1187, %v1104
      %v1189 = vmax.f32 %v821, %v917
      %v1190 = vmax.f32 %v1189, %v1013
      %v1191 = vmax.f32 %v1190, %v1109
      %v1192 = vmax.f32 %v824, %v920
      %v1193 = vmax.f32 %v1192, %v1016
      %v1194 = vmax.f32 %v1193, %v1112
      %v1195 = vmax.f32 %v829, %v925
      %v1196 = vmax.f32 %v1195, %v1021
      %v1197 = vmax.f32 %v1196, %v1117
      %v1198 = vmax.f32 %v832, %v928
      %v1199 = vmax.f32 %v1198, %v1024
      %v1200 = vmax.f32 %v1199, %v1120
      %v1201 = vmax.f32 %v837, %v933
      %v1202 = vmax.f32 %v1201, %v1029
      %v1203 = vmax.f32 %v1202, %v1125
      %v1204 = vmax.f32 %v840, %v936
      %v1205 = vmax.f32 %v1204, %v1032
      %v1206 = vmax.f32 %v1205, %v1128
      %v1207 = vmax.f32 %v845, %v941
      %v1208 = vmax.f32 %v1207, %v1037
      %v1209 = vmax.f32 %v1208, %v1133
      %v1210 = vmax.f32 %v848, %v944
      %v1211 = vmax.f32 %v1210, %v1040
      %v1212 = vmax.f32 %v1211, %v1136
      %v1213 = vmax.f32 %v853, %v949
      %v1214 = vmax.f32 %v1213, %v1045
      %v1215 = vmax.f32 %v1214, %v1141
      %v1216 = vmax.f32 %v856, %v952
      %v1217 = vmax.f32 %v1216, %v1048
      %v1218 = vmax.f32 %v1217, %v1144
      %v1219 = vmax.f32 %v1149, 0.0
      %v1220 = vmax.f32 %v1152, 0.0
      %v1221 = vmax.f32 %v1155, 0.0
      %v1222 = vmax.f32 %v1158, 0.0
      %v1223 = vmax.f32 %v1161, 0.0
      %v1224 = vmax.f32 %v1164, 0.0
      %v1225 = vmax.f32 %v1167, 0.0
      %v1226 = vmax.f32 %v1170, 0.0
      %v1227 = vmax.f32 %v1173, 0.0
      %v1228 = vmax.f32 %v1176, 0.0
      %v1229 = vmax.f32 %v1179, 0.0
      %v1230 = vmax.f32 %v1182, 0.0
      %v1231 = vmax.f32 %v1185, 0.0
      %v1232 = vmax.f32 %v1188, 0.0
      %v1233 = vmax.f32 %v1191, 0.0
      %v1234 = vmax.f32 %v1194, 0.0
      %v1235 = vmax.f32 %v1197, 0.0
      %v1236 = vmax.f32 %v1200, 0.0
      %v1237 = vmax.f32 %v1203, 0.0
      %v1238 = vmax.f32 %v1206, 0.0
      %v1239 = vmax.f32 %v1209, 0.0
      %v1240 = vmax.f32 %v1212, 0.0
      %v1241 = vmax.f32 %v1215, 0.0
      %v1242 = vmax.f32 %v1218, 0.0
      %vm1259 = vcmask 1046528
      %v1260 = vrot.slane %v1219, 1
      %v1261 = vrot.slane %v1220, 1
      %v1262 = vsel %vm1259, %v1260, %v1261
      %v1263 = vrot.slane %v1221, 1
      %v1264 = vrot.slane %v1222, 1
      %v1265 = vsel %vm1259, %v1263, %v1264
      %v1266 = vrot.slane %v1223, 1
      %v1267 = vrot.slane %v1224, 1
      %v1268 = vsel %vm1259, %v1266, %v1267
      %v1269 = vrot.slane %v1225, 1
      %v1270 = vrot.slane %v1226, 1
      %v1271 = vsel %vm1259, %v1269, %v1270
      %v1272 = vrot.slane %v1227, 1
      %v1273 = vrot.slane %v1228, 1
      %v1274 = vsel %vm1259, %v1272, %v1273
      %v1275 = vrot.slane %v1229, 1
      %v1276 = vrot.slane %v1230, 1
      %v1277 = vsel %vm1259, %v1275, %v1276
      %v1278 = vrot.slane %v1231, 1
      %v1279 = vrot.slane %v1232, 1
      %v1280 = vsel %vm1259, %v1278, %v1279
      %v1281 = vrot.slane %v1233, 1
      %v1282 = vrot.slane %v1234, 1
      %v1283 = vsel %vm1259, %v1281, %v1282
      %vm1292 = vcmask 1045504
      %v1293 = vrot.slane %v1219, 2
      %v1294 = vrot.slane %v1220, 2
      %v1295 = vsel %vm1292, %v1293, %v1294
      %v1296 = vrot.slane %v1221, 2
      %v1297 = vrot.slane %v1222, 2
      %v1298 = vsel %vm1292, %v1296, %v1297
      %v1299 = vrot.slane %v1223, 2
      %v1300 = vrot.slane %v1224, 2
      %v1301 = vsel %vm1292, %v1299, %v1300
      %v1302 = vrot.slane %v1225, 2
      %v1303 = vrot.slane %v1226, 2
      %v1304 = vsel %vm1292, %v1302, %v1303
      %v1305 = vrot.slane %v1227, 2
      %v1306 = vrot.slane %v1228, 2
      %v1307 = vsel %vm1292, %v1305, %v1306
      %v1308 = vrot.slane %v1229, 2
      %v1309 = vrot.slane %v1230, 2
      %v1310 = vsel %vm1292, %v1308, %v1309
      %v1311 = vrot.slane %v1231, 2
      %v1312 = vrot.slane %v1232, 2
      %v1313 = vsel %vm1292, %v1311, %v1312
      %v1314 = vrot.slane %v1233, 2
      %v1315 = vrot.slane %v1234, 2
      %v1316 = vsel %vm1292, %v1314, %v1315
      %vm1325 = vcmask 1044480
      %v1326 = vrot.slane %v1219, 3
      %v1327 = vrot.slane %v1220, 3
      %v1328 = vsel %vm1325, %v1326, %v1327
      %v1329 = vrot.slane %v1221, 3
      %v1330 = vrot.slane %v1222, 3
      %v1331 = vsel %vm1325, %v1329, %v1330
      %v1332 = vrot.slane %v1223, 3
      %v1333 = vrot.slane %v1224, 3
      %v1334 = vsel %vm1325, %v1332, %v1333
      %v1335 = vrot.slane %v1225, 3
      %v1336 = vrot.slane %v1226, 3
      %v1337 = vsel %vm1325, %v1335, %v1336
      %v1338 = vrot.slane %v1227, 3
      %v1339 = vrot.slane %v1228, 3
      %v1340 = vsel %vm1325, %v1338, %v1339
      %v1341 = vrot.slane %v1229, 3
      %v1342 = vrot.slane %v1230, 3
      %v1343 = vsel %vm1325, %v1341, %v1342
      %v1344 = vrot.slane %v1231, 3
      %v1345 = vrot.slane %v1232, 3
      %v1346 = vsel %vm1325, %v1344, %v1345
      %v1347 = vrot.slane %v1233, 3
      %v1348 = vrot.slane %v1234, 3
      %v1349 = vsel %vm1325, %v1347, %v1348
      %vm1358 = vcmask 1043456
      %v1359 = vrot.slane %v1219, 4
      %v1360 = vrot.slane %v1220, 4
      %v1361 = vsel %vm1358, %v1359, %v1360
      %v1362 = vrot.slane %v1221, 4
      %v1363 = vrot.slane %v1222, 4
      %v1364 = vsel %vm1358, %v1362, %v1363
      %v1365 = vrot.slane %v1223, 4
      %v1366 = vrot.slane %v1224, 4
      %v1367 = vsel %vm1358, %v1365, %v1366
      %v1368 = vrot.slane %v1225, 4
      %v1369 = vrot.slane %v1226, 4
      %v1370 = vsel %vm1358, %v1368, %v1369
      %v1371 = vrot.slane %v1227, 4
      %v1372 = vrot.slane %v1228, 4
      %v1373 = vsel %vm1358, %v1371, %v1372
      %v1374 = vrot.slane %v1229, 4
      %v1375 = vrot.slane %v1230, 4
      %v1376 = vsel %vm1358, %v1374, %v1375
      %v1377 = vrot.slane %v1231, 4
      %v1378 = vrot.slane %v1232, 4
      %v1379 = vsel %vm1358, %v1377, %v1378
      %v1380 = vrot.slane %v1233, 4
      %v1381 = vrot.slane %v1234, 4
      %v1382 = vsel %vm1358, %v1380, %v1381
      %v1393 = vrot.slane %v1235, 1
      %v1394 = vrot.slane %v1236, 1
      %v1395 = vsel %vm1259, %v1393, %v1394
      %v1397 = vrot.slane %v1235, 2
      %v1398 = vrot.slane %v1236, 2
      %v1399 = vsel %vm1292, %v1397, %v1398
      %v1401 = vrot.slane %v1235, 3
      %v1402 = vrot.slane %v1236, 3
      %v1403 = vsel %vm1325, %v1401, %v1402
      %v1405 = vrot.slane %v1235, 4
      %v1406 = vrot.slane %v1236, 4
      %v1407 = vsel %vm1358, %v1405, %v1406
      %v1411 = vrot.slane %v1237, 1
      %v1412 = vrot.slane %v1238, 1
      %v1413 = vsel %vm1259, %v1411, %v1412
      %v1415 = vrot.slane %v1237, 2
      %v1416 = vrot.slane %v1238, 2
      %v1417 = vsel %vm1292, %v1415, %v1416
      %v1419 = vrot.slane %v1237, 3
      %v1420 = vrot.slane %v1238, 3
      %v1421 = vsel %vm1325, %v1419, %v1420
      %v1423 = vrot.slane %v1237, 4
      %v1424 = vrot.slane %v1238, 4
      %v1425 = vsel %vm1358, %v1423, %v1424
      %v1429 = vrot.slane %v1239, 1
      %v1430 = vrot.slane %v1240, 1
      %v1431 = vsel %vm1259, %v1429, %v1430
      %v1433 = vrot.slane %v1239, 2
      %v1434 = vrot.slane %v1240, 2
      %v1435 = vsel %vm1292, %v1433, %v1434
      %v1437 = vrot.slane %v1239, 3
      %v1438 = vrot.slane %v1240, 3
      %v1439 = vsel %vm1325, %v1437, %v1438
      %v1441 = vrot.slane %v1239, 4
      %v1442 = vrot.slane %v1240, 4
      %v1443 = vsel %vm1358, %v1441, %v1442
      %v1447 = vrot.slane %v1241, 1
      %v1448 = vrot.slane %v1242, 1
      %v1449 = vsel %vm1259, %v1447, %v1448
      %v1451 = vrot.slane %v1241, 2
      %v1452 = vrot.slane %v1242, 2
      %v1453 = vsel %vm1292, %v1451, %v1452
      %v1455 = vrot.slane %v1241, 3
      %v1456 = vrot.slane %v1242, 3
      %v1457 = vsel %vm1325, %v1455, %v1456
      %v1459 = vrot.slane %v1241, 4
      %v1460 = vrot.slane %v1242, 4
      %v1461 = vsel %vm1358, %v1459, %v1460
      %v1463 = vpack.c.bf16 %v1221, %v1219
      %v1464 = vpack.c.bf16 %v1265, %v1262
      %v1465 = vpack.c.bf16 %v1298, %v1295
      %v1466 = vpack.c.bf16 %v1331, %v1328
      %v1467 = vpack.c.bf16 %v1364, %v1361
      %v1468 = vpack.c.bf16 %v1223, %v1221
      %v1469 = vpack.c.bf16 %v1268, %v1265
      %v1470 = vpack.c.bf16 %v1301, %v1298
      %v1471 = vpack.c.bf16 %v1334, %v1331
      %v1472 = vpack.c.bf16 %v1367, %v1364
      %v1473 = vpack.c.bf16 %v1225, %v1223
      %v1474 = vpack.c.bf16 %v1271, %v1268
      %v1475 = vpack.c.bf16 %v1304, %v1301
      %v1476 = vpack.c.bf16 %v1337, %v1334
      %v1477 = vpack.c.bf16 %v1370, %v1367
      %v1478 = vpack.c.bf16 %v1227, %v1225
      %v1479 = vpack.c.bf16 %v1274, %v1271
      %v1480 = vpack.c.bf16 %v1307, %v1304
      %v1481 = vpack.c.bf16 %v1340, %v1337
      %v1482 = vpack.c.bf16 %v1373, %v1370
      %v1483 = vpack.c.bf16 %v1229, %v1227
      %v1484 = vpack.c.bf16 %v1277, %v1274
      %v1485 = vpack.c.bf16 %v1310, %v1307
      %v1486 = vpack.c.bf16 %v1343, %v1340
      %v1487 = vpack.c.bf16 %v1376, %v1373
      %v1488 = vpack.c.bf16 %v1231, %v1229
      %v1489 = vpack.c.bf16 %v1280, %v1277
      %v1490 = vpack.c.bf16 %v1313, %v1310
      %v1491 = vpack.c.bf16 %v1346, %v1343
      %v1492 = vpack.c.bf16 %v1379, %v1376
      %v1493 = vpack.c.bf16 %v1233, %v1231
      %v1494 = vpack.c.bf16 %v1283, %v1280
      %v1495 = vpack.c.bf16 %v1316, %v1313
      %v1496 = vpack.c.bf16 %v1349, %v1346
      %v1497 = vpack.c.bf16 %v1382, %v1379
      %v1498 = vpack.c.bf16 %v1235, %v1233
      %v1499 = vpack.c.bf16 %v1395, %v1283
      %v1500 = vpack.c.bf16 %v1399, %v1316
      %v1501 = vpack.c.bf16 %v1403, %v1349
      %v1502 = vpack.c.bf16 %v1407, %v1382
      %v1503 = vpack.c.bf16 %v1237, %v1235
      %v1504 = vpack.c.bf16 %v1413, %v1395
      %v1505 = vpack.c.bf16 %v1417, %v1399
      %v1506 = vpack.c.bf16 %v1421, %v1403
      %v1507 = vpack.c.bf16 %v1425, %v1407
      %v1508 = vpack.c.bf16 %v1239, %v1237
      %v1509 = vpack.c.bf16 %v1431, %v1413
      %v1510 = vpack.c.bf16 %v1435, %v1417
      %v1511 = vpack.c.bf16 %v1439, %v1421
      %v1512 = vpack.c.bf16 %v1443, %v1425
      %v1513 = vpack.c.bf16 %v1241, %v1239
      %v1514 = vpack.c.bf16 %v1449, %v1431
      %v1515 = vpack.c.bf16 %v1453, %v1435
      %v1516 = vpack.c.bf16 %v1457, %v1439
      %v1517 = vpack.c.bf16 %v1461, %v1443
      %v1518 = vld [vmem:[%s3] sm:$0xf]
      %v1519 = vld [vmem:[%s3 + $0x4] sm:$0xf]
      %v1520 = vld [vmem:[%s3 + $0x8] sm:$0xf]
      %v1521 = vld [vmem:[%s3 + $0xc] sm:$0xf]
      %v1522 = vld [vmem:[%s3 + $0x10] sm:$0xf]
      %v1523 = vld [vmem:[%s3 + $0x14] sm:$0xf]
      %v1524 = vld [vmem:[%s3 + $0x18] sm:$0xf]
      %v1525 = vld [vmem:[%s3 + $0x1c] sm:$0xf]
      %v1526 = vld [vmem:[%s3 + $0x20] sm:$0xf]
      %v1527 = vld [vmem:[%s3 + $0x24] sm:$0xf]
      %v1528 = vld [vmem:[%s3 + $0x28] sm:$0xf]
      %v1529 = vld [vmem:[%s3 + $0x2c] sm:$0xf]
      %v1530 = vld [vmem:[%s3 + $0x30] sm:$0xf]
      %v1531 = vld [vmem:[%s3 + $0x34] sm:$0xf]
      %v1532 = vld [vmem:[%s3 + $0x38] sm:$0xf]
      %v1533 = vld [vmem:[%s3 + $0x3c] sm:$0xf]
      %v1534 = vld [vmem:[%s3 + $0x40] sm:$0xf]
      %v1535 = vld [vmem:[%s3 + $0x44] sm:$0xf]
      %v1536 = vld [vmem:[%s3 + $0x48] sm:$0xf]
      %v1537 = vld [vmem:[%s3 + $0x4c] sm:$0xf]
      %v1538 = vld [vmem:[%s3 + $0x50] sm:$0xf]
      %v1539 = vld [vmem:[%s3 + $0x54] sm:$0xf]
      %v1540 = vld [vmem:[%s3 + $0x58] sm:$0xf]
      %v1541 = vld [vmem:[%s3 + $0x5c] sm:$0xf]
      %v1542 = vld [vmem:[%s3 + $0x60] sm:$0xf]
      %v1543 = vld [vmem:[%s3 + $0x64] sm:$0xf]
      %v1544 = vld [vmem:[%s3 + $0x68] sm:$0xf]
      %v1545 = vld [vmem:[%s3 + $0x6c] sm:$0xf]
      %v1546 = vld [vmem:[%s3 + $0x70] sm:$0xf]
      %v1547 = vld [vmem:[%s3 + $0x74] sm:$0xf]
      %v1548 = vld [vmem:[%s3 + $0x78] sm:$0xf]
      %v1549 = vld [vmem:[%s3 + $0x7c] sm:$0xf]
      %v1550 = vld [vmem:[%s3 + $0x80] sm:$0xf]
      %v1551 = vld [vmem:[%s3 + $0x84] sm:$0xf]
      %v1552 = vld [vmem:[%s3 + $0x88] sm:$0xf]
      %v1553 = vld [vmem:[%s3 + $0x8c] sm:$0xf]
      %v1554 = vld [vmem:[%s3 + $0x90] sm:$0xf]
      %v1555 = vld [vmem:[%s3 + $0x94] sm:$0xf]
      %v1556 = vld [vmem:[%s3 + $0x98] sm:$0xf]
      %v1557 = vld [vmem:[%s3 + $0x9c] sm:$0xf]
      %v1558 = vld [vmem:[%s3 + $0xa0] sm:$0xf]
      %v1559 = vld [vmem:[%s3 + $0xa4] sm:$0xf]
      %v1560 = vld [vmem:[%s3 + $0xa8] sm:$0xf]
      %v1561 = vld [vmem:[%s3 + $0xac] sm:$0xf]
      %v1562 = vld [vmem:[%s3 + $0xb0] sm:$0xf]
      %v1563 = vld [vmem:[%s3 + $0xb4] sm:$0xf]
      %v1564 = vld [vmem:[%s3 + $0xb8] sm:$0xf]
      %v1565 = vld [vmem:[%s3 + $0xbc] sm:$0xf]
      %v1566 = vld [vmem:[%s3 + $0xc0] sm:$0xf]
      %v1567 = vld [vmem:[%s3 + $0xc4] sm:$0xf]
      %v1568 = vld [vmem:[%s3 + $0xc8] sm:$0xf]
      %v1569 = vld [vmem:[%s3 + $0xcc] sm:$0xf]
      %v1570 = vld [vmem:[%s3 + $0xd0] sm:$0xf]
      %v1571 = vld [vmem:[%s3 + $0xd4] sm:$0xf]
      %v1572 = vld [vmem:[%s3 + $0xd8] sm:$0xf]
      %v1573 = vld [vmem:[%s3 + $0xdc] sm:$0xf]
      %v1574 = vld [vmem:[%s3 + $0xe0] sm:$0xf]
      %v1575 = vld [vmem:[%s3 + $0xe4] sm:$0xf]
      %v1576 = vld [vmem:[%s3 + $0xe8] sm:$0xf]
      %v1577 = vld [vmem:[%s3 + $0xec] sm:$0xf]
      %v1578 = vld [vmem:[%s3 + $0xf0] sm:$0xf]
      %v1579 = vld [vmem:[%s3 + $0xf4] sm:$0xf]
      %v1580 = vld [vmem:[%s3 + $0xf8] sm:$0xf]
      %v1581 = vld [vmem:[%s3 + $0xfc] sm:$0xf]
      %v1582 = vld [vmem:[%s3 + $0x100] sm:$0xf]
      %v1583 = vld [vmem:[%s3 + $0x104] sm:$0xf]
      %v1584 = vld [vmem:[%s3 + $0x108] sm:$0xf]
      %v1585 = vld [vmem:[%s3 + $0x10c] sm:$0xf]
      %v1586 = vld [vmem:[%s3 + $0x110] sm:$0xf]
      %v1587 = vld [vmem:[%s3 + $0x114] sm:$0xf]
      %v1588 = vld [vmem:[%s3 + $0x118] sm:$0xf]
      %v1589 = vld [vmem:[%s3 + $0x11c] sm:$0xf]
      %v1590 = vld [vmem:[%s3 + $0x120] sm:$0xf]
      %v1591 = vld [vmem:[%s3 + $0x124] sm:$0xf]
      %v1592 = vld [vmem:[%s3 + $0x128] sm:$0xf]
      %v1593 = vld [vmem:[%s3 + $0x12c] sm:$0xf]
      %v1594 = vld [vmem:[%s3 + $0x130] sm:$0xf]
      %v1595 = vld [vmem:[%s3 + $0x134] sm:$0xf]
      %v1596 = vld [vmem:[%s3 + $0x138] sm:$0xf]
      %v1597 = vld [vmem:[%s3 + $0x13c] sm:$0xf]
      %v1598 = vld [vmem:[%s3 + $0x140] sm:$0xf]
      %v1599 = vld [vmem:[%s3 + $0x144] sm:$0xf]
      %v1600 = vld [vmem:[%s3 + $0x148] sm:$0xf]
      %v1601 = vld [vmem:[%s3 + $0x14c] sm:$0xf]
      %v1602 = vld [vmem:[%s3 + $0x150] sm:$0xf]
      %v1603 = vld [vmem:[%s3 + $0x154] sm:$0xf]
      %v1604 = vld [vmem:[%s3 + $0x158] sm:$0xf]
      %v1605 = vld [vmem:[%s3 + $0x15c] sm:$0xf]
      %v1606 = vld [vmem:[%s3 + $0x160] sm:$0xf]
      %v1607 = vld [vmem:[%s3 + $0x164] sm:$0xf]
      %v1608 = vld [vmem:[%s3 + $0x168] sm:$0xf]
      %v1609 = vld [vmem:[%s3 + $0x16c] sm:$0xf]
      %v1610 = vld [vmem:[%s3 + $0x170] sm:$0xf]
      %v1611 = vld [vmem:[%s3 + $0x174] sm:$0xf]
      %v1612 = vld [vmem:[%s3 + $0x178] sm:$0xf]
      %v1613 = vld [vmem:[%s3 + $0x17c] sm:$0xf]
      %v1614 = vld [vmem:[%s3 + $0x180] sm:$0xf]
      %v1615 = vld [vmem:[%s3 + $0x184] sm:$0xf]
      %v1616 = vld [vmem:[%s3 + $0x188] sm:$0xf]
      %v1617 = vld [vmem:[%s3 + $0x18c] sm:$0xf]
      %v1618 = vld [vmem:[%s3 + $0x190] sm:$0xf]
      %v1619 = vld [vmem:[%s3 + $0x194] sm:$0xf]
      %v1620 = vld [vmem:[%s3 + $0x198] sm:$0xf]
      %v1621 = vld [vmem:[%s3 + $0x19c] sm:$0xf]
      %v1622 = vld [vmem:[%s3 + $0x1a0] sm:$0xf]
      %v1623 = vld [vmem:[%s3 + $0x1a4] sm:$0xf]
      %v1624 = vld [vmem:[%s3 + $0x1a8] sm:$0xf]
      %v1625 = vld [vmem:[%s3 + $0x1ac] sm:$0xf]
      %v1626 = vld [vmem:[%s3 + $0x1b0] sm:$0xf]
      %v1627 = vld [vmem:[%s3 + $0x1b4] sm:$0xf]
      %v1628 = vld [vmem:[%s3 + $0x1b8] sm:$0xf]
      %v1629 = vld [vmem:[%s3 + $0x1bc] sm:$0xf]
      %v1630 = vld [vmem:[%s3 + $0x1c0] sm:$0xf]
      %v1631 = vld [vmem:[%s3 + $0x1c4] sm:$0xf]
      %v1632 = vld [vmem:[%s3 + $0x1c8] sm:$0xf]
      %v1633 = vld [vmem:[%s3 + $0x1cc] sm:$0xf]
      %v1634 = vld [vmem:[%s3 + $0x1d0] sm:$0xf]
      %v1635 = vld [vmem:[%s3 + $0x1d4] sm:$0xf]
      %v1636 = vld [vmem:[%s3 + $0x1d8] sm:$0xf]
      %v1637 = vld [vmem:[%s3 + $0x1dc] sm:$0xf]
      %v1638 = vld [vmem:[%s3 + $0x1e0] sm:$0xf]
      %v1639 = vld [vmem:[%s3 + $0x1e4] sm:$0xf]
      %v1640 = vld [vmem:[%s3 + $0x1e8] sm:$0xf]
      %v1641 = vld [vmem:[%s3 + $0x1ec] sm:$0xf]
      %v1642 = vld [vmem:[%s3 + $0x1f0] sm:$0xf]
      %v1643 = vld [vmem:[%s3 + $0x1f4] sm:$0xf]
      %v1644 = vld [vmem:[%s3 + $0x1f8] sm:$0xf]
      %v1645 = vld [vmem:[%s3 + $0x1fc] sm:$0xf]
      %v1646 = vld [vmem:[%s3 + $0x200] sm:$0xf]
      %v1647 = vld [vmem:[%s3 + $0x204] sm:$0xf]
      %v1648 = vld [vmem:[%s3 + $0x208] sm:$0xf]
      %v1649 = vld [vmem:[%s3 + $0x20c] sm:$0xf]
      %v1650 = vld [vmem:[%s3 + $0x210] sm:$0xf]
      %v1651 = vld [vmem:[%s3 + $0x214] sm:$0xf]
      %v1652 = vld [vmem:[%s3 + $0x218] sm:$0xf]
      %v1653 = vld [vmem:[%s3 + $0x21c] sm:$0xf]
      %v1654 = vld [vmem:[%s3 + $0x220] sm:$0xf]
      %v1655 = vld [vmem:[%s3 + $0x224] sm:$0xf]
      %v1656 = vld [vmem:[%s3 + $0x228] sm:$0xf]
      %v1657 = vld [vmem:[%s3 + $0x22c] sm:$0xf]
      %v1658 = vld [vmem:[%s3 + $0x230] sm:$0xf]
      %v1659 = vld [vmem:[%s3 + $0x234] sm:$0xf]
      %v1660 = vld [vmem:[%s3 + $0x238] sm:$0xf]
      %v1661 = vld [vmem:[%s3 + $0x23c] sm:$0xf]
      %v1662 = vld [vmem:[%s3 + $0x240] sm:$0xf]
      %v1663 = vld [vmem:[%s3 + $0x244] sm:$0xf]
      %v1664 = vld [vmem:[%s3 + $0x248] sm:$0xf]
      %v1665 = vld [vmem:[%s3 + $0x24c] sm:$0xf]
      %v1666 = vld [vmem:[%s3 + $0x250] sm:$0xf]
      %v1667 = vld [vmem:[%s3 + $0x254] sm:$0xf]
      %v1668 = vld [vmem:[%s3 + $0x258] sm:$0xf]
      %v1669 = vld [vmem:[%s3 + $0x25c] sm:$0xf]
      %v1670 = vld [vmem:[%s3 + $0x260] sm:$0xf]
      %v1671 = vld [vmem:[%s3 + $0x264] sm:$0xf]
      %v1672 = vld [vmem:[%s3 + $0x268] sm:$0xf]
      %v1673 = vld [vmem:[%s3 + $0x26c] sm:$0xf]
      %v1674 = vld [vmem:[%s3 + $0x270] sm:$0xf]
      %v1675 = vld [vmem:[%s3 + $0x274] sm:$0xf]
      %v1676 = vld [vmem:[%s3 + $0x278] sm:$0xf]
      %v1677 = vld [vmem:[%s3 + $0x27c] sm:$0xf]
      %v1678 = vld [vmem:[%s3 + $0x280] sm:$0xf]
      %v1679 = vld [vmem:[%s3 + $0x284] sm:$0xf]
      %v1680 = vld [vmem:[%s3 + $0x288] sm:$0xf]
      %v1681 = vld [vmem:[%s3 + $0x28c] sm:$0xf]
      %v1682 = vld [vmem:[%s3 + $0x290] sm:$0xf]
      %v1683 = vld [vmem:[%s3 + $0x294] sm:$0xf]
      %v1684 = vld [vmem:[%s3 + $0x298] sm:$0xf]
      %v1685 = vld [vmem:[%s3 + $0x29c] sm:$0xf]
      %v1686 = vld [vmem:[%s3 + $0x2a0] sm:$0xf]
      %v1687 = vld [vmem:[%s3 + $0x2a4] sm:$0xf]
      %v1688 = vld [vmem:[%s3 + $0x2a8] sm:$0xf]
      %v1689 = vld [vmem:[%s3 + $0x2ac] sm:$0xf]
      %v1690 = vld [vmem:[%s3 + $0x2b0] sm:$0xf]
      %v1691 = vld [vmem:[%s3 + $0x2b4] sm:$0xf]
      %v1692 = vld [vmem:[%s3 + $0x2b8] sm:$0xf]
      %v1693 = vld [vmem:[%s3 + $0x2bc] sm:$0xf]
      %v1694 = vld [vmem:[%s3 + $0x2c0] sm:$0xf]
      %v1695 = vld [vmem:[%s3 + $0x2c4] sm:$0xf]
      %v1696 = vld [vmem:[%s3 + $0x2c8] sm:$0xf]
      %v1697 = vld [vmem:[%s3 + $0x2cc] sm:$0xf]
      %v1698 = vld [vmem:[%s3 + $0x2d0] sm:$0xf]
      %v1699 = vld [vmem:[%s3 + $0x2d4] sm:$0xf]
      %v1700 = vld [vmem:[%s3 + $0x2d8] sm:$0xf]
      %v1701 = vld [vmem:[%s3 + $0x2dc] sm:$0xf]
      %v1702 = vld [vmem:[%s3 + $0x2e0] sm:$0xf]
      %v1703 = vld [vmem:[%s3 + $0x2e4] sm:$0xf]
      %v1704 = vld [vmem:[%s3 + $0x2e8] sm:$0xf]
      %v1705 = vld [vmem:[%s3 + $0x2ec] sm:$0xf]
      %v1706 = vld [vmem:[%s3 + $0x2f0] sm:$0xf]
      %v1707 = vld [vmem:[%s3 + $0x2f4] sm:$0xf]
      %v1708 = vld [vmem:[%s3 + $0x2f8] sm:$0xf]
      %v1709 = vld [vmem:[%s3 + $0x2fc] sm:$0xf]
      %v1710 = vld [vmem:[%s3 + $0x300] sm:$0xf]
      %v1711 = vld [vmem:[%s3 + $0x304] sm:$0xf]
      %v1712 = vld [vmem:[%s3 + $0x308] sm:$0xf]
      %v1713 = vld [vmem:[%s3 + $0x30c] sm:$0xf]
      %v1714 = vld [vmem:[%s3 + $0x310] sm:$0xf]
      %v1715 = vld [vmem:[%s3 + $0x314] sm:$0xf]
      %v1716 = vld [vmem:[%s3 + $0x318] sm:$0xf]
      %v1717 = vld [vmem:[%s3 + $0x31c] sm:$0xf]
      %v1718 = vld [vmem:[%s3 + $0x320] sm:$0xf]
      %v1719 = vld [vmem:[%s3 + $0x324] sm:$0xf]
      %v1720 = vld [vmem:[%s3 + $0x328] sm:$0xf]
      %v1721 = vld [vmem:[%s3 + $0x32c] sm:$0xf]
      %v1722 = vld [vmem:[%s3 + $0x330] sm:$0xf]
      %v1723 = vld [vmem:[%s3 + $0x334] sm:$0xf]
      %v1724 = vld [vmem:[%s3 + $0x338] sm:$0xf]
      %v1725 = vld [vmem:[%s3 + $0x33c] sm:$0xf]
      %v1726 = vld [vmem:[%s3 + $0x340] sm:$0xf]
      %v1727 = vld [vmem:[%s3 + $0x344] sm:$0xf]
      %v1728 = vld [vmem:[%s3 + $0x348] sm:$0xf]
      %v1729 = vld [vmem:[%s3 + $0x34c] sm:$0xf]
      %v1730 = vld [vmem:[%s3 + $0x350] sm:$0xf]
      %v1731 = vld [vmem:[%s3 + $0x354] sm:$0xf]
      %v1732 = vld [vmem:[%s3 + $0x358] sm:$0xf]
      %v1733 = vld [vmem:[%s3 + $0x35c] sm:$0xf]
      %v1734 = vld [vmem:[%s3 + $0x360] sm:$0xf]
      %v1735 = vld [vmem:[%s3 + $0x364] sm:$0xf]
      %v1736 = vld [vmem:[%s3 + $0x368] sm:$0xf]
      %v1737 = vld [vmem:[%s3 + $0x36c] sm:$0xf]
      %v1738 = vld [vmem:[%s3 + $0x370] sm:$0xf]
      %v1739 = vld [vmem:[%s3 + $0x374] sm:$0xf]
      %v1740 = vld [vmem:[%s3 + $0x378] sm:$0xf]
      %v1741 = vld [vmem:[%s3 + $0x37c] sm:$0xf]
      %v1742 = vld [vmem:[%s3 + $0x380] sm:$0xf]
      %v1743 = vld [vmem:[%s3 + $0x384] sm:$0xf]
      %v1744 = vld [vmem:[%s3 + $0x388] sm:$0xf]
      %v1745 = vld [vmem:[%s3 + $0x38c] sm:$0xf]
      %v1746 = vld [vmem:[%s3 + $0x390] sm:$0xf]
      %v1747 = vld [vmem:[%s3 + $0x394] sm:$0xf]
      %v1748 = vld [vmem:[%s3 + $0x398] sm:$0xf]
      %v1749 = vld [vmem:[%s3 + $0x39c] sm:$0xf]
      %v1750 = vld [vmem:[%s3 + $0x3a0] sm:$0xf]
      %v1751 = vld [vmem:[%s3 + $0x3a4] sm:$0xf]
      %v1752 = vld [vmem:[%s3 + $0x3a8] sm:$0xf]
      %v1753 = vld [vmem:[%s3 + $0x3ac] sm:$0xf]
      %v1754 = vld [vmem:[%s3 + $0x3b0] sm:$0xf]
      %v1755 = vld [vmem:[%s3 + $0x3b4] sm:$0xf]
      %v1756 = vld [vmem:[%s3 + $0x3b8] sm:$0xf]
      %v1757 = vld [vmem:[%s3 + $0x3bc] sm:$0xf]
      %v1758 = vld [vmem:[%s3 + $0x3c0] sm:$0xf]
      %v1759 = vld [vmem:[%s3 + $0x3c4] sm:$0xf]
      %v1760 = vld [vmem:[%s3 + $0x3c8] sm:$0xf]
      %v1761 = vld [vmem:[%s3 + $0x3cc] sm:$0xf]
      %v1762 = vld [vmem:[%s3 + $0x3d0] sm:$0xf]
      %v1763 = vld [vmem:[%s3 + $0x3d4] sm:$0xf]
      %v1764 = vld [vmem:[%s3 + $0x3d8] sm:$0xf]
      %v1765 = vld [vmem:[%s3 + $0x3dc] sm:$0xf]
      %v1766 = vld [vmem:[%s3 + $0x3e0] sm:$0xf]
      %v1767 = vld [vmem:[%s3 + $0x3e4] sm:$0xf]
      %v1768 = vld [vmem:[%s3 + $0x3e8] sm:$0xf]
      %v1769 = vld [vmem:[%s3 + $0x3ec] sm:$0xf]
      %v1770 = vld [vmem:[%s3 + $0x3f0] sm:$0xf]
      %v1771 = vld [vmem:[%s3 + $0x3f4] sm:$0xf]
      %v1772 = vld [vmem:[%s3 + $0x3f8] sm:$0xf]
      %v1773 = vld [vmem:[%s3 + $0x3fc] sm:$0xf]
      %v1774 = vld [vmem:[%s3 + $0x400] sm:$0xf]
      %v1775 = vld [vmem:[%s3 + $0x404] sm:$0xf]
      %v1776 = vld [vmem:[%s3 + $0x408] sm:$0xf]
      %v1777 = vld [vmem:[%s3 + $0x40c] sm:$0xf]
      %v1778 = vld [vmem:[%s3 + $0x410] sm:$0xf]
      %v1779 = vld [vmem:[%s3 + $0x414] sm:$0xf]
      %v1780 = vld [vmem:[%s3 + $0x418] sm:$0xf]
      %v1781 = vld [vmem:[%s3 + $0x41c] sm:$0xf]
      %v1782 = vld [vmem:[%s3 + $0x420] sm:$0xf]
      %v1783 = vld [vmem:[%s3 + $0x424] sm:$0xf]
      %v1784 = vld [vmem:[%s3 + $0x428] sm:$0xf]
      %v1785 = vld [vmem:[%s3 + $0x42c] sm:$0xf]
      %v1786 = vld [vmem:[%s3 + $0x430] sm:$0xf]
      %v1787 = vld [vmem:[%s3 + $0x434] sm:$0xf]
      %v1788 = vld [vmem:[%s3 + $0x438] sm:$0xf]
      %v1789 = vld [vmem:[%s3 + $0x43c] sm:$0xf]
      %v1790 = vld [vmem:[%s3 + $0x440] sm:$0xf]
      %v1791 = vld [vmem:[%s3 + $0x444] sm:$0xf]
      %v1792 = vld [vmem:[%s3 + $0x448] sm:$0xf]
      %v1793 = vld [vmem:[%s3 + $0x44c] sm:$0xf]
      %v1794 = vld [vmem:[%s3 + $0x450] sm:$0xf]
      %v1795 = vld [vmem:[%s3 + $0x454] sm:$0xf]
      %v1796 = vld [vmem:[%s3 + $0x458] sm:$0xf]
      %v1797 = vld [vmem:[%s3 + $0x45c] sm:$0xf]
      %v1798 = vld [vmem:[%s3 + $0x460] sm:$0xf]
      %v1799 = vld [vmem:[%s3 + $0x464] sm:$0xf]
      %v1800 = vld [vmem:[%s3 + $0x468] sm:$0xf]
      %v1801 = vld [vmem:[%s3 + $0x46c] sm:$0xf]
      %v1802 = vld [vmem:[%s3 + $0x470] sm:$0xf]
      %v1803 = vld [vmem:[%s3 + $0x474] sm:$0xf]
      %v1804 = vld [vmem:[%s3 + $0x478] sm:$0xf]
      %v1805 = vld [vmem:[%s3 + $0x47c] sm:$0xf]
      %v1806 = vld [vmem:[%s3 + $0x480] sm:$0xf]
      %v1807 = vld [vmem:[%s3 + $0x484] sm:$0xf]
      %v1808 = vld [vmem:[%s3 + $0x488] sm:$0xf]
      %v1809 = vld [vmem:[%s3 + $0x48c] sm:$0xf]
      %v1810 = vld [vmem:[%s3 + $0x490] sm:$0xf]
      %v1811 = vld [vmem:[%s3 + $0x494] sm:$0xf]
      %v1812 = vld [vmem:[%s3 + $0x498] sm:$0xf]
      %v1813 = vld [vmem:[%s3 + $0x49c] sm:$0xf]
      %v1814 = vld [vmem:[%s3 + $0x4a0] sm:$0xf]
      %v1815 = vld [vmem:[%s3 + $0x4a4] sm:$0xf]
      %v1816 = vld [vmem:[%s3 + $0x4a8] sm:$0xf]
      %v1817 = vld [vmem:[%s3 + $0x4ac] sm:$0xf]
      %v1818 = vld [vmem:[%s3 + $0x4b0] sm:$0xf]
      %v1819 = vld [vmem:[%s3 + $0x4b4] sm:$0xf]
      %v1820 = vld [vmem:[%s3 + $0x4b8] sm:$0xf]
      %v1821 = vld [vmem:[%s3 + $0x4bc] sm:$0xf]
      %v1822 = vld [vmem:[%s3 + $0x4c0] sm:$0xf]
      %v1823 = vld [vmem:[%s3 + $0x4c4] sm:$0xf]
      %v1824 = vld [vmem:[%s3 + $0x4c8] sm:$0xf]
      %v1825 = vld [vmem:[%s3 + $0x4cc] sm:$0xf]
      %v1826 = vld [vmem:[%s3 + $0x4d0] sm:$0xf]
      %v1827 = vld [vmem:[%s3 + $0x4d4] sm:$0xf]
      %v1828 = vld [vmem:[%s3 + $0x4d8] sm:$0xf]
      %v1829 = vld [vmem:[%s3 + $0x4dc] sm:$0xf]
      %v1830 = vld [vmem:[%s3 + $0x4e0] sm:$0xf]
      %v1831 = vld [vmem:[%s3 + $0x4e4] sm:$0xf]
      %v1832 = vld [vmem:[%s3 + $0x4e8] sm:$0xf]
      %v1833 = vld [vmem:[%s3 + $0x4ec] sm:$0xf]
      %v1834 = vld [vmem:[%s3 + $0x4f0] sm:$0xf]
      %v1835 = vld [vmem:[%s3 + $0x4f4] sm:$0xf]
      %v1836 = vld [vmem:[%s3 + $0x4f8] sm:$0xf]
      %v1837 = vld [vmem:[%s3 + $0x4fc] sm:$0xf]
      %v1838 = vld [vmem:[%s3 + $0x500] sm:$0xf]
      %v1839 = vld [vmem:[%s3 + $0x504] sm:$0xf]
      %v1840 = vld [vmem:[%s3 + $0x508] sm:$0xf]
      %v1841 = vld [vmem:[%s3 + $0x50c] sm:$0xf]
      %v1842 = vld [vmem:[%s3 + $0x510] sm:$0xf]
      %v1843 = vld [vmem:[%s3 + $0x514] sm:$0xf]
      %v1844 = vld [vmem:[%s3 + $0x518] sm:$0xf]
      %v1845 = vld [vmem:[%s3 + $0x51c] sm:$0xf]
      %v1846 = vld [vmem:[%s3 + $0x520] sm:$0xf]
      %v1847 = vld [vmem:[%s3 + $0x524] sm:$0xf]
      %v1848 = vld [vmem:[%s3 + $0x528] sm:$0xf]
      %v1849 = vld [vmem:[%s3 + $0x52c] sm:$0xf]
      %v1850 = vld [vmem:[%s3 + $0x530] sm:$0xf]
      %v1851 = vld [vmem:[%s3 + $0x534] sm:$0xf]
      %v1852 = vld [vmem:[%s3 + $0x538] sm:$0xf]
      %v1853 = vld [vmem:[%s3 + $0x53c] sm:$0xf]
      %v1854 = vld [vmem:[%s3 + $0x540] sm:$0xf]
      %v1855 = vld [vmem:[%s3 + $0x544] sm:$0xf]
      %v1856 = vld [vmem:[%s3 + $0x548] sm:$0xf]
      %v1857 = vld [vmem:[%s3 + $0x54c] sm:$0xf]
      %v1858 = vld [vmem:[%s3 + $0x550] sm:$0xf]
      %v1859 = vld [vmem:[%s3 + $0x554] sm:$0xf]
      %v1860 = vld [vmem:[%s3 + $0x558] sm:$0xf]
      %v1861 = vld [vmem:[%s3 + $0x55c] sm:$0xf]
      %v1862 = vld [vmem:[%s3 + $0x560] sm:$0xf]
      %v1863 = vld [vmem:[%s3 + $0x564] sm:$0xf]
      %v1864 = vld [vmem:[%s3 + $0x568] sm:$0xf]
      %v1865 = vld [vmem:[%s3 + $0x56c] sm:$0xf]
      %v1866 = vld [vmem:[%s3 + $0x570] sm:$0xf]
      %v1867 = vld [vmem:[%s3 + $0x574] sm:$0xf]
      %v1868 = vld [vmem:[%s3 + $0x578] sm:$0xf]
      %v1869 = vld [vmem:[%s3 + $0x57c] sm:$0xf]
      %v1870 = vld [vmem:[%s3 + $0x580] sm:$0xf]
      %v1871 = vld [vmem:[%s3 + $0x584] sm:$0xf]
      %v1872 = vld [vmem:[%s3 + $0x588] sm:$0xf]
      %v1873 = vld [vmem:[%s3 + $0x58c] sm:$0xf]
      %v1874 = vld [vmem:[%s3 + $0x590] sm:$0xf]
      %v1875 = vld [vmem:[%s3 + $0x594] sm:$0xf]
      %v1876 = vld [vmem:[%s3 + $0x598] sm:$0xf]
      %v1877 = vld [vmem:[%s3 + $0x59c] sm:$0xf]
      %v1878 = vld [vmem:[%s3 + $0x5a0] sm:$0xf]
      %v1879 = vld [vmem:[%s3 + $0x5a4] sm:$0xf]
      %v1880 = vld [vmem:[%s3 + $0x5a8] sm:$0xf]
      %v1881 = vld [vmem:[%s3 + $0x5ac] sm:$0xf]
      %v1882 = vld [vmem:[%s3 + $0x5b0] sm:$0xf]
      %v1883 = vld [vmem:[%s3 + $0x5b4] sm:$0xf]
      %v1884 = vld [vmem:[%s3 + $0x5b8] sm:$0xf]
      %v1885 = vld [vmem:[%s3 + $0x5bc] sm:$0xf]
      %v1886 = vld [vmem:[%s3 + $0x5c0] sm:$0xf]
      %v1887 = vld [vmem:[%s3 + $0x5c4] sm:$0xf]
      %v1888 = vld [vmem:[%s3 + $0x5c8] sm:$0xf]
      %v1889 = vld [vmem:[%s3 + $0x5cc] sm:$0xf]
      %v1890 = vld [vmem:[%s3 + $0x5d0] sm:$0xf]
      %v1891 = vld [vmem:[%s3 + $0x5d4] sm:$0xf]
      %v1892 = vld [vmem:[%s3 + $0x5d8] sm:$0xf]
      %v1893 = vld [vmem:[%s3 + $0x5dc] sm:$0xf]
      %v1894 = vld [vmem:[%s3 + $0x5e0] sm:$0xf]
      %v1895 = vld [vmem:[%s3 + $0x5e4] sm:$0xf]
      %v1896 = vld [vmem:[%s3 + $0x5e8] sm:$0xf]
      %v1897 = vld [vmem:[%s3 + $0x5ec] sm:$0xf]
      %v1898 = vld [vmem:[%s3 + $0x5f0] sm:$0xf]
      %v1899 = vld [vmem:[%s3 + $0x5f4] sm:$0xf]
      %v1900 = vld [vmem:[%s3 + $0x5f8] sm:$0xf]
      %v1901 = vld [vmem:[%s3 + $0x5fc] sm:$0xf]
      %v1902 = vld [vmem:[%s3 + $0x600] sm:$0xf]
      %v1903 = vld [vmem:[%s3 + $0x604] sm:$0xf]
      %v1904 = vld [vmem:[%s3 + $0x608] sm:$0xf]
      %v1905 = vld [vmem:[%s3 + $0x60c] sm:$0xf]
      %v1906 = vld [vmem:[%s3 + $0x610] sm:$0xf]
      %v1907 = vld [vmem:[%s3 + $0x614] sm:$0xf]
      %v1908 = vld [vmem:[%s3 + $0x618] sm:$0xf]
      %v1909 = vld [vmem:[%s3 + $0x61c] sm:$0xf]
      %v1910 = vld [vmem:[%s3 + $0x620] sm:$0xf]
      %v1911 = vld [vmem:[%s3 + $0x624] sm:$0xf]
      %v1912 = vld [vmem:[%s3 + $0x628] sm:$0xf]
      %v1913 = vld [vmem:[%s3 + $0x62c] sm:$0xf]
      %v1914 = vld [vmem:[%s3 + $0x630] sm:$0xf]
      %v1915 = vld [vmem:[%s3 + $0x634] sm:$0xf]
      %v1916 = vld [vmem:[%s3 + $0x638] sm:$0xf]
      %v1917 = vld [vmem:[%s3 + $0x63c] sm:$0xf]
      %v1918 = vld [vmem:[%s4] sm:$0x1]
      %v1920 = vlaneseq
      %v1921 = vshrl.u32 %v1920, 7
      %v1922 = vsub.s32 0, %v1921
      %v1923 = vrot.slane %v1918, %v1922
      %v2325 = vunpack.c.l.b16 %v1518
      %v2326 = vunpack.c.l.b16 %v1519
      %v2327 = vunpack.c.l.b16 %v1520
      %v2328 = vunpack.c.l.b16 %v1521
      %v2329 = vunpack.c.l.b16 %v1522
      %v2330 = vunpack.c.l.b16 %v1523
      %v2331 = vunpack.c.l.b16 %v1524
      %v2332 = vunpack.c.l.b16 %v1525
      %v2333 = vunpack.c.l.b16 %v1526
      %v2334 = vunpack.c.l.b16 %v1527
      %v2335 = vunpack.c.l.b16 %v1528
      %v2336 = vunpack.c.l.b16 %v1529
      %v2337 = vunpack.c.l.b16 %v1530
      %v2338 = vunpack.c.l.b16 %v1531
      %v2339 = vunpack.c.l.b16 %v1532
      %v2340 = vunpack.c.l.b16 %v1533
      %v2341 = vunpack.c.l.b16 %v1534
      %v2342 = vunpack.c.l.b16 %v1535
      %v2343 = vunpack.c.l.b16 %v1536
      %v2344 = vunpack.c.l.b16 %v1537
      %v2345 = vunpack.c.l.b16 %v1538
      %v2346 = vunpack.c.l.b16 %v1539
      %v2347 = vunpack.c.l.b16 %v1540
      %v2348 = vunpack.c.l.b16 %v1541
      %v2349 = vunpack.c.l.b16 %v1542
      %v2350 = vunpack.c.l.b16 %v1543
      %v2351 = vunpack.c.l.b16 %v1544
      %v2352 = vunpack.c.l.b16 %v1545
      %v2353 = vunpack.c.l.b16 %v1546
      %v2354 = vunpack.c.l.b16 %v1547
      %v2355 = vunpack.c.l.b16 %v1548
      %v2356 = vunpack.c.l.b16 %v1549
      %v2357 = vunpack.c.l.b16 %v1550
      %v2358 = vunpack.c.l.b16 %v1551
      %v2359 = vunpack.c.l.b16 %v1552
      %v2360 = vunpack.c.l.b16 %v1553
      %v2361 = vunpack.c.l.b16 %v1554
      %v2362 = vunpack.c.l.b16 %v1555
      %v2363 = vunpack.c.l.b16 %v1556
      %v2364 = vunpack.c.l.b16 %v1557
      %v2365 = vunpack.c.l.b16 %v1558
      %v2366 = vunpack.c.l.b16 %v1559
      %v2367 = vunpack.c.l.b16 %v1560
      %v2368 = vunpack.c.l.b16 %v1561
      %v2369 = vunpack.c.l.b16 %v1562
      %v2370 = vunpack.c.l.b16 %v1563
      %v2371 = vunpack.c.l.b16 %v1564
      %v2372 = vunpack.c.l.b16 %v1565
      %v2373 = vunpack.c.l.b16 %v1566
      %v2374 = vunpack.c.l.b16 %v1567
      %v2375 = vunpack.c.l.b16 %v1568
      %v2376 = vunpack.c.l.b16 %v1569
      %v2377 = vunpack.c.l.b16 %v1570
      %v2378 = vunpack.c.l.b16 %v1571
      %v2379 = vunpack.c.l.b16 %v1572
      %v2380 = vunpack.c.l.b16 %v1573
      %v2381 = vunpack.c.l.b16 %v1574
      %v2382 = vunpack.c.l.b16 %v1575
      %v2383 = vunpack.c.l.b16 %v1576
      %v2384 = vunpack.c.l.b16 %v1577
      %v2385 = vunpack.c.l.b16 %v1578
      %v2386 = vunpack.c.l.b16 %v1579
      %v2387 = vunpack.c.l.b16 %v1580
      %v2388 = vunpack.c.l.b16 %v1581
      %v2389 = vunpack.c.l.b16 %v1582
      %v2390 = vunpack.c.l.b16 %v1583
      %v2391 = vunpack.c.l.b16 %v1584
      %v2392 = vunpack.c.l.b16 %v1585
      %v2393 = vunpack.c.l.b16 %v1586
      %v2394 = vunpack.c.l.b16 %v1587
      %v2395 = vunpack.c.l.b16 %v1588
      %v2396 = vunpack.c.l.b16 %v1589
      %v2397 = vunpack.c.l.b16 %v1590
      %v2398 = vunpack.c.l.b16 %v1591
      %v2399 = vunpack.c.l.b16 %v1592
      %v2400 = vunpack.c.l.b16 %v1593
      %v2401 = vunpack.c.l.b16 %v1594
      %v2402 = vunpack.c.l.b16 %v1595
      %v2403 = vunpack.c.l.b16 %v1596
      %v2404 = vunpack.c.l.b16 %v1597
      %v2405 = vunpack.c.l.b16 %v1598
      %v2406 = vunpack.c.l.b16 %v1599
      %v2407 = vunpack.c.l.b16 %v1600
      %v2408 = vunpack.c.l.b16 %v1601
      %v2409 = vunpack.c.l.b16 %v1602
      %v2410 = vunpack.c.l.b16 %v1603
      %v2411 = vunpack.c.l.b16 %v1604
      %v2412 = vunpack.c.l.b16 %v1605
      %v2413 = vunpack.c.l.b16 %v1606
      %v2414 = vunpack.c.l.b16 %v1607
      %v2415 = vunpack.c.l.b16 %v1608
      %v2416 = vunpack.c.l.b16 %v1609
      %v2417 = vunpack.c.l.b16 %v1610
      %v2418 = vunpack.c.l.b16 %v1611
      %v2419 = vunpack.c.l.b16 %v1612
      %v2420 = vunpack.c.l.b16 %v1613
      %v2421 = vunpack.c.l.b16 %v1614
      %v2422 = vunpack.c.l.b16 %v1615
      %v2423 = vunpack.c.l.b16 %v1616
      %v2424 = vunpack.c.l.b16 %v1617
      %v2425 = vunpack.c.l.b16 %v1618
      %v2426 = vunpack.c.l.b16 %v1619
      %v2427 = vunpack.c.l.b16 %v1620
      %v2428 = vunpack.c.l.b16 %v1621
      %v2429 = vunpack.c.l.b16 %v1622
      %v2430 = vunpack.c.l.b16 %v1623
      %v2431 = vunpack.c.l.b16 %v1624
      %v2432 = vunpack.c.l.b16 %v1625
      %v2433 = vunpack.c.l.b16 %v1626
      %v2434 = vunpack.c.l.b16 %v1627
      %v2435 = vunpack.c.l.b16 %v1628
      %v2436 = vunpack.c.l.b16 %v1629
      %v2437 = vunpack.c.l.b16 %v1630
      %v2438 = vunpack.c.l.b16 %v1631
      %v2439 = vunpack.c.l.b16 %v1632
      %v2440 = vunpack.c.l.b16 %v1633
      %v2441 = vunpack.c.l.b16 %v1634
      %v2442 = vunpack.c.l.b16 %v1635
      %v2443 = vunpack.c.l.b16 %v1636
      %v2444 = vunpack.c.l.b16 %v1637
      %v2445 = vunpack.c.l.b16 %v1638
      %v2446 = vunpack.c.l.b16 %v1639
      %v2447 = vunpack.c.l.b16 %v1640
      %v2448 = vunpack.c.l.b16 %v1641
      %v2449 = vunpack.c.l.b16 %v1642
      %v2450 = vunpack.c.l.b16 %v1643
      %v2451 = vunpack.c.l.b16 %v1644
      %v2452 = vunpack.c.l.b16 %v1645
      %v2453 = vunpack.c.l.b16 %v1646
      %v2454 = vunpack.c.l.b16 %v1647
      %v2455 = vunpack.c.l.b16 %v1648
      %v2456 = vunpack.c.l.b16 %v1649
      %v2457 = vunpack.c.l.b16 %v1650
      %v2458 = vunpack.c.l.b16 %v1651
      %v2459 = vunpack.c.l.b16 %v1652
      %v2460 = vunpack.c.l.b16 %v1653
      %v2461 = vunpack.c.l.b16 %v1654
      %v2462 = vunpack.c.l.b16 %v1655
      %v2463 = vunpack.c.l.b16 %v1656
      %v2464 = vunpack.c.l.b16 %v1657
      %v2465 = vunpack.c.l.b16 %v1658
      %v2466 = vunpack.c.l.b16 %v1659
      %v2467 = vunpack.c.l.b16 %v1660
      %v2468 = vunpack.c.l.b16 %v1661
      %v2469 = vunpack.c.l.b16 %v1662
      %v2470 = vunpack.c.l.b16 %v1663
      %v2471 = vunpack.c.l.b16 %v1664
      %v2472 = vunpack.c.l.b16 %v1665
      %v2473 = vunpack.c.l.b16 %v1666
      %v2474 = vunpack.c.l.b16 %v1667
      %v2475 = vunpack.c.l.b16 %v1668
      %v2476 = vunpack.c.l.b16 %v1669
      %v2477 = vunpack.c.l.b16 %v1670
      %v2478 = vunpack.c.l.b16 %v1671
      %v2479 = vunpack.c.l.b16 %v1672
      %v2480 = vunpack.c.l.b16 %v1673
      %v2481 = vunpack.c.l.b16 %v1674
      %v2482 = vunpack.c.l.b16 %v1675
      %v2483 = vunpack.c.l.b16 %v1676
      %v2484 = vunpack.c.l.b16 %v1677
      %v2485 = vunpack.c.l.b16 %v1678
      %v2486 = vunpack.c.l.b16 %v1679
      %v2487 = vunpack.c.l.b16 %v1680
      %v2488 = vunpack.c.l.b16 %v1681
      %v2489 = vunpack.c.l.b16 %v1682
      %v2490 = vunpack.c.l.b16 %v1683
      %v2491 = vunpack.c.l.b16 %v1684
      %v2492 = vunpack.c.l.b16 %v1685
      %v2493 = vunpack.c.l.b16 %v1686
      %v2494 = vunpack.c.l.b16 %v1687
      %v2495 = vunpack.c.l.b16 %v1688
      %v2496 = vunpack.c.l.b16 %v1689
      %v2497 = vunpack.c.l.b16 %v1690
      %v2498 = vunpack.c.l.b16 %v1691
      %v2499 = vunpack.c.l.b16 %v1692
      %v2500 = vunpack.c.l.b16 %v1693
      %v2501 = vunpack.c.l.b16 %v1694
      %v2502 = vunpack.c.l.b16 %v1695
      %v2503 = vunpack.c.l.b16 %v1696
      %v2504 = vunpack.c.l.b16 %v1697
      %v2505 = vunpack.c.l.b16 %v1698
      %v2506 = vunpack.c.l.b16 %v1699
      %v2507 = vunpack.c.l.b16 %v1700
      %v2508 = vunpack.c.l.b16 %v1701
      %v2509 = vunpack.c.l.b16 %v1702
      %v2510 = vunpack.c.l.b16 %v1703
      %v2511 = vunpack.c.l.b16 %v1704
      %v2512 = vunpack.c.l.b16 %v1705
      %v2513 = vunpack.c.l.b16 %v1706
      %v2514 = vunpack.c.l.b16 %v1707
      %v2515 = vunpack.c.l.b16 %v1708
      %v2516 = vunpack.c.l.b16 %v1709
      %v2517 = vunpack.c.l.b16 %v1710
      %v2518 = vunpack.c.l.b16 %v1711
      %v2519 = vunpack.c.l.b16 %v1712
      %v2520 = vunpack.c.l.b16 %v1713
      %v2521 = vunpack.c.l.b16 %v1714
      %v2522 = vunpack.c.l.b16 %v1715
      %v2523 = vunpack.c.l.b16 %v1716
      %v2524 = vunpack.c.l.b16 %v1717
      %v2525 = vunpack.c.l.b16 %v1718
      %v2526 = vunpack.c.l.b16 %v1719
      %v2527 = vunpack.c.l.b16 %v1720
      %v2528 = vunpack.c.l.b16 %v1721
      %v2529 = vunpack.c.l.b16 %v1722
      %v2530 = vunpack.c.l.b16 %v1723
      %v2531 = vunpack.c.l.b16 %v1724
      %v2532 = vunpack.c.l.b16 %v1725
      %v2533 = vunpack.c.l.b16 %v1726
      %v2534 = vunpack.c.l.b16 %v1727
      %v2535 = vunpack.c.l.b16 %v1728
      %v2536 = vunpack.c.l.b16 %v1729
      %v2537 = vunpack.c.l.b16 %v1730
      %v2538 = vunpack.c.l.b16 %v1731
      %v2539 = vunpack.c.l.b16 %v1732
      %v2540 = vunpack.c.l.b16 %v1733
      %v2541 = vunpack.c.l.b16 %v1734
      %v2542 = vunpack.c.l.b16 %v1735
      %v2543 = vunpack.c.l.b16 %v1736
      %v2544 = vunpack.c.l.b16 %v1737
      %v2545 = vunpack.c.l.b16 %v1738
      %v2546 = vunpack.c.l.b16 %v1739
      %v2547 = vunpack.c.l.b16 %v1740
      %v2548 = vunpack.c.l.b16 %v1741
      %v2549 = vunpack.c.l.b16 %v1742
      %v2550 = vunpack.c.l.b16 %v1743
      %v2551 = vunpack.c.l.b16 %v1744
      %v2552 = vunpack.c.l.b16 %v1745
      %v2553 = vunpack.c.l.b16 %v1746
      %v2554 = vunpack.c.l.b16 %v1747
      %v2555 = vunpack.c.l.b16 %v1748
      %v2556 = vunpack.c.l.b16 %v1749
      %v2557 = vunpack.c.l.b16 %v1750
      %v2558 = vunpack.c.l.b16 %v1751
      %v2559 = vunpack.c.l.b16 %v1752
      %v2560 = vunpack.c.l.b16 %v1753
      %v2561 = vunpack.c.l.b16 %v1754
      %v2562 = vunpack.c.l.b16 %v1755
      %v2563 = vunpack.c.l.b16 %v1756
      %v2564 = vunpack.c.l.b16 %v1757
      %v2565 = vunpack.c.l.b16 %v1758
      %v2566 = vunpack.c.l.b16 %v1759
      %v2567 = vunpack.c.l.b16 %v1760
      %v2568 = vunpack.c.l.b16 %v1761
      %v2569 = vunpack.c.l.b16 %v1762
      %v2570 = vunpack.c.l.b16 %v1763
      %v2571 = vunpack.c.l.b16 %v1764
      %v2572 = vunpack.c.l.b16 %v1765
      %v2573 = vunpack.c.l.b16 %v1766
      %v2574 = vunpack.c.l.b16 %v1767
      %v2575 = vunpack.c.l.b16 %v1768
      %v2576 = vunpack.c.l.b16 %v1769
      %v2577 = vunpack.c.l.b16 %v1770
      %v2578 = vunpack.c.l.b16 %v1771
      %v2579 = vunpack.c.l.b16 %v1772
      %v2580 = vunpack.c.l.b16 %v1773
      %v2581 = vunpack.c.l.b16 %v1774
      %v2582 = vunpack.c.l.b16 %v1775
      %v2583 = vunpack.c.l.b16 %v1776
      %v2584 = vunpack.c.l.b16 %v1777
      %v2585 = vunpack.c.l.b16 %v1778
      %v2586 = vunpack.c.l.b16 %v1779
      %v2587 = vunpack.c.l.b16 %v1780
      %v2588 = vunpack.c.l.b16 %v1781
      %v2589 = vunpack.c.l.b16 %v1782
      %v2590 = vunpack.c.l.b16 %v1783
      %v2591 = vunpack.c.l.b16 %v1784
      %v2592 = vunpack.c.l.b16 %v1785
      %v2593 = vunpack.c.l.b16 %v1786
      %v2594 = vunpack.c.l.b16 %v1787
      %v2595 = vunpack.c.l.b16 %v1788
      %v2596 = vunpack.c.l.b16 %v1789
      %v2597 = vunpack.c.l.b16 %v1790
      %v2598 = vunpack.c.l.b16 %v1791
      %v2599 = vunpack.c.l.b16 %v1792
      %v2600 = vunpack.c.l.b16 %v1793
      %v2601 = vunpack.c.l.b16 %v1794
      %v2602 = vunpack.c.l.b16 %v1795
      %v2603 = vunpack.c.l.b16 %v1796
      %v2604 = vunpack.c.l.b16 %v1797
      %v2605 = vunpack.c.l.b16 %v1798
      %v2606 = vunpack.c.l.b16 %v1799
      %v2607 = vunpack.c.l.b16 %v1800
      %v2608 = vunpack.c.l.b16 %v1801
      %v2609 = vunpack.c.l.b16 %v1802
      %v2610 = vunpack.c.l.b16 %v1803
      %v2611 = vunpack.c.l.b16 %v1804
      %v2612 = vunpack.c.l.b16 %v1805
      %v2613 = vunpack.c.l.b16 %v1806
      %v2614 = vunpack.c.l.b16 %v1807
      %v2615 = vunpack.c.l.b16 %v1808
      %v2616 = vunpack.c.l.b16 %v1809
      %v2617 = vunpack.c.l.b16 %v1810
      %v2618 = vunpack.c.l.b16 %v1811
      %v2619 = vunpack.c.l.b16 %v1812
      %v2620 = vunpack.c.l.b16 %v1813
      %v2621 = vunpack.c.l.b16 %v1814
      %v2622 = vunpack.c.l.b16 %v1815
      %v2623 = vunpack.c.l.b16 %v1816
      %v2624 = vunpack.c.l.b16 %v1817
      %v2625 = vunpack.c.l.b16 %v1818
      %v2626 = vunpack.c.l.b16 %v1819
      %v2627 = vunpack.c.l.b16 %v1820
      %v2628 = vunpack.c.l.b16 %v1821
      %v2629 = vunpack.c.l.b16 %v1822
      %v2630 = vunpack.c.l.b16 %v1823
      %v2631 = vunpack.c.l.b16 %v1824
      %v2632 = vunpack.c.l.b16 %v1825
      %v2633 = vunpack.c.l.b16 %v1826
      %v2634 = vunpack.c.l.b16 %v1827
      %v2635 = vunpack.c.l.b16 %v1828
      %v2636 = vunpack.c.l.b16 %v1829
      %v2637 = vunpack.c.l.b16 %v1830
      %v2638 = vunpack.c.l.b16 %v1831
      %v2639 = vunpack.c.l.b16 %v1832
      %v2640 = vunpack.c.l.b16 %v1833
      %v2641 = vunpack.c.l.b16 %v1834
      %v2642 = vunpack.c.l.b16 %v1835
      %v2643 = vunpack.c.l.b16 %v1836
      %v2644 = vunpack.c.l.b16 %v1837
      %v2645 = vunpack.c.l.b16 %v1838
      %v2646 = vunpack.c.l.b16 %v1839
      %v2647 = vunpack.c.l.b16 %v1840
      %v2648 = vunpack.c.l.b16 %v1841
      %v2649 = vunpack.c.l.b16 %v1842
      %v2650 = vunpack.c.l.b16 %v1843
      %v2651 = vunpack.c.l.b16 %v1844
      %v2652 = vunpack.c.l.b16 %v1845
      %v2653 = vunpack.c.l.b16 %v1846
      %v2654 = vunpack.c.l.b16 %v1847
      %v2655 = vunpack.c.l.b16 %v1848
      %v2656 = vunpack.c.l.b16 %v1849
      %v2657 = vunpack.c.l.b16 %v1850
      %v2658 = vunpack.c.l.b16 %v1851
      %v2659 = vunpack.c.l.b16 %v1852
      %v2660 = vunpack.c.l.b16 %v1853
      %v2661 = vunpack.c.l.b16 %v1854
      %v2662 = vunpack.c.l.b16 %v1855
      %v2663 = vunpack.c.l.b16 %v1856
      %v2664 = vunpack.c.l.b16 %v1857
      %v2665 = vunpack.c.l.b16 %v1858
      %v2666 = vunpack.c.l.b16 %v1859
      %v2667 = vunpack.c.l.b16 %v1860
      %v2668 = vunpack.c.l.b16 %v1861
      %v2669 = vunpack.c.l.b16 %v1862
      %v2670 = vunpack.c.l.b16 %v1863
      %v2671 = vunpack.c.l.b16 %v1864
      %v2672 = vunpack.c.l.b16 %v1865
      %v2673 = vunpack.c.l.b16 %v1866
      %v2674 = vunpack.c.l.b16 %v1867
      %v2675 = vunpack.c.l.b16 %v1868
      %v2676 = vunpack.c.l.b16 %v1869
      %v2677 = vunpack.c.l.b16 %v1870
      %v2678 = vunpack.c.l.b16 %v1871
      %v2679 = vunpack.c.l.b16 %v1872
      %v2680 = vunpack.c.l.b16 %v1873
      %v2681 = vunpack.c.l.b16 %v1874
      %v2682 = vunpack.c.l.b16 %v1875
      %v2683 = vunpack.c.l.b16 %v1876
      %v2684 = vunpack.c.l.b16 %v1877
      %v2685 = vunpack.c.l.b16 %v1878
      %v2686 = vunpack.c.l.b16 %v1879
      %v2687 = vunpack.c.l.b16 %v1880
      %v2688 = vunpack.c.l.b16 %v1881
      %v2689 = vunpack.c.l.b16 %v1882
      %v2690 = vunpack.c.l.b16 %v1883
      %v2691 = vunpack.c.l.b16 %v1884
      %v2692 = vunpack.c.l.b16 %v1885
      %v2693 = vunpack.c.l.b16 %v1886
      %v2694 = vunpack.c.l.b16 %v1887
      %v2695 = vunpack.c.l.b16 %v1888
      %v2696 = vunpack.c.l.b16 %v1889
      %v2697 = vunpack.c.l.b16 %v1890
      %v2698 = vunpack.c.l.b16 %v1891
      %v2699 = vunpack.c.l.b16 %v1892
      %v2700 = vunpack.c.l.b16 %v1893
      %v2701 = vunpack.c.l.b16 %v1894
      %v2702 = vunpack.c.l.b16 %v1895
      %v2703 = vunpack.c.l.b16 %v1896
      %v2704 = vunpack.c.l.b16 %v1897
      %v2705 = vunpack.c.l.b16 %v1898
      %v2706 = vunpack.c.l.b16 %v1899
      %v2707 = vunpack.c.l.b16 %v1900
      %v2708 = vunpack.c.l.b16 %v1901
      %v2709 = vunpack.c.l.b16 %v1902
      %v2710 = vunpack.c.l.b16 %v1903
      %v2711 = vunpack.c.l.b16 %v1904
      %v2712 = vunpack.c.l.b16 %v1905
      %v2713 = vunpack.c.l.b16 %v1906
      %v2714 = vunpack.c.l.b16 %v1907
      %v2715 = vunpack.c.l.b16 %v1908
      %v2716 = vunpack.c.l.b16 %v1909
      %v2717 = vunpack.c.l.b16 %v1910
      %v2718 = vunpack.c.l.b16 %v1911
      %v2719 = vunpack.c.l.b16 %v1912
      %v2720 = vunpack.c.l.b16 %v1913
      %v2721 = vunpack.c.l.b16 %v1914
      %v2722 = vunpack.c.l.b16 %v1915
      %v2723 = vunpack.c.l.b16 %v1916
      %v2724 = vunpack.c.l.b16 %v1917
      %v2725 = vpack.c.b16 %v2326, %v2325
      %v2726 = vpack.c.b16 %v2328, %v2327
      %v2727 = vpack.c.b16 %v2330, %v2329
      %v2728 = vpack.c.b16 %v2332, %v2331
      %v2729 = vpack.c.b16 %v2334, %v2333
      %v2730 = vpack.c.b16 %v2336, %v2335
      %v2731 = vpack.c.b16 %v2338, %v2337
      %v2732 = vpack.c.b16 %v2340, %v2339
      %v2733 = vpack.c.b16 %v2342, %v2341
      %v2734 = vpack.c.b16 %v2344, %v2343
      %v2735 = vpack.c.b16 %v2346, %v2345
      %v2736 = vpack.c.b16 %v2348, %v2347
      %v2737 = vpack.c.b16 %v2350, %v2349
      %v2738 = vpack.c.b16 %v2352, %v2351
      %v2739 = vpack.c.b16 %v2354, %v2353
      %v2740 = vpack.c.b16 %v2356, %v2355
      %v2741 = vpack.c.b16 %v2358, %v2357
      %v2742 = vpack.c.b16 %v2360, %v2359
      %v2743 = vpack.c.b16 %v2362, %v2361
      %v2744 = vpack.c.b16 %v2364, %v2363
      %v2745 = vpack.c.b16 %v2366, %v2365
      %v2746 = vpack.c.b16 %v2368, %v2367
      %v2747 = vpack.c.b16 %v2370, %v2369
      %v2748 = vpack.c.b16 %v2372, %v2371
      %v2749 = vpack.c.b16 %v2374, %v2373
      %v2750 = vpack.c.b16 %v2376, %v2375
      %v2751 = vpack.c.b16 %v2378, %v2377
      %v2752 = vpack.c.b16 %v2380, %v2379
      %v2753 = vpack.c.b16 %v2382, %v2381
      %v2754 = vpack.c.b16 %v2384, %v2383
      %v2755 = vpack.c.b16 %v2386, %v2385
      %v2756 = vpack.c.b16 %v2388, %v2387
      %v2757 = vpack.c.b16 %v2390, %v2389
      %v2758 = vpack.c.b16 %v2392, %v2391
      %v2759 = vpack.c.b16 %v2394, %v2393
      %v2760 = vpack.c.b16 %v2396, %v2395
      %v2761 = vpack.c.b16 %v2398, %v2397
      %v2762 = vpack.c.b16 %v2400, %v2399
      %v2763 = vpack.c.b16 %v2402, %v2401
      %v2764 = vpack.c.b16 %v2404, %v2403
      %v2765 = vpack.c.b16 %v2406, %v2405
      %v2766 = vpack.c.b16 %v2408, %v2407
      %v2767 = vpack.c.b16 %v2410, %v2409
      %v2768 = vpack.c.b16 %v2412, %v2411
      %v2769 = vpack.c.b16 %v2414, %v2413
      %v2770 = vpack.c.b16 %v2416, %v2415
      %v2771 = vpack.c.b16 %v2418, %v2417
      %v2772 = vpack.c.b16 %v2420, %v2419
      %v2773 = vpack.c.b16 %v2422, %v2421
      %v2774 = vpack.c.b16 %v2424, %v2423
      %v2775 = vpack.c.b16 %v2426, %v2425
      %v2776 = vpack.c.b16 %v2428, %v2427
      %v2777 = vpack.c.b16 %v2430, %v2429
      %v2778 = vpack.c.b16 %v2432, %v2431
      %v2779 = vpack.c.b16 %v2434, %v2433
      %v2780 = vpack.c.b16 %v2436, %v2435
      %v2781 = vpack.c.b16 %v2438, %v2437
      %v2782 = vpack.c.b16 %v2440, %v2439
      %v2783 = vpack.c.b16 %v2442, %v2441
      %v2784 = vpack.c.b16 %v2444, %v2443
      %v2785 = vpack.c.b16 %v2446, %v2445
      %v2786 = vpack.c.b16 %v2448, %v2447
      %v2787 = vpack.c.b16 %v2450, %v2449
      %v2788 = vpack.c.b16 %v2452, %v2451
      %v2789 = vpack.c.b16 %v2454, %v2453
      %v2790 = vpack.c.b16 %v2456, %v2455
      %v2791 = vpack.c.b16 %v2458, %v2457
      %v2792 = vpack.c.b16 %v2460, %v2459
      %v2793 = vpack.c.b16 %v2462, %v2461
      %v2794 = vpack.c.b16 %v2464, %v2463
      %v2795 = vpack.c.b16 %v2466, %v2465
      %v2796 = vpack.c.b16 %v2468, %v2467
      %v2797 = vpack.c.b16 %v2470, %v2469
      %v2798 = vpack.c.b16 %v2472, %v2471
      %v2799 = vpack.c.b16 %v2474, %v2473
      %v2800 = vpack.c.b16 %v2476, %v2475
      %v2801 = vpack.c.b16 %v2478, %v2477
      %v2802 = vpack.c.b16 %v2480, %v2479
      %v2803 = vpack.c.b16 %v2482, %v2481
      %v2804 = vpack.c.b16 %v2484, %v2483
      %v2805 = vpack.c.b16 %v2486, %v2485
      %v2806 = vpack.c.b16 %v2488, %v2487
      %v2807 = vpack.c.b16 %v2490, %v2489
      %v2808 = vpack.c.b16 %v2492, %v2491
      %v2809 = vpack.c.b16 %v2494, %v2493
      %v2810 = vpack.c.b16 %v2496, %v2495
      %v2811 = vpack.c.b16 %v2498, %v2497
      %v2812 = vpack.c.b16 %v2500, %v2499
      %v2813 = vpack.c.b16 %v2502, %v2501
      %v2814 = vpack.c.b16 %v2504, %v2503
      %v2815 = vpack.c.b16 %v2506, %v2505
      %v2816 = vpack.c.b16 %v2508, %v2507
      %v2817 = vpack.c.b16 %v2510, %v2509
      %v2818 = vpack.c.b16 %v2512, %v2511
      %v2819 = vpack.c.b16 %v2514, %v2513
      %v2820 = vpack.c.b16 %v2516, %v2515
      %v2821 = vpack.c.b16 %v2518, %v2517
      %v2822 = vpack.c.b16 %v2520, %v2519
      %v2823 = vpack.c.b16 %v2522, %v2521
      %v2824 = vpack.c.b16 %v2524, %v2523
      %v2825 = vpack.c.b16 %v2526, %v2525
      %v2826 = vpack.c.b16 %v2528, %v2527
      %v2827 = vpack.c.b16 %v2530, %v2529
      %v2828 = vpack.c.b16 %v2532, %v2531
      %v2829 = vpack.c.b16 %v2534, %v2533
      %v2830 = vpack.c.b16 %v2536, %v2535
      %v2831 = vpack.c.b16 %v2538, %v2537
      %v2832 = vpack.c.b16 %v2540, %v2539
      %v2833 = vpack.c.b16 %v2542, %v2541
      %v2834 = vpack.c.b16 %v2544, %v2543
      %v2835 = vpack.c.b16 %v2546, %v2545
      %v2836 = vpack.c.b16 %v2548, %v2547
      %v2837 = vpack.c.b16 %v2550, %v2549
      %v2838 = vpack.c.b16 %v2552, %v2551
      %v2839 = vpack.c.b16 %v2554, %v2553
      %v2840 = vpack.c.b16 %v2556, %v2555
      %v2841 = vpack.c.b16 %v2558, %v2557
      %v2842 = vpack.c.b16 %v2560, %v2559
      %v2843 = vpack.c.b16 %v2562, %v2561
      %v2844 = vpack.c.b16 %v2564, %v2563
      %v2845 = vpack.c.b16 %v2566, %v2565
      %v2846 = vpack.c.b16 %v2568, %v2567
      %v2847 = vpack.c.b16 %v2570, %v2569
      %v2848 = vpack.c.b16 %v2572, %v2571
      %v2849 = vpack.c.b16 %v2574, %v2573
      %v2850 = vpack.c.b16 %v2576, %v2575
      %v2851 = vpack.c.b16 %v2578, %v2577
      %v2852 = vpack.c.b16 %v2580, %v2579
      %v2853 = vpack.c.b16 %v2582, %v2581
      %v2854 = vpack.c.b16 %v2584, %v2583
      %v2855 = vpack.c.b16 %v2586, %v2585
      %v2856 = vpack.c.b16 %v2588, %v2587
      %v2857 = vpack.c.b16 %v2590, %v2589
      %v2858 = vpack.c.b16 %v2592, %v2591
      %v2859 = vpack.c.b16 %v2594, %v2593
      %v2860 = vpack.c.b16 %v2596, %v2595
      %v2861 = vpack.c.b16 %v2598, %v2597
      %v2862 = vpack.c.b16 %v2600, %v2599
      %v2863 = vpack.c.b16 %v2602, %v2601
      %v2864 = vpack.c.b16 %v2604, %v2603
      %v2865 = vpack.c.b16 %v2606, %v2605
      %v2866 = vpack.c.b16 %v2608, %v2607
      %v2867 = vpack.c.b16 %v2610, %v2609
      %v2868 = vpack.c.b16 %v2612, %v2611
      %v2869 = vpack.c.b16 %v2614, %v2613
      %v2870 = vpack.c.b16 %v2616, %v2615
      %v2871 = vpack.c.b16 %v2618, %v2617
      %v2872 = vpack.c.b16 %v2620, %v2619
      %v2873 = vpack.c.b16 %v2622, %v2621
      %v2874 = vpack.c.b16 %v2624, %v2623
      %v2875 = vpack.c.b16 %v2626, %v2625
      %v2876 = vpack.c.b16 %v2628, %v2627
      %v2877 = vpack.c.b16 %v2630, %v2629
      %v2878 = vpack.c.b16 %v2632, %v2631
      %v2879 = vpack.c.b16 %v2634, %v2633
      %v2880 = vpack.c.b16 %v2636, %v2635
      %v2881 = vpack.c.b16 %v2638, %v2637
      %v2882 = vpack.c.b16 %v2640, %v2639
      %v2883 = vpack.c.b16 %v2642, %v2641
      %v2884 = vpack.c.b16 %v2644, %v2643
      %v2885 = vpack.c.b16 %v2646, %v2645
      %v2886 = vpack.c.b16 %v2648, %v2647
      %v2887 = vpack.c.b16 %v2650, %v2649
      %v2888 = vpack.c.b16 %v2652, %v2651
      %v2889 = vpack.c.b16 %v2654, %v2653
      %v2890 = vpack.c.b16 %v2656, %v2655
      %v2891 = vpack.c.b16 %v2658, %v2657
      %v2892 = vpack.c.b16 %v2660, %v2659
      %v2893 = vpack.c.b16 %v2662, %v2661
      %v2894 = vpack.c.b16 %v2664, %v2663
      %v2895 = vpack.c.b16 %v2666, %v2665
      %v2896 = vpack.c.b16 %v2668, %v2667
      %v2897 = vpack.c.b16 %v2670, %v2669
      %v2898 = vpack.c.b16 %v2672, %v2671
      %v2899 = vpack.c.b16 %v2674, %v2673
      %v2900 = vpack.c.b16 %v2676, %v2675
      %v2901 = vpack.c.b16 %v2678, %v2677
      %v2902 = vpack.c.b16 %v2680, %v2679
      %v2903 = vpack.c.b16 %v2682, %v2681
      %v2904 = vpack.c.b16 %v2684, %v2683
      %v2905 = vpack.c.b16 %v2686, %v2685
      %v2906 = vpack.c.b16 %v2688, %v2687
      %v2907 = vpack.c.b16 %v2690, %v2689
      %v2908 = vpack.c.b16 %v2692, %v2691
      %v2909 = vpack.c.b16 %v2694, %v2693
      %v2910 = vpack.c.b16 %v2696, %v2695
      %v2911 = vpack.c.b16 %v2698, %v2697
      %v2912 = vpack.c.b16 %v2700, %v2699
      %v2913 = vpack.c.b16 %v2702, %v2701
      %v2914 = vpack.c.b16 %v2704, %v2703
      %v2915 = vpack.c.b16 %v2706, %v2705
      %v2916 = vpack.c.b16 %v2708, %v2707
      %v2917 = vpack.c.b16 %v2710, %v2709
      %v2918 = vpack.c.b16 %v2712, %v2711
      %v2919 = vpack.c.b16 %v2714, %v2713
      %v2920 = vpack.c.b16 %v2716, %v2715
      %v2921 = vpack.c.b16 %v2718, %v2717
      %v2922 = vpack.c.b16 %v2720, %v2719
      %v2923 = vpack.c.b16 %v2722, %v2721
      %v2924 = vpack.c.b16 %v2724, %v2723
      %3125 = vmatprep.subr.bf16.mxu0 0
      %3126 = vmatpush1.bf16.msra.mxu0 %v2732
      %3127 = vmatprep.subr.bf16.mxu0 0
      %3128 = vmatpush1.bf16.msra.mxu0 %v2731
      %3129 = vmatprep.subr.bf16.mxu0 0
      %3130 = vmatpush1.bf16.msra.mxu0 %v2730
      %3131 = vmatprep.subr.bf16.mxu0 0
      %3132 = vmatpush1.bf16.msra.mxu0 %v2729
      %3133 = vmatprep.subr.bf16.mxu0 0
      %3134 = vmatpush1.bf16.msra.mxu0 %v2728
      %3135 = vmatprep.subr.bf16.mxu0 0
      %3136 = vmatpush1.bf16.msra.mxu0 %v2727
      %3137 = vmatprep.subr.bf16.mxu0 0
      %3138 = vmatpush1.bf16.msra.mxu0 %v2726
      %3139 = vmatprep.subr.bf16.mxu0 0
      %3140 = vmatpush1.bf16.msra.mxu0 %v2725
      %3141 = vmatprep.subr.bf16.mxu0 0
      %3142 = vmatpush2.bf16.msra.mxu0 %v2740
      %3143 = vmatprep.subr.bf16.mxu0 0
      %3144 = vmatpush2.bf16.msra.mxu0 %v2739
      %3145 = vmatprep.subr.bf16.mxu0 0
      %3146 = vmatpush2.bf16.msra.mxu0 %v2738
      %3147 = vmatprep.subr.bf16.mxu0 0
      %3148 = vmatpush2.bf16.msra.mxu0 %v2737
      %3149 = vmatprep.subr.bf16.mxu0 0
      %3150 = vmatpush2.bf16.msra.mxu0 %v2736
      %3151 = vmatprep.subr.bf16.mxu0 0
      %3152 = vmatpush2.bf16.msra.mxu0 %v2735
      %3153 = vmatprep.subr.bf16.mxu0 0
      %3154 = vmatpush2.bf16.msra.mxu0 %v2734
      %3155 = vmatprep.subr.bf16.mxu0 0
      %3156 = vmatpush2.bf16.msra.mxu0 %v2733
      %3157 = vmatprep.mubr.bf16.mxu0 %v1464
      %3158 = vmatmul.mubr.bf16.gmra.mxu0 %v1463
      %v3159 = vpop.f32.mrf.mxu0
      %v3160 = vadd.f32 %v1923, %v3159
      %v3161 = vpop.f32.mrf.mxu0
      %v3162 = vpop.f32.mrf.mxu0
      %v3163 = vadd.f32 %v1923, %v3162
      %v3164 = vpop.f32.mrf.mxu0
      %3165 = vmatprep.mubr.bf16.mxu0 %v1474
      %3166 = vmatmul.mubr.bf16.gmra.mxu0 %v1473
      %v3167 = vpop.f32.mrf.mxu0
      %v3168 = vadd.f32 %v1923, %v3167
      %v3169 = vpop.f32.mrf.mxu0
      %v3170 = vpop.f32.mrf.mxu0
      %v3171 = vadd.f32 %v1923, %v3170
      %v3172 = vpop.f32.mrf.mxu0
      %3173 = vmatprep.mubr.bf16.mxu0 %v1484
      %3174 = vmatmul.mubr.bf16.gmra.mxu0 %v1483
      %v3175 = vpop.f32.mrf.mxu0
      %v3176 = vadd.f32 %v1923, %v3175
      %v3177 = vpop.f32.mrf.mxu0
      %v3178 = vpop.f32.mrf.mxu0
      %v3179 = vadd.f32 %v1923, %v3178
      %v3180 = vpop.f32.mrf.mxu0
      %3181 = vmatprep.mubr.bf16.mxu0 %v1494
      %3182 = vmatmul.mubr.bf16.gmra.mxu0 %v1493
      %v3183 = vpop.f32.mrf.mxu0
      %v3184 = vadd.f32 %v1923, %v3183
      %v3185 = vpop.f32.mrf.mxu0
      %v3186 = vpop.f32.mrf.mxu0
      %v3187 = vadd.f32 %v1923, %v3186
      %v3188 = vpop.f32.mrf.mxu0
      %3189 = vdwg.mxu0
      %3190 = vmatprep.subr.bf16.mxu0 0
      %3191 = vmatpush1.bf16.msra.mxu0 %v2748
      %3192 = vmatprep.subr.bf16.mxu0 0
      %3193 = vmatpush1.bf16.msra.mxu0 %v2747
      %3194 = vmatprep.subr.bf16.mxu0 0
      %3195 = vmatpush1.bf16.msra.mxu0 %v2746
      %3196 = vmatprep.subr.bf16.mxu0 0
      %3197 = vmatpush1.bf16.msra.mxu0 %v2745
      %3198 = vmatprep.subr.bf16.mxu0 0
      %3199 = vmatpush1.bf16.msra.mxu0 %v2744
      %3200 = vmatprep.subr.bf16.mxu0 0
      %3201 = vmatpush1.bf16.msra.mxu0 %v2743
      %3202 = vmatprep.subr.bf16.mxu0 0
      %3203 = vmatpush1.bf16.msra.mxu0 %v2742
      %3204 = vmatprep.subr.bf16.mxu0 0
      %3205 = vmatpush1.bf16.msra.mxu0 %v2741
      %3206 = vmatprep.subr.bf16.mxu0 0
      %3207 = vmatpush2.bf16.msra.mxu0 %v2756
      %3208 = vmatprep.subr.bf16.mxu0 0
      %3209 = vmatpush2.bf16.msra.mxu0 %v2755
      %3210 = vmatprep.subr.bf16.mxu0 0
      %3211 = vmatpush2.bf16.msra.mxu0 %v2754
      %3212 = vmatprep.subr.bf16.mxu0 0
      %3213 = vmatpush2.bf16.msra.mxu0 %v2753
      %3214 = vmatprep.subr.bf16.mxu0 0
      %3215 = vmatpush2.bf16.msra.mxu0 %v2752
      %3216 = vmatprep.subr.bf16.mxu0 0
      %3217 = vmatpush2.bf16.msra.mxu0 %v2751
      %3218 = vmatprep.subr.bf16.mxu0 0
      %3219 = vmatpush2.bf16.msra.mxu0 %v2750
      %3220 = vmatprep.subr.bf16.mxu0 0
      %3221 = vmatpush2.bf16.msra.mxu0 %v2749
      %3222 = vmatprep.mubr.bf16.mxu0 %v1466
      %3223 = vmatmul.mubr.bf16.gmra.mxu0 %v1465
      %v3224 = vpop.f32.mrf.mxu0
      %v3225 = vadd.f32 %v3160, %v3224
      %v3226 = vpop.f32.mrf.mxu0
      %v3227 = vpop.f32.mrf.mxu0
      %v3228 = vadd.f32 %v3163, %v3227
      %v3229 = vpop.f32.mrf.mxu0
      %3230 = vmatprep.mubr.bf16.mxu0 %v1476
      %3231 = vmatmul.mubr.bf16.gmra.mxu0 %v1475
      %v3232 = vpop.f32.mrf.mxu0
      %v3233 = vadd.f32 %v3168, %v3232
      %v3234 = vpop.f32.mrf.mxu0
      %v3235 = vpop.f32.mrf.mxu0
      %v3236 = vadd.f32 %v3171, %v3235
      %v3237 = vpop.f32.mrf.mxu0
      %3238 = vmatprep.mubr.bf16.mxu0 %v1486
      %3239 = vmatmul.mubr.bf16.gmra.mxu0 %v1485
      %v3240 = vpop.f32.mrf.mxu0
      %v3241 = vadd.f32 %v3176, %v3240
      %v3242 = vpop.f32.mrf.mxu0
      %v3243 = vpop.f32.mrf.mxu0
      %v3244 = vadd.f32 %v3179, %v3243
      %v3245 = vpop.f32.mrf.mxu0
      %3246 = vmatprep.mubr.bf16.mxu0 %v1496
      %3247 = vmatmul.mubr.bf16.gmra.mxu0 %v1495
      %v3248 = vpop.f32.mrf.mxu0
      %v3249 = vadd.f32 %v3184, %v3248
      %v3250 = vpop.f32.mrf.mxu0
      %v3251 = vpop.f32.mrf.mxu0
      %v3252 = vadd.f32 %v3187, %v3251
      %v3253 = vpop.f32.mrf.mxu0
      %3254 = vdwg.mxu0
      %3255 = vmatprep.subr.bf16.mxu0 0
      %3256 = vmatpush1.bf16.msra.mxu0 %v2764
      %3257 = vmatprep.subr.bf16.mxu0 0
      %3258 = vmatpush1.bf16.msra.mxu0 %v2763
      %3259 = vmatprep.subr.bf16.mxu0 0
      %3260 = vmatpush1.bf16.msra.mxu0 %v2762
      %3261 = vmatprep.subr.bf16.mxu0 0
      %3262 = vmatpush1.bf16.msra.mxu0 %v2761
      %3263 = vmatprep.subr.bf16.mxu0 0
      %3264 = vmatpush1.bf16.msra.mxu0 %v2760
      %3265 = vmatprep.subr.bf16.mxu0 0
      %3266 = vmatpush1.bf16.msra.mxu0 %v2759
      %3267 = vmatprep.subr.bf16.mxu0 0
      %3268 = vmatpush1.bf16.msra.mxu0 %v2758
      %3269 = vmatprep.subr.bf16.mxu0 0
      %3270 = vmatpush1.bf16.msra.mxu0 %v2757
      %3271 = vmatprep.subr.bf16.mxu0 0
      %3272 = vmatpush2.bf16.msra.mxu0 %v2772
      %3273 = vmatprep.subr.bf16.mxu0 0
      %3274 = vmatpush2.bf16.msra.mxu0 %v2771
      %3275 = vmatprep.subr.bf16.mxu0 0
      %3276 = vmatpush2.bf16.msra.mxu0 %v2770
      %3277 = vmatprep.subr.bf16.mxu0 0
      %3278 = vmatpush2.bf16.msra.mxu0 %v2769
      %3279 = vmatprep.subr.bf16.mxu0 0
      %3280 = vmatpush2.bf16.msra.mxu0 %v2768
      %3281 = vmatprep.subr.bf16.mxu0 0
      %3282 = vmatpush2.bf16.msra.mxu0 %v2767
      %3283 = vmatprep.subr.bf16.mxu0 0
      %3284 = vmatpush2.bf16.msra.mxu0 %v2766
      %3285 = vmatprep.subr.bf16.mxu0 0
      %3286 = vmatpush2.bf16.msra.mxu0 %v2765
      %3287 = vmatprep.mubr.bf16.mxu0 %v1468
      %3288 = vmatmul.mubr.bf16.gmra.mxu0 %v1467
      %v3289 = vpop.f32.mrf.mxu0
      %v3290 = vadd.f32 %v3225, %v3289
      %v3291 = vpop.f32.mrf.mxu0
      %v3292 = vpop.f32.mrf.mxu0
      %v3293 = vadd.f32 %v3228, %v3292
      %v3294 = vpop.f32.mrf.mxu0
      %3295 = vmatprep.mubr.bf16.mxu0 %v1478
      %3296 = vmatmul.mubr.bf16.gmra.mxu0 %v1477
      %v3297 = vpop.f32.mrf.mxu0
      %v3298 = vadd.f32 %v3233, %v3297
      %v3299 = vpop.f32.mrf.mxu0
      %v3300 = vpop.f32.mrf.mxu0
      %v3301 = vadd.f32 %v3236, %v3300
      %v3302 = vpop.f32.mrf.mxu0
      %3303 = vmatprep.mubr.bf16.mxu0 %v1488
      %3304 = vmatmul.mubr.bf16.gmra.mxu0 %v1487
      %v3305 = vpop.f32.mrf.mxu0
      %v3306 = vadd.f32 %v3241, %v3305
      %v3307 = vpop.f32.mrf.mxu0
      %v3308 = vpop.f32.mrf.mxu0
      %v3309 = vadd.f32 %v3244, %v3308
      %v3310 = vpop.f32.mrf.mxu0
      %3311 = vmatprep.mubr.bf16.mxu0 %v1498
      %3312 = vmatmul.mubr.bf16.gmra.mxu0 %v1497
      %v3313 = vpop.f32.mrf.mxu0
      %v3314 = vadd.f32 %v3249, %v3313
      %v3315 = vpop.f32.mrf.mxu0
      %v3316 = vpop.f32.mrf.mxu0
      %v3317 = vadd.f32 %v3252, %v3316
      %v3318 = vpop.f32.mrf.mxu0
      %3319 = vdwg.mxu0
      %3320 = vmatprep.subr.bf16.mxu0 0
      %3321 = vmatpush1.bf16.msra.mxu0 %v2780
      %3322 = vmatprep.subr.bf16.mxu0 0
      %3323 = vmatpush1.bf16.msra.mxu0 %v2779
      %3324 = vmatprep.subr.bf16.mxu0 0
      %3325 = vmatpush1.bf16.msra.mxu0 %v2778
      %3326 = vmatprep.subr.bf16.mxu0 0
      %3327 = vmatpush1.bf16.msra.mxu0 %v2777
      %3328 = vmatprep.subr.bf16.mxu0 0
      %3329 = vmatpush1.bf16.msra.mxu0 %v2776
      %3330 = vmatprep.subr.bf16.mxu0 0
      %3331 = vmatpush1.bf16.msra.mxu0 %v2775
      %3332 = vmatprep.subr.bf16.mxu0 0
      %3333 = vmatpush1.bf16.msra.mxu0 %v2774
      %3334 = vmatprep.subr.bf16.mxu0 0
      %3335 = vmatpush1.bf16.msra.mxu0 %v2773
      %3336 = vmatprep.subr.bf16.mxu0 0
      %3337 = vmatpush2.bf16.msra.mxu0 %v2788
      %3338 = vmatprep.subr.bf16.mxu0 0
      %3339 = vmatpush2.bf16.msra.mxu0 %v2787
      %3340 = vmatprep.subr.bf16.mxu0 0
      %3341 = vmatpush2.bf16.msra.mxu0 %v2786
      %3342 = vmatprep.subr.bf16.mxu0 0
      %3343 = vmatpush2.bf16.msra.mxu0 %v2785
      %3344 = vmatprep.subr.bf16.mxu0 0
      %3345 = vmatpush2.bf16.msra.mxu0 %v2784
      %3346 = vmatprep.subr.bf16.mxu0 0
      %3347 = vmatpush2.bf16.msra.mxu0 %v2783
      %3348 = vmatprep.subr.bf16.mxu0 0
      %3349 = vmatpush2.bf16.msra.mxu0 %v2782
      %3350 = vmatprep.subr.bf16.mxu0 0
      %3351 = vmatpush2.bf16.msra.mxu0 %v2781
      %3352 = vmatprep.mubr.bf16.mxu0 %v1470
      %3353 = vmatmul.mubr.bf16.gmra.mxu0 %v1469
      %v3354 = vpop.f32.mrf.mxu0
      %v3355 = vadd.f32 %v3290, %v3354
      %v3356 = vpop.f32.mrf.mxu0
      %v3357 = vpop.f32.mrf.mxu0
      %v3358 = vadd.f32 %v3293, %v3357
      %v3359 = vpop.f32.mrf.mxu0
      %3360 = vmatprep.mubr.bf16.mxu0 %v1480
      %3361 = vmatmul.mubr.bf16.gmra.mxu0 %v1479
      %v3362 = vpop.f32.mrf.mxu0
      %v3363 = vadd.f32 %v3298, %v3362
      %v3364 = vpop.f32.mrf.mxu0
      %v3365 = vpop.f32.mrf.mxu0
      %v3366 = vadd.f32 %v3301, %v3365
      %v3367 = vpop.f32.mrf.mxu0
      %3368 = vmatprep.mubr.bf16.mxu0 %v1490
      %3369 = vmatmul.mubr.bf16.gmra.mxu0 %v1489
      %v3370 = vpop.f32.mrf.mxu0
      %v3371 = vadd.f32 %v3306, %v3370
      %v3372 = vpop.f32.mrf.mxu0
      %v3373 = vpop.f32.mrf.mxu0
      %v3374 = vadd.f32 %v3309, %v3373
      %v3375 = vpop.f32.mrf.mxu0
      %3376 = vmatprep.mubr.bf16.mxu0 %v1500
      %3377 = vmatmul.mubr.bf16.gmra.mxu0 %v1499
      %v3378 = vpop.f32.mrf.mxu0
      %v3379 = vadd.f32 %v3314, %v3378
      %v3380 = vpop.f32.mrf.mxu0
      %v3381 = vpop.f32.mrf.mxu0
      %v3382 = vadd.f32 %v3317, %v3381
      %v3383 = vpop.f32.mrf.mxu0
      %3384 = vdwg.mxu0
      %3385 = vmatprep.subr.bf16.mxu0 0
      %3386 = vmatpush1.bf16.msra.mxu0 %v2796
      %3387 = vmatprep.subr.bf16.mxu0 0
      %3388 = vmatpush1.bf16.msra.mxu0 %v2795
      %3389 = vmatprep.subr.bf16.mxu0 0
      %3390 = vmatpush1.bf16.msra.mxu0 %v2794
      %3391 = vmatprep.subr.bf16.mxu0 0
      %3392 = vmatpush1.bf16.msra.mxu0 %v2793
      %3393 = vmatprep.subr.bf16.mxu0 0
      %3394 = vmatpush1.bf16.msra.mxu0 %v2792
      %3395 = vmatprep.subr.bf16.mxu0 0
      %3396 = vmatpush1.bf16.msra.mxu0 %v2791
      %3397 = vmatprep.subr.bf16.mxu0 0
      %3398 = vmatpush1.bf16.msra.mxu0 %v2790
      %3399 = vmatprep.subr.bf16.mxu0 0
      %3400 = vmatpush1.bf16.msra.mxu0 %v2789
      %3401 = vmatprep.subr.bf16.mxu0 0
      %3402 = vmatpush2.bf16.msra.mxu0 %v2804
      %3403 = vmatprep.subr.bf16.mxu0 0
      %3404 = vmatpush2.bf16.msra.mxu0 %v2803
      %3405 = vmatprep.subr.bf16.mxu0 0
      %3406 = vmatpush2.bf16.msra.mxu0 %v2802
      %3407 = vmatprep.subr.bf16.mxu0 0
      %3408 = vmatpush2.bf16.msra.mxu0 %v2801
      %3409 = vmatprep.subr.bf16.mxu0 0
      %3410 = vmatpush2.bf16.msra.mxu0 %v2800
      %3411 = vmatprep.subr.bf16.mxu0 0
      %3412 = vmatpush2.bf16.msra.mxu0 %v2799
      %3413 = vmatprep.subr.bf16.mxu0 0
      %3414 = vmatpush2.bf16.msra.mxu0 %v2798
      %3415 = vmatprep.subr.bf16.mxu0 0
      %3416 = vmatpush2.bf16.msra.mxu0 %v2797
      %3417 = vmatprep.mubr.bf16.mxu0 %v1472
      %3418 = vmatmul.mubr.bf16.gmra.mxu0 %v1471
      %v3419 = vpop.f32.mrf.mxu0
      %v3420 = vadd.f32 %v3355, %v3419
      %v3421 = vpop.f32.mrf.mxu0
      %v3422 = vpop.f32.mrf.mxu0
      %v3423 = vadd.f32 %v3358, %v3422
      %v3424 = vpop.f32.mrf.mxu0
      %3425 = vmatprep.mubr.bf16.mxu0 %v1482
      %3426 = vmatmul.mubr.bf16.gmra.mxu0 %v1481
      %v3427 = vpop.f32.mrf.mxu0
      %v3428 = vadd.f32 %v3363, %v3427
      %v3429 = vpop.f32.mrf.mxu0
      %v3430 = vpop.f32.mrf.mxu0
      %v3431 = vadd.f32 %v3366, %v3430
      %v3432 = vpop.f32.mrf.mxu0
      %3433 = vmatprep.mubr.bf16.mxu0 %v1492
      %3434 = vmatmul.mubr.bf16.gmra.mxu0 %v1491
      %v3435 = vpop.f32.mrf.mxu0
      %v3436 = vadd.f32 %v3371, %v3435
      %v3437 = vpop.f32.mrf.mxu0
      %v3438 = vpop.f32.mrf.mxu0
      %v3439 = vadd.f32 %v3374, %v3438
      %v3440 = vpop.f32.mrf.mxu0
      %3441 = vmatprep.mubr.bf16.mxu0 %v1502
      %3442 = vmatmul.mubr.bf16.gmra.mxu0 %v1501
      %v3443 = vpop.f32.mrf.mxu0
      %v3444 = vadd.f32 %v3379, %v3443
      %v3445 = vpop.f32.mrf.mxu0
      %v3446 = vpop.f32.mrf.mxu0
      %v3447 = vadd.f32 %v3382, %v3446
      %v3448 = vpop.f32.mrf.mxu0
      %3449 = vdwg.mxu0
      %3450 = vmatprep.subr.bf16.mxu0 0
      %3451 = vmatpush1.bf16.msra.mxu0 %v2812
      %3452 = vmatprep.subr.bf16.mxu0 0
      %3453 = vmatpush1.bf16.msra.mxu0 %v2811
      %3454 = vmatprep.subr.bf16.mxu0 0
      %3455 = vmatpush1.bf16.msra.mxu0 %v2810
      %3456 = vmatprep.subr.bf16.mxu0 0
      %3457 = vmatpush1.bf16.msra.mxu0 %v2809
      %3458 = vmatprep.subr.bf16.mxu0 0
      %3459 = vmatpush1.bf16.msra.mxu0 %v2808
      %3460 = vmatprep.subr.bf16.mxu0 0
      %3461 = vmatpush1.bf16.msra.mxu0 %v2807
      %3462 = vmatprep.subr.bf16.mxu0 0
      %3463 = vmatpush1.bf16.msra.mxu0 %v2806
      %3464 = vmatprep.subr.bf16.mxu0 0
      %3465 = vmatpush1.bf16.msra.mxu0 %v2805
      %3466 = vmatprep.subr.bf16.mxu0 0
      %3467 = vmatpush2.bf16.msra.mxu0 %v2820
      %3468 = vmatprep.subr.bf16.mxu0 0
      %3469 = vmatpush2.bf16.msra.mxu0 %v2819
      %3470 = vmatprep.subr.bf16.mxu0 0
      %3471 = vmatpush2.bf16.msra.mxu0 %v2818
      %3472 = vmatprep.subr.bf16.mxu0 0
      %3473 = vmatpush2.bf16.msra.mxu0 %v2817
      %3474 = vmatprep.subr.bf16.mxu0 0
      %3475 = vmatpush2.bf16.msra.mxu0 %v2816
      %3476 = vmatprep.subr.bf16.mxu0 0
      %3477 = vmatpush2.bf16.msra.mxu0 %v2815
      %3478 = vmatprep.subr.bf16.mxu0 0
      %3479 = vmatpush2.bf16.msra.mxu0 %v2814
      %3480 = vmatprep.subr.bf16.mxu0 0
      %3481 = vmatpush2.bf16.msra.mxu0 %v2813
      %3482 = vmatprep.mubr.bf16.mxu0 %v1474
      %3483 = vmatmul.mubr.bf16.gmra.mxu0 %v1473
      %v3484 = vpop.f32.mrf.mxu0
      %v3485 = vadd.f32 %v3420, %v3484
      %v3486 = vpop.f32.mrf.mxu0
      %v3487 = vpop.f32.mrf.mxu0
      %v3488 = vadd.f32 %v3423, %v3487
      %v3489 = vpop.f32.mrf.mxu0
      %3490 = vmatprep.mubr.bf16.mxu0 %v1484
      %3491 = vmatmul.mubr.bf16.gmra.mxu0 %v1483
      %v3492 = vpop.f32.mrf.mxu0
      %v3493 = vadd.f32 %v3428, %v3492
      %v3494 = vpop.f32.mrf.mxu0
      %v3495 = vpop.f32.mrf.mxu0
      %v3496 = vadd.f32 %v3431, %v3495
      %v3497 = vpop.f32.mrf.mxu0
      %3498 = vmatprep.mubr.bf16.mxu0 %v1494
      %3499 = vmatmul.mubr.bf16.gmra.mxu0 %v1493
      %v3500 = vpop.f32.mrf.mxu0
      %v3501 = vadd.f32 %v3436, %v3500
      %v3502 = vpop.f32.mrf.mxu0
      %v3503 = vpop.f32.mrf.mxu0
      %v3504 = vadd.f32 %v3439, %v3503
      %v3505 = vpop.f32.mrf.mxu0
      %3506 = vmatprep.mubr.bf16.mxu0 %v1504
      %3507 = vmatmul.mubr.bf16.gmra.mxu0 %v1503
      %v3508 = vpop.f32.mrf.mxu0
      %v3509 = vadd.f32 %v3444, %v3508
      %v3510 = vpop.f32.mrf.mxu0
      %v3511 = vpop.f32.mrf.mxu0
      %v3512 = vadd.f32 %v3447, %v3511
      %v3513 = vpop.f32.mrf.mxu0
      %3514 = vdwg.mxu0
      %3515 = vmatprep.subr.bf16.mxu0 0
      %3516 = vmatpush1.bf16.msra.mxu0 %v2828
      %3517 = vmatprep.subr.bf16.mxu0 0
      %3518 = vmatpush1.bf16.msra.mxu0 %v2827
      %3519 = vmatprep.subr.bf16.mxu0 0
      %3520 = vmatpush1.bf16.msra.mxu0 %v2826
      %3521 = vmatprep.subr.bf16.mxu0 0
      %3522 = vmatpush1.bf16.msra.mxu0 %v2825
      %3523 = vmatprep.subr.bf16.mxu0 0
      %3524 = vmatpush1.bf16.msra.mxu0 %v2824
      %3525 = vmatprep.subr.bf16.mxu0 0
      %3526 = vmatpush1.bf16.msra.mxu0 %v2823
      %3527 = vmatprep.subr.bf16.mxu0 0
      %3528 = vmatpush1.bf16.msra.mxu0 %v2822
      %3529 = vmatprep.subr.bf16.mxu0 0
      %3530 = vmatpush1.bf16.msra.mxu0 %v2821
      %3531 = vmatprep.subr.bf16.mxu0 0
      %3532 = vmatpush2.bf16.msra.mxu0 %v2836
      %3533 = vmatprep.subr.bf16.mxu0 0
      %3534 = vmatpush2.bf16.msra.mxu0 %v2835
      %3535 = vmatprep.subr.bf16.mxu0 0
      %3536 = vmatpush2.bf16.msra.mxu0 %v2834
      %3537 = vmatprep.subr.bf16.mxu0 0
      %3538 = vmatpush2.bf16.msra.mxu0 %v2833
      %3539 = vmatprep.subr.bf16.mxu0 0
      %3540 = vmatpush2.bf16.msra.mxu0 %v2832
      %3541 = vmatprep.subr.bf16.mxu0 0
      %3542 = vmatpush2.bf16.msra.mxu0 %v2831
      %3543 = vmatprep.subr.bf16.mxu0 0
      %3544 = vmatpush2.bf16.msra.mxu0 %v2830
      %3545 = vmatprep.subr.bf16.mxu0 0
      %3546 = vmatpush2.bf16.msra.mxu0 %v2829
      %3547 = vmatprep.mubr.bf16.mxu0 %v1476
      %3548 = vmatmul.mubr.bf16.gmra.mxu0 %v1475
      %v3549 = vpop.f32.mrf.mxu0
      %v3550 = vadd.f32 %v3485, %v3549
      %v3551 = vpop.f32.mrf.mxu0
      %v3552 = vpop.f32.mrf.mxu0
      %v3553 = vadd.f32 %v3488, %v3552
      %v3554 = vpop.f32.mrf.mxu0
      %3555 = vmatprep.mubr.bf16.mxu0 %v1486
      %3556 = vmatmul.mubr.bf16.gmra.mxu0 %v1485
      %v3557 = vpop.f32.mrf.mxu0
      %v3558 = vadd.f32 %v3493, %v3557
      %v3559 = vpop.f32.mrf.mxu0
      %v3560 = vpop.f32.mrf.mxu0
      %v3561 = vadd.f32 %v3496, %v3560
      %v3562 = vpop.f32.mrf.mxu0
      %3563 = vmatprep.mubr.bf16.mxu0 %v1496
      %3564 = vmatmul.mubr.bf16.gmra.mxu0 %v1495
      %v3565 = vpop.f32.mrf.mxu0
      %v3566 = vadd.f32 %v3501, %v3565
      %v3567 = vpop.f32.mrf.mxu0
      %v3568 = vpop.f32.mrf.mxu0
      %v3569 = vadd.f32 %v3504, %v3568
      %v3570 = vpop.f32.mrf.mxu0
      %3571 = vmatprep.mubr.bf16.mxu0 %v1506
      %3572 = vmatmul.mubr.bf16.gmra.mxu0 %v1505
      %v3573 = vpop.f32.mrf.mxu0
      %v3574 = vadd.f32 %v3509, %v3573
      %v3575 = vpop.f32.mrf.mxu0
      %v3576 = vpop.f32.mrf.mxu0
      %v3577 = vadd.f32 %v3512, %v3576
      %v3578 = vpop.f32.mrf.mxu0
      %3579 = vdwg.mxu0
      %3580 = vmatprep.subr.bf16.mxu0 0
      %3581 = vmatpush1.bf16.msra.mxu0 %v2844
      %3582 = vmatprep.subr.bf16.mxu0 0
      %3583 = vmatpush1.bf16.msra.mxu0 %v2843
      %3584 = vmatprep.subr.bf16.mxu0 0
      %3585 = vmatpush1.bf16.msra.mxu0 %v2842
      %3586 = vmatprep.subr.bf16.mxu0 0
      %3587 = vmatpush1.bf16.msra.mxu0 %v2841
      %3588 = vmatprep.subr.bf16.mxu0 0
      %3589 = vmatpush1.bf16.msra.mxu0 %v2840
      %3590 = vmatprep.subr.bf16.mxu0 0
      %3591 = vmatpush1.bf16.msra.mxu0 %v2839
      %3592 = vmatprep.subr.bf16.mxu0 0
      %3593 = vmatpush1.bf16.msra.mxu0 %v2838
      %3594 = vmatprep.subr.bf16.mxu0 0
      %3595 = vmatpush1.bf16.msra.mxu0 %v2837
      %3596 = vmatprep.subr.bf16.mxu0 0
      %3597 = vmatpush2.bf16.msra.mxu0 %v2852
      %3598 = vmatprep.subr.bf16.mxu0 0
      %3599 = vmatpush2.bf16.msra.mxu0 %v2851
      %3600 = vmatprep.subr.bf16.mxu0 0
      %3601 = vmatpush2.bf16.msra.mxu0 %v2850
      %3602 = vmatprep.subr.bf16.mxu0 0
      %3603 = vmatpush2.bf16.msra.mxu0 %v2849
      %3604 = vmatprep.subr.bf16.mxu0 0
      %3605 = vmatpush2.bf16.msra.mxu0 %v2848
      %3606 = vmatprep.subr.bf16.mxu0 0
      %3607 = vmatpush2.bf16.msra.mxu0 %v2847
      %3608 = vmatprep.subr.bf16.mxu0 0
      %3609 = vmatpush2.bf16.msra.mxu0 %v2846
      %3610 = vmatprep.subr.bf16.mxu0 0
      %3611 = vmatpush2.bf16.msra.mxu0 %v2845
      %3612 = vmatprep.mubr.bf16.mxu0 %v1478
      %3613 = vmatmul.mubr.bf16.gmra.mxu0 %v1477
      %v3614 = vpop.f32.mrf.mxu0
      %v3615 = vadd.f32 %v3550, %v3614
      %v3616 = vpop.f32.mrf.mxu0
      %v3617 = vpop.f32.mrf.mxu0
      %v3618 = vadd.f32 %v3553, %v3617
      %v3619 = vpop.f32.mrf.mxu0
      %3620 = vmatprep.mubr.bf16.mxu0 %v1488
      %3621 = vmatmul.mubr.bf16.gmra.mxu0 %v1487
      %v3622 = vpop.f32.mrf.mxu0
      %v3623 = vadd.f32 %v3558, %v3622
      %v3624 = vpop.f32.mrf.mxu0
      %v3625 = vpop.f32.mrf.mxu0
      %v3626 = vadd.f32 %v3561, %v3625
      %v3627 = vpop.f32.mrf.mxu0
      %3628 = vmatprep.mubr.bf16.mxu0 %v1498
      %3629 = vmatmul.mubr.bf16.gmra.mxu0 %v1497
      %v3630 = vpop.f32.mrf.mxu0
      %v3631 = vadd.f32 %v3566, %v3630
      %v3632 = vpop.f32.mrf.mxu0
      %v3633 = vpop.f32.mrf.mxu0
      %v3634 = vadd.f32 %v3569, %v3633
      %v3635 = vpop.f32.mrf.mxu0
      %3636 = vmatprep.mubr.bf16.mxu0 %v1508
      %3637 = vmatmul.mubr.bf16.gmra.mxu0 %v1507
      %v3638 = vpop.f32.mrf.mxu0
      %v3639 = vadd.f32 %v3574, %v3638
      %v3640 = vpop.f32.mrf.mxu0
      %v3641 = vpop.f32.mrf.mxu0
      %v3642 = vadd.f32 %v3577, %v3641
      %v3643 = vpop.f32.mrf.mxu0
      %3644 = vdwg.mxu0
      %3645 = vmatprep.subr.bf16.mxu0 0
      %3646 = vmatpush1.bf16.msra.mxu0 %v2860
      %3647 = vmatprep.subr.bf16.mxu0 0
      %3648 = vmatpush1.bf16.msra.mxu0 %v2859
      %3649 = vmatprep.subr.bf16.mxu0 0
      %3650 = vmatpush1.bf16.msra.mxu0 %v2858
      %3651 = vmatprep.subr.bf16.mxu0 0
      %3652 = vmatpush1.bf16.msra.mxu0 %v2857
      %3653 = vmatprep.subr.bf16.mxu0 0
      %3654 = vmatpush1.bf16.msra.mxu0 %v2856
      %3655 = vmatprep.subr.bf16.mxu0 0
      %3656 = vmatpush1.bf16.msra.mxu0 %v2855
      %3657 = vmatprep.subr.bf16.mxu0 0
      %3658 = vmatpush1.bf16.msra.mxu0 %v2854
      %3659 = vmatprep.subr.bf16.mxu0 0
      %3660 = vmatpush1.bf16.msra.mxu0 %v2853
      %3661 = vmatprep.subr.bf16.mxu0 0
      %3662 = vmatpush2.bf16.msra.mxu0 %v2868
      %3663 = vmatprep.subr.bf16.mxu0 0
      %3664 = vmatpush2.bf16.msra.mxu0 %v2867
      %3665 = vmatprep.subr.bf16.mxu0 0
      %3666 = vmatpush2.bf16.msra.mxu0 %v2866
      %3667 = vmatprep.subr.bf16.mxu0 0
      %3668 = vmatpush2.bf16.msra.mxu0 %v2865
      %3669 = vmatprep.subr.bf16.mxu0 0
      %3670 = vmatpush2.bf16.msra.mxu0 %v2864
      %3671 = vmatprep.subr.bf16.mxu0 0
      %3672 = vmatpush2.bf16.msra.mxu0 %v2863
      %3673 = vmatprep.subr.bf16.mxu0 0
      %3674 = vmatpush2.bf16.msra.mxu0 %v2862
      %3675 = vmatprep.subr.bf16.mxu0 0
      %3676 = vmatpush2.bf16.msra.mxu0 %v2861
      %3677 = vmatprep.mubr.bf16.mxu0 %v1480
      %3678 = vmatmul.mubr.bf16.gmra.mxu0 %v1479
      %v3679 = vpop.f32.mrf.mxu0
      %v3680 = vadd.f32 %v3615, %v3679
      %v3681 = vpop.f32.mrf.mxu0
      %v3682 = vpop.f32.mrf.mxu0
      %v3683 = vadd.f32 %v3618, %v3682
      %v3684 = vpop.f32.mrf.mxu0
      %3685 = vmatprep.mubr.bf16.mxu0 %v1490
      %3686 = vmatmul.mubr.bf16.gmra.mxu0 %v1489
      %v3687 = vpop.f32.mrf.mxu0
      %v3688 = vadd.f32 %v3623, %v3687
      %v3689 = vpop.f32.mrf.mxu0
      %v3690 = vpop.f32.mrf.mxu0
      %v3691 = vadd.f32 %v3626, %v3690
      %v3692 = vpop.f32.mrf.mxu0
      %3693 = vmatprep.mubr.bf16.mxu0 %v1500
      %3694 = vmatmul.mubr.bf16.gmra.mxu0 %v1499
      %v3695 = vpop.f32.mrf.mxu0
      %v3696 = vadd.f32 %v3631, %v3695
      %v3697 = vpop.f32.mrf.mxu0
      %v3698 = vpop.f32.mrf.mxu0
      %v3699 = vadd.f32 %v3634, %v3698
      %v3700 = vpop.f32.mrf.mxu0
      %3701 = vmatprep.mubr.bf16.mxu0 %v1510
      %3702 = vmatmul.mubr.bf16.gmra.mxu0 %v1509
      %v3703 = vpop.f32.mrf.mxu0
      %v3704 = vadd.f32 %v3639, %v3703
      %v3705 = vpop.f32.mrf.mxu0
      %v3706 = vpop.f32.mrf.mxu0
      %v3707 = vadd.f32 %v3642, %v3706
      %v3708 = vpop.f32.mrf.mxu0
      %3709 = vdwg.mxu0
      %3710 = vmatprep.subr.bf16.mxu0 0
      %3711 = vmatpush1.bf16.msra.mxu0 %v2876
      %3712 = vmatprep.subr.bf16.mxu0 0
      %3713 = vmatpush1.bf16.msra.mxu0 %v2875
      %3714 = vmatprep.subr.bf16.mxu0 0
      %3715 = vmatpush1.bf16.msra.mxu0 %v2874
      %3716 = vmatprep.subr.bf16.mxu0 0
      %3717 = vmatpush1.bf16.msra.mxu0 %v2873
      %3718 = vmatprep.subr.bf16.mxu0 0
      %3719 = vmatpush1.bf16.msra.mxu0 %v2872
      %3720 = vmatprep.subr.bf16.mxu0 0
      %3721 = vmatpush1.bf16.msra.mxu0 %v2871
      %3722 = vmatprep.subr.bf16.mxu0 0
      %3723 = vmatpush1.bf16.msra.mxu0 %v2870
      %3724 = vmatprep.subr.bf16.mxu0 0
      %3725 = vmatpush1.bf16.msra.mxu0 %v2869
      %3726 = vmatprep.subr.bf16.mxu0 0
      %3727 = vmatpush2.bf16.msra.mxu0 %v2884
      %3728 = vmatprep.subr.bf16.mxu0 0
      %3729 = vmatpush2.bf16.msra.mxu0 %v2883
      %3730 = vmatprep.subr.bf16.mxu0 0
      %3731 = vmatpush2.bf16.msra.mxu0 %v2882
      %3732 = vmatprep.subr.bf16.mxu0 0
      %3733 = vmatpush2.bf16.msra.mxu0 %v2881
      %3734 = vmatprep.subr.bf16.mxu0 0
      %3735 = vmatpush2.bf16.msra.mxu0 %v2880
      %3736 = vmatprep.subr.bf16.mxu0 0
      %3737 = vmatpush2.bf16.msra.mxu0 %v2879
      %3738 = vmatprep.subr.bf16.mxu0 0
      %3739 = vmatpush2.bf16.msra.mxu0 %v2878
      %3740 = vmatprep.subr.bf16.mxu0 0
      %3741 = vmatpush2.bf16.msra.mxu0 %v2877
      %3742 = vmatprep.mubr.bf16.mxu0 %v1482
      %3743 = vmatmul.mubr.bf16.gmra.mxu0 %v1481
      %v3744 = vpop.f32.mrf.mxu0
      %v3745 = vadd.f32 %v3680, %v3744
      %v3746 = vpop.f32.mrf.mxu0
      %v3747 = vpop.f32.mrf.mxu0
      %v3748 = vadd.f32 %v3683, %v3747
      %v3749 = vpop.f32.mrf.mxu0
      %3750 = vmatprep.mubr.bf16.mxu0 %v1492
      %3751 = vmatmul.mubr.bf16.gmra.mxu0 %v1491
      %v3752 = vpop.f32.mrf.mxu0
      %v3753 = vadd.f32 %v3688, %v3752
      %v3754 = vpop.f32.mrf.mxu0
      %v3755 = vpop.f32.mrf.mxu0
      %v3756 = vadd.f32 %v3691, %v3755
      %v3757 = vpop.f32.mrf.mxu0
      %3758 = vmatprep.mubr.bf16.mxu0 %v1502
      %3759 = vmatmul.mubr.bf16.gmra.mxu0 %v1501
      %v3760 = vpop.f32.mrf.mxu0
      %v3761 = vadd.f32 %v3696, %v3760
      %v3762 = vpop.f32.mrf.mxu0
      %v3763 = vpop.f32.mrf.mxu0
      %v3764 = vadd.f32 %v3699, %v3763
      %v3765 = vpop.f32.mrf.mxu0
      %3766 = vmatprep.mubr.bf16.mxu0 %v1512
      %3767 = vmatmul.mubr.bf16.gmra.mxu0 %v1511
      %v3768 = vpop.f32.mrf.mxu0
      %v3769 = vadd.f32 %v3704, %v3768
      %v3770 = vpop.f32.mrf.mxu0
      %v3771 = vpop.f32.mrf.mxu0
      %v3772 = vadd.f32 %v3707, %v3771
      %v3773 = vpop.f32.mrf.mxu0
      %3774 = vdwg.mxu0
      %3775 = vmatprep.subr.bf16.mxu0 0
      %3776 = vmatpush1.bf16.msra.mxu0 %v2892
      %3777 = vmatprep.subr.bf16.mxu0 0
      %3778 = vmatpush1.bf16.msra.mxu0 %v2891
      %3779 = vmatprep.subr.bf16.mxu0 0
      %3780 = vmatpush1.bf16.msra.mxu0 %v2890
      %3781 = vmatprep.subr.bf16.mxu0 0
      %3782 = vmatpush1.bf16.msra.mxu0 %v2889
      %3783 = vmatprep.subr.bf16.mxu0 0
      %3784 = vmatpush1.bf16.msra.mxu0 %v2888
      %3785 = vmatprep.subr.bf16.mxu0 0
      %3786 = vmatpush1.bf16.msra.mxu0 %v2887
      %3787 = vmatprep.subr.bf16.mxu0 0
      %3788 = vmatpush1.bf16.msra.mxu0 %v2886
      %3789 = vmatprep.subr.bf16.mxu0 0
      %3790 = vmatpush1.bf16.msra.mxu0 %v2885
      %3791 = vmatprep.subr.bf16.mxu0 0
      %3792 = vmatpush2.bf16.msra.mxu0 %v2900
      %3793 = vmatprep.subr.bf16.mxu0 0
      %3794 = vmatpush2.bf16.msra.mxu0 %v2899
      %3795 = vmatprep.subr.bf16.mxu0 0
      %3796 = vmatpush2.bf16.msra.mxu0 %v2898
      %3797 = vmatprep.subr.bf16.mxu0 0
      %3798 = vmatpush2.bf16.msra.mxu0 %v2897
      %3799 = vmatprep.subr.bf16.mxu0 0
      %3800 = vmatpush2.bf16.msra.mxu0 %v2896
      %3801 = vmatprep.subr.bf16.mxu0 0
      %3802 = vmatpush2.bf16.msra.mxu0 %v2895
      %3803 = vmatprep.subr.bf16.mxu0 0
      %3804 = vmatpush2.bf16.msra.mxu0 %v2894
      %3805 = vmatprep.subr.bf16.mxu0 0
      %3806 = vmatpush2.bf16.msra.mxu0 %v2893
      %3807 = vmatprep.mubr.bf16.mxu0 %v1484
      %3808 = vmatmul.mubr.bf16.gmra.mxu0 %v1483
      %v3809 = vpop.f32.mrf.mxu0
      %v3810 = vadd.f32 %v3745, %v3809
      %v3811 = vpop.f32.mrf.mxu0
      %v3812 = vpop.f32.mrf.mxu0
      %v3813 = vadd.f32 %v3748, %v3812
      %v3814 = vpop.f32.mrf.mxu0
      %3815 = vmatprep.mubr.bf16.mxu0 %v1494
      %3816 = vmatmul.mubr.bf16.gmra.mxu0 %v1493
      %v3817 = vpop.f32.mrf.mxu0
      %v3818 = vadd.f32 %v3753, %v3817
      %v3819 = vpop.f32.mrf.mxu0
      %v3820 = vpop.f32.mrf.mxu0
      %v3821 = vadd.f32 %v3756, %v3820
      %v3822 = vpop.f32.mrf.mxu0
      %3823 = vmatprep.mubr.bf16.mxu0 %v1504
      %3824 = vmatmul.mubr.bf16.gmra.mxu0 %v1503
      %v3825 = vpop.f32.mrf.mxu0
      %v3826 = vadd.f32 %v3761, %v3825
      %v3827 = vpop.f32.mrf.mxu0
      %v3828 = vpop.f32.mrf.mxu0
      %v3829 = vadd.f32 %v3764, %v3828
      %v3830 = vpop.f32.mrf.mxu0
      %3831 = vmatprep.mubr.bf16.mxu0 %v1514
      %3832 = vmatmul.mubr.bf16.gmra.mxu0 %v1513
      %v3833 = vpop.f32.mrf.mxu0
      %v3834 = vadd.f32 %v3769, %v3833
      %v3835 = vpop.f32.mrf.mxu0
      %v3836 = vpop.f32.mrf.mxu0
      %v3837 = vadd.f32 %v3772, %v3836
      %v3838 = vpop.f32.mrf.mxu0
      %3839 = vdwg.mxu0
      %3840 = vmatprep.subr.bf16.mxu0 0
      %3841 = vmatpush1.bf16.msra.mxu0 %v2908
      %3842 = vmatprep.subr.bf16.mxu0 0
      %3843 = vmatpush1.bf16.msra.mxu0 %v2907
      %3844 = vmatprep.subr.bf16.mxu0 0
      %3845 = vmatpush1.bf16.msra.mxu0 %v2906
      %3846 = vmatprep.subr.bf16.mxu0 0
      %3847 = vmatpush1.bf16.msra.mxu0 %v2905
      %3848 = vmatprep.subr.bf16.mxu0 0
      %3849 = vmatpush1.bf16.msra.mxu0 %v2904
      %3850 = vmatprep.subr.bf16.mxu0 0
      %3851 = vmatpush1.bf16.msra.mxu0 %v2903
      %3852 = vmatprep.subr.bf16.mxu0 0
      %3853 = vmatpush1.bf16.msra.mxu0 %v2902
      %3854 = vmatprep.subr.bf16.mxu0 0
      %3855 = vmatpush1.bf16.msra.mxu0 %v2901
      %3856 = vmatprep.subr.bf16.mxu0 0
      %3857 = vmatpush2.bf16.msra.mxu0 %v2916
      %3858 = vmatprep.subr.bf16.mxu0 0
      %3859 = vmatpush2.bf16.msra.mxu0 %v2915
      %3860 = vmatprep.subr.bf16.mxu0 0
      %3861 = vmatpush2.bf16.msra.mxu0 %v2914
      %3862 = vmatprep.subr.bf16.mxu0 0
      %3863 = vmatpush2.bf16.msra.mxu0 %v2913
      %3864 = vmatprep.subr.bf16.mxu0 0
      %3865 = vmatpush2.bf16.msra.mxu0 %v2912
      %3866 = vmatprep.subr.bf16.mxu0 0
      %3867 = vmatpush2.bf16.msra.mxu0 %v2911
      %3868 = vmatprep.subr.bf16.mxu0 0
      %3869 = vmatpush2.bf16.msra.mxu0 %v2910
      %3870 = vmatprep.subr.bf16.mxu0 0
      %3871 = vmatpush2.bf16.msra.mxu0 %v2909
      %3872 = vmatprep.mubr.bf16.mxu0 %v1486
      %3873 = vmatmul.mubr.bf16.gmra.mxu0 %v1485
      %v3874 = vpop.f32.mrf.mxu0
      %v3875 = vadd.f32 %v3810, %v3874
      %v3876 = vpop.f32.mrf.mxu0
      %v3877 = vpop.f32.mrf.mxu0
      %v3878 = vadd.f32 %v3813, %v3877
      %v3879 = vpop.f32.mrf.mxu0
      %3880 = vmatprep.mubr.bf16.mxu0 %v1496
      %3881 = vmatmul.mubr.bf16.gmra.mxu0 %v1495
      %v3882 = vpop.f32.mrf.mxu0
      %v3883 = vadd.f32 %v3818, %v3882
      %v3884 = vpop.f32.mrf.mxu0
      %v3885 = vpop.f32.mrf.mxu0
      %v3886 = vadd.f32 %v3821, %v3885
      %v3887 = vpop.f32.mrf.mxu0
      %3888 = vmatprep.mubr.bf16.mxu0 %v1506
      %3889 = vmatmul.mubr.bf16.gmra.mxu0 %v1505
      %v3890 = vpop.f32.mrf.mxu0
      %v3891 = vadd.f32 %v3826, %v3890
      %v3892 = vpop.f32.mrf.mxu0
      %v3893 = vpop.f32.mrf.mxu0
      %v3894 = vadd.f32 %v3829, %v3893
      %v3895 = vpop.f32.mrf.mxu0
      %3896 = vmatprep.mubr.bf16.mxu0 %v1516
      %3897 = vmatmul.mubr.bf16.gmra.mxu0 %v1515
      %v3898 = vpop.f32.mrf.mxu0
      %v3899 = vadd.f32 %v3834, %v3898
      %v3900 = vpop.f32.mrf.mxu0
      %v3901 = vpop.f32.mrf.mxu0
      %v3902 = vadd.f32 %v3837, %v3901
      %v3903 = vpop.f32.mrf.mxu0
      %3904 = vdwg.mxu0
      %3905 = vmatprep.subr.bf16.mxu0 0
      %3906 = vmatpush1.bf16.msra.mxu0 %v2924
      %3907 = vmatprep.subr.bf16.mxu0 0
      %3908 = vmatpush1.bf16.msra.mxu0 %v2923
      %3909 = vmatprep.subr.bf16.mxu0 0
      %3910 = vmatpush1.bf16.msra.mxu0 %v2922
      %3911 = vmatprep.subr.bf16.mxu0 0
      %3912 = vmatpush1.bf16.msra.mxu0 %v2921
      %3913 = vmatprep.subr.bf16.mxu0 0
      %3914 = vmatpush1.bf16.msra.mxu0 %v2920
      %3915 = vmatprep.subr.bf16.mxu0 0
      %3916 = vmatpush1.bf16.msra.mxu0 %v2919
      %3917 = vmatprep.subr.bf16.mxu0 0
      %3918 = vmatpush1.bf16.msra.mxu0 %v2918
      %3919 = vmatprep.subr.bf16.mxu0 0
      %3920 = vmatpush1.bf16.msra.mxu0 %v2917
      %3921 = vmatprep.subr.bf16.mxu0 0
      %3922 = vmatpush2.bf16.msra.mxu0 0
      %3923 = vmatprep.subr.bf16.mxu0 0
      %3924 = vmatpush2.bf16.msra.mxu0 0
      %3925 = vmatprep.subr.bf16.mxu0 0
      %3926 = vmatpush2.bf16.msra.mxu0 0
      %3927 = vmatprep.subr.bf16.mxu0 0
      %3928 = vmatpush2.bf16.msra.mxu0 0
      %3929 = vmatprep.subr.bf16.mxu0 0
      %3930 = vmatpush2.bf16.msra.mxu0 0
      %3931 = vmatprep.subr.bf16.mxu0 0
      %3932 = vmatpush2.bf16.msra.mxu0 0
      %3933 = vmatprep.subr.bf16.mxu0 0
      %3934 = vmatpush2.bf16.msra.mxu0 0
      %3935 = vmatprep.subr.bf16.mxu0 0
      %3936 = vmatpush2.bf16.msra.mxu0 0
      %3937 = vmatprep.mubr.bf16.mxu0 0
      %3938 = vmatmul.mubr.bf16.gmra.mxu0 %v1487
      %v3939 = vpop.f32.mrf.mxu0
      %v3940 = vadd.f32 %v3875, %v3939
      %v3941 = vpop.f32.mrf.mxu0
      %v3942 = vpop.f32.mrf.mxu0
      %v3943 = vadd.f32 %v3878, %v3942
      %v3944 = vpop.f32.mrf.mxu0
      %3945 = vmatprep.mubr.bf16.mxu0 0
      %3946 = vmatmul.mubr.bf16.gmra.mxu0 %v1497
      %v3947 = vpop.f32.mrf.mxu0
      %v3948 = vadd.f32 %v3883, %v3947
      %v3949 = vpop.f32.mrf.mxu0
      %v3950 = vpop.f32.mrf.mxu0
      %v3951 = vadd.f32 %v3886, %v3950
      %v3952 = vpop.f32.mrf.mxu0
      %3953 = vmatprep.mubr.bf16.mxu0 0
      %3954 = vmatmul.mubr.bf16.gmra.mxu0 %v1507
      %v3955 = vpop.f32.mrf.mxu0
      %v3956 = vadd.f32 %v3891, %v3955
      %v3957 = vpop.f32.mrf.mxu0
      %v3958 = vpop.f32.mrf.mxu0
      %v3959 = vadd.f32 %v3894, %v3958
      %v3960 = vpop.f32.mrf.mxu0
      %3961 = vmatprep.mubr.bf16.mxu0 0
      %3962 = vmatmul.mubr.bf16.gmra.mxu0 %v1517
      %v3963 = vpop.f32.mrf.mxu0
      %v3964 = vadd.f32 %v3899, %v3963
      %v3965 = vpop.f32.mrf.mxu0
      %v3966 = vpop.f32.mrf.mxu0
      %v3967 = vadd.f32 %v3902, %v3966
      %v3968 = vpop.f32.mrf.mxu0
      %3969 = vdwg.mxu0
      %v3978 = vrot.slane %v3940, 1
      %v3979 = vrot.slane %v3943, 1
      %v3980 = vsel %vm1259, %v3978, %v3979
      %v3981 = vrot.slane %v3948, 1
      %v3982 = vsel %vm1259, %v3979, %v3981
      %v3983 = vrot.slane %v3951, 1
      %v3984 = vsel %vm1259, %v3981, %v3983
      %v3985 = vrot.slane %v3956, 1
      %v3986 = vsel %vm1259, %v3983, %v3985
      %v3987 = vrot.slane %v3959, 1
      %v3988 = vsel %vm1259, %v3985, %v3987
      %v3989 = vrot.slane %v3964, 1
      %v3990 = vsel %vm1259, %v3987, %v3989
      %v3991 = vrot.slane %v3967, 1
      %v3992 = vsel %vm1259, %v3989, %v3991
      %v4002 = vsel %vm1259, %v3991, %v3978
      %v4003 = vmax.f32 %v3940, %v3980
      %v4004 = vmax.f32 %v3943, %v3982
      %v4005 = vmax.f32 %v3948, %v3984
      %v4006 = vmax.f32 %v3951, %v3986
      %v4007 = vmax.f32 %v3956, %v3988
      %v4008 = vmax.f32 %v3959, %v3990
      %v4009 = vmax.f32 %v3964, %v3992
      %v4010 = vmax.f32 %v3967, %v4002
      %v4011 = vmax.f32 %v4003, %v4004
      %v4012 = vmax.f32 %v4005, %v4006
      %v4013 = vmax.f32 %v4007, %v4008
      %v4014 = vmax.f32 %v4009, %v4010
      %v4015 = vmax.f32 %v4011, 0.0
      %v4016 = vmax.f32 %v4012, 0.0
      %v4017 = vmax.f32 %v4013, 0.0
      %v4018 = vmax.f32 %v4014, 0.0
      %v4019 = vpack.c.bf16 %v4016, %v4015
      %v4020 = vpack.c.bf16 %v4018, %v4017
      %v4023 = vunpack.c.l.b16 %v4019
      %v4024 = vunpack.c.h.b16 %v4019
      %v4025 = vunpack.c.l.b16 %v4020
      %v4026 = vunpack.c.h.b16 %v4020
      %v4027 = vpack.c.b16 %v4023, %v4023
      %v4028 = vpack.c.b16 %v4024, %v4024
      %v4029 = vpack.c.b16 %v4025, %v4025
      %v4030 = vpack.c.b16 %v4026, %v4026
      %4035 = vst [vmem:[%s224] sm:$0xf] %v4027
      %4036 = vst [vmem:[%s224 + $0x4] sm:$0xf] %v4028
      %4037 = vst [vmem:[%s224 + $0x8] sm:$0xf] %v4029
      %4038 = vst [vmem:[%s224 + $0xc] sm:$0xf] %v4030
      %p4039 = scmp.lt.s32.totalorder %s16, 1
      %s4040 = scalar_select %p4039, %s16, 1
      %s4041 = smul.addr %s4040, 4
      %s4042 = smul.addr %s4041, 4
      %s4043 = scalar_lea.vmem %s5, %s4042
      // Predicated region
      $region41: #{lenet5_forward.2} parent=39 // pred_check
        %p4044 = pneg %p144
      $region42: #{lenet5_forward.2} parent=39 // pred_check_branch
        %4046 = sbr.rel (%p4044) target = $region44
      $region43: #{lenet5_forward.2} parent=39 // pred_region
        _
      $region44: #{lenet5_forward.2} parent=39 // pred_fallthru
        _
    $region40: #{lenet5_forward.2} parent=5 // pred_fallthru
      _
    %p4047 = scmp.le.s32.totalorder 2, %s11
    // Predicated region
    $region45: #{lenet5_forward.2} parent=5 // pred_check
      %p4048 = pneg %p4047
    $region46: #{lenet5_forward.2} parent=5 // pred_check_branch
      %4050 = sbr.rel (%p4048) target = $region48
    $region47: #{lenet5_forward.2} parent=5 // pred_region
      %s4051 = ssub.s32 %s11, 2
      // Predicated region
      $region49: #{lenet5_forward.2} parent=47 // pred_check
        %p4052 = pneg %p150
      $region50: #{lenet5_forward.2} parent=47 // pred_check_branch
        %4054 = sbr.rel (%p4052) target = $region52
      $region51: #{lenet5_forward.2} parent=47 // pred_region
        %p4055 = scmp.lt.s32.totalorder %s17, 1
        %s4056 = scalar_select %p4055, %s17, 1
        %s4057 = smul.addr %s4056, 4
        %s4058 = smul.addr %s4057, 4
        %s4059 = scalar_lea.vmem %s5, %s4058
      $region52: #{lenet5_forward.2} parent=47 // pred_fallthru
        _
    $region48: #{lenet5_forward.2} parent=5 // pred_fallthru
      _
  $region6: #{lenet5_forward.2} parent=0 // loop_footer
    %s15 = sadd.s32 1, %s11
  $region7: #{lenet5_forward.2} parent=0 // loop_footer_branch
    %10 = sbr.rel target = $region3
  $region8: #{lenet5_forward.2} parent=0 // loop_exit
    _

// kernel: lenet5_forward.3
$region0: #{lenet5_forward.3}
  #allocation0 [shape = 'u32[]', space=smem, size = 0x4, offset = 0x4, fixed_abs, tag = 'smem constant byte address 0x4 - core index']
  #allocation1 [shape = 'u32[144,128]{1,0:T(1,128)}', space=vmem, size = 0x12000, scoped, tag = 'internal scratch']
  %s0 = inlined_call_operand.vmem [shape: bf16[16,4096], index: 0, kind: input, shape index: {}]
  %s1 = inlined_call_operand.vmem [shape: bf16[4096,512], index: 1, kind: input, shape index: {}]
  %s2 = inlined_call_operand.vmem [shape: f32[1,512], index: 2, kind: input, shape index: {}]
  %s3 = inlined_call_operand.vmem [shape: bf16[512,128], index: 3, kind: input, shape index: {}]
  %s4 = inlined_call_operand.vmem [shape: f32[1,128], index: 4, kind: input, shape index: {}]
  %s5 = inlined_call_operand.vmem [shape: f32[16,128], index: 5, kind: output, shape index: {}]
  %s6 = sld [smem:[#allocation0]]
  $region30: #{lenet5_forward.3} parent=0
    _
  %s8 = ssub.s32 1, %s6
  %s9 = scalar_select 0, %s8, %s6
  // Predicated region
  $region2: #{lenet5_forward.3} parent=0 // pred_check
    _
  $region3: #{lenet5_forward.3} parent=0 // pred_check_branch
    %11 = sbr.rel (0) target = $region5
  $region4: #{lenet5_forward.3} parent=0 // pred_region
    _
  $region5: #{lenet5_forward.3} parent=0 // pred_fallthru
    _
  // Predicated region
  $region6: #{lenet5_forward.3} parent=0 // pred_check
    _
  $region7: #{lenet5_forward.3} parent=0 // pred_check_branch
    %13 = sbr.rel (0) target = $region9
  $region8: #{lenet5_forward.3} parent=0 // pred_region
    _
  $region9: #{lenet5_forward.3} parent=0 // pred_fallthru
    _
  // Predicated region
  $region10: #{lenet5_forward.3} parent=0 // pred_check
    _
  $region11: #{lenet5_forward.3} parent=0 // pred_check_branch
    %15 = sbr.rel (0) target = $region13
  $region12: #{lenet5_forward.3} parent=0 // pred_region
    _
  $region13: #{lenet5_forward.3} parent=0 // pred_fallthru
    _
  // Predicated region
  $region14: #{lenet5_forward.3} parent=0 // pred_check
    _
  $region15: #{lenet5_forward.3} parent=0 // pred_check_branch
    %17 = sbr.rel (0) target = $region17
  $region16: #{lenet5_forward.3} parent=0 // pred_region
    _
  $region17: #{lenet5_forward.3} parent=0 // pred_fallthru
    _
  // Predicated region
  $region18: #{lenet5_forward.3} parent=0 // pred_check
    _
  $region19: #{lenet5_forward.3} parent=0 // pred_check_branch
    %19 = sbr.rel (0) target = $region21
  $region20: #{lenet5_forward.3} parent=0 // pred_region
    _
  $region21: #{lenet5_forward.3} parent=0 // pred_fallthru
    _
  %v21 = vld [vmem:[%s0] sm:$0xff]
  %v22 = vld [vmem:[%s0 + $0x8] sm:$0xff]
  %v23 = vld [vmem:[%s0 + $0x10] sm:$0xff]
  %v24 = vld [vmem:[%s0 + $0x18] sm:$0xff]
  %v25 = vld [vmem:[%s0 + $0x20] sm:$0xff]
  %v26 = vld [vmem:[%s0 + $0x28] sm:$0xff]
  %v27 = vld [vmem:[%s0 + $0x30] sm:$0xff]
  %v28 = vld [vmem:[%s0 + $0x38] sm:$0xff]
  %v29 = vld [vmem:[%s0 + $0x40] sm:$0xff]
  %v30 = vld [vmem:[%s0 + $0x48] sm:$0xff]
  %v31 = vld [vmem:[%s0 + $0x50] sm:$0xff]
  %v32 = vld [vmem:[%s0 + $0x58] sm:$0xff]
  %v33 = vld [vmem:[%s0 + $0x60] sm:$0xff]
  %v34 = vld [vmem:[%s0 + $0x68] sm:$0xff]
  %v35 = vld [vmem:[%s0 + $0x70] sm:$0xff]
  %v36 = vld [vmem:[%s0 + $0x78] sm:$0xff]
  %v37 = vld [vmem:[%s0 + $0x80] sm:$0xff]
  %v38 = vld [vmem:[%s0 + $0x88] sm:$0xff]
  %v39 = vld [vmem:[%s0 + $0x90] sm:$0xff]
  %v40 = vld [vmem:[%s0 + $0x98] sm:$0xff]
  %v41 = vld [vmem:[%s0 + $0xa0] sm:$0xff]
  %v42 = vld [vmem:[%s0 + $0xa8] sm:$0xff]
  %v43 = vld [vmem:[%s0 + $0xb0] sm:$0xff]
  %v44 = vld [vmem:[%s0 + $0xb8] sm:$0xff]
  %v45 = vld [vmem:[%s0 + $0xc0] sm:$0xff]
  %v46 = vld [vmem:[%s0 + $0xc8] sm:$0xff]
  %v47 = vld [vmem:[%s0 + $0xd0] sm:$0xff]
  %v48 = vld [vmem:[%s0 + $0xd8] sm:$0xff]
  %v49 = vld [vmem:[%s0 + $0xe0] sm:$0xff]
  %v50 = vld [vmem:[%s0 + $0xe8] sm:$0xff]
  %v51 = vld [vmem:[%s0 + $0xf0] sm:$0xff]
  %v52 = vld [vmem:[%s0 + $0xf8] sm:$0xff]
  %v53 = vld [vmem:[%s1] sm:$0xff]
  %v54 = vld [vmem:[%s1 + $0x8] sm:$0xff]
  %v55 = vld [vmem:[%s1 + $0x10] sm:$0xff]
  %v56 = vld [vmem:[%s1 + $0x18] sm:$0xff]
  %v57 = vld [vmem:[%s1 + $0x20] sm:$0xff]
  %v58 = vld [vmem:[%s1 + $0x28] sm:$0xff]
  %v59 = vld [vmem:[%s1 + $0x30] sm:$0xff]
  %v60 = vld [vmem:[%s1 + $0x38] sm:$0xff]
  %v61 = vld [vmem:[%s1 + $0x40] sm:$0xff]
  %v62 = vld [vmem:[%s1 + $0x48] sm:$0xff]
  %v63 = vld [vmem:[%s1 + $0x50] sm:$0xff]
  %v64 = vld [vmem:[%s1 + $0x58] sm:$0xff]
  %v65 = vld [vmem:[%s1 + $0x60] sm:$0xff]
  %v66 = vld [vmem:[%s1 + $0x68] sm:$0xff]
  %v67 = vld [vmem:[%s1 + $0x70] sm:$0xff]
  %v68 = vld [vmem:[%s1 + $0x78] sm:$0xff]
  %v69 = vld [vmem:[%s1 + $0x80] sm:$0xff]
  %v70 = vld [vmem:[%s1 + $0x88] sm:$0xff]
  %v71 = vld [vmem:[%s1 + $0x90] sm:$0xff]
  %v72 = vld [vmem:[%s1 + $0x98] sm:$0xff]
  %v73 = vld [vmem:[%s1 + $0xa0] sm:$0xff]
  %v74 = vld [vmem:[%s1 + $0xa8] sm:$0xff]
  %v75 = vld [vmem:[%s1 + $0xb0] sm:$0xff]
  %v76 = vld [vmem:[%s1 + $0xb8] sm:$0xff]
  %v77 = vld [vmem:[%s1 + $0xc0] sm:$0xff]
  %v78 = vld [vmem:[%s1 + $0xc8] sm:$0xff]
  %v79 = vld [vmem:[%s1 + $0xd0] sm:$0xff]
  %v80 = vld [vmem:[%s1 + $0xd8] sm:$0xff]
  %v81 = vld [vmem:[%s1 + $0xe0] sm:$0xff]
  %v82 = vld [vmem:[%s1 + $0xe8] sm:$0xff]
  %v83 = vld [vmem:[%s1 + $0xf0] sm:$0xff]
  %v84 = vld [vmem:[%s1 + $0xf8] sm:$0xff]
  %v85 = vld [vmem:[%s1 + $0x100] sm:$0xff]
  %v86 = vld [vmem:[%s1 + $0x108] sm:$0xff]
  %v87 = vld [vmem:[%s1 + $0x110] sm:$0xff]
  %v88 = vld [vmem:[%s1 + $0x118] sm:$0xff]
  %v89 = vld [vmem:[%s1 + $0x120] sm:$0xff]
  %v90 = vld [vmem:[%s1 + $0x128] sm:$0xff]
  %v91 = vld [vmem:[%s1 + $0x130] sm:$0xff]
  %v92 = vld [vmem:[%s1 + $0x138] sm:$0xff]
  %v93 = vld [vmem:[%s1 + $0x140] sm:$0xff]
  %v94 = vld [vmem:[%s1 + $0x148] sm:$0xff]
  %v95 = vld [vmem:[%s1 + $0x150] sm:$0xff]
  %v96 = vld [vmem:[%s1 + $0x158] sm:$0xff]
  %v97 = vld [vmem:[%s1 + $0x160] sm:$0xff]
  %v98 = vld [vmem:[%s1 + $0x168] sm:$0xff]
  %v99 = vld [vmem:[%s1 + $0x170] sm:$0xff]
  %v100 = vld [vmem:[%s1 + $0x178] sm:$0xff]
  %v101 = vld [vmem:[%s1 + $0x180] sm:$0xff]
  %v102 = vld [vmem:[%s1 + $0x188] sm:$0xff]
  %v103 = vld [vmem:[%s1 + $0x190] sm:$0xff]
  %v104 = vld [vmem:[%s1 + $0x198] sm:$0xff]
  %v105 = vld [vmem:[%s1 + $0x1a0] sm:$0xff]
  %v106 = vld [vmem:[%s1 + $0x1a8] sm:$0xff]
  %v107 = vld [vmem:[%s1 + $0x1b0] sm:$0xff]
  %v108 = vld [vmem:[%s1 + $0x1b8] sm:$0xff]
  %v109 = vld [vmem:[%s1 + $0x1c0] sm:$0xff]
  %v110 = vld [vmem:[%s1 + $0x1c8] sm:$0xff]
  %v111 = vld [vmem:[%s1 + $0x1d0] sm:$0xff]
  %v112 = vld [vmem:[%s1 + $0x1d8] sm:$0xff]
  %v113 = vld [vmem:[%s1 + $0x1e0] sm:$0xff]
  %v114 = vld [vmem:[%s1 + $0x1e8] sm:$0xff]
  %v115 = vld [vmem:[%s1 + $0x1f0] sm:$0xff]
  %v116 = vld [vmem:[%s1 + $0x1f8] sm:$0xff]
  %v117 = vld [vmem:[%s1 + $0x200] sm:$0xff]
  %v118 = vld [vmem:[%s1 + $0x208] sm:$0xff]
  %v119 = vld [vmem:[%s1 + $0x210] sm:$0xff]
  %v120 = vld [vmem:[%s1 + $0x218] sm:$0xff]
  %v121 = vld [vmem:[%s1 + $0x220] sm:$0xff]
  %v122 = vld [vmem:[%s1 + $0x228] sm:$0xff]
  %v123 = vld [vmem:[%s1 + $0x230] sm:$0xff]
  %v124 = vld [vmem:[%s1 + $0x238] sm:$0xff]
  %v125 = vld [vmem:[%s1 + $0x240] sm:$0xff]
  %v126 = vld [vmem:[%s1 + $0x248] sm:$0xff]
  %v127 = vld [vmem:[%s1 + $0x250] sm:$0xff]
  %v128 = vld [vmem:[%s1 + $0x258] sm:$0xff]
  %v129 = vld [vmem:[%s1 + $0x260] sm:$0xff]
  %v130 = vld [vmem:[%s1 + $0x268] sm:$0xff]
  %v131 = vld [vmem:[%s1 + $0x270] sm:$0xff]
  %v132 = vld [vmem:[%s1 + $0x278] sm:$0xff]
  %v133 = vld [vmem:[%s1 + $0x280] sm:$0xff]
  %v134 = vld [vmem:[%s1 + $0x288] sm:$0xff]
  %v135 = vld [vmem:[%s1 + $0x290] sm:$0xff]
  %v136 = vld [vmem:[%s1 + $0x298] sm:$0xff]
  %v137 = vld [vmem:[%s1 + $0x2a0] sm:$0xff]
  %v138 = vld [vmem:[%s1 + $0x2a8] sm:$0xff]
  %v139 = vld [vmem:[%s1 + $0x2b0] sm:$0xff]
  %v140 = vld [vmem:[%s1 + $0x2b8] sm:$0xff]
  %v141 = vld [vmem:[%s1 + $0x2c0] sm:$0xff]
  %v142 = vld [vmem:[%s1 + $0x2c8] sm:$0xff]
  %v143 = vld [vmem:[%s1 + $0x2d0] sm:$0xff]
  %v144 = vld [vmem:[%s1 + $0x2d8] sm:$0xff]
  %v145 = vld [vmem:[%s1 + $0x2e0] sm:$0xff]
  %v146 = vld [vmem:[%s1 + $0x2e8] sm:$0xff]
  %v147 = vld [vmem:[%s1 + $0x2f0] sm:$0xff]
  %v148 = vld [vmem:[%s1 + $0x2f8] sm:$0xff]
  %v149 = vld [vmem:[%s1 + $0x300] sm:$0xff]
  %v150 = vld [vmem:[%s1 + $0x308] sm:$0xff]
  %v151 = vld [vmem:[%s1 + $0x310] sm:$0xff]
  %v152 = vld [vmem:[%s1 + $0x318] sm:$0xff]
  %v153 = vld [vmem:[%s1 + $0x320] sm:$0xff]
  %v154 = vld [vmem:[%s1 + $0x328] sm:$0xff]
  %v155 = vld [vmem:[%s1 + $0x330] sm:$0xff]
  %v156 = vld [vmem:[%s1 + $0x338] sm:$0xff]
  %v157 = vld [vmem:[%s1 + $0x340] sm:$0xff]
  %v158 = vld [vmem:[%s1 + $0x348] sm:$0xff]
  %v159 = vld [vmem:[%s1 + $0x350] sm:$0xff]
  %v160 = vld [vmem:[%s1 + $0x358] sm:$0xff]
  %v161 = vld [vmem:[%s1 + $0x360] sm:$0xff]
  %v162 = vld [vmem:[%s1 + $0x368] sm:$0xff]
  %v163 = vld [vmem:[%s1 + $0x370] sm:$0xff]
  %v164 = vld [vmem:[%s1 + $0x378] sm:$0xff]
  %v165 = vld [vmem:[%s1 + $0x380] sm:$0xff]
  %v166 = vld [vmem:[%s1 + $0x388] sm:$0xff]
  %v167 = vld [vmem:[%s1 + $0x390] sm:$0xff]
  %v168 = vld [vmem:[%s1 + $0x398] sm:$0xff]
  %v169 = vld [vmem:[%s1 + $0x3a0] sm:$0xff]
  %v170 = vld [vmem:[%s1 + $0x3a8] sm:$0xff]
  %v171 = vld [vmem:[%s1 + $0x3b0] sm:$0xff]
  %v172 = vld [vmem:[%s1 + $0x3b8] sm:$0xff]
  %v173 = vld [vmem:[%s1 + $0x3c0] sm:$0xff]
  %v174 = vld [vmem:[%s1 + $0x3c8] sm:$0xff]
  %v175 = vld [vmem:[%s1 + $0x3d0] sm:$0xff]
  %v176 = vld [vmem:[%s1 + $0x3d8] sm:$0xff]
  %v177 = vld [vmem:[%s1 + $0x3e0] sm:$0xff]
  %v178 = vld [vmem:[%s1 + $0x3e8] sm:$0xff]
  %v179 = vld [vmem:[%s1 + $0x3f0] sm:$0xff]
  %v180 = vld [vmem:[%s1 + $0x3f8] sm:$0xff]
  %v181 = vld [vmem:[%s1 + $0x400] sm:$0xff]
  %v182 = vld [vmem:[%s1 + $0x408] sm:$0xff]
  %v183 = vld [vmem:[%s1 + $0x410] sm:$0xff]
  %v184 = vld [vmem:[%s1 + $0x418] sm:$0xff]
  %v185 = vld [vmem:[%s1 + $0x420] sm:$0xff]
  %v186 = vld [vmem:[%s1 + $0x428] sm:$0xff]
  %v187 = vld [vmem:[%s1 + $0x430] sm:$0xff]
  %v188 = vld [vmem:[%s1 + $0x438] sm:$0xff]
  %v189 = vld [vmem:[%s1 + $0x440] sm:$0xff]
  %v190 = vld [vmem:[%s1 + $0x448] sm:$0xff]
  %v191 = vld [vmem:[%s1 + $0x450] sm:$0xff]
  %v192 = vld [vmem:[%s1 + $0x458] sm:$0xff]
  %v193 = vld [vmem:[%s1 + $0x460] sm:$0xff]
  %v194 = vld [vmem:[%s1 + $0x468] sm:$0xff]
  %v195 = vld [vmem:[%s1 + $0x470] sm:$0xff]
  %v196 = vld [vmem:[%s1 + $0x478] sm:$0xff]
  %v197 = vld [vmem:[%s1 + $0x480] sm:$0xff]
  %v198 = vld [vmem:[%s1 + $0x488] sm:$0xff]
  %v199 = vld [vmem:[%s1 + $0x490] sm:$0xff]
  %v200 = vld [vmem:[%s1 + $0x498] sm:$0xff]
  %v201 = vld [vmem:[%s1 + $0x4a0] sm:$0xff]
  %v202 = vld [vmem:[%s1 + $0x4a8] sm:$0xff]
  %v203 = vld [vmem:[%s1 + $0x4b0] sm:$0xff]
  %v204 = vld [vmem:[%s1 + $0x4b8] sm:$0xff]
  %v205 = vld [vmem:[%s1 + $0x4c0] sm:$0xff]
  %v206 = vld [vmem:[%s1 + $0x4c8] sm:$0xff]
  %v207 = vld [vmem:[%s1 + $0x4d0] sm:$0xff]
  %v208 = vld [vmem:[%s1 + $0x4d8] sm:$0xff]
  %v209 = vld [vmem:[%s1 + $0x4e0] sm:$0xff]
  %v210 = vld [vmem:[%s1 + $0x4e8] sm:$0xff]
  %v211 = vld [vmem:[%s1 + $0x4f0] sm:$0xff]
  %v212 = vld [vmem:[%s1 + $0x4f8] sm:$0xff]
  %v213 = vld [vmem:[%s1 + $0x500] sm:$0xff]
  %v214 = vld [vmem:[%s1 + $0x508] sm:$0xff]
  %v215 = vld [vmem:[%s1 + $0x510] sm:$0xff]
  %v216 = vld [vmem:[%s1 + $0x518] sm:$0xff]
  %v217 = vld [vmem:[%s1 + $0x520] sm:$0xff]
  %v218 = vld [vmem:[%s1 + $0x528] sm:$0xff]
  %v219 = vld [vmem:[%s1 + $0x530] sm:$0xff]
  %v220 = vld [vmem:[%s1 + $0x538] sm:$0xff]
  %v221 = vld [vmem:[%s1 + $0x540] sm:$0xff]
  %v222 = vld [vmem:[%s1 + $0x548] sm:$0xff]
  %v223 = vld [vmem:[%s1 + $0x550] sm:$0xff]
  %v224 = vld [vmem:[%s1 + $0x558] sm:$0xff]
  %v225 = vld [vmem:[%s1 + $0x560] sm:$0xff]
  %v226 = vld [vmem:[%s1 + $0x568] sm:$0xff]
  %v227 = vld [vmem:[%s1 + $0x570] sm:$0xff]
  %v228 = vld [vmem:[%s1 + $0x578] sm:$0xff]
  %v229 = vld [vmem:[%s1 + $0x580] sm:$0xff]
  %v230 = vld [vmem:[%s1 + $0x588] sm:$0xff]
  %v231 = vld [vmem:[%s1 + $0x590] sm:$0xff]
  %v232 = vld [vmem:[%s1 + $0x598] sm:$0xff]
  %v233 = vld [vmem:[%s1 + $0x5a0] sm:$0xff]
  %v234 = vld [vmem:[%s1 + $0x5a8] sm:$0xff]
  %v235 = vld [vmem:[%s1 + $0x5b0] sm:$0xff]
  %v236 = vld [vmem:[%s1 + $0x5b8] sm:$0xff]
  %v237 = vld [vmem:[%s1 + $0x5c0] sm:$0xff]
  %v238 = vld [vmem:[%s1 + $0x5c8] sm:$0xff]
  %v239 = vld [vmem:[%s1 + $0x5d0] sm:$0xff]
  %v240 = vld [vmem:[%s1 + $0x5d8] sm:$0xff]
  %v241 = vld [vmem:[%s1 + $0x5e0] sm:$0xff]
  %v242 = vld [vmem:[%s1 + $0x5e8] sm:$0xff]
  %v243 = vld [vmem:[%s1 + $0x5f0] sm:$0xff]
  %v244 = vld [vmem:[%s1 + $0x5f8] sm:$0xff]
  %v245 = vld [vmem:[%s1 + $0x600] sm:$0xff]
  %v246 = vld [vmem:[%s1 + $0x608] sm:$0xff]
  %v247 = vld [vmem:[%s1 + $0x610] sm:$0xff]
  %v248 = vld [vmem:[%s1 + $0x618] sm:$0xff]
  %v249 = vld [vmem:[%s1 + $0x620] sm:$0xff]
  %v250 = vld [vmem:[%s1 + $0x628] sm:$0xff]
  %v251 = vld [vmem:[%s1 + $0x630] sm:$0xff]
  %v252 = vld [vmem:[%s1 + $0x638] sm:$0xff]
  %v253 = vld [vmem:[%s1 + $0x640] sm:$0xff]
  %v254 = vld [vmem:[%s1 + $0x648] sm:$0xff]
  %v255 = vld [vmem:[%s1 + $0x650] sm:$0xff]
  %v256 = vld [vmem:[%s1 + $0x658] sm:$0xff]
  %v257 = vld [vmem:[%s1 + $0x660] sm:$0xff]
  %v258 = vld [vmem:[%s1 + $0x668] sm:$0xff]
  %v259 = vld [vmem:[%s1 + $0x670] sm:$0xff]
  %v260 = vld [vmem:[%s1 + $0x678] sm:$0xff]
  %v261 = vld [vmem:[%s1 + $0x680] sm:$0xff]
  %v262 = vld [vmem:[%s1 + $0x688] sm:$0xff]
  %v263 = vld [vmem:[%s1 + $0x690] sm:$0xff]
  %v264 = vld [vmem:[%s1 + $0x698] sm:$0xff]
  %v265 = vld [vmem:[%s1 + $0x6a0] sm:$0xff]
  %v266 = vld [vmem:[%s1 + $0x6a8] sm:$0xff]
  %v267 = vld [vmem:[%s1 + $0x6b0] sm:$0xff]
  %v268 = vld [vmem:[%s1 + $0x6b8] sm:$0xff]
  %v269 = vld [vmem:[%s1 + $0x6c0] sm:$0xff]
  %v270 = vld [vmem:[%s1 + $0x6c8] sm:$0xff]
  %v271 = vld [vmem:[%s1 + $0x6d0] sm:$0xff]
  %v272 = vld [vmem:[%s1 + $0x6d8] sm:$0xff]
  %v273 = vld [vmem:[%s1 + $0x6e0] sm:$0xff]
  %v274 = vld [vmem:[%s1 + $0x6e8] sm:$0xff]
  %v275 = vld [vmem:[%s1 + $0x6f0] sm:$0xff]
  %v276 = vld [vmem:[%s1 + $0x6f8] sm:$0xff]
  %v277 = vld [vmem:[%s1 + $0x700] sm:$0xff]
  %v278 = vld [vmem:[%s1 + $0x708] sm:$0xff]
  %v279 = vld [vmem:[%s1 + $0x710] sm:$0xff]
  %v280 = vld [vmem:[%s1 + $0x718] sm:$0xff]
  %v281 = vld [vmem:[%s1 + $0x720] sm:$0xff]
  %v282 = vld [vmem:[%s1 + $0x728] sm:$0xff]
  %v283 = vld [vmem:[%s1 + $0x730] sm:$0xff]
  %v284 = vld [vmem:[%s1 + $0x738] sm:$0xff]
  %v285 = vld [vmem:[%s1 + $0x740] sm:$0xff]
  %v286 = vld [vmem:[%s1 + $0x748] sm:$0xff]
  %v287 = vld [vmem:[%s1 + $0x750] sm:$0xff]
  %v288 = vld [vmem:[%s1 + $0x758] sm:$0xff]
  %v289 = vld [vmem:[%s1 + $0x760] sm:$0xff]
  %v290 = vld [vmem:[%s1 + $0x768] sm:$0xff]
  %v291 = vld [vmem:[%s1 + $0x770] sm:$0xff]
  %v292 = vld [vmem:[%s1 + $0x778] sm:$0xff]
  %v293 = vld [vmem:[%s1 + $0x780] sm:$0xff]
  %v294 = vld [vmem:[%s1 + $0x788] sm:$0xff]
  %v295 = vld [vmem:[%s1 + $0x790] sm:$0xff]
  %v296 = vld [vmem:[%s1 + $0x798] sm:$0xff]
  %v297 = vld [vmem:[%s1 + $0x7a0] sm:$0xff]
  %v298 = vld [vmem:[%s1 + $0x7a8] sm:$0xff]
  %v299 = vld [vmem:[%s1 + $0x7b0] sm:$0xff]
  %v300 = vld [vmem:[%s1 + $0x7b8] sm:$0xff]
  %v301 = vld [vmem:[%s1 + $0x7c0] sm:$0xff]
  %v302 = vld [vmem:[%s1 + $0x7c8] sm:$0xff]
  %v303 = vld [vmem:[%s1 + $0x7d0] sm:$0xff]
  %v304 = vld [vmem:[%s1 + $0x7d8] sm:$0xff]
  %v305 = vld [vmem:[%s1 + $0x7e0] sm:$0xff]
  %v306 = vld [vmem:[%s1 + $0x7e8] sm:$0xff]
  %v307 = vld [vmem:[%s1 + $0x7f0] sm:$0xff]
  %v308 = vld [vmem:[%s1 + $0x7f8] sm:$0xff]
  %v309 = vld [vmem:[%s1 + $0x800] sm:$0xff]
  %v310 = vld [vmem:[%s1 + $0x808] sm:$0xff]
  %v311 = vld [vmem:[%s1 + $0x810] sm:$0xff]
  %v312 = vld [vmem:[%s1 + $0x818] sm:$0xff]
  %v313 = vld [vmem:[%s1 + $0x820] sm:$0xff]
  %v314 = vld [vmem:[%s1 + $0x828] sm:$0xff]
  %v315 = vld [vmem:[%s1 + $0x830] sm:$0xff]
  %v316 = vld [vmem:[%s1 + $0x838] sm:$0xff]
  %v317 = vld [vmem:[%s1 + $0x840] sm:$0xff]
  %v318 = vld [vmem:[%s1 + $0x848] sm:$0xff]
  %v319 = vld [vmem:[%s1 + $0x850] sm:$0xff]
  %v320 = vld [vmem:[%s1 + $0x858] sm:$0xff]
  %v321 = vld [vmem:[%s1 + $0x860] sm:$0xff]
  %v322 = vld [vmem:[%s1 + $0x868] sm:$0xff]
  %v323 = vld [vmem:[%s1 + $0x870] sm:$0xff]
  %v324 = vld [vmem:[%s1 + $0x878] sm:$0xff]
  %v325 = vld [vmem:[%s1 + $0x880] sm:$0xff]
  %v326 = vld [vmem:[%s1 + $0x888] sm:$0xff]
  %v327 = vld [vmem:[%s1 + $0x890] sm:$0xff]
  %v328 = vld [vmem:[%s1 + $0x898] sm:$0xff]
  %v329 = vld [vmem:[%s1 + $0x8a0] sm:$0xff]
  %v330 = vld [vmem:[%s1 + $0x8a8] sm:$0xff]
  %v331 = vld [vmem:[%s1 + $0x8b0] sm:$0xff]
  %v332 = vld [vmem:[%s1 + $0x8b8] sm:$0xff]
  %v333 = vld [vmem:[%s1 + $0x8c0] sm:$0xff]
  %v334 = vld [vmem:[%s1 + $0x8c8] sm:$0xff]
  %v335 = vld [vmem:[%s1 + $0x8d0] sm:$0xff]
  %v336 = vld [vmem:[%s1 + $0x8d8] sm:$0xff]
  %v337 = vld [vmem:[%s1 + $0x8e0] sm:$0xff]
  %v338 = vld [vmem:[%s1 + $0x8e8] sm:$0xff]
  %v339 = vld [vmem:[%s1 + $0x8f0] sm:$0xff]
  %v340 = vld [vmem:[%s1 + $0x8f8] sm:$0xff]
  %v341 = vld [vmem:[%s1 + $0x900] sm:$0xff]
  %v342 = vld [vmem:[%s1 + $0x908] sm:$0xff]
  %v343 = vld [vmem:[%s1 + $0x910] sm:$0xff]
  %v344 = vld [vmem:[%s1 + $0x918] sm:$0xff]
  %v345 = vld [vmem:[%s1 + $0x920] sm:$0xff]
  %v346 = vld [vmem:[%s1 + $0x928] sm:$0xff]
  %v347 = vld [vmem:[%s1 + $0x930] sm:$0xff]
  %v348 = vld [vmem:[%s1 + $0x938] sm:$0xff]
  %v349 = vld [vmem:[%s1 + $0x940] sm:$0xff]
  %v350 = vld [vmem:[%s1 + $0x948] sm:$0xff]
  %v351 = vld [vmem:[%s1 + $0x950] sm:$0xff]
  %v352 = vld [vmem:[%s1 + $0x958] sm:$0xff]
  %v353 = vld [vmem:[%s1 + $0x960] sm:$0xff]
  %v354 = vld [vmem:[%s1 + $0x968] sm:$0xff]
  %v355 = vld [vmem:[%s1 + $0x970] sm:$0xff]
  %v356 = vld [vmem:[%s1 + $0x978] sm:$0xff]
  %v357 = vld [vmem:[%s1 + $0x980] sm:$0xff]
  %v358 = vld [vmem:[%s1 + $0x988] sm:$0xff]
  %v359 = vld [vmem:[%s1 + $0x990] sm:$0xff]
  %v360 = vld [vmem:[%s1 + $0x998] sm:$0xff]
  %v361 = vld [vmem:[%s1 + $0x9a0] sm:$0xff]
  %v362 = vld [vmem:[%s1 + $0x9a8] sm:$0xff]
  %v363 = vld [vmem:[%s1 + $0x9b0] sm:$0xff]
  %v364 = vld [vmem:[%s1 + $0x9b8] sm:$0xff]
  %v365 = vld [vmem:[%s1 + $0x9c0] sm:$0xff]
  %v366 = vld [vmem:[%s1 + $0x9c8] sm:$0xff]
  %v367 = vld [vmem:[%s1 + $0x9d0] sm:$0xff]
  %v368 = vld [vmem:[%s1 + $0x9d8] sm:$0xff]
  %v369 = vld [vmem:[%s1 + $0x9e0] sm:$0xff]
  %v370 = vld [vmem:[%s1 + $0x9e8] sm:$0xff]
  %v371 = vld [vmem:[%s1 + $0x9f0] sm:$0xff]
  %v372 = vld [vmem:[%s1 + $0x9f8] sm:$0xff]
  %v373 = vld [vmem:[%s1 + $0xa00] sm:$0xff]
  %v374 = vld [vmem:[%s1 + $0xa08] sm:$0xff]
  %v375 = vld [vmem:[%s1 + $0xa10] sm:$0xff]
  %v376 = vld [vmem:[%s1 + $0xa18] sm:$0xff]
  %v377 = vld [vmem:[%s1 + $0xa20] sm:$0xff]
  %v378 = vld [vmem:[%s1 + $0xa28] sm:$0xff]
  %v379 = vld [vmem:[%s1 + $0xa30] sm:$0xff]
  %v380 = vld [vmem:[%s1 + $0xa38] sm:$0xff]
  %v381 = vld [vmem:[%s1 + $0xa40] sm:$0xff]
  %v382 = vld [vmem:[%s1 + $0xa48] sm:$0xff]
  %v383 = vld [vmem:[%s1 + $0xa50] sm:$0xff]
  %v384 = vld [vmem:[%s1 + $0xa58] sm:$0xff]
  %v385 = vld [vmem:[%s1 + $0xa60] sm:$0xff]
  %v386 = vld [vmem:[%s1 + $0xa68] sm:$0xff]
  %v387 = vld [vmem:[%s1 + $0xa70] sm:$0xff]
  %v388 = vld [vmem:[%s1 + $0xa78] sm:$0xff]
  %v389 = vld [vmem:[%s1 + $0xa80] sm:$0xff]
  %v390 = vld [vmem:[%s1 + $0xa88] sm:$0xff]
  %v391 = vld [vmem:[%s1 + $0xa90] sm:$0xff]
  %v392 = vld [vmem:[%s1 + $0xa98] sm:$0xff]
  %v393 = vld [vmem:[%s1 + $0xaa0] sm:$0xff]
  %v394 = vld [vmem:[%s1 + $0xaa8] sm:$0xff]
  %v395 = vld [vmem:[%s1 + $0xab0] sm:$0xff]
  %v396 = vld [vmem:[%s1 + $0xab8] sm:$0xff]
  %v397 = vld [vmem:[%s1 + $0xac0] sm:$0xff]
  %v398 = vld [vmem:[%s1 + $0xac8] sm:$0xff]
  %v399 = vld [vmem:[%s1 + $0xad0] sm:$0xff]
  %v400 = vld [vmem:[%s1 + $0xad8] sm:$0xff]
  %v401 = vld [vmem:[%s1 + $0xae0] sm:$0xff]
  %v402 = vld [vmem:[%s1 + $0xae8] sm:$0xff]
  %v403 = vld [vmem:[%s1 + $0xaf0] sm:$0xff]
  %v404 = vld [vmem:[%s1 + $0xaf8] sm:$0xff]
  %v405 = vld [vmem:[%s1 + $0xb00] sm:$0xff]
  %v406 = vld [vmem:[%s1 + $0xb08] sm:$0xff]
  %v407 = vld [vmem:[%s1 + $0xb10] sm:$0xff]
  %v408 = vld [vmem:[%s1 + $0xb18] sm:$0xff]
  %v409 = vld [vmem:[%s1 + $0xb20] sm:$0xff]
  %v410 = vld [vmem:[%s1 + $0xb28] sm:$0xff]
  %v411 = vld [vmem:[%s1 + $0xb30] sm:$0xff]
  %v412 = vld [vmem:[%s1 + $0xb38] sm:$0xff]
  %v413 = vld [vmem:[%s1 + $0xb40] sm:$0xff]
  %v414 = vld [vmem:[%s1 + $0xb48] sm:$0xff]
  %v415 = vld [vmem:[%s1 + $0xb50] sm:$0xff]
  %v416 = vld [vmem:[%s1 + $0xb58] sm:$0xff]
  %v417 = vld [vmem:[%s1 + $0xb60] sm:$0xff]
  %v418 = vld [vmem:[%s1 + $0xb68] sm:$0xff]
  %v419 = vld [vmem:[%s1 + $0xb70] sm:$0xff]
  %v420 = vld [vmem:[%s1 + $0xb78] sm:$0xff]
  %v421 = vld [vmem:[%s1 + $0xb80] sm:$0xff]
  %v422 = vld [vmem:[%s1 + $0xb88] sm:$0xff]
  %v423 = vld [vmem:[%s1 + $0xb90] sm:$0xff]
  %v424 = vld [vmem:[%s1 + $0xb98] sm:$0xff]
  %v425 = vld [vmem:[%s1 + $0xba0] sm:$0xff]
  %v426 = vld [vmem:[%s1 + $0xba8] sm:$0xff]
  %v427 = vld [vmem:[%s1 + $0xbb0] sm:$0xff]
  %v428 = vld [vmem:[%s1 + $0xbb8] sm:$0xff]
  %v429 = vld [vmem:[%s1 + $0xbc0] sm:$0xff]
  %v430 = vld [vmem:[%s1 + $0xbc8] sm:$0xff]
  %v431 = vld [vmem:[%s1 + $0xbd0] sm:$0xff]
  %v432 = vld [vmem:[%s1 + $0xbd8] sm:$0xff]
  %v433 = vld [vmem:[%s1 + $0xbe0] sm:$0xff]
  %v434 = vld [vmem:[%s1 + $0xbe8] sm:$0xff]
  %v435 = vld [vmem:[%s1 + $0xbf0] sm:$0xff]
  %v436 = vld [vmem:[%s1 + $0xbf8] sm:$0xff]
  %v437 = vld [vmem:[%s1 + $0xc00] sm:$0xff]
  %v438 = vld [vmem:[%s1 + $0xc08] sm:$0xff]
  %v439 = vld [vmem:[%s1 + $0xc10] sm:$0xff]
  %v440 = vld [vmem:[%s1 + $0xc18] sm:$0xff]
  %v441 = vld [vmem:[%s1 + $0xc20] sm:$0xff]
  %v442 = vld [vmem:[%s1 + $0xc28] sm:$0xff]
  %v443 = vld [vmem:[%s1 + $0xc30] sm:$0xff]
  %v444 = vld [vmem:[%s1 + $0xc38] sm:$0xff]
  %v445 = vld [vmem:[%s1 + $0xc40] sm:$0xff]
  %v446 = vld [vmem:[%s1 + $0xc48] sm:$0xff]
  %v447 = vld [vmem:[%s1 + $0xc50] sm:$0xff]
  %v448 = vld [vmem:[%s1 + $0xc58] sm:$0xff]
  %v449 = vld [vmem:[%s1 + $0xc60] sm:$0xff]
  %v450 = vld [vmem:[%s1 + $0xc68] sm:$0xff]
  %v451 = vld [vmem:[%s1 + $0xc70] sm:$0xff]
  %v452 = vld [vmem:[%s1 + $0xc78] sm:$0xff]
  %v453 = vld [vmem:[%s1 + $0xc80] sm:$0xff]
  %v454 = vld [vmem:[%s1 + $0xc88] sm:$0xff]
  %v455 = vld [vmem:[%s1 + $0xc90] sm:$0xff]
  %v456 = vld [vmem:[%s1 + $0xc98] sm:$0xff]
  %v457 = vld [vmem:[%s1 + $0xca0] sm:$0xff]
  %v458 = vld [vmem:[%s1 + $0xca8] sm:$0xff]
  %v459 = vld [vmem:[%s1 + $0xcb0] sm:$0xff]
  %v460 = vld [vmem:[%s1 + $0xcb8] sm:$0xff]
  %v461 = vld [vmem:[%s1 + $0xcc0] sm:$0xff]
  %v462 = vld [vmem:[%s1 + $0xcc8] sm:$0xff]
  %v463 = vld [vmem:[%s1 + $0xcd0] sm:$0xff]
  %v464 = vld [vmem:[%s1 + $0xcd8] sm:$0xff]
  %v465 = vld [vmem:[%s1 + $0xce0] sm:$0xff]
  %v466 = vld [vmem:[%s1 + $0xce8] sm:$0xff]
  %v467 = vld [vmem:[%s1 + $0xcf0] sm:$0xff]
  %v468 = vld [vmem:[%s1 + $0xcf8] sm:$0xff]
  %v469 = vld [vmem:[%s1 + $0xd00] sm:$0xff]
  %v470 = vld [vmem:[%s1 + $0xd08] sm:$0xff]
  %v471 = vld [vmem:[%s1 + $0xd10] sm:$0xff]
  %v472 = vld [vmem:[%s1 + $0xd18] sm:$0xff]
  %v473 = vld [vmem:[%s1 + $0xd20] sm:$0xff]
  %v474 = vld [vmem:[%s1 + $0xd28] sm:$0xff]
  %v475 = vld [vmem:[%s1 + $0xd30] sm:$0xff]
  %v476 = vld [vmem:[%s1 + $0xd38] sm:$0xff]
  %v477 = vld [vmem:[%s1 + $0xd40] sm:$0xff]
  %v478 = vld [vmem:[%s1 + $0xd48] sm:$0xff]
  %v479 = vld [vmem:[%s1 + $0xd50] sm:$0xff]
  %v480 = vld [vmem:[%s1 + $0xd58] sm:$0xff]
  %v481 = vld [vmem:[%s1 + $0xd60] sm:$0xff]
  %v482 = vld [vmem:[%s1 + $0xd68] sm:$0xff]
  %v483 = vld [vmem:[%s1 + $0xd70] sm:$0xff]
  %v484 = vld [vmem:[%s1 + $0xd78] sm:$0xff]
  %v485 = vld [vmem:[%s1 + $0xd80] sm:$0xff]
  %v486 = vld [vmem:[%s1 + $0xd88] sm:$0xff]
  %v487 = vld [vmem:[%s1 + $0xd90] sm:$0xff]
  %v488 = vld [vmem:[%s1 + $0xd98] sm:$0xff]
  %v489 = vld [vmem:[%s1 + $0xda0] sm:$0xff]
  %v490 = vld [vmem:[%s1 + $0xda8] sm:$0xff]
  %v491 = vld [vmem:[%s1 + $0xdb0] sm:$0xff]
  %v492 = vld [vmem:[%s1 + $0xdb8] sm:$0xff]
  %v493 = vld [vmem:[%s1 + $0xdc0] sm:$0xff]
  %v494 = vld [vmem:[%s1 + $0xdc8] sm:$0xff]
  %v495 = vld [vmem:[%s1 + $0xdd0] sm:$0xff]
  %v496 = vld [vmem:[%s1 + $0xdd8] sm:$0xff]
  %v497 = vld [vmem:[%s1 + $0xde0] sm:$0xff]
  %v498 = vld [vmem:[%s1 + $0xde8] sm:$0xff]
  %v499 = vld [vmem:[%s1 + $0xdf0] sm:$0xff]
  %v500 = vld [vmem:[%s1 + $0xdf8] sm:$0xff]
  %v501 = vld [vmem:[%s1 + $0xe00] sm:$0xff]
  %v502 = vld [vmem:[%s1 + $0xe08] sm:$0xff]
  %v503 = vld [vmem:[%s1 + $0xe10] sm:$0xff]
  %v504 = vld [vmem:[%s1 + $0xe18] sm:$0xff]
  %v505 = vld [vmem:[%s1 + $0xe20] sm:$0xff]
  %v506 = vld [vmem:[%s1 + $0xe28] sm:$0xff]
  %v507 = vld [vmem:[%s1 + $0xe30] sm:$0xff]
  %v508 = vld [vmem:[%s1 + $0xe38] sm:$0xff]
  %v509 = vld [vmem:[%s1 + $0xe40] sm:$0xff]
  %v510 = vld [vmem:[%s1 + $0xe48] sm:$0xff]
  %v511 = vld [vmem:[%s1 + $0xe50] sm:$0xff]
  %v512 = vld [vmem:[%s1 + $0xe58] sm:$0xff]
  %v513 = vld [vmem:[%s1 + $0xe60] sm:$0xff]
  %v514 = vld [vmem:[%s1 + $0xe68] sm:$0xff]
  %v515 = vld [vmem:[%s1 + $0xe70] sm:$0xff]
  %v516 = vld [vmem:[%s1 + $0xe78] sm:$0xff]
  %v517 = vld [vmem:[%s1 + $0xe80] sm:$0xff]
  %v518 = vld [vmem:[%s1 + $0xe88] sm:$0xff]
  %v519 = vld [vmem:[%s1 + $0xe90] sm:$0xff]
  %v520 = vld [vmem:[%s1 + $0xe98] sm:$0xff]
  %v521 = vld [vmem:[%s1 + $0xea0] sm:$0xff]
  %v522 = vld [vmem:[%s1 + $0xea8] sm:$0xff]
  %v523 = vld [vmem:[%s1 + $0xeb0] sm:$0xff]
  %v524 = vld [vmem:[%s1 + $0xeb8] sm:$0xff]
  %v525 = vld [vmem:[%s1 + $0xec0] sm:$0xff]
  %v526 = vld [vmem:[%s1 + $0xec8] sm:$0xff]
  %v527 = vld [vmem:[%s1 + $0xed0] sm:$0xff]
  %v528 = vld [vmem:[%s1 + $0xed8] sm:$0xff]
  %v529 = vld [vmem:[%s1 + $0xee0] sm:$0xff]
  %v530 = vld [vmem:[%s1 + $0xee8] sm:$0xff]
  %v531 = vld [vmem:[%s1 + $0xef0] sm:$0xff]
  %v532 = vld [vmem:[%s1 + $0xef8] sm:$0xff]
  %v533 = vld [vmem:[%s1 + $0xf00] sm:$0xff]
  %v534 = vld [vmem:[%s1 + $0xf08] sm:$0xff]
  %v535 = vld [vmem:[%s1 + $0xf10] sm:$0xff]
  %v536 = vld [vmem:[%s1 + $0xf18] sm:$0xff]
  %v537 = vld [vmem:[%s1 + $0xf20] sm:$0xff]
  %v538 = vld [vmem:[%s1 + $0xf28] sm:$0xff]
  %v539 = vld [vmem:[%s1 + $0xf30] sm:$0xff]
  %v540 = vld [vmem:[%s1 + $0xf38] sm:$0xff]
  %v541 = vld [vmem:[%s1 + $0xf40] sm:$0xff]
  %v542 = vld [vmem:[%s1 + $0xf48] sm:$0xff]
  %v543 = vld [vmem:[%s1 + $0xf50] sm:$0xff]
  %v544 = vld [vmem:[%s1 + $0xf58] sm:$0xff]
  %v545 = vld [vmem:[%s1 + $0xf60] sm:$0xff]
  %v546 = vld [vmem:[%s1 + $0xf68] sm:$0xff]
  %v547 = vld [vmem:[%s1 + $0xf70] sm:$0xff]
  %v548 = vld [vmem:[%s1 + $0xf78] sm:$0xff]
  %v549 = vld [vmem:[%s1 + $0xf80] sm:$0xff]
  %v550 = vld [vmem:[%s1 + $0xf88] sm:$0xff]
  %v551 = vld [vmem:[%s1 + $0xf90] sm:$0xff]
  %v552 = vld [vmem:[%s1 + $0xf98] sm:$0xff]
  %v553 = vld [vmem:[%s1 + $0xfa0] sm:$0xff]
  %v554 = vld [vmem:[%s1 + $0xfa8] sm:$0xff]
  %v555 = vld [vmem:[%s1 + $0xfb0] sm:$0xff]
  %v556 = vld [vmem:[%s1 + $0xfb8] sm:$0xff]
  %v557 = vld [vmem:[%s1 + $0xfc0] sm:$0xff]
  %v558 = vld [vmem:[%s1 + $0xfc8] sm:$0xff]
  %v559 = vld [vmem:[%s1 + $0xfd0] sm:$0xff]
  %v560 = vld [vmem:[%s1 + $0xfd8] sm:$0xff]
  %v561 = vld [vmem:[%s1 + $0xfe0] sm:$0xff]
  %v562 = vld [vmem:[%s1 + $0xfe8] sm:$0xff]
  %v563 = vld [vmem:[%s1 + $0xff0] sm:$0xff]
  %v564 = vld [vmem:[%s1 + $0xff8] sm:$0xff]
  %v565 = vld [vmem:[%s1 + $0x1000] sm:$0xff]
  %v566 = vld [vmem:[%s1 + $0x1008] sm:$0xff]
  %v567 = vld [vmem:[%s1 + $0x1010] sm:$0xff]
  %v568 = vld [vmem:[%s1 + $0x1018] sm:$0xff]
  %v569 = vld [vmem:[%s1 + $0x1020] sm:$0xff]
  %v570 = vld [vmem:[%s1 + $0x1028] sm:$0xff]
  %v571 = vld [vmem:[%s1 + $0x1030] sm:$0xff]
  %v572 = vld [vmem:[%s1 + $0x1038] sm:$0xff]
  %v573 = vld [vmem:[%s1 + $0x1040] sm:$0xff]
  %v574 = vld [vmem:[%s1 + $0x1048] sm:$0xff]
  %v575 = vld [vmem:[%s1 + $0x1050] sm:$0xff]
  %v576 = vld [vmem:[%s1 + $0x1058] sm:$0xff]
  %v577 = vld [vmem:[%s1 + $0x1060] sm:$0xff]
  %v578 = vld [vmem:[%s1 + $0x1068] sm:$0xff]
  %v579 = vld [vmem:[%s1 + $0x1070] sm:$0xff]
  %v580 = vld [vmem:[%s1 + $0x1078] sm:$0xff]
  %v581 = vld [vmem:[%s1 + $0x1080] sm:$0xff]
  %v582 = vld [vmem:[%s1 + $0x1088] sm:$0xff]
  %v583 = vld [vmem:[%s1 + $0x1090] sm:$0xff]
  %v584 = vld [vmem:[%s1 + $0x1098] sm:$0xff]
  %v585 = vld [vmem:[%s1 + $0x10a0] sm:$0xff]
  %v586 = vld [vmem:[%s1 + $0x10a8] sm:$0xff]
  %v587 = vld [vmem:[%s1 + $0x10b0] sm:$0xff]
  %v588 = vld [vmem:[%s1 + $0x10b8] sm:$0xff]
  %v589 = vld [vmem:[%s1 + $0x10c0] sm:$0xff]
  %v590 = vld [vmem:[%s1 + $0x10c8] sm:$0xff]
  %v591 = vld [vmem:[%s1 + $0x10d0] sm:$0xff]
  %v592 = vld [vmem:[%s1 + $0x10d8] sm:$0xff]
  %v593 = vld [vmem:[%s1 + $0x10e0] sm:$0xff]
  %v594 = vld [vmem:[%s1 + $0x10e8] sm:$0xff]
  %v595 = vld [vmem:[%s1 + $0x10f0] sm:$0xff]
  %v596 = vld [vmem:[%s1 + $0x10f8] sm:$0xff]
  %v597 = vld [vmem:[%s1 + $0x1100] sm:$0xff]
  %v598 = vld [vmem:[%s1 + $0x1108] sm:$0xff]
  %v599 = vld [vmem:[%s1 + $0x1110] sm:$0xff]
  %v600 = vld [vmem:[%s1 + $0x1118] sm:$0xff]
  %v601 = vld [vmem:[%s1 + $0x1120] sm:$0xff]
  %v602 = vld [vmem:[%s1 + $0x1128] sm:$0xff]
  %v603 = vld [vmem:[%s1 + $0x1130] sm:$0xff]
  %v604 = vld [vmem:[%s1 + $0x1138] sm:$0xff]
  %v605 = vld [vmem:[%s1 + $0x1140] sm:$0xff]
  %v606 = vld [vmem:[%s1 + $0x1148] sm:$0xff]
  %v607 = vld [vmem:[%s1 + $0x1150] sm:$0xff]
  %v608 = vld [vmem:[%s1 + $0x1158] sm:$0xff]
  %v609 = vld [vmem:[%s1 + $0x1160] sm:$0xff]
  %v610 = vld [vmem:[%s1 + $0x1168] sm:$0xff]
  %v611 = vld [vmem:[%s1 + $0x1170] sm:$0xff]
  %v612 = vld [vmem:[%s1 + $0x1178] sm:$0xff]
  %v613 = vld [vmem:[%s1 + $0x1180] sm:$0xff]
  %v614 = vld [vmem:[%s1 + $0x1188] sm:$0xff]
  %v615 = vld [vmem:[%s1 + $0x1190] sm:$0xff]
  %v616 = vld [vmem:[%s1 + $0x1198] sm:$0xff]
  %v617 = vld [vmem:[%s1 + $0x11a0] sm:$0xff]
  %v618 = vld [vmem:[%s1 + $0x11a8] sm:$0xff]
  %v619 = vld [vmem:[%s1 + $0x11b0] sm:$0xff]
  %v620 = vld [vmem:[%s1 + $0x11b8] sm:$0xff]
  %v621 = vld [vmem:[%s1 + $0x11c0] sm:$0xff]
  %v622 = vld [vmem:[%s1 + $0x11c8] sm:$0xff]
  %v623 = vld [vmem:[%s1 + $0x11d0] sm:$0xff]
  %v624 = vld [vmem:[%s1 + $0x11d8] sm:$0xff]
  %v625 = vld [vmem:[%s1 + $0x11e0] sm:$0xff]
  %v626 = vld [vmem:[%s1 + $0x11e8] sm:$0xff]
  %v627 = vld [vmem:[%s1 + $0x11f0] sm:$0xff]
  %v628 = vld [vmem:[%s1 + $0x11f8] sm:$0xff]
  %v629 = vld [vmem:[%s1 + $0x1200] sm:$0xff]
  %v630 = vld [vmem:[%s1 + $0x1208] sm:$0xff]
  %v631 = vld [vmem:[%s1 + $0x1210] sm:$0xff]
  %v632 = vld [vmem:[%s1 + $0x1218] sm:$0xff]
  %v633 = vld [vmem:[%s1 + $0x1220] sm:$0xff]
  %v634 = vld [vmem:[%s1 + $0x1228] sm:$0xff]
  %v635 = vld [vmem:[%s1 + $0x1230] sm:$0xff]
  %v636 = vld [vmem:[%s1 + $0x1238] sm:$0xff]
  %v637 = vld [vmem:[%s1 + $0x1240] sm:$0xff]
  %v638 = vld [vmem:[%s1 + $0x1248] sm:$0xff]
  %v639 = vld [vmem:[%s1 + $0x1250] sm:$0xff]
  %v640 = vld [vmem:[%s1 + $0x1258] sm:$0xff]
  %v641 = vld [vmem:[%s1 + $0x1260] sm:$0xff]
  %v642 = vld [vmem:[%s1 + $0x1268] sm:$0xff]
  %v643 = vld [vmem:[%s1 + $0x1270] sm:$0xff]
  %v644 = vld [vmem:[%s1 + $0x1278] sm:$0xff]
  %v645 = vld [vmem:[%s1 + $0x1280] sm:$0xff]
  %v646 = vld [vmem:[%s1 + $0x1288] sm:$0xff]
  %v647 = vld [vmem:[%s1 + $0x1290] sm:$0xff]
  %v648 = vld [vmem:[%s1 + $0x1298] sm:$0xff]
  %v649 = vld [vmem:[%s1 + $0x12a0] sm:$0xff]
  %v650 = vld [vmem:[%s1 + $0x12a8] sm:$0xff]
  %v651 = vld [vmem:[%s1 + $0x12b0] sm:$0xff]
  %v652 = vld [vmem:[%s1 + $0x12b8] sm:$0xff]
  %v653 = vld [vmem:[%s1 + $0x12c0] sm:$0xff]
  %v654 = vld [vmem:[%s1 + $0x12c8] sm:$0xff]
  %v655 = vld [vmem:[%s1 + $0x12d0] sm:$0xff]
  %v656 = vld [vmem:[%s1 + $0x12d8] sm:$0xff]
  %v657 = vld [vmem:[%s1 + $0x12e0] sm:$0xff]
  %v658 = vld [vmem:[%s1 + $0x12e8] sm:$0xff]
  %v659 = vld [vmem:[%s1 + $0x12f0] sm:$0xff]
  %v660 = vld [vmem:[%s1 + $0x12f8] sm:$0xff]
  %v661 = vld [vmem:[%s1 + $0x1300] sm:$0xff]
  %v662 = vld [vmem:[%s1 + $0x1308] sm:$0xff]
  %v663 = vld [vmem:[%s1 + $0x1310] sm:$0xff]
  %v664 = vld [vmem:[%s1 + $0x1318] sm:$0xff]
  %v665 = vld [vmem:[%s1 + $0x1320] sm:$0xff]
  %v666 = vld [vmem:[%s1 + $0x1328] sm:$0xff]
  %v667 = vld [vmem:[%s1 + $0x1330] sm:$0xff]
  %v668 = vld [vmem:[%s1 + $0x1338] sm:$0xff]
  %v669 = vld [vmem:[%s1 + $0x1340] sm:$0xff]
  %v670 = vld [vmem:[%s1 + $0x1348] sm:$0xff]
  %v671 = vld [vmem:[%s1 + $0x1350] sm:$0xff]
  %v672 = vld [vmem:[%s1 + $0x1358] sm:$0xff]
  %v673 = vld [vmem:[%s1 + $0x1360] sm:$0xff]
  %v674 = vld [vmem:[%s1 + $0x1368] sm:$0xff]
  %v675 = vld [vmem:[%s1 + $0x1370] sm:$0xff]
  %v676 = vld [vmem:[%s1 + $0x1378] sm:$0xff]
  %v677 = vld [vmem:[%s1 + $0x1380] sm:$0xff]
  %v678 = vld [vmem:[%s1 + $0x1388] sm:$0xff]
  %v679 = vld [vmem:[%s1 + $0x1390] sm:$0xff]
  %v680 = vld [vmem:[%s1 + $0x1398] sm:$0xff]
  %v681 = vld [vmem:[%s1 + $0x13a0] sm:$0xff]
  %v682 = vld [vmem:[%s1 + $0x13a8] sm:$0xff]
  %v683 = vld [vmem:[%s1 + $0x13b0] sm:$0xff]
  %v684 = vld [vmem:[%s1 + $0x13b8] sm:$0xff]
  %v685 = vld [vmem:[%s1 + $0x13c0] sm:$0xff]
  %v686 = vld [vmem:[%s1 + $0x13c8] sm:$0xff]
  %v687 = vld [vmem:[%s1 + $0x13d0] sm:$0xff]
  %v688 = vld [vmem:[%s1 + $0x13d8] sm:$0xff]
  %v689 = vld [vmem:[%s1 + $0x13e0] sm:$0xff]
  %v690 = vld [vmem:[%s1 + $0x13e8] sm:$0xff]
  %v691 = vld [vmem:[%s1 + $0x13f0] sm:$0xff]
  %v692 = vld [vmem:[%s1 + $0x13f8] sm:$0xff]
  %v693 = vld [vmem:[%s1 + $0x1400] sm:$0xff]
  %v694 = vld [vmem:[%s1 + $0x1408] sm:$0xff]
  %v695 = vld [vmem:[%s1 + $0x1410] sm:$0xff]
  %v696 = vld [vmem:[%s1 + $0x1418] sm:$0xff]
  %v697 = vld [vmem:[%s1 + $0x1420] sm:$0xff]
  %v698 = vld [vmem:[%s1 + $0x1428] sm:$0xff]
  %v699 = vld [vmem:[%s1 + $0x1430] sm:$0xff]
  %v700 = vld [vmem:[%s1 + $0x1438] sm:$0xff]
  %v701 = vld [vmem:[%s1 + $0x1440] sm:$0xff]
  %v702 = vld [vmem:[%s1 + $0x1448] sm:$0xff]
  %v703 = vld [vmem:[%s1 + $0x1450] sm:$0xff]
  %v704 = vld [vmem:[%s1 + $0x1458] sm:$0xff]
  %v705 = vld [vmem:[%s1 + $0x1460] sm:$0xff]
  %v706 = vld [vmem:[%s1 + $0x1468] sm:$0xff]
  %v707 = vld [vmem:[%s1 + $0x1470] sm:$0xff]
  %v708 = vld [vmem:[%s1 + $0x1478] sm:$0xff]
  %v709 = vld [vmem:[%s1 + $0x1480] sm:$0xff]
  %v710 = vld [vmem:[%s1 + $0x1488] sm:$0xff]
  %v711 = vld [vmem:[%s1 + $0x1490] sm:$0xff]
  %v712 = vld [vmem:[%s1 + $0x1498] sm:$0xff]
  %v713 = vld [vmem:[%s1 + $0x14a0] sm:$0xff]
  %v714 = vld [vmem:[%s1 + $0x14a8] sm:$0xff]
  %v715 = vld [vmem:[%s1 + $0x14b0] sm:$0xff]
  %v716 = vld [vmem:[%s1 + $0x14b8] sm:$0xff]
  %v717 = vld [vmem:[%s1 + $0x14c0] sm:$0xff]
  %v718 = vld [vmem:[%s1 + $0x14c8] sm:$0xff]
  %v719 = vld [vmem:[%s1 + $0x14d0] sm:$0xff]
  %v720 = vld [vmem:[%s1 + $0x14d8] sm:$0xff]
  %v721 = vld [vmem:[%s1 + $0x14e0] sm:$0xff]
  %v722 = vld [vmem:[%s1 + $0x14e8] sm:$0xff]
  %v723 = vld [vmem:[%s1 + $0x14f0] sm:$0xff]
  %v724 = vld [vmem:[%s1 + $0x14f8] sm:$0xff]
  %v725 = vld [vmem:[%s1 + $0x1500] sm:$0xff]
  %v726 = vld [vmem:[%s1 + $0x1508] sm:$0xff]
  %v727 = vld [vmem:[%s1 + $0x1510] sm:$0xff]
  %v728 = vld [vmem:[%s1 + $0x1518] sm:$0xff]
  %v729 = vld [vmem:[%s1 + $0x1520] sm:$0xff]
  %v730 = vld [vmem:[%s1 + $0x1528] sm:$0xff]
  %v731 = vld [vmem:[%s1 + $0x1530] sm:$0xff]
  %v732 = vld [vmem:[%s1 + $0x1538] sm:$0xff]
  %v733 = vld [vmem:[%s1 + $0x1540] sm:$0xff]
  %v734 = vld [vmem:[%s1 + $0x1548] sm:$0xff]
  %v735 = vld [vmem:[%s1 + $0x1550] sm:$0xff]
  %v736 = vld [vmem:[%s1 + $0x1558] sm:$0xff]
  %v737 = vld [vmem:[%s1 + $0x1560] sm:$0xff]
  %v738 = vld [vmem:[%s1 + $0x1568] sm:$0xff]
  %v739 = vld [vmem:[%s1 + $0x1570] sm:$0xff]
  %v740 = vld [vmem:[%s1 + $0x1578] sm:$0xff]
  %v741 = vld [vmem:[%s1 + $0x1580] sm:$0xff]
  %v742 = vld [vmem:[%s1 + $0x1588] sm:$0xff]
  %v743 = vld [vmem:[%s1 + $0x1590] sm:$0xff]
  %v744 = vld [vmem:[%s1 + $0x1598] sm:$0xff]
  %v745 = vld [vmem:[%s1 + $0x15a0] sm:$0xff]
  %v746 = vld [vmem:[%s1 + $0x15a8] sm:$0xff]
  %v747 = vld [vmem:[%s1 + $0x15b0] sm:$0xff]
  %v748 = vld [vmem:[%s1 + $0x15b8] sm:$0xff]
  %v749 = vld [vmem:[%s1 + $0x15c0] sm:$0xff]
  %v750 = vld [vmem:[%s1 + $0x15c8] sm:$0xff]
  %v751 = vld [vmem:[%s1 + $0x15d0] sm:$0xff]
  %v752 = vld [vmem:[%s1 + $0x15d8] sm:$0xff]
  %v753 = vld [vmem:[%s1 + $0x15e0] sm:$0xff]
  %v754 = vld [vmem:[%s1 + $0x15e8] sm:$0xff]
  %v755 = vld [vmem:[%s1 + $0x15f0] sm:$0xff]
  %v756 = vld [vmem:[%s1 + $0x15f8] sm:$0xff]
  %v757 = vld [vmem:[%s1 + $0x1600] sm:$0xff]
  %v758 = vld [vmem:[%s1 + $0x1608] sm:$0xff]
  %v759 = vld [vmem:[%s1 + $0x1610] sm:$0xff]
  %v760 = vld [vmem:[%s1 + $0x1618] sm:$0xff]
  %v761 = vld [vmem:[%s1 + $0x1620] sm:$0xff]
  %v762 = vld [vmem:[%s1 + $0x1628] sm:$0xff]
  %v763 = vld [vmem:[%s1 + $0x1630] sm:$0xff]
  %v764 = vld [vmem:[%s1 + $0x1638] sm:$0xff]
  %v765 = vld [vmem:[%s1 + $0x1640] sm:$0xff]
  %v766 = vld [vmem:[%s1 + $0x1648] sm:$0xff]
  %v767 = vld [vmem:[%s1 + $0x1650] sm:$0xff]
  %v768 = vld [vmem:[%s1 + $0x1658] sm:$0xff]
  %v769 = vld [vmem:[%s1 + $0x1660] sm:$0xff]
  %v770 = vld [vmem:[%s1 + $0x1668] sm:$0xff]
  %v771 = vld [vmem:[%s1 + $0x1670] sm:$0xff]
  %v772 = vld [vmem:[%s1 + $0x1678] sm:$0xff]
  %v773 = vld [vmem:[%s1 + $0x1680] sm:$0xff]
  %v774 = vld [vmem:[%s1 + $0x1688] sm:$0xff]
  %v775 = vld [vmem:[%s1 + $0x1690] sm:$0xff]
  %v776 = vld [vmem:[%s1 + $0x1698] sm:$0xff]
  %v777 = vld [vmem:[%s1 + $0x16a0] sm:$0xff]
  %v778 = vld [vmem:[%s1 + $0x16a8] sm:$0xff]
  %v779 = vld [vmem:[%s1 + $0x16b0] sm:$0xff]
  %v780 = vld [vmem:[%s1 + $0x16b8] sm:$0xff]
  %v781 = vld [vmem:[%s1 + $0x16c0] sm:$0xff]
  %v782 = vld [vmem:[%s1 + $0x16c8] sm:$0xff]
  %v783 = vld [vmem:[%s1 + $0x16d0] sm:$0xff]
  %v784 = vld [vmem:[%s1 + $0x16d8] sm:$0xff]
  %v785 = vld [vmem:[%s1 + $0x16e0] sm:$0xff]
  %v786 = vld [vmem:[%s1 + $0x16e8] sm:$0xff]
  %v787 = vld [vmem:[%s1 + $0x16f0] sm:$0xff]
  %v788 = vld [vmem:[%s1 + $0x16f8] sm:$0xff]
  %v789 = vld [vmem:[%s1 + $0x1700] sm:$0xff]
  %v790 = vld [vmem:[%s1 + $0x1708] sm:$0xff]
  %v791 = vld [vmem:[%s1 + $0x1710] sm:$0xff]
  %v792 = vld [vmem:[%s1 + $0x1718] sm:$0xff]
  %v793 = vld [vmem:[%s1 + $0x1720] sm:$0xff]
  %v794 = vld [vmem:[%s1 + $0x1728] sm:$0xff]
  %v795 = vld [vmem:[%s1 + $0x1730] sm:$0xff]
  %v796 = vld [vmem:[%s1 + $0x1738] sm:$0xff]
  %v797 = vld [vmem:[%s1 + $0x1740] sm:$0xff]
  %v798 = vld [vmem:[%s1 + $0x1748] sm:$0xff]
  %v799 = vld [vmem:[%s1 + $0x1750] sm:$0xff]
  %v800 = vld [vmem:[%s1 + $0x1758] sm:$0xff]
  %v801 = vld [vmem:[%s1 + $0x1760] sm:$0xff]
  %v802 = vld [vmem:[%s1 + $0x1768] sm:$0xff]
  %v803 = vld [vmem:[%s1 + $0x1770] sm:$0xff]
  %v804 = vld [vmem:[%s1 + $0x1778] sm:$0xff]
  %v805 = vld [vmem:[%s1 + $0x1780] sm:$0xff]
  %v806 = vld [vmem:[%s1 + $0x1788] sm:$0xff]
  %v807 = vld [vmem:[%s1 + $0x1790] sm:$0xff]
  %v808 = vld [vmem:[%s1 + $0x1798] sm:$0xff]
  %v809 = vld [vmem:[%s1 + $0x17a0] sm:$0xff]
  %v810 = vld [vmem:[%s1 + $0x17a8] sm:$0xff]
  %v811 = vld [vmem:[%s1 + $0x17b0] sm:$0xff]
  %v812 = vld [vmem:[%s1 + $0x17b8] sm:$0xff]
  %v813 = vld [vmem:[%s1 + $0x17c0] sm:$0xff]
  %v814 = vld [vmem:[%s1 + $0x17c8] sm:$0xff]
  %v815 = vld [vmem:[%s1 + $0x17d0] sm:$0xff]
  %v816 = vld [vmem:[%s1 + $0x17d8] sm:$0xff]
  %v817 = vld [vmem:[%s1 + $0x17e0] sm:$0xff]
  %v818 = vld [vmem:[%s1 + $0x17e8] sm:$0xff]
  %v819 = vld [vmem:[%s1 + $0x17f0] sm:$0xff]
  %v820 = vld [vmem:[%s1 + $0x17f8] sm:$0xff]
  %v821 = vld [vmem:[%s1 + $0x1800] sm:$0xff]
  %v822 = vld [vmem:[%s1 + $0x1808] sm:$0xff]
  %v823 = vld [vmem:[%s1 + $0x1810] sm:$0xff]
  %v824 = vld [vmem:[%s1 + $0x1818] sm:$0xff]
  %v825 = vld [vmem:[%s1 + $0x1820] sm:$0xff]
  %v826 = vld [vmem:[%s1 + $0x1828] sm:$0xff]
  %v827 = vld [vmem:[%s1 + $0x1830] sm:$0xff]
  %v828 = vld [vmem:[%s1 + $0x1838] sm:$0xff]
  %v829 = vld [vmem:[%s1 + $0x1840] sm:$0xff]
  %v830 = vld [vmem:[%s1 + $0x1848] sm:$0xff]
  %v831 = vld [vmem:[%s1 + $0x1850] sm:$0xff]
  %v832 = vld [vmem:[%s1 + $0x1858] sm:$0xff]
  %v833 = vld [vmem:[%s1 + $0x1860] sm:$0xff]
  %v834 = vld [vmem:[%s1 + $0x1868] sm:$0xff]
  %v835 = vld [vmem:[%s1 + $0x1870] sm:$0xff]
  %v836 = vld [vmem:[%s1 + $0x1878] sm:$0xff]
  %v837 = vld [vmem:[%s1 + $0x1880] sm:$0xff]
  %v838 = vld [vmem:[%s1 + $0x1888] sm:$0xff]
  %v839 = vld [vmem:[%s1 + $0x1890] sm:$0xff]
  %v840 = vld [vmem:[%s1 + $0x1898] sm:$0xff]
  %v841 = vld [vmem:[%s1 + $0x18a0] sm:$0xff]
  %v842 = vld [vmem:[%s1 + $0x18a8] sm:$0xff]
  %v843 = vld [vmem:[%s1 + $0x18b0] sm:$0xff]
  %v844 = vld [vmem:[%s1 + $0x18b8] sm:$0xff]
  %v845 = vld [vmem:[%s1 + $0x18c0] sm:$0xff]
  %v846 = vld [vmem:[%s1 + $0x18c8] sm:$0xff]
  %v847 = vld [vmem:[%s1 + $0x18d0] sm:$0xff]
  %v848 = vld [vmem:[%s1 + $0x18d8] sm:$0xff]
  %v849 = vld [vmem:[%s1 + $0x18e0] sm:$0xff]
  %v850 = vld [vmem:[%s1 + $0x18e8] sm:$0xff]
  %v851 = vld [vmem:[%s1 + $0x18f0] sm:$0xff]
  %v852 = vld [vmem:[%s1 + $0x18f8] sm:$0xff]
  %v853 = vld [vmem:[%s1 + $0x1900] sm:$0xff]
  %v854 = vld [vmem:[%s1 + $0x1908] sm:$0xff]
  %v855 = vld [vmem:[%s1 + $0x1910] sm:$0xff]
  %v856 = vld [vmem:[%s1 + $0x1918] sm:$0xff]
  %v857 = vld [vmem:[%s1 + $0x1920] sm:$0xff]
  %v858 = vld [vmem:[%s1 + $0x1928] sm:$0xff]
  %v859 = vld [vmem:[%s1 + $0x1930] sm:$0xff]
  %v860 = vld [vmem:[%s1 + $0x1938] sm:$0xff]
  %v861 = vld [vmem:[%s1 + $0x1940] sm:$0xff]
  %v862 = vld [vmem:[%s1 + $0x1948] sm:$0xff]
  %v863 = vld [vmem:[%s1 + $0x1950] sm:$0xff]
  %v864 = vld [vmem:[%s1 + $0x1958] sm:$0xff]
  %v865 = vld [vmem:[%s1 + $0x1960] sm:$0xff]
  %v866 = vld [vmem:[%s1 + $0x1968] sm:$0xff]
  %v867 = vld [vmem:[%s1 + $0x1970] sm:$0xff]
  %v868 = vld [vmem:[%s1 + $0x1978] sm:$0xff]
  %v869 = vld [vmem:[%s1 + $0x1980] sm:$0xff]
  %v870 = vld [vmem:[%s1 + $0x1988] sm:$0xff]
  %v871 = vld [vmem:[%s1 + $0x1990] sm:$0xff]
  %v872 = vld [vmem:[%s1 + $0x1998] sm:$0xff]
  %v873 = vld [vmem:[%s1 + $0x19a0] sm:$0xff]
  %v874 = vld [vmem:[%s1 + $0x19a8] sm:$0xff]
  %v875 = vld [vmem:[%s1 + $0x19b0] sm:$0xff]
  %v876 = vld [vmem:[%s1 + $0x19b8] sm:$0xff]
  %v877 = vld [vmem:[%s1 + $0x19c0] sm:$0xff]
  %v878 = vld [vmem:[%s1 + $0x19c8] sm:$0xff]
  %v879 = vld [vmem:[%s1 + $0x19d0] sm:$0xff]
  %v880 = vld [vmem:[%s1 + $0x19d8] sm:$0xff]
  %v881 = vld [vmem:[%s1 + $0x19e0] sm:$0xff]
  %v882 = vld [vmem:[%s1 + $0x19e8] sm:$0xff]
  %v883 = vld [vmem:[%s1 + $0x19f0] sm:$0xff]
  %v884 = vld [vmem:[%s1 + $0x19f8] sm:$0xff]
  %v885 = vld [vmem:[%s1 + $0x1a00] sm:$0xff]
  %v886 = vld [vmem:[%s1 + $0x1a08] sm:$0xff]
  %v887 = vld [vmem:[%s1 + $0x1a10] sm:$0xff]
  %v888 = vld [vmem:[%s1 + $0x1a18] sm:$0xff]
  %v889 = vld [vmem:[%s1 + $0x1a20] sm:$0xff]
  %v890 = vld [vmem:[%s1 + $0x1a28] sm:$0xff]
  %v891 = vld [vmem:[%s1 + $0x1a30] sm:$0xff]
  %v892 = vld [vmem:[%s1 + $0x1a38] sm:$0xff]
  %v893 = vld [vmem:[%s1 + $0x1a40] sm:$0xff]
  %v894 = vld [vmem:[%s1 + $0x1a48] sm:$0xff]
  %v895 = vld [vmem:[%s1 + $0x1a50] sm:$0xff]
  %v896 = vld [vmem:[%s1 + $0x1a58] sm:$0xff]
  %v897 = vld [vmem:[%s1 + $0x1a60] sm:$0xff]
  %v898 = vld [vmem:[%s1 + $0x1a68] sm:$0xff]
  %v899 = vld [vmem:[%s1 + $0x1a70] sm:$0xff]
  %v900 = vld [vmem:[%s1 + $0x1a78] sm:$0xff]
  %v901 = vld [vmem:[%s1 + $0x1a80] sm:$0xff]
  %v902 = vld [vmem:[%s1 + $0x1a88] sm:$0xff]
  %v903 = vld [vmem:[%s1 + $0x1a90] sm:$0xff]
  %v904 = vld [vmem:[%s1 + $0x1a98] sm:$0xff]
  %v905 = vld [vmem:[%s1 + $0x1aa0] sm:$0xff]
  %v906 = vld [vmem:[%s1 + $0x1aa8] sm:$0xff]
  %v907 = vld [vmem:[%s1 + $0x1ab0] sm:$0xff]
  %v908 = vld [vmem:[%s1 + $0x1ab8] sm:$0xff]
  %v909 = vld [vmem:[%s1 + $0x1ac0] sm:$0xff]
  %v910 = vld [vmem:[%s1 + $0x1ac8] sm:$0xff]
  %v911 = vld [vmem:[%s1 + $0x1ad0] sm:$0xff]
  %v912 = vld [vmem:[%s1 + $0x1ad8] sm:$0xff]
  %v913 = vld [vmem:[%s1 + $0x1ae0] sm:$0xff]
  %v914 = vld [vmem:[%s1 + $0x1ae8] sm:$0xff]
  %v915 = vld [vmem:[%s1 + $0x1af0] sm:$0xff]
  %v916 = vld [vmem:[%s1 + $0x1af8] sm:$0xff]
  %v917 = vld [vmem:[%s1 + $0x1b00] sm:$0xff]
  %v918 = vld [vmem:[%s1 + $0x1b08] sm:$0xff]
  %v919 = vld [vmem:[%s1 + $0x1b10] sm:$0xff]
  %v920 = vld [vmem:[%s1 + $0x1b18] sm:$0xff]
  %v921 = vld [vmem:[%s1 + $0x1b20] sm:$0xff]
  %v922 = vld [vmem:[%s1 + $0x1b28] sm:$0xff]
  %v923 = vld [vmem:[%s1 + $0x1b30] sm:$0xff]
  %v924 = vld [vmem:[%s1 + $0x1b38] sm:$0xff]
  %v925 = vld [vmem:[%s1 + $0x1b40] sm:$0xff]
  %v926 = vld [vmem:[%s1 + $0x1b48] sm:$0xff]
  %v927 = vld [vmem:[%s1 + $0x1b50] sm:$0xff]
  %v928 = vld [vmem:[%s1 + $0x1b58] sm:$0xff]
  %v929 = vld [vmem:[%s1 + $0x1b60] sm:$0xff]
  %v930 = vld [vmem:[%s1 + $0x1b68] sm:$0xff]
  %v931 = vld [vmem:[%s1 + $0x1b70] sm:$0xff]
  %v932 = vld [vmem:[%s1 + $0x1b78] sm:$0xff]
  %v933 = vld [vmem:[%s1 + $0x1b80] sm:$0xff]
  %v934 = vld [vmem:[%s1 + $0x1b88] sm:$0xff]
  %v935 = vld [vmem:[%s1 + $0x1b90] sm:$0xff]
  %v936 = vld [vmem:[%s1 + $0x1b98] sm:$0xff]
  %v937 = vld [vmem:[%s1 + $0x1ba0] sm:$0xff]
  %v938 = vld [vmem:[%s1 + $0x1ba8] sm:$0xff]
  %v939 = vld [vmem:[%s1 + $0x1bb0] sm:$0xff]
  %v940 = vld [vmem:[%s1 + $0x1bb8] sm:$0xff]
  %v941 = vld [vmem:[%s1 + $0x1bc0] sm:$0xff]
  %v942 = vld [vmem:[%s1 + $0x1bc8] sm:$0xff]
  %v943 = vld [vmem:[%s1 + $0x1bd0] sm:$0xff]
  %v944 = vld [vmem:[%s1 + $0x1bd8] sm:$0xff]
  %v945 = vld [vmem:[%s1 + $0x1be0] sm:$0xff]
  %v946 = vld [vmem:[%s1 + $0x1be8] sm:$0xff]
  %v947 = vld [vmem:[%s1 + $0x1bf0] sm:$0xff]
  %v948 = vld [vmem:[%s1 + $0x1bf8] sm:$0xff]
  %v949 = vld [vmem:[%s1 + $0x1c00] sm:$0xff]
  %v950 = vld [vmem:[%s1 + $0x1c08] sm:$0xff]
  %v951 = vld [vmem:[%s1 + $0x1c10] sm:$0xff]
  %v952 = vld [vmem:[%s1 + $0x1c18] sm:$0xff]
  %v953 = vld [vmem:[%s1 + $0x1c20] sm:$0xff]
  %v954 = vld [vmem:[%s1 + $0x1c28] sm:$0xff]
  %v955 = vld [vmem:[%s1 + $0x1c30] sm:$0xff]
  %v956 = vld [vmem:[%s1 + $0x1c38] sm:$0xff]
  %v957 = vld [vmem:[%s1 + $0x1c40] sm:$0xff]
  %v958 = vld [vmem:[%s1 + $0x1c48] sm:$0xff]
  %v959 = vld [vmem:[%s1 + $0x1c50] sm:$0xff]
  %v960 = vld [vmem:[%s1 + $0x1c58] sm:$0xff]
  %v961 = vld [vmem:[%s1 + $0x1c60] sm:$0xff]
  %v962 = vld [vmem:[%s1 + $0x1c68] sm:$0xff]
  %v963 = vld [vmem:[%s1 + $0x1c70] sm:$0xff]
  %v964 = vld [vmem:[%s1 + $0x1c78] sm:$0xff]
  %v965 = vld [vmem:[%s1 + $0x1c80] sm:$0xff]
  %v966 = vld [vmem:[%s1 + $0x1c88] sm:$0xff]
  %v967 = vld [vmem:[%s1 + $0x1c90] sm:$0xff]
  %v968 = vld [vmem:[%s1 + $0x1c98] sm:$0xff]
  %v969 = vld [vmem:[%s1 + $0x1ca0] sm:$0xff]
  %v970 = vld [vmem:[%s1 + $0x1ca8] sm:$0xff]
  %v971 = vld [vmem:[%s1 + $0x1cb0] sm:$0xff]
  %v972 = vld [vmem:[%s1 + $0x1cb8] sm:$0xff]
  %v973 = vld [vmem:[%s1 + $0x1cc0] sm:$0xff]
  %v974 = vld [vmem:[%s1 + $0x1cc8] sm:$0xff]
  %v975 = vld [vmem:[%s1 + $0x1cd0] sm:$0xff]
  %v976 = vld [vmem:[%s1 + $0x1cd8] sm:$0xff]
  %v977 = vld [vmem:[%s1 + $0x1ce0] sm:$0xff]
  %v978 = vld [vmem:[%s1 + $0x1ce8] sm:$0xff]
  %v979 = vld [vmem:[%s1 + $0x1cf0] sm:$0xff]
  %v980 = vld [vmem:[%s1 + $0x1cf8] sm:$0xff]
  %v981 = vld [vmem:[%s1 + $0x1d00] sm:$0xff]
  %v982 = vld [vmem:[%s1 + $0x1d08] sm:$0xff]
  %v983 = vld [vmem:[%s1 + $0x1d10] sm:$0xff]
  %v984 = vld [vmem:[%s1 + $0x1d18] sm:$0xff]
  %v985 = vld [vmem:[%s1 + $0x1d20] sm:$0xff]
  %v986 = vld [vmem:[%s1 + $0x1d28] sm:$0xff]
  %v987 = vld [vmem:[%s1 + $0x1d30] sm:$0xff]
  %v988 = vld [vmem:[%s1 + $0x1d38] sm:$0xff]
  %v989 = vld [vmem:[%s1 + $0x1d40] sm:$0xff]
  %v990 = vld [vmem:[%s1 + $0x1d48] sm:$0xff]
  %v991 = vld [vmem:[%s1 + $0x1d50] sm:$0xff]
  %v992 = vld [vmem:[%s1 + $0x1d58] sm:$0xff]
  %v993 = vld [vmem:[%s1 + $0x1d60] sm:$0xff]
  %v994 = vld [vmem:[%s1 + $0x1d68] sm:$0xff]
  %v995 = vld [vmem:[%s1 + $0x1d70] sm:$0xff]
  %v996 = vld [vmem:[%s1 + $0x1d78] sm:$0xff]
  %v997 = vld [vmem:[%s1 + $0x1d80] sm:$0xff]
  %v998 = vld [vmem:[%s1 + $0x1d88] sm:$0xff]
  %v999 = vld [vmem:[%s1 + $0x1d90] sm:$0xff]
  %v1000 = vld [vmem:[%s1 + $0x1d98] sm:$0xff]
  %v1001 = vld [vmem:[%s1 + $0x1da0] sm:$0xff]
  %v1002 = vld [vmem:[%s1 + $0x1da8] sm:$0xff]
  %v1003 = vld [vmem:[%s1 + $0x1db0] sm:$0xff]
  %v1004 = vld [vmem:[%s1 + $0x1db8] sm:$0xff]
  %v1005 = vld [vmem:[%s1 + $0x1dc0] sm:$0xff]
  %v1006 = vld [vmem:[%s1 + $0x1dc8] sm:$0xff]
  %v1007 = vld [vmem:[%s1 + $0x1dd0] sm:$0xff]
  %v1008 = vld [vmem:[%s1 + $0x1dd8] sm:$0xff]
  %v1009 = vld [vmem:[%s1 + $0x1de0] sm:$0xff]
  %v1010 = vld [vmem:[%s1 + $0x1de8] sm:$0xff]
  %v1011 = vld [vmem:[%s1 + $0x1df0] sm:$0xff]
  %v1012 = vld [vmem:[%s1 + $0x1df8] sm:$0xff]
  %v1013 = vld [vmem:[%s1 + $0x1e00] sm:$0xff]
  %v1014 = vld [vmem:[%s1 + $0x1e08] sm:$0xff]
  %v1015 = vld [vmem:[%s1 + $0x1e10] sm:$0xff]
  %v1016 = vld [vmem:[%s1 + $0x1e18] sm:$0xff]
  %v1017 = vld [vmem:[%s1 + $0x1e20] sm:$0xff]
  %v1018 = vld [vmem:[%s1 + $0x1e28] sm:$0xff]
  %v1019 = vld [vmem:[%s1 + $0x1e30] sm:$0xff]
  %v1020 = vld [vmem:[%s1 + $0x1e38] sm:$0xff]
  %v1021 = vld [vmem:[%s1 + $0x1e40] sm:$0xff]
  %v1022 = vld [vmem:[%s1 + $0x1e48] sm:$0xff]
  %v1023 = vld [vmem:[%s1 + $0x1e50] sm:$0xff]
  %v1024 = vld [vmem:[%s1 + $0x1e58] sm:$0xff]
  %v1025 = vld [vmem:[%s1 + $0x1e60] sm:$0xff]
  %v1026 = vld [vmem:[%s1 + $0x1e68] sm:$0xff]
  %v1027 = vld [vmem:[%s1 + $0x1e70] sm:$0xff]
  %v1028 = vld [vmem:[%s1 + $0x1e78] sm:$0xff]
  %v1029 = vld [vmem:[%s1 + $0x1e80] sm:$0xff]
  %v1030 = vld [vmem:[%s1 + $0x1e88] sm:$0xff]
  %v1031 = vld [vmem:[%s1 + $0x1e90] sm:$0xff]
  %v1032 = vld [vmem:[%s1 + $0x1e98] sm:$0xff]
  %v1033 = vld [vmem:[%s1 + $0x1ea0] sm:$0xff]
  %v1034 = vld [vmem:[%s1 + $0x1ea8] sm:$0xff]
  %v1035 = vld [vmem:[%s1 + $0x1eb0] sm:$0xff]
  %v1036 = vld [vmem:[%s1 + $0x1eb8] sm:$0xff]
  %v1037 = vld [vmem:[%s1 + $0x1ec0] sm:$0xff]
  %v1038 = vld [vmem:[%s1 + $0x1ec8] sm:$0xff]
  %v1039 = vld [vmem:[%s1 + $0x1ed0] sm:$0xff]
  %v1040 = vld [vmem:[%s1 + $0x1ed8] sm:$0xff]
  %v1041 = vld [vmem:[%s1 + $0x1ee0] sm:$0xff]
  %v1042 = vld [vmem:[%s1 + $0x1ee8] sm:$0xff]
  %v1043 = vld [vmem:[%s1 + $0x1ef0] sm:$0xff]
  %v1044 = vld [vmem:[%s1 + $0x1ef8] sm:$0xff]
  %v1045 = vld [vmem:[%s1 + $0x1f00] sm:$0xff]
  %v1046 = vld [vmem:[%s1 + $0x1f08] sm:$0xff]
  %v1047 = vld [vmem:[%s1 + $0x1f10] sm:$0xff]
  %v1048 = vld [vmem:[%s1 + $0x1f18] sm:$0xff]
  %v1049 = vld [vmem:[%s1 + $0x1f20] sm:$0xff]
  %v1050 = vld [vmem:[%s1 + $0x1f28] sm:$0xff]
  %v1051 = vld [vmem:[%s1 + $0x1f30] sm:$0xff]
  %v1052 = vld [vmem:[%s1 + $0x1f38] sm:$0xff]
  %v1053 = vld [vmem:[%s1 + $0x1f40] sm:$0xff]
  %v1054 = vld [vmem:[%s1 + $0x1f48] sm:$0xff]
  %v1055 = vld [vmem:[%s1 + $0x1f50] sm:$0xff]
  %v1056 = vld [vmem:[%s1 + $0x1f58] sm:$0xff]
  %v1057 = vld [vmem:[%s1 + $0x1f60] sm:$0xff]
  %v1058 = vld [vmem:[%s1 + $0x1f68] sm:$0xff]
  %v1059 = vld [vmem:[%s1 + $0x1f70] sm:$0xff]
  %v1060 = vld [vmem:[%s1 + $0x1f78] sm:$0xff]
  %v1061 = vld [vmem:[%s1 + $0x1f80] sm:$0xff]
  %v1062 = vld [vmem:[%s1 + $0x1f88] sm:$0xff]
  %v1063 = vld [vmem:[%s1 + $0x1f90] sm:$0xff]
  %v1064 = vld [vmem:[%s1 + $0x1f98] sm:$0xff]
  %v1065 = vld [vmem:[%s1 + $0x1fa0] sm:$0xff]
  %v1066 = vld [vmem:[%s1 + $0x1fa8] sm:$0xff]
  %v1067 = vld [vmem:[%s1 + $0x1fb0] sm:$0xff]
  %v1068 = vld [vmem:[%s1 + $0x1fb8] sm:$0xff]
  %v1069 = vld [vmem:[%s1 + $0x1fc0] sm:$0xff]
  %v1070 = vld [vmem:[%s1 + $0x1fc8] sm:$0xff]
  %v1071 = vld [vmem:[%s1 + $0x1fd0] sm:$0xff]
  %v1072 = vld [vmem:[%s1 + $0x1fd8] sm:$0xff]
  %v1073 = vld [vmem:[%s1 + $0x1fe0] sm:$0xff]
  %v1074 = vld [vmem:[%s1 + $0x1fe8] sm:$0xff]
  %v1075 = vld [vmem:[%s1 + $0x1ff0] sm:$0xff]
  %v1076 = vld [vmem:[%s1 + $0x1ff8] sm:$0xff]
  %v1077 = vld [vmem:[%s2] sm:$0xf]
  %v1079 = vlaneseq
  %v1080 = vshrl.u32 %v1079, 7
  %v1081 = vsub.s32 0, %v1080
  %v1082 = vrot.slane %v1077, %v1081
  %v1083 = vlaneseq
  %v1084 = vshrl.u32 %v1083, 7
  %v1085 = vsub.s32 1, %v1084
  %v1086 = vrot.slane %v1077, %v1085
  %v1087 = vlaneseq
  %v1088 = vshrl.u32 %v1087, 7
  %v1089 = vsub.s32 2, %v1088
  %v1090 = vrot.slane %v1077, %v1089
  %v1091 = vlaneseq
  %v1092 = vshrl.u32 %v1091, 7
  %v1093 = vsub.s32 3, %v1092
  %v1094 = vrot.slane %v1077, %v1093
  %v1131 = vunpack.c.l.b16 %v21
  %v1132 = vunpack.c.h.b16 %v21
  %v1133 = vunpack.c.l.b16 %v22
  %v1134 = vunpack.c.h.b16 %v22
  %v1135 = vunpack.c.l.b16 %v23
  %v1136 = vunpack.c.h.b16 %v23
  %v1137 = vunpack.c.l.b16 %v24
  %v1138 = vunpack.c.h.b16 %v24
  %v1139 = vunpack.c.l.b16 %v25
  %v1140 = vunpack.c.h.b16 %v25
  %v1141 = vunpack.c.l.b16 %v26
  %v1142 = vunpack.c.h.b16 %v26
  %v1143 = vunpack.c.l.b16 %v27
  %v1144 = vunpack.c.h.b16 %v27
  %v1145 = vunpack.c.l.b16 %v28
  %v1146 = vunpack.c.h.b16 %v28
  %v1147 = vunpack.c.l.b16 %v29
  %v1148 = vunpack.c.h.b16 %v29
  %v1149 = vunpack.c.l.b16 %v30
  %v1150 = vunpack.c.h.b16 %v30
  %v1151 = vunpack.c.l.b16 %v31
  %v1152 = vunpack.c.h.b16 %v31
  %v1153 = vunpack.c.l.b16 %v32
  %v1154 = vunpack.c.h.b16 %v32
  %v1155 = vunpack.c.l.b16 %v33
  %v1156 = vunpack.c.h.b16 %v33
  %v1157 = vunpack.c.l.b16 %v34
  %v1158 = vunpack.c.h.b16 %v34
  %v1159 = vunpack.c.l.b16 %v35
  %v1160 = vunpack.c.h.b16 %v35
  %v1161 = vunpack.c.l.b16 %v36
  %v1162 = vunpack.c.h.b16 %v36
  %v1163 = vunpack.c.l.b16 %v37
  %v1164 = vunpack.c.h.b16 %v37
  %v1165 = vunpack.c.l.b16 %v38
  %v1166 = vunpack.c.h.b16 %v38
  %v1167 = vunpack.c.l.b16 %v39
  %v1168 = vunpack.c.h.b16 %v39
  %v1169 = vunpack.c.l.b16 %v40
  %v1170 = vunpack.c.h.b16 %v40
  %v1171 = vunpack.c.l.b16 %v41
  %v1172 = vunpack.c.h.b16 %v41
  %v1173 = vunpack.c.l.b16 %v42
  %v1174 = vunpack.c.h.b16 %v42
  %v1175 = vunpack.c.l.b16 %v43
  %v1176 = vunpack.c.h.b16 %v43
  %v1177 = vunpack.c.l.b16 %v44
  %v1178 = vunpack.c.h.b16 %v44
  %v1179 = vunpack.c.l.b16 %v45
  %v1180 = vunpack.c.h.b16 %v45
  %v1181 = vunpack.c.l.b16 %v46
  %v1182 = vunpack.c.h.b16 %v46
  %v1183 = vunpack.c.l.b16 %v47
  %v1184 = vunpack.c.h.b16 %v47
  %v1185 = vunpack.c.l.b16 %v48
  %v1186 = vunpack.c.h.b16 %v48
  %v1187 = vunpack.c.l.b16 %v49
  %v1188 = vunpack.c.h.b16 %v49
  %v1189 = vunpack.c.l.b16 %v50
  %v1190 = vunpack.c.h.b16 %v50
  %v1191 = vunpack.c.l.b16 %v51
  %v1192 = vunpack.c.h.b16 %v51
  %v1193 = vunpack.c.l.b16 %v52
  %v1194 = vunpack.c.h.b16 %v52
  %v1195 = vpack.c.b16 %v1163, %v1131
  %v1196 = vpack.c.b16 %v1164, %v1132
  %v1197 = vpack.c.b16 %v1165, %v1133
  %v1198 = vpack.c.b16 %v1166, %v1134
  %v1199 = vpack.c.b16 %v1167, %v1135
  %v1200 = vpack.c.b16 %v1168, %v1136
  %v1201 = vpack.c.b16 %v1169, %v1137
  %v1202 = vpack.c.b16 %v1170, %v1138
  %v1203 = vpack.c.b16 %v1171, %v1139
  %v1204 = vpack.c.b16 %v1172, %v1140
  %v1205 = vpack.c.b16 %v1173, %v1141
  %v1206 = vpack.c.b16 %v1174, %v1142
  %v1207 = vpack.c.b16 %v1175, %v1143
  %v1208 = vpack.c.b16 %v1176, %v1144
  %v1209 = vpack.c.b16 %v1177, %v1145
  %v1210 = vpack.c.b16 %v1178, %v1146
  %v1211 = vpack.c.b16 %v1179, %v1147
  %v1212 = vpack.c.b16 %v1180, %v1148
  %v1213 = vpack.c.b16 %v1181, %v1149
  %v1214 = vpack.c.b16 %v1182, %v1150
  %v1215 = vpack.c.b16 %v1183, %v1151
  %v1216 = vpack.c.b16 %v1184, %v1152
  %v1217 = vpack.c.b16 %v1185, %v1153
  %v1218 = vpack.c.b16 %v1186, %v1154
  %v1219 = vpack.c.b16 %v1187, %v1155
  %v1220 = vpack.c.b16 %v1188, %v1156
  %v1221 = vpack.c.b16 %v1189, %v1157
  %v1222 = vpack.c.b16 %v1190, %v1158
  %v1223 = vpack.c.b16 %v1191, %v1159
  %v1224 = vpack.c.b16 %v1192, %v1160
  %v1225 = vpack.c.b16 %v1193, %v1161
  %v1226 = vpack.c.b16 %v1194, %v1162
  %v2283 = vunpack.c.l.b16 %v53
  %v2284 = vunpack.c.h.b16 %v53
  %v2285 = vunpack.c.l.b16 %v54
  %v2286 = vunpack.c.h.b16 %v54
  %v2287 = vunpack.c.l.b16 %v55
  %v2288 = vunpack.c.h.b16 %v55
  %v2289 = vunpack.c.l.b16 %v56
  %v2290 = vunpack.c.h.b16 %v56
  %v2291 = vunpack.c.l.b16 %v57
  %v2292 = vunpack.c.h.b16 %v57
  %v2293 = vunpack.c.l.b16 %v58
  %v2294 = vunpack.c.h.b16 %v58
  %v2295 = vunpack.c.l.b16 %v59
  %v2296 = vunpack.c.h.b16 %v59
  %v2297 = vunpack.c.l.b16 %v60
  %v2298 = vunpack.c.h.b16 %v60
  %v2299 = vunpack.c.l.b16 %v61
  %v2300 = vunpack.c.h.b16 %v61
  %v2301 = vunpack.c.l.b16 %v62
  %v2302 = vunpack.c.h.b16 %v62
  %v2303 = vunpack.c.l.b16 %v63
  %v2304 = vunpack.c.h.b16 %v63
  %v2305 = vunpack.c.l.b16 %v64
  %v2306 = vunpack.c.h.b16 %v64
  %v2307 = vunpack.c.l.b16 %v65
  %v2308 = vunpack.c.h.b16 %v65
  %v2309 = vunpack.c.l.b16 %v66
  %v2310 = vunpack.c.h.b16 %v66
  %v2311 = vunpack.c.l.b16 %v67
  %v2312 = vunpack.c.h.b16 %v67
  %v2313 = vunpack.c.l.b16 %v68
  %v2314 = vunpack.c.h.b16 %v68
  %v2315 = vunpack.c.l.b16 %v69
  %v2316 = vunpack.c.h.b16 %v69
  %v2317 = vunpack.c.l.b16 %v70
  %v2318 = vunpack.c.h.b16 %v70
  %v2319 = vunpack.c.l.b16 %v71
  %v2320 = vunpack.c.h.b16 %v71
  %v2321 = vunpack.c.l.b16 %v72
  %v2322 = vunpack.c.h.b16 %v72
  %v2323 = vunpack.c.l.b16 %v73
  %v2324 = vunpack.c.h.b16 %v73
  %v2325 = vunpack.c.l.b16 %v74
  %v2326 = vunpack.c.h.b16 %v74
  %v2327 = vunpack.c.l.b16 %v75
  %v2328 = vunpack.c.h.b16 %v75
  %v2329 = vunpack.c.l.b16 %v76
  %v2330 = vunpack.c.h.b16 %v76
  %v2331 = vunpack.c.l.b16 %v77
  %v2332 = vunpack.c.h.b16 %v77
  %v2333 = vunpack.c.l.b16 %v78
  %v2334 = vunpack.c.h.b16 %v78
  %v2335 = vunpack.c.l.b16 %v79
  %v2336 = vunpack.c.h.b16 %v79
  %v2337 = vunpack.c.l.b16 %v80
  %v2338 = vunpack.c.h.b16 %v80
  %v2339 = vunpack.c.l.b16 %v81
  %v2340 = vunpack.c.h.b16 %v81
  %v2341 = vunpack.c.l.b16 %v82
  %v2342 = vunpack.c.h.b16 %v82
  %v2343 = vunpack.c.l.b16 %v83
  %v2344 = vunpack.c.h.b16 %v83
  %v2345 = vunpack.c.l.b16 %v84
  %v2346 = vunpack.c.h.b16 %v84
  %v2347 = vunpack.c.l.b16 %v85
  %v2348 = vunpack.c.h.b16 %v85
  %v2349 = vunpack.c.l.b16 %v86
  %v2350 = vunpack.c.h.b16 %v86
  %v2351 = vunpack.c.l.b16 %v87
  %v2352 = vunpack.c.h.b16 %v87
  %v2353 = vunpack.c.l.b16 %v88
  %v2354 = vunpack.c.h.b16 %v88
  %v2355 = vunpack.c.l.b16 %v89
  %v2356 = vunpack.c.h.b16 %v89
  %v2357 = vunpack.c.l.b16 %v90
  %v2358 = vunpack.c.h.b16 %v90
  %v2359 = vunpack.c.l.b16 %v91
  %v2360 = vunpack.c.h.b16 %v91
  %v2361 = vunpack.c.l.b16 %v92
  %v2362 = vunpack.c.h.b16 %v92
  %v2363 = vunpack.c.l.b16 %v93
  %v2364 = vunpack.c.h.b16 %v93
  %v2365 = vunpack.c.l.b16 %v94
  %v2366 = vunpack.c.h.b16 %v94
  %v2367 = vunpack.c.l.b16 %v95
  %v2368 = vunpack.c.h.b16 %v95
  %v2369 = vunpack.c.l.b16 %v96
  %v2370 = vunpack.c.h.b16 %v96
  %v2371 = vunpack.c.l.b16 %v97
  %v2372 = vunpack.c.h.b16 %v97
  %v2373 = vunpack.c.l.b16 %v98
  %v2374 = vunpack.c.h.b16 %v98
  %v2375 = vunpack.c.l.b16 %v99
  %v2376 = vunpack.c.h.b16 %v99
  %v2377 = vunpack.c.l.b16 %v100
  %v2378 = vunpack.c.h.b16 %v100
  %v2379 = vunpack.c.l.b16 %v101
  %v2380 = vunpack.c.h.b16 %v101
  %v2381 = vunpack.c.l.b16 %v102
  %v2382 = vunpack.c.h.b16 %v102
  %v2383 = vunpack.c.l.b16 %v103
  %v2384 = vunpack.c.h.b16 %v103
  %v2385 = vunpack.c.l.b16 %v104
  %v2386 = vunpack.c.h.b16 %v104
  %v2387 = vunpack.c.l.b16 %v105
  %v2388 = vunpack.c.h.b16 %v105
  %v2389 = vunpack.c.l.b16 %v106
  %v2390 = vunpack.c.h.b16 %v106
  %v2391 = vunpack.c.l.b16 %v107
  %v2392 = vunpack.c.h.b16 %v107
  %v2393 = vunpack.c.l.b16 %v108
  %v2394 = vunpack.c.h.b16 %v108
  %v2395 = vunpack.c.l.b16 %v109
  %v2396 = vunpack.c.h.b16 %v109
  %v2397 = vunpack.c.l.b16 %v110
  %v2398 = vunpack.c.h.b16 %v110
  %v2399 = vunpack.c.l.b16 %v111
  %v2400 = vunpack.c.h.b16 %v111
  %v2401 = vunpack.c.l.b16 %v112
  %v2402 = vunpack.c.h.b16 %v112
  %v2403 = vunpack.c.l.b16 %v113
  %v2404 = vunpack.c.h.b16 %v113
  %v2405 = vunpack.c.l.b16 %v114
  %v2406 = vunpack.c.h.b16 %v114
  %v2407 = vunpack.c.l.b16 %v115
  %v2408 = vunpack.c.h.b16 %v115
  %v2409 = vunpack.c.l.b16 %v116
  %v2410 = vunpack.c.h.b16 %v116
  %v2411 = vunpack.c.l.b16 %v117
  %v2412 = vunpack.c.h.b16 %v117
  %v2413 = vunpack.c.l.b16 %v118
  %v2414 = vunpack.c.h.b16 %v118
  %v2415 = vunpack.c.l.b16 %v119
  %v2416 = vunpack.c.h.b16 %v119
  %v2417 = vunpack.c.l.b16 %v120
  %v2418 = vunpack.c.h.b16 %v120
  %v2419 = vunpack.c.l.b16 %v121
  %v2420 = vunpack.c.h.b16 %v121
  %v2421 = vunpack.c.l.b16 %v122
  %v2422 = vunpack.c.h.b16 %v122
  %v2423 = vunpack.c.l.b16 %v123
  %v2424 = vunpack.c.h.b16 %v123
  %v2425 = vunpack.c.l.b16 %v124
  %v2426 = vunpack.c.h.b16 %v124
  %v2427 = vunpack.c.l.b16 %v125
  %v2428 = vunpack.c.h.b16 %v125
  %v2429 = vunpack.c.l.b16 %v126
  %v2430 = vunpack.c.h.b16 %v126
  %v2431 = vunpack.c.l.b16 %v127
  %v2432 = vunpack.c.h.b16 %v127
  %v2433 = vunpack.c.l.b16 %v128
  %v2434 = vunpack.c.h.b16 %v128
  %v2435 = vunpack.c.l.b16 %v129
  %v2436 = vunpack.c.h.b16 %v129
  %v2437 = vunpack.c.l.b16 %v130
  %v2438 = vunpack.c.h.b16 %v130
  %v2439 = vunpack.c.l.b16 %v131
  %v2440 = vunpack.c.h.b16 %v131
  %v2441 = vunpack.c.l.b16 %v132
  %v2442 = vunpack.c.h.b16 %v132
  %v2443 = vunpack.c.l.b16 %v133
  %v2444 = vunpack.c.h.b16 %v133
  %v2445 = vunpack.c.l.b16 %v134
  %v2446 = vunpack.c.h.b16 %v134
  %v2447 = vunpack.c.l.b16 %v135
  %v2448 = vunpack.c.h.b16 %v135
  %v2449 = vunpack.c.l.b16 %v136
  %v2450 = vunpack.c.h.b16 %v136
  %v2451 = vunpack.c.l.b16 %v137
  %v2452 = vunpack.c.h.b16 %v137
  %v2453 = vunpack.c.l.b16 %v138
  %v2454 = vunpack.c.h.b16 %v138
  %v2455 = vunpack.c.l.b16 %v139
  %v2456 = vunpack.c.h.b16 %v139
  %v2457 = vunpack.c.l.b16 %v140
  %v2458 = vunpack.c.h.b16 %v140
  %v2459 = vunpack.c.l.b16 %v141
  %v2460 = vunpack.c.h.b16 %v141
  %v2461 = vunpack.c.l.b16 %v142
  %v2462 = vunpack.c.h.b16 %v142
  %v2463 = vunpack.c.l.b16 %v143
  %v2464 = vunpack.c.h.b16 %v143
  %v2465 = vunpack.c.l.b16 %v144
  %v2466 = vunpack.c.h.b16 %v144
  %v2467 = vunpack.c.l.b16 %v145
  %v2468 = vunpack.c.h.b16 %v145
  %v2469 = vunpack.c.l.b16 %v146
  %v2470 = vunpack.c.h.b16 %v146
  %v2471 = vunpack.c.l.b16 %v147
  %v2472 = vunpack.c.h.b16 %v147
  %v2473 = vunpack.c.l.b16 %v148
  %v2474 = vunpack.c.h.b16 %v148
  %v2475 = vunpack.c.l.b16 %v149
  %v2476 = vunpack.c.h.b16 %v149
  %v2477 = vunpack.c.l.b16 %v150
  %v2478 = vunpack.c.h.b16 %v150
  %v2479 = vunpack.c.l.b16 %v151
  %v2480 = vunpack.c.h.b16 %v151
  %v2481 = vunpack.c.l.b16 %v152
  %v2482 = vunpack.c.h.b16 %v152
  %v2483 = vunpack.c.l.b16 %v153
  %v2484 = vunpack.c.h.b16 %v153
  %v2485 = vunpack.c.l.b16 %v154
  %v2486 = vunpack.c.h.b16 %v154
  %v2487 = vunpack.c.l.b16 %v155
  %v2488 = vunpack.c.h.b16 %v155
  %v2489 = vunpack.c.l.b16 %v156
  %v2490 = vunpack.c.h.b16 %v156
  %v2491 = vunpack.c.l.b16 %v157
  %v2492 = vunpack.c.h.b16 %v157
  %v2493 = vunpack.c.l.b16 %v158
  %v2494 = vunpack.c.h.b16 %v158
  %v2495 = vunpack.c.l.b16 %v159
  %v2496 = vunpack.c.h.b16 %v159
  %v2497 = vunpack.c.l.b16 %v160
  %v2498 = vunpack.c.h.b16 %v160
  %v2499 = vunpack.c.l.b16 %v161
  %v2500 = vunpack.c.h.b16 %v161
  %v2501 = vunpack.c.l.b16 %v162
  %v2502 = vunpack.c.h.b16 %v162
  %v2503 = vunpack.c.l.b16 %v163
  %v2504 = vunpack.c.h.b16 %v163
  %v2505 = vunpack.c.l.b16 %v164
  %v2506 = vunpack.c.h.b16 %v164
  %v2507 = vunpack.c.l.b16 %v165
  %v2508 = vunpack.c.h.b16 %v165
  %v2509 = vunpack.c.l.b16 %v166
  %v2510 = vunpack.c.h.b16 %v166
  %v2511 = vunpack.c.l.b16 %v167
  %v2512 = vunpack.c.h.b16 %v167
  %v2513 = vunpack.c.l.b16 %v168
  %v2514 = vunpack.c.h.b16 %v168
  %v2515 = vunpack.c.l.b16 %v169
  %v2516 = vunpack.c.h.b16 %v169
  %v2517 = vunpack.c.l.b16 %v170
  %v2518 = vunpack.c.h.b16 %v170
  %v2519 = vunpack.c.l.b16 %v171
  %v2520 = vunpack.c.h.b16 %v171
  %v2521 = vunpack.c.l.b16 %v172
  %v2522 = vunpack.c.h.b16 %v172
  %v2523 = vunpack.c.l.b16 %v173
  %v2524 = vunpack.c.h.b16 %v173
  %v2525 = vunpack.c.l.b16 %v174
  %v2526 = vunpack.c.h.b16 %v174
  %v2527 = vunpack.c.l.b16 %v175
  %v2528 = vunpack.c.h.b16 %v175
  %v2529 = vunpack.c.l.b16 %v176
  %v2530 = vunpack.c.h.b16 %v176
  %v2531 = vunpack.c.l.b16 %v177
  %v2532 = vunpack.c.h.b16 %v177
  %v2533 = vunpack.c.l.b16 %v178
  %v2534 = vunpack.c.h.b16 %v178
  %v2535 = vunpack.c.l.b16 %v179
  %v2536 = vunpack.c.h.b16 %v179
  %v2537 = vunpack.c.l.b16 %v180
  %v2538 = vunpack.c.h.b16 %v180
  %v2539 = vunpack.c.l.b16 %v181
  %v2540 = vunpack.c.h.b16 %v181
  %v2541 = vunpack.c.l.b16 %v182
  %v2542 = vunpack.c.h.b16 %v182
  %v2543 = vunpack.c.l.b16 %v183
  %v2544 = vunpack.c.h.b16 %v183
  %v2545 = vunpack.c.l.b16 %v184
  %v2546 = vunpack.c.h.b16 %v184
  %v2547 = vunpack.c.l.b16 %v185
  %v2548 = vunpack.c.h.b16 %v185
  %v2549 = vunpack.c.l.b16 %v186
  %v2550 = vunpack.c.h.b16 %v186
  %v2551 = vunpack.c.l.b16 %v187
  %v2552 = vunpack.c.h.b16 %v187
  %v2553 = vunpack.c.l.b16 %v188
  %v2554 = vunpack.c.h.b16 %v188
  %v2555 = vunpack.c.l.b16 %v189
  %v2556 = vunpack.c.h.b16 %v189
  %v2557 = vunpack.c.l.b16 %v190
  %v2558 = vunpack.c.h.b16 %v190
  %v2559 = vunpack.c.l.b16 %v191
  %v2560 = vunpack.c.h.b16 %v191
  %v2561 = vunpack.c.l.b16 %v192
  %v2562 = vunpack.c.h.b16 %v192
  %v2563 = vunpack.c.l.b16 %v193
  %v2564 = vunpack.c.h.b16 %v193
  %v2565 = vunpack.c.l.b16 %v194
  %v2566 = vunpack.c.h.b16 %v194
  %v2567 = vunpack.c.l.b16 %v195
  %v2568 = vunpack.c.h.b16 %v195
  %v2569 = vunpack.c.l.b16 %v196
  %v2570 = vunpack.c.h.b16 %v196
  %v2571 = vunpack.c.l.b16 %v197
  %v2572 = vunpack.c.h.b16 %v197
  %v2573 = vunpack.c.l.b16 %v198
  %v2574 = vunpack.c.h.b16 %v198
  %v2575 = vunpack.c.l.b16 %v199
  %v2576 = vunpack.c.h.b16 %v199
  %v2577 = vunpack.c.l.b16 %v200
  %v2578 = vunpack.c.h.b16 %v200
  %v2579 = vunpack.c.l.b16 %v201
  %v2580 = vunpack.c.h.b16 %v201
  %v2581 = vunpack.c.l.b16 %v202
  %v2582 = vunpack.c.h.b16 %v202
  %v2583 = vunpack.c.l.b16 %v203
  %v2584 = vunpack.c.h.b16 %v203
  %v2585 = vunpack.c.l.b16 %v204
  %v2586 = vunpack.c.h.b16 %v204
  %v2587 = vunpack.c.l.b16 %v205
  %v2588 = vunpack.c.h.b16 %v205
  %v2589 = vunpack.c.l.b16 %v206
  %v2590 = vunpack.c.h.b16 %v206
  %v2591 = vunpack.c.l.b16 %v207
  %v2592 = vunpack.c.h.b16 %v207
  %v2593 = vunpack.c.l.b16 %v208
  %v2594 = vunpack.c.h.b16 %v208
  %v2595 = vunpack.c.l.b16 %v209
  %v2596 = vunpack.c.h.b16 %v209
  %v2597 = vunpack.c.l.b16 %v210
  %v2598 = vunpack.c.h.b16 %v210
  %v2599 = vunpack.c.l.b16 %v211
  %v2600 = vunpack.c.h.b16 %v211
  %v2601 = vunpack.c.l.b16 %v212
  %v2602 = vunpack.c.h.b16 %v212
  %v2603 = vunpack.c.l.b16 %v213
  %v2604 = vunpack.c.h.b16 %v213
  %v2605 = vunpack.c.l.b16 %v214
  %v2606 = vunpack.c.h.b16 %v214
  %v2607 = vunpack.c.l.b16 %v215
  %v2608 = vunpack.c.h.b16 %v215
  %v2609 = vunpack.c.l.b16 %v216
  %v2610 = vunpack.c.h.b16 %v216
  %v2611 = vunpack.c.l.b16 %v217
  %v2612 = vunpack.c.h.b16 %v217
  %v2613 = vunpack.c.l.b16 %v218
  %v2614 = vunpack.c.h.b16 %v218
  %v2615 = vunpack.c.l.b16 %v219
  %v2616 = vunpack.c.h.b16 %v219
  %v2617 = vunpack.c.l.b16 %v220
  %v2618 = vunpack.c.h.b16 %v220
  %v2619 = vunpack.c.l.b16 %v221
  %v2620 = vunpack.c.h.b16 %v221
  %v2621 = vunpack.c.l.b16 %v222
  %v2622 = vunpack.c.h.b16 %v222
  %v2623 = vunpack.c.l.b16 %v223
  %v2624 = vunpack.c.h.b16 %v223
  %v2625 = vunpack.c.l.b16 %v224
  %v2626 = vunpack.c.h.b16 %v224
  %v2627 = vunpack.c.l.b16 %v225
  %v2628 = vunpack.c.h.b16 %v225
  %v2629 = vunpack.c.l.b16 %v226
  %v2630 = vunpack.c.h.b16 %v226
  %v2631 = vunpack.c.l.b16 %v227
  %v2632 = vunpack.c.h.b16 %v227
  %v2633 = vunpack.c.l.b16 %v228
  %v2634 = vunpack.c.h.b16 %v228
  %v2635 = vunpack.c.l.b16 %v229
  %v2636 = vunpack.c.h.b16 %v229
  %v2637 = vunpack.c.l.b16 %v230
  %v2638 = vunpack.c.h.b16 %v230
  %v2639 = vunpack.c.l.b16 %v231
  %v2640 = vunpack.c.h.b16 %v231
  %v2641 = vunpack.c.l.b16 %v232
  %v2642 = vunpack.c.h.b16 %v232
  %v2643 = vunpack.c.l.b16 %v233
  %v2644 = vunpack.c.h.b16 %v233
  %v2645 = vunpack.c.l.b16 %v234
  %v2646 = vunpack.c.h.b16 %v234
  %v2647 = vunpack.c.l.b16 %v235
  %v2648 = vunpack.c.h.b16 %v235
  %v2649 = vunpack.c.l.b16 %v236
  %v2650 = vunpack.c.h.b16 %v236
  %v2651 = vunpack.c.l.b16 %v237
  %v2652 = vunpack.c.h.b16 %v237
  %v2653 = vunpack.c.l.b16 %v238
  %v2654 = vunpack.c.h.b16 %v238
  %v2655 = vunpack.c.l.b16 %v239
  %v2656 = vunpack.c.h.b16 %v239
  %v2657 = vunpack.c.l.b16 %v240
  %v2658 = vunpack.c.h.b16 %v240
  %v2659 = vunpack.c.l.b16 %v241
  %v2660 = vunpack.c.h.b16 %v241
  %v2661 = vunpack.c.l.b16 %v242
  %v2662 = vunpack.c.h.b16 %v242
  %v2663 = vunpack.c.l.b16 %v243
  %v2664 = vunpack.c.h.b16 %v243
  %v2665 = vunpack.c.l.b16 %v244
  %v2666 = vunpack.c.h.b16 %v244
  %v2667 = vunpack.c.l.b16 %v245
  %v2668 = vunpack.c.h.b16 %v245
  %v2669 = vunpack.c.l.b16 %v246
  %v2670 = vunpack.c.h.b16 %v246
  %v2671 = vunpack.c.l.b16 %v247
  %v2672 = vunpack.c.h.b16 %v247
  %v2673 = vunpack.c.l.b16 %v248
  %v2674 = vunpack.c.h.b16 %v248
  %v2675 = vunpack.c.l.b16 %v249
  %v2676 = vunpack.c.h.b16 %v249
  %v2677 = vunpack.c.l.b16 %v250
  %v2678 = vunpack.c.h.b16 %v250
  %v2679 = vunpack.c.l.b16 %v251
  %v2680 = vunpack.c.h.b16 %v251
  %v2681 = vunpack.c.l.b16 %v252
  %v2682 = vunpack.c.h.b16 %v252
  %v2683 = vunpack.c.l.b16 %v253
  %v2684 = vunpack.c.h.b16 %v253
  %v2685 = vunpack.c.l.b16 %v254
  %v2686 = vunpack.c.h.b16 %v254
  %v2687 = vunpack.c.l.b16 %v255
  %v2688 = vunpack.c.h.b16 %v255
  %v2689 = vunpack.c.l.b16 %v256
  %v2690 = vunpack.c.h.b16 %v256
  %v2691 = vunpack.c.l.b16 %v257
  %v2692 = vunpack.c.h.b16 %v257
  %v2693 = vunpack.c.l.b16 %v258
  %v2694 = vunpack.c.h.b16 %v258
  %v2695 = vunpack.c.l.b16 %v259
  %v2696 = vunpack.c.h.b16 %v259
  %v2697 = vunpack.c.l.b16 %v260
  %v2698 = vunpack.c.h.b16 %v260
  %v2699 = vunpack.c.l.b16 %v261
  %v2700 = vunpack.c.h.b16 %v261
  %v2701 = vunpack.c.l.b16 %v262
  %v2702 = vunpack.c.h.b16 %v262
  %v2703 = vunpack.c.l.b16 %v263
  %v2704 = vunpack.c.h.b16 %v263
  %v2705 = vunpack.c.l.b16 %v264
  %v2706 = vunpack.c.h.b16 %v264
  %v2707 = vunpack.c.l.b16 %v265
  %v2708 = vunpack.c.h.b16 %v265
  %v2709 = vunpack.c.l.b16 %v266
  %v2710 = vunpack.c.h.b16 %v266
  %v2711 = vunpack.c.l.b16 %v267
  %v2712 = vunpack.c.h.b16 %v267
  %v2713 = vunpack.c.l.b16 %v268
  %v2714 = vunpack.c.h.b16 %v268
  %v2715 = vunpack.c.l.b16 %v269
  %v2716 = vunpack.c.h.b16 %v269
  %v2717 = vunpack.c.l.b16 %v270
  %v2718 = vunpack.c.h.b16 %v270
  %v2719 = vunpack.c.l.b16 %v271
  %v2720 = vunpack.c.h.b16 %v271
  %v2721 = vunpack.c.l.b16 %v272
  %v2722 = vunpack.c.h.b16 %v272
  %v2723 = vunpack.c.l.b16 %v273
  %v2724 = vunpack.c.h.b16 %v273
  %v2725 = vunpack.c.l.b16 %v274
  %v2726 = vunpack.c.h.b16 %v274
  %v2727 = vunpack.c.l.b16 %v275
  %v2728 = vunpack.c.h.b16 %v275
  %v2729 = vunpack.c.l.b16 %v276
  %v2730 = vunpack.c.h.b16 %v276
  %v2731 = vunpack.c.l.b16 %v277
  %v2732 = vunpack.c.h.b16 %v277
  %v2733 = vunpack.c.l.b16 %v278
  %v2734 = vunpack.c.h.b16 %v278
  %v2735 = vunpack.c.l.b16 %v279
  %v2736 = vunpack.c.h.b16 %v279
  %v2737 = vunpack.c.l.b16 %v280
  %v2738 = vunpack.c.h.b16 %v280
  %v2739 = vunpack.c.l.b16 %v281
  %v2740 = vunpack.c.h.b16 %v281
  %v2741 = vunpack.c.l.b16 %v282
  %v2742 = vunpack.c.h.b16 %v282
  %v2743 = vunpack.c.l.b16 %v283
  %v2744 = vunpack.c.h.b16 %v283
  %v2745 = vunpack.c.l.b16 %v284
  %v2746 = vunpack.c.h.b16 %v284
  %v2747 = vunpack.c.l.b16 %v285
  %v2748 = vunpack.c.h.b16 %v285
  %v2749 = vunpack.c.l.b16 %v286
  %v2750 = vunpack.c.h.b16 %v286
  %v2751 = vunpack.c.l.b16 %v287
  %v2752 = vunpack.c.h.b16 %v287
  %v2753 = vunpack.c.l.b16 %v288
  %v2754 = vunpack.c.h.b16 %v288
  %v2755 = vunpack.c.l.b16 %v289
  %v2756 = vunpack.c.h.b16 %v289
  %v2757 = vunpack.c.l.b16 %v290
  %v2758 = vunpack.c.h.b16 %v290
  %v2759 = vunpack.c.l.b16 %v291
  %v2760 = vunpack.c.h.b16 %v291
  %v2761 = vunpack.c.l.b16 %v292
  %v2762 = vunpack.c.h.b16 %v292
  %v2763 = vunpack.c.l.b16 %v293
  %v2764 = vunpack.c.h.b16 %v293
  %v2765 = vunpack.c.l.b16 %v294
  %v2766 = vunpack.c.h.b16 %v294
  %v2767 = vunpack.c.l.b16 %v295
  %v2768 = vunpack.c.h.b16 %v295
  %v2769 = vunpack.c.l.b16 %v296
  %v2770 = vunpack.c.h.b16 %v296
  %v2771 = vunpack.c.l.b16 %v297
  %v2772 = vunpack.c.h.b16 %v297
  %v2773 = vunpack.c.l.b16 %v298
  %v2774 = vunpack.c.h.b16 %v298
  %v2775 = vunpack.c.l.b16 %v299
  %v2776 = vunpack.c.h.b16 %v299
  %v2777 = vunpack.c.l.b16 %v300
  %v2778 = vunpack.c.h.b16 %v300
  %v2779 = vunpack.c.l.b16 %v301
  %v2780 = vunpack.c.h.b16 %v301
  %v2781 = vunpack.c.l.b16 %v302
  %v2782 = vunpack.c.h.b16 %v302
  %v2783 = vunpack.c.l.b16 %v303
  %v2784 = vunpack.c.h.b16 %v303
  %v2785 = vunpack.c.l.b16 %v304
  %v2786 = vunpack.c.h.b16 %v304
  %v2787 = vunpack.c.l.b16 %v305
  %v2788 = vunpack.c.h.b16 %v305
  %v2789 = vunpack.c.l.b16 %v306
  %v2790 = vunpack.c.h.b16 %v306
  %v2791 = vunpack.c.l.b16 %v307
  %v2792 = vunpack.c.h.b16 %v307
  %v2793 = vunpack.c.l.b16 %v308
  %v2794 = vunpack.c.h.b16 %v308
  %v2795 = vunpack.c.l.b16 %v309
  %v2796 = vunpack.c.h.b16 %v309
  %v2797 = vunpack.c.l.b16 %v310
  %v2798 = vunpack.c.h.b16 %v310
  %v2799 = vunpack.c.l.b16 %v311
  %v2800 = vunpack.c.h.b16 %v311
  %v2801 = vunpack.c.l.b16 %v312
  %v2802 = vunpack.c.h.b16 %v312
  %v2803 = vunpack.c.l.b16 %v313
  %v2804 = vunpack.c.h.b16 %v313
  %v2805 = vunpack.c.l.b16 %v314
  %v2806 = vunpack.c.h.b16 %v314
  %v2807 = vunpack.c.l.b16 %v315
  %v2808 = vunpack.c.h.b16 %v315
  %v2809 = vunpack.c.l.b16 %v316
  %v2810 = vunpack.c.h.b16 %v316
  %v2811 = vunpack.c.l.b16 %v317
  %v2812 = vunpack.c.h.b16 %v317
  %v2813 = vunpack.c.l.b16 %v318
  %v2814 = vunpack.c.h.b16 %v318
  %v2815 = vunpack.c.l.b16 %v319
  %v2816 = vunpack.c.h.b16 %v319
  %v2817 = vunpack.c.l.b16 %v320
  %v2818 = vunpack.c.h.b16 %v320
  %v2819 = vunpack.c.l.b16 %v321
  %v2820 = vunpack.c.h.b16 %v321
  %v2821 = vunpack.c.l.b16 %v322
  %v2822 = vunpack.c.h.b16 %v322
  %v2823 = vunpack.c.l.b16 %v323
  %v2824 = vunpack.c.h.b16 %v323
  %v2825 = vunpack.c.l.b16 %v324
  %v2826 = vunpack.c.h.b16 %v324
  %v2827 = vunpack.c.l.b16 %v325
  %v2828 = vunpack.c.h.b16 %v325
  %v2829 = vunpack.c.l.b16 %v326
  %v2830 = vunpack.c.h.b16 %v326
  %v2831 = vunpack.c.l.b16 %v327
  %v2832 = vunpack.c.h.b16 %v327
  %v2833 = vunpack.c.l.b16 %v328
  %v2834 = vunpack.c.h.b16 %v328
  %v2835 = vunpack.c.l.b16 %v329
  %v2836 = vunpack.c.h.b16 %v329
  %v2837 = vunpack.c.l.b16 %v330
  %v2838 = vunpack.c.h.b16 %v330
  %v2839 = vunpack.c.l.b16 %v331
  %v2840 = vunpack.c.h.b16 %v331
  %v2841 = vunpack.c.l.b16 %v332
  %v2842 = vunpack.c.h.b16 %v332
  %v2843 = vunpack.c.l.b16 %v333
  %v2844 = vunpack.c.h.b16 %v333
  %v2845 = vunpack.c.l.b16 %v334
  %v2846 = vunpack.c.h.b16 %v334
  %v2847 = vunpack.c.l.b16 %v335
  %v2848 = vunpack.c.h.b16 %v335
  %v2849 = vunpack.c.l.b16 %v336
  %v2850 = vunpack.c.h.b16 %v336
  %v2851 = vunpack.c.l.b16 %v337
  %v2852 = vunpack.c.h.b16 %v337
  %v2853 = vunpack.c.l.b16 %v338
  %v2854 = vunpack.c.h.b16 %v338
  %v2855 = vunpack.c.l.b16 %v339
  %v2856 = vunpack.c.h.b16 %v339
  %v2857 = vunpack.c.l.b16 %v340
  %v2858 = vunpack.c.h.b16 %v340
  %v2859 = vunpack.c.l.b16 %v341
  %v2860 = vunpack.c.h.b16 %v341
  %v2861 = vunpack.c.l.b16 %v342
  %v2862 = vunpack.c.h.b16 %v342
  %v2863 = vunpack.c.l.b16 %v343
  %v2864 = vunpack.c.h.b16 %v343
  %v2865 = vunpack.c.l.b16 %v344
  %v2866 = vunpack.c.h.b16 %v344
  %v2867 = vunpack.c.l.b16 %v345
  %v2868 = vunpack.c.h.b16 %v345
  %v2869 = vunpack.c.l.b16 %v346
  %v2870 = vunpack.c.h.b16 %v346
  %v2871 = vunpack.c.l.b16 %v347
  %v2872 = vunpack.c.h.b16 %v347
  %v2873 = vunpack.c.l.b16 %v348
  %v2874 = vunpack.c.h.b16 %v348
  %v2875 = vunpack.c.l.b16 %v349
  %v2876 = vunpack.c.h.b16 %v349
  %v2877 = vunpack.c.l.b16 %v350
  %v2878 = vunpack.c.h.b16 %v350
  %v2879 = vunpack.c.l.b16 %v351
  %v2880 = vunpack.c.h.b16 %v351
  %v2881 = vunpack.c.l.b16 %v352
  %v2882 = vunpack.c.h.b16 %v352
  %v2883 = vunpack.c.l.b16 %v353
  %v2884 = vunpack.c.h.b16 %v353
  %v2885 = vunpack.c.l.b16 %v354
  %v2886 = vunpack.c.h.b16 %v354
  %v2887 = vunpack.c.l.b16 %v355
  %v2888 = vunpack.c.h.b16 %v355
  %v2889 = vunpack.c.l.b16 %v356
  %v2890 = vunpack.c.h.b16 %v356
  %v2891 = vunpack.c.l.b16 %v357
  %v2892 = vunpack.c.h.b16 %v357
  %v2893 = vunpack.c.l.b16 %v358
  %v2894 = vunpack.c.h.b16 %v358
  %v2895 = vunpack.c.l.b16 %v359
  %v2896 = vunpack.c.h.b16 %v359
  %v2897 = vunpack.c.l.b16 %v360
  %v2898 = vunpack.c.h.b16 %v360
  %v2899 = vunpack.c.l.b16 %v361
  %v2900 = vunpack.c.h.b16 %v361
  %v2901 = vunpack.c.l.b16 %v362
  %v2902 = vunpack.c.h.b16 %v362
  %v2903 = vunpack.c.l.b16 %v363
  %v2904 = vunpack.c.h.b16 %v363
  %v2905 = vunpack.c.l.b16 %v364
  %v2906 = vunpack.c.h.b16 %v364
  %v2907 = vunpack.c.l.b16 %v365
  %v2908 = vunpack.c.h.b16 %v365
  %v2909 = vunpack.c.l.b16 %v366
  %v2910 = vunpack.c.h.b16 %v366
  %v2911 = vunpack.c.l.b16 %v367
  %v2912 = vunpack.c.h.b16 %v367
  %v2913 = vunpack.c.l.b16 %v368
  %v2914 = vunpack.c.h.b16 %v368
  %v2915 = vunpack.c.l.b16 %v369
  %v2916 = vunpack.c.h.b16 %v369
  %v2917 = vunpack.c.l.b16 %v370
  %v2918 = vunpack.c.h.b16 %v370
  %v2919 = vunpack.c.l.b16 %v371
  %v2920 = vunpack.c.h.b16 %v371
  %v2921 = vunpack.c.l.b16 %v372
  %v2922 = vunpack.c.h.b16 %v372
  %v2923 = vunpack.c.l.b16 %v373
  %v2924 = vunpack.c.h.b16 %v373
  %v2925 = vunpack.c.l.b16 %v374
  %v2926 = vunpack.c.h.b16 %v374
  %v2927 = vunpack.c.l.b16 %v375
  %v2928 = vunpack.c.h.b16 %v375
  %v2929 = vunpack.c.l.b16 %v376
  %v2930 = vunpack.c.h.b16 %v376
  %v2931 = vunpack.c.l.b16 %v377
  %v2932 = vunpack.c.h.b16 %v377
  %v2933 = vunpack.c.l.b16 %v378
  %v2934 = vunpack.c.h.b16 %v378
  %v2935 = vunpack.c.l.b16 %v379
  %v2936 = vunpack.c.h.b16 %v379
  %v2937 = vunpack.c.l.b16 %v380
  %v2938 = vunpack.c.h.b16 %v380
  %v2939 = vunpack.c.l.b16 %v381
  %v2940 = vunpack.c.h.b16 %v381
  %v2941 = vunpack.c.l.b16 %v382
  %v2942 = vunpack.c.h.b16 %v382
  %v2943 = vunpack.c.l.b16 %v383
  %v2944 = vunpack.c.h.b16 %v383
  %v2945 = vunpack.c.l.b16 %v384
  %v2946 = vunpack.c.h.b16 %v384
  %v2947 = vunpack.c.l.b16 %v385
  %v2948 = vunpack.c.h.b16 %v385
  %v2949 = vunpack.c.l.b16 %v386
  %v2950 = vunpack.c.h.b16 %v386
  %v2951 = vunpack.c.l.b16 %v387
  %v2952 = vunpack.c.h.b16 %v387
  %v2953 = vunpack.c.l.b16 %v388
  %v2954 = vunpack.c.h.b16 %v388
  %v2955 = vunpack.c.l.b16 %v389
  %v2956 = vunpack.c.h.b16 %v389
  %v2957 = vunpack.c.l.b16 %v390
  %v2958 = vunpack.c.h.b16 %v390
  %v2959 = vunpack.c.l.b16 %v391
  %v2960 = vunpack.c.h.b16 %v391
  %v2961 = vunpack.c.l.b16 %v392
  %v2962 = vunpack.c.h.b16 %v392
  %v2963 = vunpack.c.l.b16 %v393
  %v2964 = vunpack.c.h.b16 %v393
  %v2965 = vunpack.c.l.b16 %v394
  %v2966 = vunpack.c.h.b16 %v394
  %v2967 = vunpack.c.l.b16 %v395
  %v2968 = vunpack.c.h.b16 %v395
  %v2969 = vunpack.c.l.b16 %v396
  %v2970 = vunpack.c.h.b16 %v396
  %v2971 = vunpack.c.l.b16 %v397
  %v2972 = vunpack.c.h.b16 %v397
  %v2973 = vunpack.c.l.b16 %v398
  %v2974 = vunpack.c.h.b16 %v398
  %v2975 = vunpack.c.l.b16 %v399
  %v2976 = vunpack.c.h.b16 %v399
  %v2977 = vunpack.c.l.b16 %v400
  %v2978 = vunpack.c.h.b16 %v400
  %v2979 = vunpack.c.l.b16 %v401
  %v2980 = vunpack.c.h.b16 %v401
  %v2981 = vunpack.c.l.b16 %v402
  %v2982 = vunpack.c.h.b16 %v402
  %v2983 = vunpack.c.l.b16 %v403
  %v2984 = vunpack.c.h.b16 %v403
  %v2985 = vunpack.c.l.b16 %v404
  %v2986 = vunpack.c.h.b16 %v404
  %v2987 = vunpack.c.l.b16 %v405
  %v2988 = vunpack.c.h.b16 %v405
  %v2989 = vunpack.c.l.b16 %v406
  %v2990 = vunpack.c.h.b16 %v406
  %v2991 = vunpack.c.l.b16 %v407
  %v2992 = vunpack.c.h.b16 %v407
  %v2993 = vunpack.c.l.b16 %v408
  %v2994 = vunpack.c.h.b16 %v408
  %v2995 = vunpack.c.l.b16 %v409
  %v2996 = vunpack.c.h.b16 %v409
  %v2997 = vunpack.c.l.b16 %v410
  %v2998 = vunpack.c.h.b16 %v410
  %v2999 = vunpack.c.l.b16 %v411
  %v3000 = vunpack.c.h.b16 %v411
  %v3001 = vunpack.c.l.b16 %v412
  %v3002 = vunpack.c.h.b16 %v412
  %v3003 = vunpack.c.l.b16 %v413
  %v3004 = vunpack.c.h.b16 %v413
  %v3005 = vunpack.c.l.b16 %v414
  %v3006 = vunpack.c.h.b16 %v414
  %v3007 = vunpack.c.l.b16 %v415
  %v3008 = vunpack.c.h.b16 %v415
  %v3009 = vunpack.c.l.b16 %v416
  %v3010 = vunpack.c.h.b16 %v416
  %v3011 = vunpack.c.l.b16 %v417
  %v3012 = vunpack.c.h.b16 %v417
  %v3013 = vunpack.c.l.b16 %v418
  %v3014 = vunpack.c.h.b16 %v418
  %v3015 = vunpack.c.l.b16 %v419
  %v3016 = vunpack.c.h.b16 %v419
  %v3017 = vunpack.c.l.b16 %v420
  %v3018 = vunpack.c.h.b16 %v420
  %v3019 = vunpack.c.l.b16 %v421
  %v3020 = vunpack.c.h.b16 %v421
  %v3021 = vunpack.c.l.b16 %v422
  %v3022 = vunpack.c.h.b16 %v422
  %v3023 = vunpack.c.l.b16 %v423
  %v3024 = vunpack.c.h.b16 %v423
  %v3025 = vunpack.c.l.b16 %v424
  %v3026 = vunpack.c.h.b16 %v424
  %v3027 = vunpack.c.l.b16 %v425
  %v3028 = vunpack.c.h.b16 %v425
  %v3029 = vunpack.c.l.b16 %v426
  %v3030 = vunpack.c.h.b16 %v426
  %v3031 = vunpack.c.l.b16 %v427
  %v3032 = vunpack.c.h.b16 %v427
  %v3033 = vunpack.c.l.b16 %v428
  %v3034 = vunpack.c.h.b16 %v428
  %v3035 = vunpack.c.l.b16 %v429
  %v3036 = vunpack.c.h.b16 %v429
  %v3037 = vunpack.c.l.b16 %v430
  %v3038 = vunpack.c.h.b16 %v430
  %v3039 = vunpack.c.l.b16 %v431
  %v3040 = vunpack.c.h.b16 %v431
  %v3041 = vunpack.c.l.b16 %v432
  %v3042 = vunpack.c.h.b16 %v432
  %v3043 = vunpack.c.l.b16 %v433
  %v3044 = vunpack.c.h.b16 %v433
  %v3045 = vunpack.c.l.b16 %v434
  %v3046 = vunpack.c.h.b16 %v434
  %v3047 = vunpack.c.l.b16 %v435
  %v3048 = vunpack.c.h.b16 %v435
  %v3049 = vunpack.c.l.b16 %v436
  %v3050 = vunpack.c.h.b16 %v436
  %v3051 = vunpack.c.l.b16 %v437
  %v3052 = vunpack.c.h.b16 %v437
  %v3053 = vunpack.c.l.b16 %v438
  %v3054 = vunpack.c.h.b16 %v438
  %v3055 = vunpack.c.l.b16 %v439
  %v3056 = vunpack.c.h.b16 %v439
  %v3057 = vunpack.c.l.b16 %v440
  %v3058 = vunpack.c.h.b16 %v440
  %v3059 = vunpack.c.l.b16 %v441
  %v3060 = vunpack.c.h.b16 %v441
  %v3061 = vunpack.c.l.b16 %v442
  %v3062 = vunpack.c.h.b16 %v442
  %v3063 = vunpack.c.l.b16 %v443
  %v3064 = vunpack.c.h.b16 %v443
  %v3065 = vunpack.c.l.b16 %v444
  %v3066 = vunpack.c.h.b16 %v444
  %v3067 = vunpack.c.l.b16 %v445
  %v3068 = vunpack.c.h.b16 %v445
  %v3069 = vunpack.c.l.b16 %v446
  %v3070 = vunpack.c.h.b16 %v446
  %v3071 = vunpack.c.l.b16 %v447
  %v3072 = vunpack.c.h.b16 %v447
  %v3073 = vunpack.c.l.b16 %v448
  %v3074 = vunpack.c.h.b16 %v448
  %v3075 = vunpack.c.l.b16 %v449
  %v3076 = vunpack.c.h.b16 %v449
  %v3077 = vunpack.c.l.b16 %v450
  %v3078 = vunpack.c.h.b16 %v450
  %v3079 = vunpack.c.l.b16 %v451
  %v3080 = vunpack.c.h.b16 %v451
  %v3081 = vunpack.c.l.b16 %v452
  %v3082 = vunpack.c.h.b16 %v452
  %v3083 = vunpack.c.l.b16 %v453
  %v3084 = vunpack.c.h.b16 %v453
  %v3085 = vunpack.c.l.b16 %v454
  %v3086 = vunpack.c.h.b16 %v454
  %v3087 = vunpack.c.l.b16 %v455
  %v3088 = vunpack.c.h.b16 %v455
  %v3089 = vunpack.c.l.b16 %v456
  %v3090 = vunpack.c.h.b16 %v456
  %v3091 = vunpack.c.l.b16 %v457
  %v3092 = vunpack.c.h.b16 %v457
  %v3093 = vunpack.c.l.b16 %v458
  %v3094 = vunpack.c.h.b16 %v458
  %v3095 = vunpack.c.l.b16 %v459
  %v3096 = vunpack.c.h.b16 %v459
  %v3097 = vunpack.c.l.b16 %v460
  %v3098 = vunpack.c.h.b16 %v460
  %v3099 = vunpack.c.l.b16 %v461
  %v3100 = vunpack.c.h.b16 %v461
  %v3101 = vunpack.c.l.b16 %v462
  %v3102 = vunpack.c.h.b16 %v462
  %v3103 = vunpack.c.l.b16 %v463
  %v3104 = vunpack.c.h.b16 %v463
  %v3105 = vunpack.c.l.b16 %v464
  %v3106 = vunpack.c.h.b16 %v464
  %v3107 = vunpack.c.l.b16 %v465
  %v3108 = vunpack.c.h.b16 %v465
  %v3109 = vunpack.c.l.b16 %v466
  %v3110 = vunpack.c.h.b16 %v466
  %v3111 = vunpack.c.l.b16 %v467
  %v3112 = vunpack.c.h.b16 %v467
  %v3113 = vunpack.c.l.b16 %v468
  %v3114 = vunpack.c.h.b16 %v468
  %v3115 = vunpack.c.l.b16 %v469
  %v3116 = vunpack.c.h.b16 %v469
  %v3117 = vunpack.c.l.b16 %v470
  %v3118 = vunpack.c.h.b16 %v470
  %v3119 = vunpack.c.l.b16 %v471
  %v3120 = vunpack.c.h.b16 %v471
  %v3121 = vunpack.c.l.b16 %v472
  %v3122 = vunpack.c.h.b16 %v472
  %v3123 = vunpack.c.l.b16 %v473
  %v3124 = vunpack.c.h.b16 %v473
  %v3125 = vunpack.c.l.b16 %v474
  %v3126 = vunpack.c.h.b16 %v474
  %v3127 = vunpack.c.l.b16 %v475
  %v3128 = vunpack.c.h.b16 %v475
  %v3129 = vunpack.c.l.b16 %v476
  %v3130 = vunpack.c.h.b16 %v476
  %v3131 = vunpack.c.l.b16 %v477
  %v3132 = vunpack.c.h.b16 %v477
  %v3133 = vunpack.c.l.b16 %v478
  %v3134 = vunpack.c.h.b16 %v478
  %v3135 = vunpack.c.l.b16 %v479
  %v3136 = vunpack.c.h.b16 %v479
  %v3137 = vunpack.c.l.b16 %v480
  %v3138 = vunpack.c.h.b16 %v480
  %v3139 = vunpack.c.l.b16 %v481
  %v3140 = vunpack.c.h.b16 %v481
  %v3141 = vunpack.c.l.b16 %v482
  %v3142 = vunpack.c.h.b16 %v482
  %v3143 = vunpack.c.l.b16 %v483
  %v3144 = vunpack.c.h.b16 %v483
  %v3145 = vunpack.c.l.b16 %v484
  %v3146 = vunpack.c.h.b16 %v484
  %v3147 = vunpack.c.l.b16 %v485
  %v3148 = vunpack.c.h.b16 %v485
  %v3149 = vunpack.c.l.b16 %v486
  %v3150 = vunpack.c.h.b16 %v486
  %v3151 = vunpack.c.l.b16 %v487
  %v3152 = vunpack.c.h.b16 %v487
  %v3153 = vunpack.c.l.b16 %v488
  %v3154 = vunpack.c.h.b16 %v488
  %v3155 = vunpack.c.l.b16 %v489
  %v3156 = vunpack.c.h.b16 %v489
  %v3157 = vunpack.c.l.b16 %v490
  %v3158 = vunpack.c.h.b16 %v490
  %v3159 = vunpack.c.l.b16 %v491
  %v3160 = vunpack.c.h.b16 %v491
  %v3161 = vunpack.c.l.b16 %v492
  %v3162 = vunpack.c.h.b16 %v492
  %v3163 = vunpack.c.l.b16 %v493
  %v3164 = vunpack.c.h.b16 %v493
  %v3165 = vunpack.c.l.b16 %v494
  %v3166 = vunpack.c.h.b16 %v494
  %v3167 = vunpack.c.l.b16 %v495
  %v3168 = vunpack.c.h.b16 %v495
  %v3169 = vunpack.c.l.b16 %v496
  %v3170 = vunpack.c.h.b16 %v496
  %v3171 = vunpack.c.l.b16 %v497
  %v3172 = vunpack.c.h.b16 %v497
  %v3173 = vunpack.c.l.b16 %v498
  %v3174 = vunpack.c.h.b16 %v498
  %v3175 = vunpack.c.l.b16 %v499
  %v3176 = vunpack.c.h.b16 %v499
  %v3177 = vunpack.c.l.b16 %v500
  %v3178 = vunpack.c.h.b16 %v500
  %v3179 = vunpack.c.l.b16 %v501
  %v3180 = vunpack.c.h.b16 %v501
  %v3181 = vunpack.c.l.b16 %v502
  %v3182 = vunpack.c.h.b16 %v502
  %v3183 = vunpack.c.l.b16 %v503
  %v3184 = vunpack.c.h.b16 %v503
  %v3185 = vunpack.c.l.b16 %v504
  %v3186 = vunpack.c.h.b16 %v504
  %v3187 = vunpack.c.l.b16 %v505
  %v3188 = vunpack.c.h.b16 %v505
  %v3189 = vunpack.c.l.b16 %v506
  %v3190 = vunpack.c.h.b16 %v506
  %v3191 = vunpack.c.l.b16 %v507
  %v3192 = vunpack.c.h.b16 %v507
  %v3193 = vunpack.c.l.b16 %v508
  %v3194 = vunpack.c.h.b16 %v508
  %v3195 = vunpack.c.l.b16 %v509
  %v3196 = vunpack.c.h.b16 %v509
  %v3197 = vunpack.c.l.b16 %v510
  %v3198 = vunpack.c.h.b16 %v510
  %v3199 = vunpack.c.l.b16 %v511
  %v3200 = vunpack.c.h.b16 %v511
  %v3201 = vunpack.c.l.b16 %v512
  %v3202 = vunpack.c.h.b16 %v512
  %v3203 = vunpack.c.l.b16 %v513
  %v3204 = vunpack.c.h.b16 %v513
  %v3205 = vunpack.c.l.b16 %v514
  %v3206 = vunpack.c.h.b16 %v514
  %v3207 = vunpack.c.l.b16 %v515
  %v3208 = vunpack.c.h.b16 %v515
  %v3209 = vunpack.c.l.b16 %v516
  %v3210 = vunpack.c.h.b16 %v516
  %v3211 = vunpack.c.l.b16 %v517
  %v3212 = vunpack.c.h.b16 %v517
  %v3213 = vunpack.c.l.b16 %v518
  %v3214 = vunpack.c.h.b16 %v518
  %v3215 = vunpack.c.l.b16 %v519
  %v3216 = vunpack.c.h.b16 %v519
  %v3217 = vunpack.c.l.b16 %v520
  %v3218 = vunpack.c.h.b16 %v520
  %v3219 = vunpack.c.l.b16 %v521
  %v3220 = vunpack.c.h.b16 %v521
  %v3221 = vunpack.c.l.b16 %v522
  %v3222 = vunpack.c.h.b16 %v522
  %v3223 = vunpack.c.l.b16 %v523
  %v3224 = vunpack.c.h.b16 %v523
  %v3225 = vunpack.c.l.b16 %v524
  %v3226 = vunpack.c.h.b16 %v524
  %v3227 = vunpack.c.l.b16 %v525
  %v3228 = vunpack.c.h.b16 %v525
  %v3229 = vunpack.c.l.b16 %v526
  %v3230 = vunpack.c.h.b16 %v526
  %v3231 = vunpack.c.l.b16 %v527
  %v3232 = vunpack.c.h.b16 %v527
  %v3233 = vunpack.c.l.b16 %v528
  %v3234 = vunpack.c.h.b16 %v528
  %v3235 = vunpack.c.l.b16 %v529
  %v3236 = vunpack.c.h.b16 %v529
  %v3237 = vunpack.c.l.b16 %v530
  %v3238 = vunpack.c.h.b16 %v530
  %v3239 = vunpack.c.l.b16 %v531
  %v3240 = vunpack.c.h.b16 %v531
  %v3241 = vunpack.c.l.b16 %v532
  %v3242 = vunpack.c.h.b16 %v532
  %v3243 = vunpack.c.l.b16 %v533
  %v3244 = vunpack.c.h.b16 %v533
  %v3245 = vunpack.c.l.b16 %v534
  %v3246 = vunpack.c.h.b16 %v534
  %v3247 = vunpack.c.l.b16 %v535
  %v3248 = vunpack.c.h.b16 %v535
  %v3249 = vunpack.c.l.b16 %v536
  %v3250 = vunpack.c.h.b16 %v536
  %v3251 = vunpack.c.l.b16 %v537
  %v3252 = vunpack.c.h.b16 %v537
  %v3253 = vunpack.c.l.b16 %v538
  %v3254 = vunpack.c.h.b16 %v538
  %v3255 = vunpack.c.l.b16 %v539
  %v3256 = vunpack.c.h.b16 %v539
  %v3257 = vunpack.c.l.b16 %v540
  %v3258 = vunpack.c.h.b16 %v540
  %v3259 = vunpack.c.l.b16 %v541
  %v3260 = vunpack.c.h.b16 %v541
  %v3261 = vunpack.c.l.b16 %v542
  %v3262 = vunpack.c.h.b16 %v542
  %v3263 = vunpack.c.l.b16 %v543
  %v3264 = vunpack.c.h.b16 %v543
  %v3265 = vunpack.c.l.b16 %v544
  %v3266 = vunpack.c.h.b16 %v544
  %v3267 = vunpack.c.l.b16 %v545
  %v3268 = vunpack.c.h.b16 %v545
  %v3269 = vunpack.c.l.b16 %v546
  %v3270 = vunpack.c.h.b16 %v546
  %v3271 = vunpack.c.l.b16 %v547
  %v3272 = vunpack.c.h.b16 %v547
  %v3273 = vunpack.c.l.b16 %v548
  %v3274 = vunpack.c.h.b16 %v548
  %v3275 = vunpack.c.l.b16 %v549
  %v3276 = vunpack.c.h.b16 %v549
  %v3277 = vunpack.c.l.b16 %v550
  %v3278 = vunpack.c.h.b16 %v550
  %v3279 = vunpack.c.l.b16 %v551
  %v3280 = vunpack.c.h.b16 %v551
  %v3281 = vunpack.c.l.b16 %v552
  %v3282 = vunpack.c.h.b16 %v552
  %v3283 = vunpack.c.l.b16 %v553
  %v3284 = vunpack.c.h.b16 %v553
  %v3285 = vunpack.c.l.b16 %v554
  %v3286 = vunpack.c.h.b16 %v554
  %v3287 = vunpack.c.l.b16 %v555
  %v3288 = vunpack.c.h.b16 %v555
  %v3289 = vunpack.c.l.b16 %v556
  %v3290 = vunpack.c.h.b16 %v556
  %v3291 = vunpack.c.l.b16 %v557
  %v3292 = vunpack.c.h.b16 %v557
  %v3293 = vunpack.c.l.b16 %v558
  %v3294 = vunpack.c.h.b16 %v558
  %v3295 = vunpack.c.l.b16 %v559
  %v3296 = vunpack.c.h.b16 %v559
  %v3297 = vunpack.c.l.b16 %v560
  %v3298 = vunpack.c.h.b16 %v560
  %v3299 = vunpack.c.l.b16 %v561
  %v3300 = vunpack.c.h.b16 %v561
  %v3301 = vunpack.c.l.b16 %v562
  %v3302 = vunpack.c.h.b16 %v562
  %v3303 = vunpack.c.l.b16 %v563
  %v3304 = vunpack.c.h.b16 %v563
  %v3305 = vunpack.c.l.b16 %v564
  %v3306 = vunpack.c.h.b16 %v564
  %v3307 = vunpack.c.l.b16 %v565
  %v3308 = vunpack.c.h.b16 %v565
  %v3309 = vunpack.c.l.b16 %v566
  %v3310 = vunpack.c.h.b16 %v566
  %v3311 = vunpack.c.l.b16 %v567
  %v3312 = vunpack.c.h.b16 %v567
  %v3313 = vunpack.c.l.b16 %v568
  %v3314 = vunpack.c.h.b16 %v568
  %v3315 = vunpack.c.l.b16 %v569
  %v3316 = vunpack.c.h.b16 %v569
  %v3317 = vunpack.c.l.b16 %v570
  %v3318 = vunpack.c.h.b16 %v570
  %v3319 = vunpack.c.l.b16 %v571
  %v3320 = vunpack.c.h.b16 %v571
  %v3321 = vunpack.c.l.b16 %v572
  %v3322 = vunpack.c.h.b16 %v572
  %v3323 = vunpack.c.l.b16 %v573
  %v3324 = vunpack.c.h.b16 %v573
  %v3325 = vunpack.c.l.b16 %v574
  %v3326 = vunpack.c.h.b16 %v574
  %v3327 = vunpack.c.l.b16 %v575
  %v3328 = vunpack.c.h.b16 %v575
  %v3329 = vunpack.c.l.b16 %v576
  %v3330 = vunpack.c.h.b16 %v576
  %v3331 = vunpack.c.l.b16 %v577
  %v3332 = vunpack.c.h.b16 %v577
  %v3333 = vunpack.c.l.b16 %v578
  %v3334 = vunpack.c.h.b16 %v578
  %v3335 = vunpack.c.l.b16 %v579
  %v3336 = vunpack.c.h.b16 %v579
  %v3337 = vunpack.c.l.b16 %v580
  %v3338 = vunpack.c.h.b16 %v580
  %v3339 = vunpack.c.l.b16 %v581
  %v3340 = vunpack.c.h.b16 %v581
  %v3341 = vunpack.c.l.b16 %v582
  %v3342 = vunpack.c.h.b16 %v582
  %v3343 = vunpack.c.l.b16 %v583
  %v3344 = vunpack.c.h.b16 %v583
  %v3345 = vunpack.c.l.b16 %v584
  %v3346 = vunpack.c.h.b16 %v584
  %v3347 = vunpack.c.l.b16 %v585
  %v3348 = vunpack.c.h.b16 %v585
  %v3349 = vunpack.c.l.b16 %v586
  %v3350 = vunpack.c.h.b16 %v586
  %v3351 = vunpack.c.l.b16 %v587
  %v3352 = vunpack.c.h.b16 %v587
  %v3353 = vunpack.c.l.b16 %v588
  %v3354 = vunpack.c.h.b16 %v588
  %v3355 = vunpack.c.l.b16 %v589
  %v3356 = vunpack.c.h.b16 %v589
  %v3357 = vunpack.c.l.b16 %v590
  %v3358 = vunpack.c.h.b16 %v590
  %v3359 = vunpack.c.l.b16 %v591
  %v3360 = vunpack.c.h.b16 %v591
  %v3361 = vunpack.c.l.b16 %v592
  %v3362 = vunpack.c.h.b16 %v592
  %v3363 = vunpack.c.l.b16 %v593
  %v3364 = vunpack.c.h.b16 %v593
  %v3365 = vunpack.c.l.b16 %v594
  %v3366 = vunpack.c.h.b16 %v594
  %v3367 = vunpack.c.l.b16 %v595
  %v3368 = vunpack.c.h.b16 %v595
  %v3369 = vunpack.c.l.b16 %v596
  %v3370 = vunpack.c.h.b16 %v596
  %v3371 = vunpack.c.l.b16 %v597
  %v3372 = vunpack.c.h.b16 %v597
  %v3373 = vunpack.c.l.b16 %v598
  %v3374 = vunpack.c.h.b16 %v598
  %v3375 = vunpack.c.l.b16 %v599
  %v3376 = vunpack.c.h.b16 %v599
  %v3377 = vunpack.c.l.b16 %v600
  %v3378 = vunpack.c.h.b16 %v600
  %v3379 = vunpack.c.l.b16 %v601
  %v3380 = vunpack.c.h.b16 %v601
  %v3381 = vunpack.c.l.b16 %v602
  %v3382 = vunpack.c.h.b16 %v602
  %v3383 = vunpack.c.l.b16 %v603
  %v3384 = vunpack.c.h.b16 %v603
  %v3385 = vunpack.c.l.b16 %v604
  %v3386 = vunpack.c.h.b16 %v604
  %v3387 = vunpack.c.l.b16 %v605
  %v3388 = vunpack.c.h.b16 %v605
  %v3389 = vunpack.c.l.b16 %v606
  %v3390 = vunpack.c.h.b16 %v606
  %v3391 = vunpack.c.l.b16 %v607
  %v3392 = vunpack.c.h.b16 %v607
  %v3393 = vunpack.c.l.b16 %v608
  %v3394 = vunpack.c.h.b16 %v608
  %v3395 = vunpack.c.l.b16 %v609
  %v3396 = vunpack.c.h.b16 %v609
  %v3397 = vunpack.c.l.b16 %v610
  %v3398 = vunpack.c.h.b16 %v610
  %v3399 = vunpack.c.l.b16 %v611
  %v3400 = vunpack.c.h.b16 %v611
  %v3401 = vunpack.c.l.b16 %v612
  %v3402 = vunpack.c.h.b16 %v612
  %v3403 = vunpack.c.l.b16 %v613
  %v3404 = vunpack.c.h.b16 %v613
  %v3405 = vunpack.c.l.b16 %v614
  %v3406 = vunpack.c.h.b16 %v614
  %v3407 = vunpack.c.l.b16 %v615
  %v3408 = vunpack.c.h.b16 %v615
  %v3409 = vunpack.c.l.b16 %v616
  %v3410 = vunpack.c.h.b16 %v616
  %v3411 = vunpack.c.l.b16 %v617
  %v3412 = vunpack.c.h.b16 %v617
  %v3413 = vunpack.c.l.b16 %v618
  %v3414 = vunpack.c.h.b16 %v618
  %v3415 = vunpack.c.l.b16 %v619
  %v3416 = vunpack.c.h.b16 %v619
  %v3417 = vunpack.c.l.b16 %v620
  %v3418 = vunpack.c.h.b16 %v620
  %v3419 = vunpack.c.l.b16 %v621
  %v3420 = vunpack.c.h.b16 %v621
  %v3421 = vunpack.c.l.b16 %v622
  %v3422 = vunpack.c.h.b16 %v622
  %v3423 = vunpack.c.l.b16 %v623
  %v3424 = vunpack.c.h.b16 %v623
  %v3425 = vunpack.c.l.b16 %v624
  %v3426 = vunpack.c.h.b16 %v624
  %v3427 = vunpack.c.l.b16 %v625
  %v3428 = vunpack.c.h.b16 %v625
  %v3429 = vunpack.c.l.b16 %v626
  %v3430 = vunpack.c.h.b16 %v626
  %v3431 = vunpack.c.l.b16 %v627
  %v3432 = vunpack.c.h.b16 %v627
  %v3433 = vunpack.c.l.b16 %v628
  %v3434 = vunpack.c.h.b16 %v628
  %v3435 = vunpack.c.l.b16 %v629
  %v3436 = vunpack.c.h.b16 %v629
  %v3437 = vunpack.c.l.b16 %v630
  %v3438 = vunpack.c.h.b16 %v630
  %v3439 = vunpack.c.l.b16 %v631
  %v3440 = vunpack.c.h.b16 %v631
  %v3441 = vunpack.c.l.b16 %v632
  %v3442 = vunpack.c.h.b16 %v632
  %v3443 = vunpack.c.l.b16 %v633
  %v3444 = vunpack.c.h.b16 %v633
  %v3445 = vunpack.c.l.b16 %v634
  %v3446 = vunpack.c.h.b16 %v634
  %v3447 = vunpack.c.l.b16 %v635
  %v3448 = vunpack.c.h.b16 %v635
  %v3449 = vunpack.c.l.b16 %v636
  %v3450 = vunpack.c.h.b16 %v636
  %v3451 = vunpack.c.l.b16 %v637
  %v3452 = vunpack.c.h.b16 %v637
  %v3453 = vunpack.c.l.b16 %v638
  %v3454 = vunpack.c.h.b16 %v638
  %v3455 = vunpack.c.l.b16 %v639
  %v3456 = vunpack.c.h.b16 %v639
  %v3457 = vunpack.c.l.b16 %v640
  %v3458 = vunpack.c.h.b16 %v640
  %v3459 = vunpack.c.l.b16 %v641
  %v3460 = vunpack.c.h.b16 %v641
  %v3461 = vunpack.c.l.b16 %v642
  %v3462 = vunpack.c.h.b16 %v642
  %v3463 = vunpack.c.l.b16 %v643
  %v3464 = vunpack.c.h.b16 %v643
  %v3465 = vunpack.c.l.b16 %v644
  %v3466 = vunpack.c.h.b16 %v644
  %v3467 = vunpack.c.l.b16 %v645
  %v3468 = vunpack.c.h.b16 %v645
  %v3469 = vunpack.c.l.b16 %v646
  %v3470 = vunpack.c.h.b16 %v646
  %v3471 = vunpack.c.l.b16 %v647
  %v3472 = vunpack.c.h.b16 %v647
  %v3473 = vunpack.c.l.b16 %v648
  %v3474 = vunpack.c.h.b16 %v648
  %v3475 = vunpack.c.l.b16 %v649
  %v3476 = vunpack.c.h.b16 %v649
  %v3477 = vunpack.c.l.b16 %v650
  %v3478 = vunpack.c.h.b16 %v650
  %v3479 = vunpack.c.l.b16 %v651
  %v3480 = vunpack.c.h.b16 %v651
  %v3481 = vunpack.c.l.b16 %v652
  %v3482 = vunpack.c.h.b16 %v652
  %v3483 = vunpack.c.l.b16 %v653
  %v3484 = vunpack.c.h.b16 %v653
  %v3485 = vunpack.c.l.b16 %v654
  %v3486 = vunpack.c.h.b16 %v654
  %v3487 = vunpack.c.l.b16 %v655
  %v3488 = vunpack.c.h.b16 %v655
  %v3489 = vunpack.c.l.b16 %v656
  %v3490 = vunpack.c.h.b16 %v656
  %v3491 = vunpack.c.l.b16 %v657
  %v3492 = vunpack.c.h.b16 %v657
  %v3493 = vunpack.c.l.b16 %v658
  %v3494 = vunpack.c.h.b16 %v658
  %v3495 = vunpack.c.l.b16 %v659
  %v3496 = vunpack.c.h.b16 %v659
  %v3497 = vunpack.c.l.b16 %v660
  %v3498 = vunpack.c.h.b16 %v660
  %v3499 = vunpack.c.l.b16 %v661
  %v3500 = vunpack.c.h.b16 %v661
  %v3501 = vunpack.c.l.b16 %v662
  %v3502 = vunpack.c.h.b16 %v662
  %v3503 = vunpack.c.l.b16 %v663
  %v3504 = vunpack.c.h.b16 %v663
  %v3505 = vunpack.c.l.b16 %v664
  %v3506 = vunpack.c.h.b16 %v664
  %v3507 = vunpack.c.l.b16 %v665
  %v3508 = vunpack.c.h.b16 %v665
  %v3509 = vunpack.c.l.b16 %v666
  %v3510 = vunpack.c.h.b16 %v666
  %v3511 = vunpack.c.l.b16 %v667
  %v3512 = vunpack.c.h.b16 %v667
  %v3513 = vunpack.c.l.b16 %v668
  %v3514 = vunpack.c.h.b16 %v668
  %v3515 = vunpack.c.l.b16 %v669
  %v3516 = vunpack.c.h.b16 %v669
  %v3517 = vunpack.c.l.b16 %v670
  %v3518 = vunpack.c.h.b16 %v670
  %v3519 = vunpack.c.l.b16 %v671
  %v3520 = vunpack.c.h.b16 %v671
  %v3521 = vunpack.c.l.b16 %v672
  %v3522 = vunpack.c.h.b16 %v672
  %v3523 = vunpack.c.l.b16 %v673
  %v3524 = vunpack.c.h.b16 %v673
  %v3525 = vunpack.c.l.b16 %v674
  %v3526 = vunpack.c.h.b16 %v674
  %v3527 = vunpack.c.l.b16 %v675
  %v3528 = vunpack.c.h.b16 %v675
  %v3529 = vunpack.c.l.b16 %v676
  %v3530 = vunpack.c.h.b16 %v676
  %v3531 = vunpack.c.l.b16 %v677
  %v3532 = vunpack.c.h.b16 %v677
  %v3533 = vunpack.c.l.b16 %v678
  %v3534 = vunpack.c.h.b16 %v678
  %v3535 = vunpack.c.l.b16 %v679
  %v3536 = vunpack.c.h.b16 %v679
  %v3537 = vunpack.c.l.b16 %v680
  %v3538 = vunpack.c.h.b16 %v680
  %v3539 = vunpack.c.l.b16 %v681
  %v3540 = vunpack.c.h.b16 %v681
  %v3541 = vunpack.c.l.b16 %v682
  %v3542 = vunpack.c.h.b16 %v682
  %v3543 = vunpack.c.l.b16 %v683
  %v3544 = vunpack.c.h.b16 %v683
  %v3545 = vunpack.c.l.b16 %v684
  %v3546 = vunpack.c.h.b16 %v684
  %v3547 = vunpack.c.l.b16 %v685
  %v3548 = vunpack.c.h.b16 %v685
  %v3549 = vunpack.c.l.b16 %v686
  %v3550 = vunpack.c.h.b16 %v686
  %v3551 = vunpack.c.l.b16 %v687
  %v3552 = vunpack.c.h.b16 %v687
  %v3553 = vunpack.c.l.b16 %v688
  %v3554 = vunpack.c.h.b16 %v688
  %v3555 = vunpack.c.l.b16 %v689
  %v3556 = vunpack.c.h.b16 %v689
  %v3557 = vunpack.c.l.b16 %v690
  %v3558 = vunpack.c.h.b16 %v690
  %v3559 = vunpack.c.l.b16 %v691
  %v3560 = vunpack.c.h.b16 %v691
  %v3561 = vunpack.c.l.b16 %v692
  %v3562 = vunpack.c.h.b16 %v692
  %v3563 = vunpack.c.l.b16 %v693
  %v3564 = vunpack.c.h.b16 %v693
  %v3565 = vunpack.c.l.b16 %v694
  %v3566 = vunpack.c.h.b16 %v694
  %v3567 = vunpack.c.l.b16 %v695
  %v3568 = vunpack.c.h.b16 %v695
  %v3569 = vunpack.c.l.b16 %v696
  %v3570 = vunpack.c.h.b16 %v696
  %v3571 = vunpack.c.l.b16 %v697
  %v3572 = vunpack.c.h.b16 %v697
  %v3573 = vunpack.c.l.b16 %v698
  %v3574 = vunpack.c.h.b16 %v698
  %v3575 = vunpack.c.l.b16 %v699
  %v3576 = vunpack.c.h.b16 %v699
  %v3577 = vunpack.c.l.b16 %v700
  %v3578 = vunpack.c.h.b16 %v700
  %v3579 = vunpack.c.l.b16 %v701
  %v3580 = vunpack.c.h.b16 %v701
  %v3581 = vunpack.c.l.b16 %v702
  %v3582 = vunpack.c.h.b16 %v702
  %v3583 = vunpack.c.l.b16 %v703
  %v3584 = vunpack.c.h.b16 %v703
  %v3585 = vunpack.c.l.b16 %v704
  %v3586 = vunpack.c.h.b16 %v704
  %v3587 = vunpack.c.l.b16 %v705
  %v3588 = vunpack.c.h.b16 %v705
  %v3589 = vunpack.c.l.b16 %v706
  %v3590 = vunpack.c.h.b16 %v706
  %v3591 = vunpack.c.l.b16 %v707
  %v3592 = vunpack.c.h.b16 %v707
  %v3593 = vunpack.c.l.b16 %v708
  %v3594 = vunpack.c.h.b16 %v708
  %v3595 = vunpack.c.l.b16 %v709
  %v3596 = vunpack.c.h.b16 %v709
  %v3597 = vunpack.c.l.b16 %v710
  %v3598 = vunpack.c.h.b16 %v710
  %v3599 = vunpack.c.l.b16 %v711
  %v3600 = vunpack.c.h.b16 %v711
  %v3601 = vunpack.c.l.b16 %v712
  %v3602 = vunpack.c.h.b16 %v712
  %v3603 = vunpack.c.l.b16 %v713
  %v3604 = vunpack.c.h.b16 %v713
  %v3605 = vunpack.c.l.b16 %v714
  %v3606 = vunpack.c.h.b16 %v714
  %v3607 = vunpack.c.l.b16 %v715
  %v3608 = vunpack.c.h.b16 %v715
  %v3609 = vunpack.c.l.b16 %v716
  %v3610 = vunpack.c.h.b16 %v716
  %v3611 = vunpack.c.l.b16 %v717
  %v3612 = vunpack.c.h.b16 %v717
  %v3613 = vunpack.c.l.b16 %v718
  %v3614 = vunpack.c.h.b16 %v718
  %v3615 = vunpack.c.l.b16 %v719
  %v3616 = vunpack.c.h.b16 %v719
  %v3617 = vunpack.c.l.b16 %v720
  %v3618 = vunpack.c.h.b16 %v720
  %v3619 = vunpack.c.l.b16 %v721
  %v3620 = vunpack.c.h.b16 %v721
  %v3621 = vunpack.c.l.b16 %v722
  %v3622 = vunpack.c.h.b16 %v722
  %v3623 = vunpack.c.l.b16 %v723
  %v3624 = vunpack.c.h.b16 %v723
  %v3625 = vunpack.c.l.b16 %v724
  %v3626 = vunpack.c.h.b16 %v724
  %v3627 = vunpack.c.l.b16 %v725
  %v3628 = vunpack.c.h.b16 %v725
  %v3629 = vunpack.c.l.b16 %v726
  %v3630 = vunpack.c.h.b16 %v726
  %v3631 = vunpack.c.l.b16 %v727
  %v3632 = vunpack.c.h.b16 %v727
  %v3633 = vunpack.c.l.b16 %v728
  %v3634 = vunpack.c.h.b16 %v728
  %v3635 = vunpack.c.l.b16 %v729
  %v3636 = vunpack.c.h.b16 %v729
  %v3637 = vunpack.c.l.b16 %v730
  %v3638 = vunpack.c.h.b16 %v730
  %v3639 = vunpack.c.l.b16 %v731
  %v3640 = vunpack.c.h.b16 %v731
  %v3641 = vunpack.c.l.b16 %v732
  %v3642 = vunpack.c.h.b16 %v732
  %v3643 = vunpack.c.l.b16 %v733
  %v3644 = vunpack.c.h.b16 %v733
  %v3645 = vunpack.c.l.b16 %v734
  %v3646 = vunpack.c.h.b16 %v734
  %v3647 = vunpack.c.l.b16 %v735
  %v3648 = vunpack.c.h.b16 %v735
  %v3649 = vunpack.c.l.b16 %v736
  %v3650 = vunpack.c.h.b16 %v736
  %v3651 = vunpack.c.l.b16 %v737
  %v3652 = vunpack.c.h.b16 %v737
  %v3653 = vunpack.c.l.b16 %v738
  %v3654 = vunpack.c.h.b16 %v738
  %v3655 = vunpack.c.l.b16 %v739
  %v3656 = vunpack.c.h.b16 %v739
  %v3657 = vunpack.c.l.b16 %v740
  %v3658 = vunpack.c.h.b16 %v740
  %v3659 = vunpack.c.l.b16 %v741
  %v3660 = vunpack.c.h.b16 %v741
  %v3661 = vunpack.c.l.b16 %v742
  %v3662 = vunpack.c.h.b16 %v742
  %v3663 = vunpack.c.l.b16 %v743
  %v3664 = vunpack.c.h.b16 %v743
  %v3665 = vunpack.c.l.b16 %v744
  %v3666 = vunpack.c.h.b16 %v744
  %v3667 = vunpack.c.l.b16 %v745
  %v3668 = vunpack.c.h.b16 %v745
  %v3669 = vunpack.c.l.b16 %v746
  %v3670 = vunpack.c.h.b16 %v746
  %v3671 = vunpack.c.l.b16 %v747
  %v3672 = vunpack.c.h.b16 %v747
  %v3673 = vunpack.c.l.b16 %v748
  %v3674 = vunpack.c.h.b16 %v748
  %v3675 = vunpack.c.l.b16 %v749
  %v3676 = vunpack.c.h.b16 %v749
  %v3677 = vunpack.c.l.b16 %v750
  %v3678 = vunpack.c.h.b16 %v750
  %v3679 = vunpack.c.l.b16 %v751
  %v3680 = vunpack.c.h.b16 %v751
  %v3681 = vunpack.c.l.b16 %v752
  %v3682 = vunpack.c.h.b16 %v752
  %v3683 = vunpack.c.l.b16 %v753
  %v3684 = vunpack.c.h.b16 %v753
  %v3685 = vunpack.c.l.b16 %v754
  %v3686 = vunpack.c.h.b16 %v754
  %v3687 = vunpack.c.l.b16 %v755
  %v3688 = vunpack.c.h.b16 %v755
  %v3689 = vunpack.c.l.b16 %v756
  %v3690 = vunpack.c.h.b16 %v756
  %v3691 = vunpack.c.l.b16 %v757
  %v3692 = vunpack.c.h.b16 %v757
  %v3693 = vunpack.c.l.b16 %v758
  %v3694 = vunpack.c.h.b16 %v758
  %v3695 = vunpack.c.l.b16 %v759
  %v3696 = vunpack.c.h.b16 %v759
  %v3697 = vunpack.c.l.b16 %v760
  %v3698 = vunpack.c.h.b16 %v760
  %v3699 = vunpack.c.l.b16 %v761
  %v3700 = vunpack.c.h.b16 %v761
  %v3701 = vunpack.c.l.b16 %v762
  %v3702 = vunpack.c.h.b16 %v762
  %v3703 = vunpack.c.l.b16 %v763
  %v3704 = vunpack.c.h.b16 %v763
  %v3705 = vunpack.c.l.b16 %v764
  %v3706 = vunpack.c.h.b16 %v764
  %v3707 = vunpack.c.l.b16 %v765
  %v3708 = vunpack.c.h.b16 %v765
  %v3709 = vunpack.c.l.b16 %v766
  %v3710 = vunpack.c.h.b16 %v766
  %v3711 = vunpack.c.l.b16 %v767
  %v3712 = vunpack.c.h.b16 %v767
  %v3713 = vunpack.c.l.b16 %v768
  %v3714 = vunpack.c.h.b16 %v768
  %v3715 = vunpack.c.l.b16 %v769
  %v3716 = vunpack.c.h.b16 %v769
  %v3717 = vunpack.c.l.b16 %v770
  %v3718 = vunpack.c.h.b16 %v770
  %v3719 = vunpack.c.l.b16 %v771
  %v3720 = vunpack.c.h.b16 %v771
  %v3721 = vunpack.c.l.b16 %v772
  %v3722 = vunpack.c.h.b16 %v772
  %v3723 = vunpack.c.l.b16 %v773
  %v3724 = vunpack.c.h.b16 %v773
  %v3725 = vunpack.c.l.b16 %v774
  %v3726 = vunpack.c.h.b16 %v774
  %v3727 = vunpack.c.l.b16 %v775
  %v3728 = vunpack.c.h.b16 %v775
  %v3729 = vunpack.c.l.b16 %v776
  %v3730 = vunpack.c.h.b16 %v776
  %v3731 = vunpack.c.l.b16 %v777
  %v3732 = vunpack.c.h.b16 %v777
  %v3733 = vunpack.c.l.b16 %v778
  %v3734 = vunpack.c.h.b16 %v778
  %v3735 = vunpack.c.l.b16 %v779
  %v3736 = vunpack.c.h.b16 %v779
  %v3737 = vunpack.c.l.b16 %v780
  %v3738 = vunpack.c.h.b16 %v780
  %v3739 = vunpack.c.l.b16 %v781
  %v3740 = vunpack.c.h.b16 %v781
  %v3741 = vunpack.c.l.b16 %v782
  %v3742 = vunpack.c.h.b16 %v782
  %v3743 = vunpack.c.l.b16 %v783
  %v3744 = vunpack.c.h.b16 %v783
  %v3745 = vunpack.c.l.b16 %v784
  %v3746 = vunpack.c.h.b16 %v784
  %v3747 = vunpack.c.l.b16 %v785
  %v3748 = vunpack.c.h.b16 %v785
  %v3749 = vunpack.c.l.b16 %v786
  %v3750 = vunpack.c.h.b16 %v786
  %v3751 = vunpack.c.l.b16 %v787
  %v3752 = vunpack.c.h.b16 %v787
  %v3753 = vunpack.c.l.b16 %v788
  %v3754 = vunpack.c.h.b16 %v788
  %v3755 = vunpack.c.l.b16 %v789
  %v3756 = vunpack.c.h.b16 %v789
  %v3757 = vunpack.c.l.b16 %v790
  %v3758 = vunpack.c.h.b16 %v790
  %v3759 = vunpack.c.l.b16 %v791
  %v3760 = vunpack.c.h.b16 %v791
  %v3761 = vunpack.c.l.b16 %v792
  %v3762 = vunpack.c.h.b16 %v792
  %v3763 = vunpack.c.l.b16 %v793
  %v3764 = vunpack.c.h.b16 %v793
  %v3765 = vunpack.c.l.b16 %v794
  %v3766 = vunpack.c.h.b16 %v794
  %v3767 = vunpack.c.l.b16 %v795
  %v3768 = vunpack.c.h.b16 %v795
  %v3769 = vunpack.c.l.b16 %v796
  %v3770 = vunpack.c.h.b16 %v796
  %v3771 = vunpack.c.l.b16 %v797
  %v3772 = vunpack.c.h.b16 %v797
  %v3773 = vunpack.c.l.b16 %v798
  %v3774 = vunpack.c.h.b16 %v798
  %v3775 = vunpack.c.l.b16 %v799
  %v3776 = vunpack.c.h.b16 %v799
  %v3777 = vunpack.c.l.b16 %v800
  %v3778 = vunpack.c.h.b16 %v800
  %v3779 = vunpack.c.l.b16 %v801
  %v3780 = vunpack.c.h.b16 %v801
  %v3781 = vunpack.c.l.b16 %v802
  %v3782 = vunpack.c.h.b16 %v802
  %v3783 = vunpack.c.l.b16 %v803
  %v3784 = vunpack.c.h.b16 %v803
  %v3785 = vunpack.c.l.b16 %v804
  %v3786 = vunpack.c.h.b16 %v804
  %v3787 = vunpack.c.l.b16 %v805
  %v3788 = vunpack.c.h.b16 %v805
  %v3789 = vunpack.c.l.b16 %v806
  %v3790 = vunpack.c.h.b16 %v806
  %v3791 = vunpack.c.l.b16 %v807
  %v3792 = vunpack.c.h.b16 %v807
  %v3793 = vunpack.c.l.b16 %v808
  %v3794 = vunpack.c.h.b16 %v808
  %v3795 = vunpack.c.l.b16 %v809
  %v3796 = vunpack.c.h.b16 %v809
  %v3797 = vunpack.c.l.b16 %v810
  %v3798 = vunpack.c.h.b16 %v810
  %v3799 = vunpack.c.l.b16 %v811
  %v3800 = vunpack.c.h.b16 %v811
  %v3801 = vunpack.c.l.b16 %v812
  %v3802 = vunpack.c.h.b16 %v812
  %v3803 = vunpack.c.l.b16 %v813
  %v3804 = vunpack.c.h.b16 %v813
  %v3805 = vunpack.c.l.b16 %v814
  %v3806 = vunpack.c.h.b16 %v814
  %v3807 = vunpack.c.l.b16 %v815
  %v3808 = vunpack.c.h.b16 %v815
  %v3809 = vunpack.c.l.b16 %v816
  %v3810 = vunpack.c.h.b16 %v816
  %v3811 = vunpack.c.l.b16 %v817
  %v3812 = vunpack.c.h.b16 %v817
  %v3813 = vunpack.c.l.b16 %v818
  %v3814 = vunpack.c.h.b16 %v818
  %v3815 = vunpack.c.l.b16 %v819
  %v3816 = vunpack.c.h.b16 %v819
  %v3817 = vunpack.c.l.b16 %v820
  %v3818 = vunpack.c.h.b16 %v820
  %v3819 = vunpack.c.l.b16 %v821
  %v3820 = vunpack.c.h.b16 %v821
  %v3821 = vunpack.c.l.b16 %v822
  %v3822 = vunpack.c.h.b16 %v822
  %v3823 = vunpack.c.l.b16 %v823
  %v3824 = vunpack.c.h.b16 %v823
  %v3825 = vunpack.c.l.b16 %v824
  %v3826 = vunpack.c.h.b16 %v824
  %v3827 = vunpack.c.l.b16 %v825
  %v3828 = vunpack.c.h.b16 %v825
  %v3829 = vunpack.c.l.b16 %v826
  %v3830 = vunpack.c.h.b16 %v826
  %v3831 = vunpack.c.l.b16 %v827
  %v3832 = vunpack.c.h.b16 %v827
  %v3833 = vunpack.c.l.b16 %v828
  %v3834 = vunpack.c.h.b16 %v828
  %v3835 = vunpack.c.l.b16 %v829
  %v3836 = vunpack.c.h.b16 %v829
  %v3837 = vunpack.c.l.b16 %v830
  %v3838 = vunpack.c.h.b16 %v830
  %v3839 = vunpack.c.l.b16 %v831
  %v3840 = vunpack.c.h.b16 %v831
  %v3841 = vunpack.c.l.b16 %v832
  %v3842 = vunpack.c.h.b16 %v832
  %v3843 = vunpack.c.l.b16 %v833
  %v3844 = vunpack.c.h.b16 %v833
  %v3845 = vunpack.c.l.b16 %v834
  %v3846 = vunpack.c.h.b16 %v834
  %v3847 = vunpack.c.l.b16 %v835
  %v3848 = vunpack.c.h.b16 %v835
  %v3849 = vunpack.c.l.b16 %v836
  %v3850 = vunpack.c.h.b16 %v836
  %v3851 = vunpack.c.l.b16 %v837
  %v3852 = vunpack.c.h.b16 %v837
  %v3853 = vunpack.c.l.b16 %v838
  %v3854 = vunpack.c.h.b16 %v838
  %v3855 = vunpack.c.l.b16 %v839
  %v3856 = vunpack.c.h.b16 %v839
  %v3857 = vunpack.c.l.b16 %v840
  %v3858 = vunpack.c.h.b16 %v840
  %v3859 = vunpack.c.l.b16 %v841
  %v3860 = vunpack.c.h.b16 %v841
  %v3861 = vunpack.c.l.b16 %v842
  %v3862 = vunpack.c.h.b16 %v842
  %v3863 = vunpack.c.l.b16 %v843
  %v3864 = vunpack.c.h.b16 %v843
  %v3865 = vunpack.c.l.b16 %v844
  %v3866 = vunpack.c.h.b16 %v844
  %v3867 = vunpack.c.l.b16 %v845
  %v3868 = vunpack.c.h.b16 %v845
  %v3869 = vunpack.c.l.b16 %v846
  %v3870 = vunpack.c.h.b16 %v846
  %v3871 = vunpack.c.l.b16 %v847
  %v3872 = vunpack.c.h.b16 %v847
  %v3873 = vunpack.c.l.b16 %v848
  %v3874 = vunpack.c.h.b16 %v848
  %v3875 = vunpack.c.l.b16 %v849
  %v3876 = vunpack.c.h.b16 %v849
  %v3877 = vunpack.c.l.b16 %v850
  %v3878 = vunpack.c.h.b16 %v850
  %v3879 = vunpack.c.l.b16 %v851
  %v3880 = vunpack.c.h.b16 %v851
  %v3881 = vunpack.c.l.b16 %v852
  %v3882 = vunpack.c.h.b16 %v852
  %v3883 = vunpack.c.l.b16 %v853
  %v3884 = vunpack.c.h.b16 %v853
  %v3885 = vunpack.c.l.b16 %v854
  %v3886 = vunpack.c.h.b16 %v854
  %v3887 = vunpack.c.l.b16 %v855
  %v3888 = vunpack.c.h.b16 %v855
  %v3889 = vunpack.c.l.b16 %v856
  %v3890 = vunpack.c.h.b16 %v856
  %v3891 = vunpack.c.l.b16 %v857
  %v3892 = vunpack.c.h.b16 %v857
  %v3893 = vunpack.c.l.b16 %v858
  %v3894 = vunpack.c.h.b16 %v858
  %v3895 = vunpack.c.l.b16 %v859
  %v3896 = vunpack.c.h.b16 %v859
  %v3897 = vunpack.c.l.b16 %v860
  %v3898 = vunpack.c.h.b16 %v860
  %v3899 = vunpack.c.l.b16 %v861
  %v3900 = vunpack.c.h.b16 %v861
  %v3901 = vunpack.c.l.b16 %v862
  %v3902 = vunpack.c.h.b16 %v862
  %v3903 = vunpack.c.l.b16 %v863
  %v3904 = vunpack.c.h.b16 %v863
  %v3905 = vunpack.c.l.b16 %v864
  %v3906 = vunpack.c.h.b16 %v864
  %v3907 = vunpack.c.l.b16 %v865
  %v3908 = vunpack.c.h.b16 %v865
  %v3909 = vunpack.c.l.b16 %v866
  %v3910 = vunpack.c.h.b16 %v866
  %v3911 = vunpack.c.l.b16 %v867
  %v3912 = vunpack.c.h.b16 %v867
  %v3913 = vunpack.c.l.b16 %v868
  %v3914 = vunpack.c.h.b16 %v868
  %v3915 = vunpack.c.l.b16 %v869
  %v3916 = vunpack.c.h.b16 %v869
  %v3917 = vunpack.c.l.b16 %v870
  %v3918 = vunpack.c.h.b16 %v870
  %v3919 = vunpack.c.l.b16 %v871
  %v3920 = vunpack.c.h.b16 %v871
  %v3921 = vunpack.c.l.b16 %v872
  %v3922 = vunpack.c.h.b16 %v872
  %v3923 = vunpack.c.l.b16 %v873
  %v3924 = vunpack.c.h.b16 %v873
  %v3925 = vunpack.c.l.b16 %v874
  %v3926 = vunpack.c.h.b16 %v874
  %v3927 = vunpack.c.l.b16 %v875
  %v3928 = vunpack.c.h.b16 %v875
  %v3929 = vunpack.c.l.b16 %v876
  %v3930 = vunpack.c.h.b16 %v876
  %v3931 = vunpack.c.l.b16 %v877
  %v3932 = vunpack.c.h.b16 %v877
  %v3933 = vunpack.c.l.b16 %v878
  %v3934 = vunpack.c.h.b16 %v878
  %v3935 = vunpack.c.l.b16 %v879
  %v3936 = vunpack.c.h.b16 %v879
  %v3937 = vunpack.c.l.b16 %v880
  %v3938 = vunpack.c.h.b16 %v880
  %v3939 = vunpack.c.l.b16 %v881
  %v3940 = vunpack.c.h.b16 %v881
  %v3941 = vunpack.c.l.b16 %v882
  %v3942 = vunpack.c.h.b16 %v882
  %v3943 = vunpack.c.l.b16 %v883
  %v3944 = vunpack.c.h.b16 %v883
  %v3945 = vunpack.c.l.b16 %v884
  %v3946 = vunpack.c.h.b16 %v884
  %v3947 = vunpack.c.l.b16 %v885
  %v3948 = vunpack.c.h.b16 %v885
  %v3949 = vunpack.c.l.b16 %v886
  %v3950 = vunpack.c.h.b16 %v886
  %v3951 = vunpack.c.l.b16 %v887
  %v3952 = vunpack.c.h.b16 %v887
  %v3953 = vunpack.c.l.b16 %v888
  %v3954 = vunpack.c.h.b16 %v888
  %v3955 = vunpack.c.l.b16 %v889
  %v3956 = vunpack.c.h.b16 %v889
  %v3957 = vunpack.c.l.b16 %v890
  %v3958 = vunpack.c.h.b16 %v890
  %v3959 = vunpack.c.l.b16 %v891
  %v3960 = vunpack.c.h.b16 %v891
  %v3961 = vunpack.c.l.b16 %v892
  %v3962 = vunpack.c.h.b16 %v892
  %v3963 = vunpack.c.l.b16 %v893
  %v3964 = vunpack.c.h.b16 %v893
  %v3965 = vunpack.c.l.b16 %v894
  %v3966 = vunpack.c.h.b16 %v894
  %v3967 = vunpack.c.l.b16 %v895
  %v3968 = vunpack.c.h.b16 %v895
  %v3969 = vunpack.c.l.b16 %v896
  %v3970 = vunpack.c.h.b16 %v896
  %v3971 = vunpack.c.l.b16 %v897
  %v3972 = vunpack.c.h.b16 %v897
  %v3973 = vunpack.c.l.b16 %v898
  %v3974 = vunpack.c.h.b16 %v898
  %v3975 = vunpack.c.l.b16 %v899
  %v3976 = vunpack.c.h.b16 %v899
  %v3977 = vunpack.c.l.b16 %v900
  %v3978 = vunpack.c.h.b16 %v900
  %v3979 = vunpack.c.l.b16 %v901
  %v3980 = vunpack.c.h.b16 %v901
  %v3981 = vunpack.c.l.b16 %v902
  %v3982 = vunpack.c.h.b16 %v902
  %v3983 = vunpack.c.l.b16 %v903
  %v3984 = vunpack.c.h.b16 %v903
  %v3985 = vunpack.c.l.b16 %v904
  %v3986 = vunpack.c.h.b16 %v904
  %v3987 = vunpack.c.l.b16 %v905
  %v3988 = vunpack.c.h.b16 %v905
  %v3989 = vunpack.c.l.b16 %v906
  %v3990 = vunpack.c.h.b16 %v906
  %v3991 = vunpack.c.l.b16 %v907
  %v3992 = vunpack.c.h.b16 %v907
  %v3993 = vunpack.c.l.b16 %v908
  %v3994 = vunpack.c.h.b16 %v908
  %v3995 = vunpack.c.l.b16 %v909
  %v3996 = vunpack.c.h.b16 %v909
  %v3997 = vunpack.c.l.b16 %v910
  %v3998 = vunpack.c.h.b16 %v910
  %v3999 = vunpack.c.l.b16 %v911
  %v4000 = vunpack.c.h.b16 %v911
  %v4001 = vunpack.c.l.b16 %v912
  %v4002 = vunpack.c.h.b16 %v912
  %v4003 = vunpack.c.l.b16 %v913
  %v4004 = vunpack.c.h.b16 %v913
  %v4005 = vunpack.c.l.b16 %v914
  %v4006 = vunpack.c.h.b16 %v914
  %v4007 = vunpack.c.l.b16 %v915
  %v4008 = vunpack.c.h.b16 %v915
  %v4009 = vunpack.c.l.b16 %v916
  %v4010 = vunpack.c.h.b16 %v916
  %v4011 = vunpack.c.l.b16 %v917
  %v4012 = vunpack.c.h.b16 %v917
  %v4013 = vunpack.c.l.b16 %v918
  %v4014 = vunpack.c.h.b16 %v918
  %v4015 = vunpack.c.l.b16 %v919
  %v4016 = vunpack.c.h.b16 %v919
  %v4017 = vunpack.c.l.b16 %v920
  %v4018 = vunpack.c.h.b16 %v920
  %v4019 = vunpack.c.l.b16 %v921
  %v4020 = vunpack.c.h.b16 %v921
  %v4021 = vunpack.c.l.b16 %v922
  %v4022 = vunpack.c.h.b16 %v922
  %v4023 = vunpack.c.l.b16 %v923
  %v4024 = vunpack.c.h.b16 %v923
  %v4025 = vunpack.c.l.b16 %v924
  %v4026 = vunpack.c.h.b16 %v924
  %v4027 = vunpack.c.l.b16 %v925
  %v4028 = vunpack.c.h.b16 %v925
  %v4029 = vunpack.c.l.b16 %v926
  %v4030 = vunpack.c.h.b16 %v926
  %v4031 = vunpack.c.l.b16 %v927
  %v4032 = vunpack.c.h.b16 %v927
  %v4033 = vunpack.c.l.b16 %v928
  %v4034 = vunpack.c.h.b16 %v928
  %v4035 = vunpack.c.l.b16 %v929
  %v4036 = vunpack.c.h.b16 %v929
  %v4037 = vunpack.c.l.b16 %v930
  %v4038 = vunpack.c.h.b16 %v930
  %v4039 = vunpack.c.l.b16 %v931
  %v4040 = vunpack.c.h.b16 %v931
  %v4041 = vunpack.c.l.b16 %v932
  %v4042 = vunpack.c.h.b16 %v932
  %v4043 = vunpack.c.l.b16 %v933
  %v4044 = vunpack.c.h.b16 %v933
  %v4045 = vunpack.c.l.b16 %v934
  %v4046 = vunpack.c.h.b16 %v934
  %v4047 = vunpack.c.l.b16 %v935
  %v4048 = vunpack.c.h.b16 %v935
  %v4049 = vunpack.c.l.b16 %v936
  %v4050 = vunpack.c.h.b16 %v936
  %v4051 = vunpack.c.l.b16 %v937
  %v4052 = vunpack.c.h.b16 %v937
  %v4053 = vunpack.c.l.b16 %v938
  %v4054 = vunpack.c.h.b16 %v938
  %v4055 = vunpack.c.l.b16 %v939
  %v4056 = vunpack.c.h.b16 %v939
  %v4057 = vunpack.c.l.b16 %v940
  %v4058 = vunpack.c.h.b16 %v940
  %v4059 = vunpack.c.l.b16 %v941
  %v4060 = vunpack.c.h.b16 %v941
  %v4061 = vunpack.c.l.b16 %v942
  %v4062 = vunpack.c.h.b16 %v942
  %v4063 = vunpack.c.l.b16 %v943
  %v4064 = vunpack.c.h.b16 %v943
  %v4065 = vunpack.c.l.b16 %v944
  %v4066 = vunpack.c.h.b16 %v944
  %v4067 = vunpack.c.l.b16 %v945
  %v4068 = vunpack.c.h.b16 %v945
  %v4069 = vunpack.c.l.b16 %v946
  %v4070 = vunpack.c.h.b16 %v946
  %v4071 = vunpack.c.l.b16 %v947
  %v4072 = vunpack.c.h.b16 %v947
  %v4073 = vunpack.c.l.b16 %v948
  %v4074 = vunpack.c.h.b16 %v948
  %v4075 = vunpack.c.l.b16 %v949
  %v4076 = vunpack.c.h.b16 %v949
  %v4077 = vunpack.c.l.b16 %v950
  %v4078 = vunpack.c.h.b16 %v950
  %v4079 = vunpack.c.l.b16 %v951
  %v4080 = vunpack.c.h.b16 %v951
  %v4081 = vunpack.c.l.b16 %v952
  %v4082 = vunpack.c.h.b16 %v952
  %v4083 = vunpack.c.l.b16 %v953
  %v4084 = vunpack.c.h.b16 %v953
  %v4085 = vunpack.c.l.b16 %v954
  %v4086 = vunpack.c.h.b16 %v954
  %v4087 = vunpack.c.l.b16 %v955
  %v4088 = vunpack.c.h.b16 %v955
  %v4089 = vunpack.c.l.b16 %v956
  %v4090 = vunpack.c.h.b16 %v956
  %v4091 = vunpack.c.l.b16 %v957
  %v4092 = vunpack.c.h.b16 %v957
  %v4093 = vunpack.c.l.b16 %v958
  %v4094 = vunpack.c.h.b16 %v958
  %v4095 = vunpack.c.l.b16 %v959
  %v4096 = vunpack.c.h.b16 %v959
  %v4097 = vunpack.c.l.b16 %v960
  %v4098 = vunpack.c.h.b16 %v960
  %v4099 = vunpack.c.l.b16 %v961
  %v4100 = vunpack.c.h.b16 %v961
  %v4101 = vunpack.c.l.b16 %v962
  %v4102 = vunpack.c.h.b16 %v962
  %v4103 = vunpack.c.l.b16 %v963
  %v4104 = vunpack.c.h.b16 %v963
  %v4105 = vunpack.c.l.b16 %v964
  %v4106 = vunpack.c.h.b16 %v964
  %v4107 = vunpack.c.l.b16 %v965
  %v4108 = vunpack.c.h.b16 %v965
  %v4109 = vunpack.c.l.b16 %v966
  %v4110 = vunpack.c.h.b16 %v966
  %v4111 = vunpack.c.l.b16 %v967
  %v4112 = vunpack.c.h.b16 %v967
  %v4113 = vunpack.c.l.b16 %v968
  %v4114 = vunpack.c.h.b16 %v968
  %v4115 = vunpack.c.l.b16 %v969
  %v4116 = vunpack.c.h.b16 %v969
  %v4117 = vunpack.c.l.b16 %v970
  %v4118 = vunpack.c.h.b16 %v970
  %v4119 = vunpack.c.l.b16 %v971
  %v4120 = vunpack.c.h.b16 %v971
  %v4121 = vunpack.c.l.b16 %v972
  %v4122 = vunpack.c.h.b16 %v972
  %v4123 = vunpack.c.l.b16 %v973
  %v4124 = vunpack.c.h.b16 %v973
  %v4125 = vunpack.c.l.b16 %v974
  %v4126 = vunpack.c.h.b16 %v974
  %v4127 = vunpack.c.l.b16 %v975
  %v4128 = vunpack.c.h.b16 %v975
  %v4129 = vunpack.c.l.b16 %v976
  %v4130 = vunpack.c.h.b16 %v976
  %v4131 = vunpack.c.l.b16 %v977
  %v4132 = vunpack.c.h.b16 %v977
  %v4133 = vunpack.c.l.b16 %v978
  %v4134 = vunpack.c.h.b16 %v978
  %v4135 = vunpack.c.l.b16 %v979
  %v4136 = vunpack.c.h.b16 %v979
  %v4137 = vunpack.c.l.b16 %v980
  %v4138 = vunpack.c.h.b16 %v980
  %v4139 = vunpack.c.l.b16 %v981
  %v4140 = vunpack.c.h.b16 %v981
  %v4141 = vunpack.c.l.b16 %v982
  %v4142 = vunpack.c.h.b16 %v982
  %v4143 = vunpack.c.l.b16 %v983
  %v4144 = vunpack.c.h.b16 %v983
  %v4145 = vunpack.c.l.b16 %v984
  %v4146 = vunpack.c.h.b16 %v984
  %v4147 = vunpack.c.l.b16 %v985
  %v4148 = vunpack.c.h.b16 %v985
  %v4149 = vunpack.c.l.b16 %v986
  %v4150 = vunpack.c.h.b16 %v986
  %v4151 = vunpack.c.l.b16 %v987
  %v4152 = vunpack.c.h.b16 %v987
  %v4153 = vunpack.c.l.b16 %v988
  %v4154 = vunpack.c.h.b16 %v988
  %v4155 = vunpack.c.l.b16 %v989
  %v4156 = vunpack.c.h.b16 %v989
  %v4157 = vunpack.c.l.b16 %v990
  %v4158 = vunpack.c.h.b16 %v990
  %v4159 = vunpack.c.l.b16 %v991
  %v4160 = vunpack.c.h.b16 %v991
  %v4161 = vunpack.c.l.b16 %v992
  %v4162 = vunpack.c.h.b16 %v992
  %v4163 = vunpack.c.l.b16 %v993
  %v4164 = vunpack.c.h.b16 %v993
  %v4165 = vunpack.c.l.b16 %v994
  %v4166 = vunpack.c.h.b16 %v994
  %v4167 = vunpack.c.l.b16 %v995
  %v4168 = vunpack.c.h.b16 %v995
  %v4169 = vunpack.c.l.b16 %v996
  %v4170 = vunpack.c.h.b16 %v996
  %v4171 = vunpack.c.l.b16 %v997
  %v4172 = vunpack.c.h.b16 %v997
  %v4173 = vunpack.c.l.b16 %v998
  %v4174 = vunpack.c.h.b16 %v998
  %v4175 = vunpack.c.l.b16 %v999
  %v4176 = vunpack.c.h.b16 %v999
  %v4177 = vunpack.c.l.b16 %v1000
  %v4178 = vunpack.c.h.b16 %v1000
  %v4179 = vunpack.c.l.b16 %v1001
  %v4180 = vunpack.c.h.b16 %v1001
  %v4181 = vunpack.c.l.b16 %v1002
  %v4182 = vunpack.c.h.b16 %v1002
  %v4183 = vunpack.c.l.b16 %v1003
  %v4184 = vunpack.c.h.b16 %v1003
  %v4185 = vunpack.c.l.b16 %v1004
  %v4186 = vunpack.c.h.b16 %v1004
  %v4187 = vunpack.c.l.b16 %v1005
  %v4188 = vunpack.c.h.b16 %v1005
  %v4189 = vunpack.c.l.b16 %v1006
  %v4190 = vunpack.c.h.b16 %v1006
  %v4191 = vunpack.c.l.b16 %v1007
  %v4192 = vunpack.c.h.b16 %v1007
  %v4193 = vunpack.c.l.b16 %v1008
  %v4194 = vunpack.c.h.b16 %v1008
  %v4195 = vunpack.c.l.b16 %v1009
  %v4196 = vunpack.c.h.b16 %v1009
  %v4197 = vunpack.c.l.b16 %v1010
  %v4198 = vunpack.c.h.b16 %v1010
  %v4199 = vunpack.c.l.b16 %v1011
  %v4200 = vunpack.c.h.b16 %v1011
  %v4201 = vunpack.c.l.b16 %v1012
  %v4202 = vunpack.c.h.b16 %v1012
  %v4203 = vunpack.c.l.b16 %v1013
  %v4204 = vunpack.c.h.b16 %v1013
  %v4205 = vunpack.c.l.b16 %v1014
  %v4206 = vunpack.c.h.b16 %v1014
  %v4207 = vunpack.c.l.b16 %v1015
  %v4208 = vunpack.c.h.b16 %v1015
  %v4209 = vunpack.c.l.b16 %v1016
  %v4210 = vunpack.c.h.b16 %v1016
  %v4211 = vunpack.c.l.b16 %v1017
  %v4212 = vunpack.c.h.b16 %v1017
  %v4213 = vunpack.c.l.b16 %v1018
  %v4214 = vunpack.c.h.b16 %v1018
  %v4215 = vunpack.c.l.b16 %v1019
  %v4216 = vunpack.c.h.b16 %v1019
  %v4217 = vunpack.c.l.b16 %v1020
  %v4218 = vunpack.c.h.b16 %v1020
  %v4219 = vunpack.c.l.b16 %v1021
  %v4220 = vunpack.c.h.b16 %v1021
  %v4221 = vunpack.c.l.b16 %v1022
  %v4222 = vunpack.c.h.b16 %v1022
  %v4223 = vunpack.c.l.b16 %v1023
  %v4224 = vunpack.c.h.b16 %v1023
  %v4225 = vunpack.c.l.b16 %v1024
  %v4226 = vunpack.c.h.b16 %v1024
  %v4227 = vunpack.c.l.b16 %v1025
  %v4228 = vunpack.c.h.b16 %v1025
  %v4229 = vunpack.c.l.b16 %v1026
  %v4230 = vunpack.c.h.b16 %v1026
  %v4231 = vunpack.c.l.b16 %v1027
  %v4232 = vunpack.c.h.b16 %v1027
  %v4233 = vunpack.c.l.b16 %v1028
  %v4234 = vunpack.c.h.b16 %v1028
  %v4235 = vunpack.c.l.b16 %v1029
  %v4236 = vunpack.c.h.b16 %v1029
  %v4237 = vunpack.c.l.b16 %v1030
  %v4238 = vunpack.c.h.b16 %v1030
  %v4239 = vunpack.c.l.b16 %v1031
  %v4240 = vunpack.c.h.b16 %v1031
  %v4241 = vunpack.c.l.b16 %v1032
  %v4242 = vunpack.c.h.b16 %v1032
  %v4243 = vunpack.c.l.b16 %v1033
  %v4244 = vunpack.c.h.b16 %v1033
  %v4245 = vunpack.c.l.b16 %v1034
  %v4246 = vunpack.c.h.b16 %v1034
  %v4247 = vunpack.c.l.b16 %v1035
  %v4248 = vunpack.c.h.b16 %v1035
  %v4249 = vunpack.c.l.b16 %v1036
  %v4250 = vunpack.c.h.b16 %v1036
  %v4251 = vunpack.c.l.b16 %v1037
  %v4252 = vunpack.c.h.b16 %v1037
  %v4253 = vunpack.c.l.b16 %v1038
  %v4254 = vunpack.c.h.b16 %v1038
  %v4255 = vunpack.c.l.b16 %v1039
  %v4256 = vunpack.c.h.b16 %v1039
  %v4257 = vunpack.c.l.b16 %v1040
  %v4258 = vunpack.c.h.b16 %v1040
  %v4259 = vunpack.c.l.b16 %v1041
  %v4260 = vunpack.c.h.b16 %v1041
  %v4261 = vunpack.c.l.b16 %v1042
  %v4262 = vunpack.c.h.b16 %v1042
  %v4263 = vunpack.c.l.b16 %v1043
  %v4264 = vunpack.c.h.b16 %v1043
  %v4265 = vunpack.c.l.b16 %v1044
  %v4266 = vunpack.c.h.b16 %v1044
  %v4267 = vunpack.c.l.b16 %v1045
  %v4268 = vunpack.c.h.b16 %v1045
  %v4269 = vunpack.c.l.b16 %v1046
  %v4270 = vunpack.c.h.b16 %v1046
  %v4271 = vunpack.c.l.b16 %v1047
  %v4272 = vunpack.c.h.b16 %v1047
  %v4273 = vunpack.c.l.b16 %v1048
  %v4274 = vunpack.c.h.b16 %v1048
  %v4275 = vunpack.c.l.b16 %v1049
  %v4276 = vunpack.c.h.b16 %v1049
  %v4277 = vunpack.c.l.b16 %v1050
  %v4278 = vunpack.c.h.b16 %v1050
  %v4279 = vunpack.c.l.b16 %v1051
  %v4280 = vunpack.c.h.b16 %v1051
  %v4281 = vunpack.c.l.b16 %v1052
  %v4282 = vunpack.c.h.b16 %v1052
  %v4283 = vunpack.c.l.b16 %v1053
  %v4284 = vunpack.c.h.b16 %v1053
  %v4285 = vunpack.c.l.b16 %v1054
  %v4286 = vunpack.c.h.b16 %v1054
  %v4287 = vunpack.c.l.b16 %v1055
  %v4288 = vunpack.c.h.b16 %v1055
  %v4289 = vunpack.c.l.b16 %v1056
  %v4290 = vunpack.c.h.b16 %v1056
  %v4291 = vunpack.c.l.b16 %v1057
  %v4292 = vunpack.c.h.b16 %v1057
  %v4293 = vunpack.c.l.b16 %v1058
  %v4294 = vunpack.c.h.b16 %v1058
  %v4295 = vunpack.c.l.b16 %v1059
  %v4296 = vunpack.c.h.b16 %v1059
  %v4297 = vunpack.c.l.b16 %v1060
  %v4298 = vunpack.c.h.b16 %v1060
  %v4299 = vunpack.c.l.b16 %v1061
  %v4300 = vunpack.c.h.b16 %v1061
  %v4301 = vunpack.c.l.b16 %v1062
  %v4302 = vunpack.c.h.b16 %v1062
  %v4303 = vunpack.c.l.b16 %v1063
  %v4304 = vunpack.c.h.b16 %v1063
  %v4305 = vunpack.c.l.b16 %v1064
  %v4306 = vunpack.c.h.b16 %v1064
  %v4307 = vunpack.c.l.b16 %v1065
  %v4308 = vunpack.c.h.b16 %v1065
  %v4309 = vunpack.c.l.b16 %v1066
  %v4310 = vunpack.c.h.b16 %v1066
  %v4311 = vunpack.c.l.b16 %v1067
  %v4312 = vunpack.c.h.b16 %v1067
  %v4313 = vunpack.c.l.b16 %v1068
  %v4314 = vunpack.c.h.b16 %v1068
  %v4315 = vunpack.c.l.b16 %v1069
  %v4316 = vunpack.c.h.b16 %v1069
  %v4317 = vunpack.c.l.b16 %v1070
  %v4318 = vunpack.c.h.b16 %v1070
  %v4319 = vunpack.c.l.b16 %v1071
  %v4320 = vunpack.c.h.b16 %v1071
  %v4321 = vunpack.c.l.b16 %v1072
  %v4322 = vunpack.c.h.b16 %v1072
  %v4323 = vunpack.c.l.b16 %v1073
  %v4324 = vunpack.c.h.b16 %v1073
  %v4325 = vunpack.c.l.b16 %v1074
  %v4326 = vunpack.c.h.b16 %v1074
  %v4327 = vunpack.c.l.b16 %v1075
  %v4328 = vunpack.c.h.b16 %v1075
  %v4329 = vunpack.c.l.b16 %v1076
  %v4330 = vunpack.c.h.b16 %v1076
  %v4331 = vpack.c.b16 %v2287, %v2283
  %v4332 = vpack.c.b16 %v2288, %v2284
  %v4333 = vpack.c.b16 %v2289, %v2285
  %v4334 = vpack.c.b16 %v2290, %v2286
  %v4335 = vpack.c.b16 %v2295, %v2291
  %v4336 = vpack.c.b16 %v2296, %v2292
  %v4337 = vpack.c.b16 %v2297, %v2293
  %v4338 = vpack.c.b16 %v2298, %v2294
  %v4339 = vpack.c.b16 %v2303, %v2299
  %v4340 = vpack.c.b16 %v2304, %v2300
  %v4341 = vpack.c.b16 %v2305, %v2301
  %v4342 = vpack.c.b16 %v2306, %v2302
  %v4343 = vpack.c.b16 %v2311, %v2307
  %v4344 = vpack.c.b16 %v2312, %v2308
  %v4345 = vpack.c.b16 %v2313, %v2309
  %v4346 = vpack.c.b16 %v2314, %v2310
  %v4347 = vpack.c.b16 %v2319, %v2315
  %v4348 = vpack.c.b16 %v2320, %v2316
  %v4349 = vpack.c.b16 %v2321, %v2317
  %v4350 = vpack.c.b16 %v2322, %v2318
  %v4351 = vpack.c.b16 %v2327, %v2323
  %v4352 = vpack.c.b16 %v2328, %v2324
  %v4353 = vpack.c.b16 %v2329, %v2325
  %v4354 = vpack.c.b16 %v2330, %v2326
  %v4355 = vpack.c.b16 %v2335, %v2331
  %v4356 = vpack.c.b16 %v2336, %v2332
  %v4357 = vpack.c.b16 %v2337, %v2333
  %v4358 = vpack.c.b16 %v2338, %v2334
  %v4359 = vpack.c.b16 %v2343, %v2339
  %v4360 = vpack.c.b16 %v2344, %v2340
  %v4361 = vpack.c.b16 %v2345, %v2341
  %v4362 = vpack.c.b16 %v2346, %v2342
  %v4363 = vpack.c.b16 %v2351, %v2347
  %v4364 = vpack.c.b16 %v2352, %v2348
  %v4365 = vpack.c.b16 %v2353, %v2349
  %v4366 = vpack.c.b16 %v2354, %v2350
  %v4367 = vpack.c.b16 %v2359, %v2355
  %v4368 = vpack.c.b16 %v2360, %v2356
  %v4369 = vpack.c.b16 %v2361, %v2357
  %v4370 = vpack.c.b16 %v2362, %v2358
  %v4371 = vpack.c.b16 %v2367, %v2363
  %v4372 = vpack.c.b16 %v2368, %v2364
  %v4373 = vpack.c.b16 %v2369, %v2365
  %v4374 = vpack.c.b16 %v2370, %v2366
  %v4375 = vpack.c.b16 %v2375, %v2371
  %v4376 = vpack.c.b16 %v2376, %v2372
  %v4377 = vpack.c.b16 %v2377, %v2373
  %v4378 = vpack.c.b16 %v2378, %v2374
  %v4379 = vpack.c.b16 %v2383, %v2379
  %v4380 = vpack.c.b16 %v2384, %v2380
  %v4381 = vpack.c.b16 %v2385, %v2381
  %v4382 = vpack.c.b16 %v2386, %v2382
  %v4383 = vpack.c.b16 %v2391, %v2387
  %v4384 = vpack.c.b16 %v2392, %v2388
  %v4385 = vpack.c.b16 %v2393, %v2389
  %v4386 = vpack.c.b16 %v2394, %v2390
  %v4387 = vpack.c.b16 %v2399, %v2395
  %v4388 = vpack.c.b16 %v2400, %v2396
  %v4389 = vpack.c.b16 %v2401, %v2397
  %v4390 = vpack.c.b16 %v2402, %v2398
  %v4391 = vpack.c.b16 %v2407, %v2403
  %v4392 = vpack.c.b16 %v2408, %v2404
  %v4393 = vpack.c.b16 %v2409, %v2405
  %v4394 = vpack.c.b16 %v2410, %v2406
  %v4395 = vpack.c.b16 %v2415, %v2411
  %v4396 = vpack.c.b16 %v2416, %v2412
  %v4397 = vpack.c.b16 %v2417, %v2413
  %v4398 = vpack.c.b16 %v2418, %v2414
  %v4399 = vpack.c.b16 %v2423, %v2419
  %v4400 = vpack.c.b16 %v2424, %v2420
  %v4401 = vpack.c.b16 %v2425, %v2421
  %v4402 = vpack.c.b16 %v2426, %v2422
  %v4403 = vpack.c.b16 %v2431, %v2427
  %v4404 = vpack.c.b16 %v2432, %v2428
  %v4405 = vpack.c.b16 %v2433, %v2429
  %v4406 = vpack.c.b16 %v2434, %v2430
  %v4407 = vpack.c.b16 %v2439, %v2435
  %v4408 = vpack.c.b16 %v2440, %v2436
  %v4409 = vpack.c.b16 %v2441, %v2437
  %v4410 = vpack.c.b16 %v2442, %v2438
  %v4411 = vpack.c.b16 %v2447, %v2443
  %v4412 = vpack.c.b16 %v2448, %v2444
  %v4413 = vpack.c.b16 %v2449, %v2445
  %v4414 = vpack.c.b16 %v2450, %v2446
  %v4415 = vpack.c.b16 %v2455, %v2451
  %v4416 = vpack.c.b16 %v2456, %v2452
  %v4417 = vpack.c.b16 %v2457, %v2453
  %v4418 = vpack.c.b16 %v2458, %v2454
  %v4419 = vpack.c.b16 %v2463, %v2459
  %v4420 = vpack.c.b16 %v2464, %v2460
  %v4421 = vpack.c.b16 %v2465, %v2461
  %v4422 = vpack.c.b16 %v2466, %v2462
  %v4423 = vpack.c.b16 %v2471, %v2467
  %v4424 = vpack.c.b16 %v2472, %v2468
  %v4425 = vpack.c.b16 %v2473, %v2469
  %v4426 = vpack.c.b16 %v2474, %v2470
  %v4427 = vpack.c.b16 %v2479, %v2475
  %v4428 = vpack.c.b16 %v2480, %v2476
  %v4429 = vpack.c.b16 %v2481, %v2477
  %v4430 = vpack.c.b16 %v2482, %v2478
  %v4431 = vpack.c.b16 %v2487, %v2483
  %v4432 = vpack.c.b16 %v2488, %v2484
  %v4433 = vpack.c.b16 %v2489, %v2485
  %v4434 = vpack.c.b16 %v2490, %v2486
  %v4435 = vpack.c.b16 %v2495, %v2491
  %v4436 = vpack.c.b16 %v2496, %v2492
  %v4437 = vpack.c.b16 %v2497, %v2493
  %v4438 = vpack.c.b16 %v2498, %v2494
  %v4439 = vpack.c.b16 %v2503, %v2499
  %v4440 = vpack.c.b16 %v2504, %v2500
  %v4441 = vpack.c.b16 %v2505, %v2501
  %v4442 = vpack.c.b16 %v2506, %v2502
  %v4443 = vpack.c.b16 %v2511, %v2507
  %v4444 = vpack.c.b16 %v2512, %v2508
  %v4445 = vpack.c.b16 %v2513, %v2509
  %v4446 = vpack.c.b16 %v2514, %v2510
  %v4447 = vpack.c.b16 %v2519, %v2515
  %v4448 = vpack.c.b16 %v2520, %v2516
  %v4449 = vpack.c.b16 %v2521, %v2517
  %v4450 = vpack.c.b16 %v2522, %v2518
  %v4451 = vpack.c.b16 %v2527, %v2523
  %v4452 = vpack.c.b16 %v2528, %v2524
  %v4453 = vpack.c.b16 %v2529, %v2525
  %v4454 = vpack.c.b16 %v2530, %v2526
  %v4455 = vpack.c.b16 %v2535, %v2531
  %v4456 = vpack.c.b16 %v2536, %v2532
  %v4457 = vpack.c.b16 %v2537, %v2533
  %v4458 = vpack.c.b16 %v2538, %v2534
  %v4459 = vpack.c.b16 %v2543, %v2539
  %v4460 = vpack.c.b16 %v2544, %v2540
  %v4461 = vpack.c.b16 %v2545, %v2541
  %v4462 = vpack.c.b16 %v2546, %v2542
  %v4463 = vpack.c.b16 %v2551, %v2547
  %v4464 = vpack.c.b16 %v2552, %v2548
  %v4465 = vpack.c.b16 %v2553, %v2549
  %v4466 = vpack.c.b16 %v2554, %v2550
  %v4467 = vpack.c.b16 %v2559, %v2555
  %v4468 = vpack.c.b16 %v2560, %v2556
  %v4469 = vpack.c.b16 %v2561, %v2557
  %v4470 = vpack.c.b16 %v2562, %v2558
  %v4471 = vpack.c.b16 %v2567, %v2563
  %v4472 = vpack.c.b16 %v2568, %v2564
  %v4473 = vpack.c.b16 %v2569, %v2565
  %v4474 = vpack.c.b16 %v2570, %v2566
  %v4475 = vpack.c.b16 %v2575, %v2571
  %v4476 = vpack.c.b16 %v2576, %v2572
  %v4477 = vpack.c.b16 %v2577, %v2573
  %v4478 = vpack.c.b16 %v2578, %v2574
  %v4479 = vpack.c.b16 %v2583, %v2579
  %v4480 = vpack.c.b16 %v2584, %v2580
  %v4481 = vpack.c.b16 %v2585, %v2581
  %v4482 = vpack.c.b16 %v2586, %v2582
  %v4483 = vpack.c.b16 %v2591, %v2587
  %v4484 = vpack.c.b16 %v2592, %v2588
  %v4485 = vpack.c.b16 %v2593, %v2589
  %v4486 = vpack.c.b16 %v2594, %v2590
  %v4487 = vpack.c.b16 %v2599, %v2595
  %v4488 = vpack.c.b16 %v2600, %v2596
  %v4489 = vpack.c.b16 %v2601, %v2597
  %v4490 = vpack.c.b16 %v2602, %v2598
  %v4491 = vpack.c.b16 %v2607, %v2603
  %v4492 = vpack.c.b16 %v2608, %v2604
  %v4493 = vpack.c.b16 %v2609, %v2605
  %v4494 = vpack.c.b16 %v2610, %v2606
  %v4495 = vpack.c.b16 %v2615, %v2611
  %v4496 = vpack.c.b16 %v2616, %v2612
  %v4497 = vpack.c.b16 %v2617, %v2613
  %v4498 = vpack.c.b16 %v2618, %v2614
  %v4499 = vpack.c.b16 %v2623, %v2619
  %v4500 = vpack.c.b16 %v2624, %v2620
  %v4501 = vpack.c.b16 %v2625, %v2621
  %v4502 = vpack.c.b16 %v2626, %v2622
  %v4503 = vpack.c.b16 %v2631, %v2627
  %v4504 = vpack.c.b16 %v2632, %v2628
  %v4505 = vpack.c.b16 %v2633, %v2629
  %v4506 = vpack.c.b16 %v2634, %v2630
  %v4507 = vpack.c.b16 %v2639, %v2635
  %v4508 = vpack.c.b16 %v2640, %v2636
  %v4509 = vpack.c.b16 %v2641, %v2637
  %v4510 = vpack.c.b16 %v2642, %v2638
  %v4511 = vpack.c.b16 %v2647, %v2643
  %v4512 = vpack.c.b16 %v2648, %v2644
  %v4513 = vpack.c.b16 %v2649, %v2645
  %v4514 = vpack.c.b16 %v2650, %v2646
  %v4515 = vpack.c.b16 %v2655, %v2651
  %v4516 = vpack.c.b16 %v2656, %v2652
  %v4517 = vpack.c.b16 %v2657, %v2653
  %v4518 = vpack.c.b16 %v2658, %v2654
  %v4519 = vpack.c.b16 %v2663, %v2659
  %v4520 = vpack.c.b16 %v2664, %v2660
  %v4521 = vpack.c.b16 %v2665, %v2661
  %v4522 = vpack.c.b16 %v2666, %v2662
  %v4523 = vpack.c.b16 %v2671, %v2667
  %v4524 = vpack.c.b16 %v2672, %v2668
  %v4525 = vpack.c.b16 %v2673, %v2669
  %v4526 = vpack.c.b16 %v2674, %v2670
  %v4527 = vpack.c.b16 %v2679, %v2675
  %v4528 = vpack.c.b16 %v2680, %v2676
  %v4529 = vpack.c.b16 %v2681, %v2677
  %v4530 = vpack.c.b16 %v2682, %v2678
  %v4531 = vpack.c.b16 %v2687, %v2683
  %v4532 = vpack.c.b16 %v2688, %v2684
  %v4533 = vpack.c.b16 %v2689, %v2685
  %v4534 = vpack.c.b16 %v2690, %v2686
  %v4535 = vpack.c.b16 %v2695, %v2691
  %v4536 = vpack.c.b16 %v2696, %v2692
  %v4537 = vpack.c.b16 %v2697, %v2693
  %v4538 = vpack.c.b16 %v2698, %v2694
  %v4539 = vpack.c.b16 %v2703, %v2699
  %v4540 = vpack.c.b16 %v2704, %v2700
  %v4541 = vpack.c.b16 %v2705, %v2701
  %v4542 = vpack.c.b16 %v2706, %v2702
  %v4543 = vpack.c.b16 %v2711, %v2707
  %v4544 = vpack.c.b16 %v2712, %v2708
  %v4545 = vpack.c.b16 %v2713, %v2709
  %v4546 = vpack.c.b16 %v2714, %v2710
  %v4547 = vpack.c.b16 %v2719, %v2715
  %v4548 = vpack.c.b16 %v2720, %v2716
  %v4549 = vpack.c.b16 %v2721, %v2717
  %v4550 = vpack.c.b16 %v2722, %v2718
  %v4551 = vpack.c.b16 %v2727, %v2723
  %v4552 = vpack.c.b16 %v2728, %v2724
  %v4553 = vpack.c.b16 %v2729, %v2725
  %v4554 = vpack.c.b16 %v2730, %v2726
  %v4555 = vpack.c.b16 %v2735, %v2731
  %v4556 = vpack.c.b16 %v2736, %v2732
  %v4557 = vpack.c.b16 %v2737, %v2733
  %v4558 = vpack.c.b16 %v2738, %v2734
  %v4559 = vpack.c.b16 %v2743, %v2739
  %v4560 = vpack.c.b16 %v2744, %v2740
  %v4561 = vpack.c.b16 %v2745, %v2741
  %v4562 = vpack.c.b16 %v2746, %v2742
  %v4563 = vpack.c.b16 %v2751, %v2747
  %v4564 = vpack.c.b16 %v2752, %v2748
  %v4565 = vpack.c.b16 %v2753, %v2749
  %v4566 = vpack.c.b16 %v2754, %v2750
  %v4567 = vpack.c.b16 %v2759, %v2755
  %v4568 = vpack.c.b16 %v2760, %v2756
  %v4569 = vpack.c.b16 %v2761, %v2757
  %v4570 = vpack.c.b16 %v2762, %v2758
  %v4571 = vpack.c.b16 %v2767, %v2763
  %v4572 = vpack.c.b16 %v2768, %v2764
  %v4573 = vpack.c.b16 %v2769, %v2765
  %v4574 = vpack.c.b16 %v2770, %v2766
  %v4575 = vpack.c.b16 %v2775, %v2771
  %v4576 = vpack.c.b16 %v2776, %v2772
  %v4577 = vpack.c.b16 %v2777, %v2773
  %v4578 = vpack.c.b16 %v2778, %v2774
  %v4579 = vpack.c.b16 %v2783, %v2779
  %v4580 = vpack.c.b16 %v2784, %v2780
  %v4581 = vpack.c.b16 %v2785, %v2781
  %v4582 = vpack.c.b16 %v2786, %v2782
  %v4583 = vpack.c.b16 %v2791, %v2787
  %v4584 = vpack.c.b16 %v2792, %v2788
  %v4585 = vpack.c.b16 %v2793, %v2789
  %v4586 = vpack.c.b16 %v2794, %v2790
  %v4587 = vpack.c.b16 %v2799, %v2795
  %v4588 = vpack.c.b16 %v2800, %v2796
  %v4589 = vpack.c.b16 %v2801, %v2797
  %v4590 = vpack.c.b16 %v2802, %v2798
  %v4591 = vpack.c.b16 %v2807, %v2803
  %v4592 = vpack.c.b16 %v2808, %v2804
  %v4593 = vpack.c.b16 %v2809, %v2805
  %v4594 = vpack.c.b16 %v2810, %v2806
  %v4595 = vpack.c.b16 %v2815, %v2811
  %v4596 = vpack.c.b16 %v2816, %v2812
  %v4597 = vpack.c.b16 %v2817, %v2813
  %v4598 = vpack.c.b16 %v2818, %v2814
  %v4599 = vpack.c.b16 %v2823, %v2819
  %v4600 = vpack.c.b16 %v2824, %v2820
  %v4601 = vpack.c.b16 %v2825, %v2821
  %v4602 = vpack.c.b16 %v2826, %v2822
  %v4603 = vpack.c.b16 %v2831, %v2827
  %v4604 = vpack.c.b16 %v2832, %v2828
  %v4605 = vpack.c.b16 %v2833, %v2829
  %v4606 = vpack.c.b16 %v2834, %v2830
  %v4607 = vpack.c.b16 %v2839, %v2835
  %v4608 = vpack.c.b16 %v2840, %v2836
  %v4609 = vpack.c.b16 %v2841, %v2837
  %v4610 = vpack.c.b16 %v2842, %v2838
  %v4611 = vpack.c.b16 %v2847, %v2843
  %v4612 = vpack.c.b16 %v2848, %v2844
  %v4613 = vpack.c.b16 %v2849, %v2845
  %v4614 = vpack.c.b16 %v2850, %v2846
  %v4615 = vpack.c.b16 %v2855, %v2851
  %v4616 = vpack.c.b16 %v2856, %v2852
  %v4617 = vpack.c.b16 %v2857, %v2853
  %v4618 = vpack.c.b16 %v2858, %v2854
  %v4619 = vpack.c.b16 %v2863, %v2859
  %v4620 = vpack.c.b16 %v2864, %v2860
  %v4621 = vpack.c.b16 %v2865, %v2861
  %v4622 = vpack.c.b16 %v2866, %v2862
  %v4623 = vpack.c.b16 %v2871, %v2867
  %v4624 = vpack.c.b16 %v2872, %v2868
  %v4625 = vpack.c.b16 %v2873, %v2869
  %v4626 = vpack.c.b16 %v2874, %v2870
  %v4627 = vpack.c.b16 %v2879, %v2875
  %v4628 = vpack.c.b16 %v2880, %v2876
  %v4629 = vpack.c.b16 %v2881, %v2877
  %v4630 = vpack.c.b16 %v2882, %v2878
  %v4631 = vpack.c.b16 %v2887, %v2883
  %v4632 = vpack.c.b16 %v2888, %v2884
  %v4633 = vpack.c.b16 %v2889, %v2885
  %v4634 = vpack.c.b16 %v2890, %v2886
  %v4635 = vpack.c.b16 %v2895, %v2891
  %v4636 = vpack.c.b16 %v2896, %v2892
  %v4637 = vpack.c.b16 %v2897, %v2893
  %v4638 = vpack.c.b16 %v2898, %v2894
  %v4639 = vpack.c.b16 %v2903, %v2899
  %v4640 = vpack.c.b16 %v2904, %v2900
  %v4641 = vpack.c.b16 %v2905, %v2901
  %v4642 = vpack.c.b16 %v2906, %v2902
  %v4643 = vpack.c.b16 %v2911, %v2907
  %v4644 = vpack.c.b16 %v2912, %v2908
  %v4645 = vpack.c.b16 %v2913, %v2909
  %v4646 = vpack.c.b16 %v2914, %v2910
  %v4647 = vpack.c.b16 %v2919, %v2915
  %v4648 = vpack.c.b16 %v2920, %v2916
  %v4649 = vpack.c.b16 %v2921, %v2917
  %v4650 = vpack.c.b16 %v2922, %v2918
  %v4651 = vpack.c.b16 %v2927, %v2923
  %v4652 = vpack.c.b16 %v2928, %v2924
  %v4653 = vpack.c.b16 %v2929, %v2925
  %v4654 = vpack.c.b16 %v2930, %v2926
  %v4655 = vpack.c.b16 %v2935, %v2931
  %v4656 = vpack.c.b16 %v2936, %v2932
  %v4657 = vpack.c.b16 %v2937, %v2933
  %v4658 = vpack.c.b16 %v2938, %v2934
  %v4659 = vpack.c.b16 %v2943, %v2939
  %v4660 = vpack.c.b16 %v2944, %v2940
  %v4661 = vpack.c.b16 %v2945, %v2941
  %v4662 = vpack.c.b16 %v2946, %v2942
  %v4663 = vpack.c.b16 %v2951, %v2947
  %v4664 = vpack.c.b16 %v2952, %v2948
  %v4665 = vpack.c.b16 %v2953, %v2949
  %v4666 = vpack.c.b16 %v2954, %v2950
  %v4667 = vpack.c.b16 %v2959, %v2955
  %v4668 = vpack.c.b16 %v2960, %v2956
  %v4669 = vpack.c.b16 %v2961, %v2957
  %v4670 = vpack.c.b16 %v2962, %v2958
  %v4671 = vpack.c.b16 %v2967, %v2963
  %v4672 = vpack.c.b16 %v2968, %v2964
  %v4673 = vpack.c.b16 %v2969, %v2965
  %v4674 = vpack.c.b16 %v2970, %v2966
  %v4675 = vpack.c.b16 %v2975, %v2971
  %v4676 = vpack.c.b16 %v2976, %v2972
  %v4677 = vpack.c.b16 %v2977, %v2973
  %v4678 = vpack.c.b16 %v2978, %v2974
  %v4679 = vpack.c.b16 %v2983, %v2979
  %v4680 = vpack.c.b16 %v2984, %v2980
  %v4681 = vpack.c.b16 %v2985, %v2981
  %v4682 = vpack.c.b16 %v2986, %v2982
  %v4683 = vpack.c.b16 %v2991, %v2987
  %v4684 = vpack.c.b16 %v2992, %v2988
  %v4685 = vpack.c.b16 %v2993, %v2989
  %v4686 = vpack.c.b16 %v2994, %v2990
  %v4687 = vpack.c.b16 %v2999, %v2995
  %v4688 = vpack.c.b16 %v3000, %v2996
  %v4689 = vpack.c.b16 %v3001, %v2997
  %v4690 = vpack.c.b16 %v3002, %v2998
  %v4691 = vpack.c.b16 %v3007, %v3003
  %v4692 = vpack.c.b16 %v3008, %v3004
  %v4693 = vpack.c.b16 %v3009, %v3005
  %v4694 = vpack.c.b16 %v3010, %v3006
  %v4695 = vpack.c.b16 %v3015, %v3011
  %v4696 = vpack.c.b16 %v3016, %v3012
  %v4697 = vpack.c.b16 %v3017, %v3013
  %v4698 = vpack.c.b16 %v3018, %v3014
  %v4699 = vpack.c.b16 %v3023, %v3019
  %v4700 = vpack.c.b16 %v3024, %v3020
  %v4701 = vpack.c.b16 %v3025, %v3021
  %v4702 = vpack.c.b16 %v3026, %v3022
  %v4703 = vpack.c.b16 %v3031, %v3027
  %v4704 = vpack.c.b16 %v3032, %v3028
  %v4705 = vpack.c.b16 %v3033, %v3029
  %v4706 = vpack.c.b16 %v3034, %v3030
  %v4707 = vpack.c.b16 %v3039, %v3035
  %v4708 = vpack.c.b16 %v3040, %v3036
  %v4709 = vpack.c.b16 %v3041, %v3037
  %v4710 = vpack.c.b16 %v3042, %v3038
  %v4711 = vpack.c.b16 %v3047, %v3043
  %v4712 = vpack.c.b16 %v3048, %v3044
  %v4713 = vpack.c.b16 %v3049, %v3045
  %v4714 = vpack.c.b16 %v3050, %v3046
  %v4715 = vpack.c.b16 %v3055, %v3051
  %v4716 = vpack.c.b16 %v3056, %v3052
  %v4717 = vpack.c.b16 %v3057, %v3053
  %v4718 = vpack.c.b16 %v3058, %v3054
  %v4719 = vpack.c.b16 %v3063, %v3059
  %v4720 = vpack.c.b16 %v3064, %v3060
  %v4721 = vpack.c.b16 %v3065, %v3061
  %v4722 = vpack.c.b16 %v3066, %v3062
  %v4723 = vpack.c.b16 %v3071, %v3067
  %v4724 = vpack.c.b16 %v3072, %v3068
  %v4725 = vpack.c.b16 %v3073, %v3069
  %v4726 = vpack.c.b16 %v3074, %v3070
  %v4727 = vpack.c.b16 %v3079, %v3075
  %v4728 = vpack.c.b16 %v3080, %v3076
  %v4729 = vpack.c.b16 %v3081, %v3077
  %v4730 = vpack.c.b16 %v3082, %v3078
  %v4731 = vpack.c.b16 %v3087, %v3083
  %v4732 = vpack.c.b16 %v3088, %v3084
  %v4733 = vpack.c.b16 %v3089, %v3085
  %v4734 = vpack.c.b16 %v3090, %v3086
  %v4735 = vpack.c.b16 %v3095, %v3091
  %v4736 = vpack.c.b16 %v3096, %v3092
  %v4737 = vpack.c.b16 %v3097, %v3093
  %v4738 = vpack.c.b16 %v3098, %v3094
  %v4739 = vpack.c.b16 %v3103, %v3099
  %v4740 = vpack.c.b16 %v3104, %v3100
  %v4741 = vpack.c.b16 %v3105, %v3101
  %v4742 = vpack.c.b16 %v3106, %v3102
  %v4743 = vpack.c.b16 %v3111, %v3107
  %v4744 = vpack.c.b16 %v3112, %v3108
  %v4745 = vpack.c.b16 %v3113, %v3109
  %v4746 = vpack.c.b16 %v3114, %v3110
  %v4747 = vpack.c.b16 %v3119, %v3115
  %v4748 = vpack.c.b16 %v3120, %v3116
  %v4749 = vpack.c.b16 %v3121, %v3117
  %v4750 = vpack.c.b16 %v3122, %v3118
  %v4751 = vpack.c.b16 %v3127, %v3123
  %v4752 = vpack.c.b16 %v3128, %v3124
  %v4753 = vpack.c.b16 %v3129, %v3125
  %v4754 = vpack.c.b16 %v3130, %v3126
  %v4755 = vpack.c.b16 %v3135, %v3131
  %v4756 = vpack.c.b16 %v3136, %v3132
  %v4757 = vpack.c.b16 %v3137, %v3133
  %v4758 = vpack.c.b16 %v3138, %v3134
  %v4759 = vpack.c.b16 %v3143, %v3139
  %v4760 = vpack.c.b16 %v3144, %v3140
  %v4761 = vpack.c.b16 %v3145, %v3141
  %v4762 = vpack.c.b16 %v3146, %v3142
  %v4763 = vpack.c.b16 %v3151, %v3147
  %v4764 = vpack.c.b16 %v3152, %v3148
  %v4765 = vpack.c.b16 %v3153, %v3149
  %v4766 = vpack.c.b16 %v3154, %v3150
  %v4767 = vpack.c.b16 %v3159, %v3155
  %v4768 = vpack.c.b16 %v3160, %v3156
  %v4769 = vpack.c.b16 %v3161, %v3157
  %v4770 = vpack.c.b16 %v3162, %v3158
  %v4771 = vpack.c.b16 %v3167, %v3163
  %v4772 = vpack.c.b16 %v3168, %v3164
  %v4773 = vpack.c.b16 %v3169, %v3165
  %v4774 = vpack.c.b16 %v3170, %v3166
  %v4775 = vpack.c.b16 %v3175, %v3171
  %v4776 = vpack.c.b16 %v3176, %v3172
  %v4777 = vpack.c.b16 %v3177, %v3173
  %v4778 = vpack.c.b16 %v3178, %v3174
  %v4779 = vpack.c.b16 %v3183, %v3179
  %v4780 = vpack.c.b16 %v3184, %v3180
  %v4781 = vpack.c.b16 %v3185, %v3181
  %v4782 = vpack.c.b16 %v3186, %v3182
  %v4783 = vpack.c.b16 %v3191, %v3187
  %v4784 = vpack.c.b16 %v3192, %v3188
  %v4785 = vpack.c.b16 %v3193, %v3189
  %v4786 = vpack.c.b16 %v3194, %v3190
  %v4787 = vpack.c.b16 %v3199, %v3195
  %v4788 = vpack.c.b16 %v3200, %v3196
  %v4789 = vpack.c.b16 %v3201, %v3197
  %v4790 = vpack.c.b16 %v3202, %v3198
  %v4791 = vpack.c.b16 %v3207, %v3203
  %v4792 = vpack.c.b16 %v3208, %v3204
  %v4793 = vpack.c.b16 %v3209, %v3205
  %v4794 = vpack.c.b16 %v3210, %v3206
  %v4795 = vpack.c.b16 %v3215, %v3211
  %v4796 = vpack.c.b16 %v3216, %v3212
  %v4797 = vpack.c.b16 %v3217, %v3213
  %v4798 = vpack.c.b16 %v3218, %v3214
  %v4799 = vpack.c.b16 %v3223, %v3219
  %v4800 = vpack.c.b16 %v3224, %v3220
  %v4801 = vpack.c.b16 %v3225, %v3221
  %v4802 = vpack.c.b16 %v3226, %v3222
  %v4803 = vpack.c.b16 %v3231, %v3227
  %v4804 = vpack.c.b16 %v3232, %v3228
  %v4805 = vpack.c.b16 %v3233, %v3229
  %v4806 = vpack.c.b16 %v3234, %v3230
  %v4807 = vpack.c.b16 %v3239, %v3235
  %v4808 = vpack.c.b16 %v3240, %v3236
  %v4809 = vpack.c.b16 %v3241, %v3237
  %v4810 = vpack.c.b16 %v3242, %v3238
  %v4811 = vpack.c.b16 %v3247, %v3243
  %v4812 = vpack.c.b16 %v3248, %v3244
  %v4813 = vpack.c.b16 %v3249, %v3245
  %v4814 = vpack.c.b16 %v3250, %v3246
  %v4815 = vpack.c.b16 %v3255, %v3251
  %v4816 = vpack.c.b16 %v3256, %v3252
  %v4817 = vpack.c.b16 %v3257, %v3253
  %v4818 = vpack.c.b16 %v3258, %v3254
  %v4819 = vpack.c.b16 %v3263, %v3259
  %v4820 = vpack.c.b16 %v3264, %v3260
  %v4821 = vpack.c.b16 %v3265, %v3261
  %v4822 = vpack.c.b16 %v3266, %v3262
  %v4823 = vpack.c.b16 %v3271, %v3267
  %v4824 = vpack.c.b16 %v3272, %v3268
  %v4825 = vpack.c.b16 %v3273, %v3269
  %v4826 = vpack.c.b16 %v3274, %v3270
  %v4827 = vpack.c.b16 %v3279, %v3275
  %v4828 = vpack.c.b16 %v3280, %v3276
  %v4829 = vpack.c.b16 %v3281, %v3277
  %v4830 = vpack.c.b16 %v3282, %v3278
  %v4831 = vpack.c.b16 %v3287, %v3283
  %v4832 = vpack.c.b16 %v3288, %v3284
  %v4833 = vpack.c.b16 %v3289, %v3285
  %v4834 = vpack.c.b16 %v3290, %v3286
  %v4835 = vpack.c.b16 %v3295, %v3291
  %v4836 = vpack.c.b16 %v3296, %v3292
  %v4837 = vpack.c.b16 %v3297, %v3293
  %v4838 = vpack.c.b16 %v3298, %v3294
  %v4839 = vpack.c.b16 %v3303, %v3299
  %v4840 = vpack.c.b16 %v3304, %v3300
  %v4841 = vpack.c.b16 %v3305, %v3301
  %v4842 = vpack.c.b16 %v3306, %v3302
  %v4843 = vpack.c.b16 %v3311, %v3307
  %v4844 = vpack.c.b16 %v3312, %v3308
  %v4845 = vpack.c.b16 %v3313, %v3309
  %v4846 = vpack.c.b16 %v3314, %v3310
  %v4847 = vpack.c.b16 %v3319, %v3315
  %v4848 = vpack.c.b16 %v3320, %v3316
  %v4849 = vpack.c.b16 %v3321, %v3317
  %v4850 = vpack.c.b16 %v3322, %v3318
  %v4851 = vpack.c.b16 %v3327, %v3323
  %v4852 = vpack.c.b16 %v3328, %v3324
  %v4853 = vpack.c.b16 %v3329, %v3325
  %v4854 = vpack.c.b16 %v3330, %v3326
  %v4855 = vpack.c.b16 %v3335, %v3331
  %v4856 = vpack.c.b16 %v3336, %v3332
  %v4857 = vpack.c.b16 %v3337, %v3333
  %v4858 = vpack.c.b16 %v3338, %v3334
  %v4859 = vpack.c.b16 %v3343, %v3339
  %v4860 = vpack.c.b16 %v3344, %v3340
  %v4861 = vpack.c.b16 %v3345, %v3341
  %v4862 = vpack.c.b16 %v3346, %v3342
  %v4863 = vpack.c.b16 %v3351, %v3347
  %v4864 = vpack.c.b16 %v3352, %v3348
  %v4865 = vpack.c.b16 %v3353, %v3349
  %v4866 = vpack.c.b16 %v3354, %v3350
  %v4867 = vpack.c.b16 %v3359, %v3355
  %v4868 = vpack.c.b16 %v3360, %v3356
  %v4869 = vpack.c.b16 %v3361, %v3357
  %v4870 = vpack.c.b16 %v3362, %v3358
  %v4871 = vpack.c.b16 %v3367, %v3363
  %v4872 = vpack.c.b16 %v3368, %v3364
  %v4873 = vpack.c.b16 %v3369, %v3365
  %v4874 = vpack.c.b16 %v3370, %v3366
  %v4875 = vpack.c.b16 %v3375, %v3371
  %v4876 = vpack.c.b16 %v3376, %v3372
  %v4877 = vpack.c.b16 %v3377, %v3373
  %v4878 = vpack.c.b16 %v3378, %v3374
  %v4879 = vpack.c.b16 %v3383, %v3379
  %v4880 = vpack.c.b16 %v3384, %v3380
  %v4881 = vpack.c.b16 %v3385, %v3381
  %v4882 = vpack.c.b16 %v3386, %v3382
  %v4883 = vpack.c.b16 %v3391, %v3387
  %v4884 = vpack.c.b16 %v3392, %v3388
  %v4885 = vpack.c.b16 %v3393, %v3389
  %v4886 = vpack.c.b16 %v3394, %v3390
  %v4887 = vpack.c.b16 %v3399, %v3395
  %v4888 = vpack.c.b16 %v3400, %v3396
  %v4889 = vpack.c.b16 %v3401, %v3397
  %v4890 = vpack.c.b16 %v3402, %v3398
  %v4891 = vpack.c.b16 %v3407, %v3403
  %v4892 = vpack.c.b16 %v3408, %v3404
  %v4893 = vpack.c.b16 %v3409, %v3405
  %v4894 = vpack.c.b16 %v3410, %v3406
  %v4895 = vpack.c.b16 %v3415, %v3411
  %v4896 = vpack.c.b16 %v3416, %v3412
  %v4897 = vpack.c.b16 %v3417, %v3413
  %v4898 = vpack.c.b16 %v3418, %v3414
  %v4899 = vpack.c.b16 %v3423, %v3419
  %v4900 = vpack.c.b16 %v3424, %v3420
  %v4901 = vpack.c.b16 %v3425, %v3421
  %v4902 = vpack.c.b16 %v3426, %v3422
  %v4903 = vpack.c.b16 %v3431, %v3427
  %v4904 = vpack.c.b16 %v3432, %v3428
  %v4905 = vpack.c.b16 %v3433, %v3429
  %v4906 = vpack.c.b16 %v3434, %v3430
  %v4907 = vpack.c.b16 %v3439, %v3435
  %v4908 = vpack.c.b16 %v3440, %v3436
  %v4909 = vpack.c.b16 %v3441, %v3437
  %v4910 = vpack.c.b16 %v3442, %v3438
  %v4911 = vpack.c.b16 %v3447, %v3443
  %v4912 = vpack.c.b16 %v3448, %v3444
  %v4913 = vpack.c.b16 %v3449, %v3445
  %v4914 = vpack.c.b16 %v3450, %v3446
  %v4915 = vpack.c.b16 %v3455, %v3451
  %v4916 = vpack.c.b16 %v3456, %v3452
  %v4917 = vpack.c.b16 %v3457, %v3453
  %v4918 = vpack.c.b16 %v3458, %v3454
  %v4919 = vpack.c.b16 %v3463, %v3459
  %v4920 = vpack.c.b16 %v3464, %v3460
  %v4921 = vpack.c.b16 %v3465, %v3461
  %v4922 = vpack.c.b16 %v3466, %v3462
  %v4923 = vpack.c.b16 %v3471, %v3467
  %v4924 = vpack.c.b16 %v3472, %v3468
  %v4925 = vpack.c.b16 %v3473, %v3469
  %v4926 = vpack.c.b16 %v3474, %v3470
  %v4927 = vpack.c.b16 %v3479, %v3475
  %v4928 = vpack.c.b16 %v3480, %v3476
  %v4929 = vpack.c.b16 %v3481, %v3477
  %v4930 = vpack.c.b16 %v3482, %v3478
  %v4931 = vpack.c.b16 %v3487, %v3483
  %v4932 = vpack.c.b16 %v3488, %v3484
  %v4933 = vpack.c.b16 %v3489, %v3485
  %v4934 = vpack.c.b16 %v3490, %v3486
  %v4935 = vpack.c.b16 %v3495, %v3491
  %v4936 = vpack.c.b16 %v3496, %v3492
  %v4937 = vpack.c.b16 %v3497, %v3493
  %v4938 = vpack.c.b16 %v3498, %v3494
  %v4939 = vpack.c.b16 %v3503, %v3499
  %v4940 = vpack.c.b16 %v3504, %v3500
  %v4941 = vpack.c.b16 %v3505, %v3501
  %v4942 = vpack.c.b16 %v3506, %v3502
  %v4943 = vpack.c.b16 %v3511, %v3507
  %v4944 = vpack.c.b16 %v3512, %v3508
  %v4945 = vpack.c.b16 %v3513, %v3509
  %v4946 = vpack.c.b16 %v3514, %v3510
  %v4947 = vpack.c.b16 %v3519, %v3515
  %v4948 = vpack.c.b16 %v3520, %v3516
  %v4949 = vpack.c.b16 %v3521, %v3517
  %v4950 = vpack.c.b16 %v3522, %v3518
  %v4951 = vpack.c.b16 %v3527, %v3523
  %v4952 = vpack.c.b16 %v3528, %v3524
  %v4953 = vpack.c.b16 %v3529, %v3525
  %v4954 = vpack.c.b16 %v3530, %v3526
  %v4955 = vpack.c.b16 %v3535, %v3531
  %v4956 = vpack.c.b16 %v3536, %v3532
  %v4957 = vpack.c.b16 %v3537, %v3533
  %v4958 = vpack.c.b16 %v3538, %v3534
  %v4959 = vpack.c.b16 %v3543, %v3539
  %v4960 = vpack.c.b16 %v3544, %v3540
  %v4961 = vpack.c.b16 %v3545, %v3541
  %v4962 = vpack.c.b16 %v3546, %v3542
  %v4963 = vpack.c.b16 %v3551, %v3547
  %v4964 = vpack.c.b16 %v3552, %v3548
  %v4965 = vpack.c.b16 %v3553, %v3549
  %v4966 = vpack.c.b16 %v3554, %v3550
  %v4967 = vpack.c.b16 %v3559, %v3555
  %v4968 = vpack.c.b16 %v3560, %v3556
  %v4969 = vpack.c.b16 %v3561, %v3557
  %v4970 = vpack.c.b16 %v3562, %v3558
  %v4971 = vpack.c.b16 %v3567, %v3563
  %v4972 = vpack.c.b16 %v3568, %v3564
  %v4973 = vpack.c.b16 %v3569, %v3565
  %v4974 = vpack.c.b16 %v3570, %v3566
  %v4975 = vpack.c.b16 %v3575, %v3571
  %v4976 = vpack.c.b16 %v3576, %v3572
  %v4977 = vpack.c.b16 %v3577, %v3573
  %v4978 = vpack.c.b16 %v3578, %v3574
  %v4979 = vpack.c.b16 %v3583, %v3579
  %v4980 = vpack.c.b16 %v3584, %v3580
  %v4981 = vpack.c.b16 %v3585, %v3581
  %v4982 = vpack.c.b16 %v3586, %v3582
  %v4983 = vpack.c.b16 %v3591, %v3587
  %v4984 = vpack.c.b16 %v3592, %v3588
  %v4985 = vpack.c.b16 %v3593, %v3589
  %v4986 = vpack.c.b16 %v3594, %v3590
  %v4987 = vpack.c.b16 %v3599, %v3595
  %v4988 = vpack.c.b16 %v3600, %v3596
  %v4989 = vpack.c.b16 %v3601, %v3597
  %v4990 = vpack.c.b16 %v3602, %v3598
  %v4991 = vpack.c.b16 %v3607, %v3603
  %v4992 = vpack.c.b16 %v3608, %v3604
  %v4993 = vpack.c.b16 %v3609, %v3605
  %v4994 = vpack.c.b16 %v3610, %v3606
  %v4995 = vpack.c.b16 %v3615, %v3611
  %v4996 = vpack.c.b16 %v3616, %v3612
  %v4997 = vpack.c.b16 %v3617, %v3613
  %v4998 = vpack.c.b16 %v3618, %v3614
  %v4999 = vpack.c.b16 %v3623, %v3619
  %v5000 = vpack.c.b16 %v3624, %v3620
  %v5001 = vpack.c.b16 %v3625, %v3621
  %v5002 = vpack.c.b16 %v3626, %v3622
  %v5003 = vpack.c.b16 %v3631, %v3627
  %v5004 = vpack.c.b16 %v3632, %v3628
  %v5005 = vpack.c.b16 %v3633, %v3629
  %v5006 = vpack.c.b16 %v3634, %v3630
  %v5007 = vpack.c.b16 %v3639, %v3635
  %v5008 = vpack.c.b16 %v3640, %v3636
  %v5009 = vpack.c.b16 %v3641, %v3637
  %v5010 = vpack.c.b16 %v3642, %v3638
  %v5011 = vpack.c.b16 %v3647, %v3643
  %v5012 = vpack.c.b16 %v3648, %v3644
  %v5013 = vpack.c.b16 %v3649, %v3645
  %v5014 = vpack.c.b16 %v3650, %v3646
  %v5015 = vpack.c.b16 %v3655, %v3651
  %v5016 = vpack.c.b16 %v3656, %v3652
  %v5017 = vpack.c.b16 %v3657, %v3653
  %v5018 = vpack.c.b16 %v3658, %v3654
  %v5019 = vpack.c.b16 %v3663, %v3659
  %v5020 = vpack.c.b16 %v3664, %v3660
  %v5021 = vpack.c.b16 %v3665, %v3661
  %v5022 = vpack.c.b16 %v3666, %v3662
  %v5023 = vpack.c.b16 %v3671, %v3667
  %v5024 = vpack.c.b16 %v3672, %v3668
  %v5025 = vpack.c.b16 %v3673, %v3669
  %v5026 = vpack.c.b16 %v3674, %v3670
  %v5027 = vpack.c.b16 %v3679, %v3675
  %v5028 = vpack.c.b16 %v3680, %v3676
  %v5029 = vpack.c.b16 %v3681, %v3677
  %v5030 = vpack.c.b16 %v3682, %v3678
  %v5031 = vpack.c.b16 %v3687, %v3683
  %v5032 = vpack.c.b16 %v3688, %v3684
  %v5033 = vpack.c.b16 %v3689, %v3685
  %v5034 = vpack.c.b16 %v3690, %v3686
  %v5035 = vpack.c.b16 %v3695, %v3691
  %v5036 = vpack.c.b16 %v3696, %v3692
  %v5037 = vpack.c.b16 %v3697, %v3693
  %v5038 = vpack.c.b16 %v3698, %v3694
  %v5039 = vpack.c.b16 %v3703, %v3699
  %v5040 = vpack.c.b16 %v3704, %v3700
  %v5041 = vpack.c.b16 %v3705, %v3701
  %v5042 = vpack.c.b16 %v3706, %v3702
  %v5043 = vpack.c.b16 %v3711, %v3707
  %v5044 = vpack.c.b16 %v3712, %v3708
  %v5045 = vpack.c.b16 %v3713, %v3709
  %v5046 = vpack.c.b16 %v3714, %v3710
  %v5047 = vpack.c.b16 %v3719, %v3715
  %v5048 = vpack.c.b16 %v3720, %v3716
  %v5049 = vpack.c.b16 %v3721, %v3717
  %v5050 = vpack.c.b16 %v3722, %v3718
  %v5051 = vpack.c.b16 %v3727, %v3723
  %v5052 = vpack.c.b16 %v3728, %v3724
  %v5053 = vpack.c.b16 %v3729, %v3725
  %v5054 = vpack.c.b16 %v3730, %v3726
  %v5055 = vpack.c.b16 %v3735, %v3731
  %v5056 = vpack.c.b16 %v3736, %v3732
  %v5057 = vpack.c.b16 %v3737, %v3733
  %v5058 = vpack.c.b16 %v3738, %v3734
  %v5059 = vpack.c.b16 %v3743, %v3739
  %v5060 = vpack.c.b16 %v3744, %v3740
  %v5061 = vpack.c.b16 %v3745, %v3741
  %v5062 = vpack.c.b16 %v3746, %v3742
  %v5063 = vpack.c.b16 %v3751, %v3747
  %v5064 = vpack.c.b16 %v3752, %v3748
  %v5065 = vpack.c.b16 %v3753, %v3749
  %v5066 = vpack.c.b16 %v3754, %v3750
  %v5067 = vpack.c.b16 %v3759, %v3755
  %v5068 = vpack.c.b16 %v3760, %v3756
  %v5069 = vpack.c.b16 %v3761, %v3757
  %v5070 = vpack.c.b16 %v3762, %v3758
  %v5071 = vpack.c.b16 %v3767, %v3763
  %v5072 = vpack.c.b16 %v3768, %v3764
  %v5073 = vpack.c.b16 %v3769, %v3765
  %v5074 = vpack.c.b16 %v3770, %v3766
  %v5075 = vpack.c.b16 %v3775, %v3771
  %v5076 = vpack.c.b16 %v3776, %v3772
  %v5077 = vpack.c.b16 %v3777, %v3773
  %v5078 = vpack.c.b16 %v3778, %v3774
  %v5079 = vpack.c.b16 %v3783, %v3779
  %v5080 = vpack.c.b16 %v3784, %v3780
  %v5081 = vpack.c.b16 %v3785, %v3781
  %v5082 = vpack.c.b16 %v3786, %v3782
  %v5083 = vpack.c.b16 %v3791, %v3787
  %v5084 = vpack.c.b16 %v3792, %v3788
  %v5085 = vpack.c.b16 %v3793, %v3789
  %v5086 = vpack.c.b16 %v3794, %v3790
  %v5087 = vpack.c.b16 %v3799, %v3795
  %v5088 = vpack.c.b16 %v3800, %v3796
  %v5089 = vpack.c.b16 %v3801, %v3797
  %v5090 = vpack.c.b16 %v3802, %v3798
  %v5091 = vpack.c.b16 %v3807, %v3803
  %v5092 = vpack.c.b16 %v3808, %v3804
  %v5093 = vpack.c.b16 %v3809, %v3805
  %v5094 = vpack.c.b16 %v3810, %v3806
  %v5095 = vpack.c.b16 %v3815, %v3811
  %v5096 = vpack.c.b16 %v3816, %v3812
  %v5097 = vpack.c.b16 %v3817, %v3813
  %v5098 = vpack.c.b16 %v3818, %v3814
  %v5099 = vpack.c.b16 %v3823, %v3819
  %v5100 = vpack.c.b16 %v3824, %v3820
  %v5101 = vpack.c.b16 %v3825, %v3821
  %v5102 = vpack.c.b16 %v3826, %v3822
  %v5103 = vpack.c.b16 %v3831, %v3827
  %v5104 = vpack.c.b16 %v3832, %v3828
  %v5105 = vpack.c.b16 %v3833, %v3829
  %v5106 = vpack.c.b16 %v3834, %v3830
  %v5107 = vpack.c.b16 %v3839, %v3835
  %v5108 = vpack.c.b16 %v3840, %v3836
  %v5109 = vpack.c.b16 %v3841, %v3837
  %v5110 = vpack.c.b16 %v3842, %v3838
  %v5111 = vpack.c.b16 %v3847, %v3843
  %v5112 = vpack.c.b16 %v3848, %v3844
  %v5113 = vpack.c.b16 %v3849, %v3845
  %v5114 = vpack.c.b16 %v3850, %v3846
  %v5115 = vpack.c.b16 %v3855, %v3851
  %v5116 = vpack.c.b16 %v3856, %v3852
  %v5117 = vpack.c.b16 %v3857, %v3853
  %v5118 = vpack.c.b16 %v3858, %v3854
  %v5119 = vpack.c.b16 %v3863, %v3859
  %v5120 = vpack.c.b16 %v3864, %v3860
  %v5121 = vpack.c.b16 %v3865, %v3861
  %v5122 = vpack.c.b16 %v3866, %v3862
  %v5123 = vpack.c.b16 %v3871, %v3867
  %v5124 = vpack.c.b16 %v3872, %v3868
  %v5125 = vpack.c.b16 %v3873, %v3869
  %v5126 = vpack.c.b16 %v3874, %v3870
  %v5127 = vpack.c.b16 %v3879, %v3875
  %v5128 = vpack.c.b16 %v3880, %v3876
  %v5129 = vpack.c.b16 %v3881, %v3877
  %v5130 = vpack.c.b16 %v3882, %v3878
  %v5131 = vpack.c.b16 %v3887, %v3883
  %v5132 = vpack.c.b16 %v3888, %v3884
  %v5133 = vpack.c.b16 %v3889, %v3885
  %v5134 = vpack.c.b16 %v3890, %v3886
  %v5135 = vpack.c.b16 %v3895, %v3891
  %v5136 = vpack.c.b16 %v3896, %v3892
  %v5137 = vpack.c.b16 %v3897, %v3893
  %v5138 = vpack.c.b16 %v3898, %v3894
  %v5139 = vpack.c.b16 %v3903, %v3899
  %v5140 = vpack.c.b16 %v3904, %v3900
  %v5141 = vpack.c.b16 %v3905, %v3901
  %v5142 = vpack.c.b16 %v3906, %v3902
  %v5143 = vpack.c.b16 %v3911, %v3907
  %v5144 = vpack.c.b16 %v3912, %v3908
  %v5145 = vpack.c.b16 %v3913, %v3909
  %v5146 = vpack.c.b16 %v3914, %v3910
  %v5147 = vpack.c.b16 %v3919, %v3915
  %v5148 = vpack.c.b16 %v3920, %v3916
  %v5149 = vpack.c.b16 %v3921, %v3917
  %v5150 = vpack.c.b16 %v3922, %v3918
  %v5151 = vpack.c.b16 %v3927, %v3923
  %v5152 = vpack.c.b16 %v3928, %v3924
  %v5153 = vpack.c.b16 %v3929, %v3925
  %v5154 = vpack.c.b16 %v3930, %v3926
  %v5155 = vpack.c.b16 %v3935, %v3931
  %v5156 = vpack.c.b16 %v3936, %v3932
  %v5157 = vpack.c.b16 %v3937, %v3933
  %v5158 = vpack.c.b16 %v3938, %v3934
  %v5159 = vpack.c.b16 %v3943, %v3939
  %v5160 = vpack.c.b16 %v3944, %v3940
  %v5161 = vpack.c.b16 %v3945, %v3941
  %v5162 = vpack.c.b16 %v3946, %v3942
  %v5163 = vpack.c.b16 %v3951, %v3947
  %v5164 = vpack.c.b16 %v3952, %v3948
  %v5165 = vpack.c.b16 %v3953, %v3949
  %v5166 = vpack.c.b16 %v3954, %v3950
  %v5167 = vpack.c.b16 %v3959, %v3955
  %v5168 = vpack.c.b16 %v3960, %v3956
  %v5169 = vpack.c.b16 %v3961, %v3957
  %v5170 = vpack.c.b16 %v3962, %v3958
  %v5171 = vpack.c.b16 %v3967, %v3963
  %v5172 = vpack.c.b16 %v3968, %v3964
  %v5173 = vpack.c.b16 %v3969, %v3965
  %v5174 = vpack.c.b16 %v3970, %v3966
  %v5175 = vpack.c.b16 %v3975, %v3971
  %v5176 = vpack.c.b16 %v3976, %v3972
  %v5177 = vpack.c.b16 %v3977, %v3973
  %v5178 = vpack.c.b16 %v3978, %v3974
  %v5179 = vpack.c.b16 %v3983, %v3979
  %v5180 = vpack.c.b16 %v3984, %v3980
  %v5181 = vpack.c.b16 %v3985, %v3981
  %v5182 = vpack.c.b16 %v3986, %v3982
  %v5183 = vpack.c.b16 %v3991, %v3987
  %v5184 = vpack.c.b16 %v3992, %v3988
  %v5185 = vpack.c.b16 %v3993, %v3989
  %v5186 = vpack.c.b16 %v3994, %v3990
  %v5187 = vpack.c.b16 %v3999, %v3995
  %v5188 = vpack.c.b16 %v4000, %v3996
  %v5189 = vpack.c.b16 %v4001, %v3997
  %v5190 = vpack.c.b16 %v4002, %v3998
  %v5191 = vpack.c.b16 %v4007, %v4003
  %v5192 = vpack.c.b16 %v4008, %v4004
  %v5193 = vpack.c.b16 %v4009, %v4005
  %v5194 = vpack.c.b16 %v4010, %v4006
  %v5195 = vpack.c.b16 %v4015, %v4011
  %v5196 = vpack.c.b16 %v4016, %v4012
  %v5197 = vpack.c.b16 %v4017, %v4013
  %v5198 = vpack.c.b16 %v4018, %v4014
  %v5199 = vpack.c.b16 %v4023, %v4019
  %v5200 = vpack.c.b16 %v4024, %v4020
  %v5201 = vpack.c.b16 %v4025, %v4021
  %v5202 = vpack.c.b16 %v4026, %v4022
  %v5203 = vpack.c.b16 %v4031, %v4027
  %v5204 = vpack.c.b16 %v4032, %v4028
  %v5205 = vpack.c.b16 %v4033, %v4029
  %v5206 = vpack.c.b16 %v4034, %v4030
  %v5207 = vpack.c.b16 %v4039, %v4035
  %v5208 = vpack.c.b16 %v4040, %v4036
  %v5209 = vpack.c.b16 %v4041, %v4037
  %v5210 = vpack.c.b16 %v4042, %v4038
  %v5211 = vpack.c.b16 %v4047, %v4043
  %v5212 = vpack.c.b16 %v4048, %v4044
  %v5213 = vpack.c.b16 %v4049, %v4045
  %v5214 = vpack.c.b16 %v4050, %v4046
  %v5215 = vpack.c.b16 %v4055, %v4051
  %v5216 = vpack.c.b16 %v4056, %v4052
  %v5217 = vpack.c.b16 %v4057, %v4053
  %v5218 = vpack.c.b16 %v4058, %v4054
  %v5219 = vpack.c.b16 %v4063, %v4059
  %v5220 = vpack.c.b16 %v4064, %v4060
  %v5221 = vpack.c.b16 %v4065, %v4061
  %v5222 = vpack.c.b16 %v4066, %v4062
  %v5223 = vpack.c.b16 %v4071, %v4067
  %v5224 = vpack.c.b16 %v4072, %v4068
  %v5225 = vpack.c.b16 %v4073, %v4069
  %v5226 = vpack.c.b16 %v4074, %v4070
  %v5227 = vpack.c.b16 %v4079, %v4075
  %v5228 = vpack.c.b16 %v4080, %v4076
  %v5229 = vpack.c.b16 %v4081, %v4077
  %v5230 = vpack.c.b16 %v4082, %v4078
  %v5231 = vpack.c.b16 %v4087, %v4083
  %v5232 = vpack.c.b16 %v4088, %v4084
  %v5233 = vpack.c.b16 %v4089, %v4085
  %v5234 = vpack.c.b16 %v4090, %v4086
  %v5235 = vpack.c.b16 %v4095, %v4091
  %v5236 = vpack.c.b16 %v4096, %v4092
  %v5237 = vpack.c.b16 %v4097, %v4093
  %v5238 = vpack.c.b16 %v4098, %v4094
  %v5239 = vpack.c.b16 %v4103, %v4099
  %v5240 = vpack.c.b16 %v4104, %v4100
  %v5241 = vpack.c.b16 %v4105, %v4101
  %v5242 = vpack.c.b16 %v4106, %v4102
  %v5243 = vpack.c.b16 %v4111, %v4107
  %v5244 = vpack.c.b16 %v4112, %v4108
  %v5245 = vpack.c.b16 %v4113, %v4109
  %v5246 = vpack.c.b16 %v4114, %v4110
  %v5247 = vpack.c.b16 %v4119, %v4115
  %v5248 = vpack.c.b16 %v4120, %v4116
  %v5249 = vpack.c.b16 %v4121, %v4117
  %v5250 = vpack.c.b16 %v4122, %v4118
  %v5251 = vpack.c.b16 %v4127, %v4123
  %v5252 = vpack.c.b16 %v4128, %v4124
  %v5253 = vpack.c.b16 %v4129, %v4125
  %v5254 = vpack.c.b16 %v4130, %v4126
  %v5255 = vpack.c.b16 %v4135, %v4131
  %v5256 = vpack.c.b16 %v4136, %v4132
  %v5257 = vpack.c.b16 %v4137, %v4133
  %v5258 = vpack.c.b16 %v4138, %v4134
  %v5259 = vpack.c.b16 %v4143, %v4139
  %v5260 = vpack.c.b16 %v4144, %v4140
  %v5261 = vpack.c.b16 %v4145, %v4141
  %v5262 = vpack.c.b16 %v4146, %v4142
  %v5263 = vpack.c.b16 %v4151, %v4147
  %v5264 = vpack.c.b16 %v4152, %v4148
  %v5265 = vpack.c.b16 %v4153, %v4149
  %v5266 = vpack.c.b16 %v4154, %v4150
  %v5267 = vpack.c.b16 %v4159, %v4155
  %v5268 = vpack.c.b16 %v4160, %v4156
  %v5269 = vpack.c.b16 %v4161, %v4157
  %v5270 = vpack.c.b16 %v4162, %v4158
  %v5271 = vpack.c.b16 %v4167, %v4163
  %v5272 = vpack.c.b16 %v4168, %v4164
  %v5273 = vpack.c.b16 %v4169, %v4165
  %v5274 = vpack.c.b16 %v4170, %v4166
  %v5275 = vpack.c.b16 %v4175, %v4171
  %v5276 = vpack.c.b16 %v4176, %v4172
  %v5277 = vpack.c.b16 %v4177, %v4173
  %v5278 = vpack.c.b16 %v4178, %v4174
  %v5279 = vpack.c.b16 %v4183, %v4179
  %v5280 = vpack.c.b16 %v4184, %v4180
  %v5281 = vpack.c.b16 %v4185, %v4181
  %v5282 = vpack.c.b16 %v4186, %v4182
  %v5283 = vpack.c.b16 %v4191, %v4187
  %v5284 = vpack.c.b16 %v4192, %v4188
  %v5285 = vpack.c.b16 %v4193, %v4189
  %v5286 = vpack.c.b16 %v4194, %v4190
  %v5287 = vpack.c.b16 %v4199, %v4195
  %v5288 = vpack.c.b16 %v4200, %v4196
  %v5289 = vpack.c.b16 %v4201, %v4197
  %v5290 = vpack.c.b16 %v4202, %v4198
  %v5291 = vpack.c.b16 %v4207, %v4203
  %v5292 = vpack.c.b16 %v4208, %v4204
  %v5293 = vpack.c.b16 %v4209, %v4205
  %v5294 = vpack.c.b16 %v4210, %v4206
  %v5295 = vpack.c.b16 %v4215, %v4211
  %v5296 = vpack.c.b16 %v4216, %v4212
  %v5297 = vpack.c.b16 %v4217, %v4213
  %v5298 = vpack.c.b16 %v4218, %v4214
  %v5299 = vpack.c.b16 %v4223, %v4219
  %v5300 = vpack.c.b16 %v4224, %v4220
  %v5301 = vpack.c.b16 %v4225, %v4221
  %v5302 = vpack.c.b16 %v4226, %v4222
  %v5303 = vpack.c.b16 %v4231, %v4227
  %v5304 = vpack.c.b16 %v4232, %v4228
  %v5305 = vpack.c.b16 %v4233, %v4229
  %v5306 = vpack.c.b16 %v4234, %v4230
  %v5307 = vpack.c.b16 %v4239, %v4235
  %v5308 = vpack.c.b16 %v4240, %v4236
  %v5309 = vpack.c.b16 %v4241, %v4237
  %v5310 = vpack.c.b16 %v4242, %v4238
  %v5311 = vpack.c.b16 %v4247, %v4243
  %v5312 = vpack.c.b16 %v4248, %v4244
  %v5313 = vpack.c.b16 %v4249, %v4245
  %v5314 = vpack.c.b16 %v4250, %v4246
  %v5315 = vpack.c.b16 %v4255, %v4251
  %v5316 = vpack.c.b16 %v4256, %v4252
  %v5317 = vpack.c.b16 %v4257, %v4253
  %v5318 = vpack.c.b16 %v4258, %v4254
  %v5319 = vpack.c.b16 %v4263, %v4259
  %v5320 = vpack.c.b16 %v4264, %v4260
  %v5321 = vpack.c.b16 %v4265, %v4261
  %v5322 = vpack.c.b16 %v4266, %v4262
  %v5323 = vpack.c.b16 %v4271, %v4267
  %v5324 = vpack.c.b16 %v4272, %v4268
  %v5325 = vpack.c.b16 %v4273, %v4269
  %v5326 = vpack.c.b16 %v4274, %v4270
  %v5327 = vpack.c.b16 %v4279, %v4275
  %v5328 = vpack.c.b16 %v4280, %v4276
  %v5329 = vpack.c.b16 %v4281, %v4277
  %v5330 = vpack.c.b16 %v4282, %v4278
  %v5331 = vpack.c.b16 %v4287, %v4283
  %v5332 = vpack.c.b16 %v4288, %v4284
  %v5333 = vpack.c.b16 %v4289, %v4285
  %v5334 = vpack.c.b16 %v4290, %v4286
  %v5335 = vpack.c.b16 %v4295, %v4291
  %v5336 = vpack.c.b16 %v4296, %v4292
  %v5337 = vpack.c.b16 %v4297, %v4293
  %v5338 = vpack.c.b16 %v4298, %v4294
  %v5339 = vpack.c.b16 %v4303, %v4299
  %v5340 = vpack.c.b16 %v4304, %v4300
  %v5341 = vpack.c.b16 %v4305, %v4301
  %v5342 = vpack.c.b16 %v4306, %v4302
  %v5343 = vpack.c.b16 %v4311, %v4307
  %v5344 = vpack.c.b16 %v4312, %v4308
  %v5345 = vpack.c.b16 %v4313, %v4309
  %v5346 = vpack.c.b16 %v4314, %v4310
  %v5347 = vpack.c.b16 %v4319, %v4315
  %v5348 = vpack.c.b16 %v4320, %v4316
  %v5349 = vpack.c.b16 %v4321, %v4317
  %v5350 = vpack.c.b16 %v4322, %v4318
  %v5351 = vpack.c.b16 %v4327, %v4323
  %v5352 = vpack.c.b16 %v4328, %v4324
  %v5353 = vpack.c.b16 %v4329, %v4325
  %v5354 = vpack.c.b16 %v4330, %v4326
  %6379 = vmatprep.subr.bf16.mxu0 %v4360
  %6380 = vmatpush1.bf16.msra.mxu0 %v4359
  %6381 = vmatprep.subr.bf16.mxu0 %v4356
  %6382 = vmatpush1.bf16.msra.mxu0 %v4355
  %6383 = vmatprep.subr.bf16.mxu0 %v4352
  %6384 = vmatpush1.bf16.msra.mxu0 %v4351
  %6385 = vmatprep.subr.bf16.mxu0 %v4348
  %6386 = vmatpush1.bf16.msra.mxu0 %v4347
  %6387 = vmatprep.subr.bf16.mxu0 %v4344
  %6388 = vmatpush1.bf16.msra.mxu0 %v4343
  %6389 = vmatprep.subr.bf16.mxu0 %v4340
  %6390 = vmatpush1.bf16.msra.mxu0 %v4339
  %6391 = vmatprep.subr.bf16.mxu0 %v4336
  %6392 = vmatpush1.bf16.msra.mxu0 %v4335
  %6393 = vmatprep.subr.bf16.mxu0 %v4332
  %6394 = vmatpush1.bf16.msra.mxu0 %v4331
  %6395 = vmatprep.subr.bf16.mxu0 %v4392
  %6396 = vmatpush2.bf16.msra.mxu0 %v4391
  %6397 = vmatprep.subr.bf16.mxu0 %v4388
  %6398 = vmatpush2.bf16.msra.mxu0 %v4387
  %6399 = vmatprep.subr.bf16.mxu0 %v4384
  %6400 = vmatpush2.bf16.msra.mxu0 %v4383
  %6401 = vmatprep.subr.bf16.mxu0 %v4380
  %6402 = vmatpush2.bf16.msra.mxu0 %v4379
  %6403 = vmatprep.subr.bf16.mxu0 %v4376
  %6404 = vmatpush2.bf16.msra.mxu0 %v4375
  %6405 = vmatprep.subr.bf16.mxu0 %v4372
  %6406 = vmatpush2.bf16.msra.mxu0 %v4371
  %6407 = vmatprep.subr.bf16.mxu0 %v4368
  %6408 = vmatpush2.bf16.msra.mxu0 %v4367
  %6409 = vmatprep.subr.bf16.mxu0 %v4364
  %6410 = vmatpush2.bf16.msra.mxu0 %v4363
  %6411 = vmatprep.mubr.bf16.mxu0 %v1196
  %6412 = vmatmul.mubr.bf16.gmra.mxu0 %v1195
  %v6413 = vpop.f32.mrf.mxu0
  %v6414 = vadd.f32 %v1082, %v6413
  %v6415 = vpop.f32.mrf.mxu0
  %v6416 = vadd.f32 %v1086, %v6415
  %v6417 = vpop.f32.mrf.mxu0
  %v6418 = vadd.f32 %v1082, %v6417
  %v6419 = vpop.f32.mrf.mxu0
  %v6420 = vadd.f32 %v1086, %v6419
  %6421 = vdwg.mxu0
  %6422 = vmatprep.subr.bf16.mxu0 %v4424
  %6423 = vmatpush1.bf16.msra.mxu0 %v4423
  %6424 = vmatprep.subr.bf16.mxu0 %v4420
  %6425 = vmatpush1.bf16.msra.mxu0 %v4419
  %6426 = vmatprep.subr.bf16.mxu0 %v4416
  %6427 = vmatpush1.bf16.msra.mxu0 %v4415
  %6428 = vmatprep.subr.bf16.mxu0 %v4412
  %6429 = vmatpush1.bf16.msra.mxu0 %v4411
  %6430 = vmatprep.subr.bf16.mxu0 %v4408
  %6431 = vmatpush1.bf16.msra.mxu0 %v4407
  %6432 = vmatprep.subr.bf16.mxu0 %v4404
  %6433 = vmatpush1.bf16.msra.mxu0 %v4403
  %6434 = vmatprep.subr.bf16.mxu0 %v4400
  %6435 = vmatpush1.bf16.msra.mxu0 %v4399
  %6436 = vmatprep.subr.bf16.mxu0 %v4396
  %6437 = vmatpush1.bf16.msra.mxu0 %v4395
  %6438 = vmatprep.subr.bf16.mxu0 %v4456
  %6439 = vmatpush2.bf16.msra.mxu0 %v4455
  %6440 = vmatprep.subr.bf16.mxu0 %v4452
  %6441 = vmatpush2.bf16.msra.mxu0 %v4451
  %6442 = vmatprep.subr.bf16.mxu0 %v4448
  %6443 = vmatpush2.bf16.msra.mxu0 %v4447
  %6444 = vmatprep.subr.bf16.mxu0 %v4444
  %6445 = vmatpush2.bf16.msra.mxu0 %v4443
  %6446 = vmatprep.subr.bf16.mxu0 %v4440
  %6447 = vmatpush2.bf16.msra.mxu0 %v4439
  %6448 = vmatprep.subr.bf16.mxu0 %v4436
  %6449 = vmatpush2.bf16.msra.mxu0 %v4435
  %6450 = vmatprep.subr.bf16.mxu0 %v4432
  %6451 = vmatpush2.bf16.msra.mxu0 %v4431
  %6452 = vmatprep.subr.bf16.mxu0 %v4428
  %6453 = vmatpush2.bf16.msra.mxu0 %v4427
  %6454 = vmatprep.mubr.bf16.mxu0 %v1198
  %6455 = vmatmul.mubr.bf16.gmra.mxu0 %v1197
  %v6456 = vpop.f32.mrf.mxu0
  %v6457 = vadd.f32 %v6414, %v6456
  %v6458 = vpop.f32.mrf.mxu0
  %v6459 = vadd.f32 %v6416, %v6458
  %v6460 = vpop.f32.mrf.mxu0
  %v6461 = vadd.f32 %v6418, %v6460
  %v6462 = vpop.f32.mrf.mxu0
  %v6463 = vadd.f32 %v6420, %v6462
  %6464 = vdwg.mxu0
  %6465 = vmatprep.subr.bf16.mxu0 %v4488
  %6466 = vmatpush1.bf16.msra.mxu0 %v4487
  %6467 = vmatprep.subr.bf16.mxu0 %v4484
  %6468 = vmatpush1.bf16.msra.mxu0 %v4483
  %6469 = vmatprep.subr.bf16.mxu0 %v4480
  %6470 = vmatpush1.bf16.msra.mxu0 %v4479
  %6471 = vmatprep.subr.bf16.mxu0 %v4476
  %6472 = vmatpush1.bf16.msra.mxu0 %v4475
  %6473 = vmatprep.subr.bf16.mxu0 %v4472
  %6474 = vmatpush1.bf16.msra.mxu0 %v4471
  %6475 = vmatprep.subr.bf16.mxu0 %v4468
  %6476 = vmatpush1.bf16.msra.mxu0 %v4467
  %6477 = vmatprep.subr.bf16.mxu0 %v4464
  %6478 = vmatpush1.bf16.msra.mxu0 %v4463
  %6479 = vmatprep.subr.bf16.mxu0 %v4460
  %6480 = vmatpush1.bf16.msra.mxu0 %v4459
  %6481 = vmatprep.subr.bf16.mxu0 %v4520
  %6482 = vmatpush2.bf16.msra.mxu0 %v4519
  %6483 = vmatprep.subr.bf16.mxu0 %v4516
  %6484 = vmatpush2.bf16.msra.mxu0 %v4515
  %6485 = vmatprep.subr.bf16.mxu0 %v4512
  %6486 = vmatpush2.bf16.msra.mxu0 %v4511
  %6487 = vmatprep.subr.bf16.mxu0 %v4508
  %6488 = vmatpush2.bf16.msra.mxu0 %v4507
  %6489 = vmatprep.subr.bf16.mxu0 %v4504
  %6490 = vmatpush2.bf16.msra.mxu0 %v4503
  %6491 = vmatprep.subr.bf16.mxu0 %v4500
  %6492 = vmatpush2.bf16.msra.mxu0 %v4499
  %6493 = vmatprep.subr.bf16.mxu0 %v4496
  %6494 = vmatpush2.bf16.msra.mxu0 %v4495
  %6495 = vmatprep.subr.bf16.mxu0 %v4492
  %6496 = vmatpush2.bf16.msra.mxu0 %v4491
  %6497 = vmatprep.mubr.bf16.mxu0 %v1200
  %6498 = vmatmul.mubr.bf16.gmra.mxu0 %v1199
  %v6499 = vpop.f32.mrf.mxu0
  %v6500 = vadd.f32 %v6457, %v6499
  %v6501 = vpop.f32.mrf.mxu0
  %v6502 = vadd.f32 %v6459, %v6501
  %v6503 = vpop.f32.mrf.mxu0
  %v6504 = vadd.f32 %v6461, %v6503
  %v6505 = vpop.f32.mrf.mxu0
  %v6506 = vadd.f32 %v6463, %v6505
  %6507 = vdwg.mxu0
  %6508 = vmatprep.subr.bf16.mxu0 %v4552
  %6509 = vmatpush1.bf16.msra.mxu0 %v4551
  %6510 = vmatprep.subr.bf16.mxu0 %v4548
  %6511 = vmatpush1.bf16.msra.mxu0 %v4547
  %6512 = vmatprep.subr.bf16.mxu0 %v4544
  %6513 = vmatpush1.bf16.msra.mxu0 %v4543
  %6514 = vmatprep.subr.bf16.mxu0 %v4540
  %6515 = vmatpush1.bf16.msra.mxu0 %v4539
  %6516 = vmatprep.subr.bf16.mxu0 %v4536
  %6517 = vmatpush1.bf16.msra.mxu0 %v4535
  %6518 = vmatprep.subr.bf16.mxu0 %v4532
  %6519 = vmatpush1.bf16.msra.mxu0 %v4531
  %6520 = vmatprep.subr.bf16.mxu0 %v4528
  %6521 = vmatpush1.bf16.msra.mxu0 %v4527
  %6522 = vmatprep.subr.bf16.mxu0 %v4524
  %6523 = vmatpush1.bf16.msra.mxu0 %v4523
  %6524 = vmatprep.subr.bf16.mxu0 %v4584
  %6525 = vmatpush2.bf16.msra.mxu0 %v4583
  %6526 = vmatprep.subr.bf16.mxu0 %v4580
  %6527 = vmatpush2.bf16.msra.mxu0 %v4579
  %6528 = vmatprep.subr.bf16.mxu0 %v4576
  %6529 = vmatpush2.bf16.msra.mxu0 %v4575
  %6530 = vmatprep.subr.bf16.mxu0 %v4572
  %6531 = vmatpush2.bf16.msra.mxu0 %v4571
  %6532 = vmatprep.subr.bf16.mxu0 %v4568
  %6533 = vmatpush2.bf16.msra.mxu0 %v4567
  %6534 = vmatprep.subr.bf16.mxu0 %v4564
  %6535 = vmatpush2.bf16.msra.mxu0 %v4563
  %6536 = vmatprep.subr.bf16.mxu0 %v4560
  %6537 = vmatpush2.bf16.msra.mxu0 %v4559
  %6538 = vmatprep.subr.bf16.mxu0 %v4556
  %6539 = vmatpush2.bf16.msra.mxu0 %v4555
  %6540 = vmatprep.mubr.bf16.mxu0 %v1202
  %6541 = vmatmul.mubr.bf16.gmra.mxu0 %v1201
  %v6542 = vpop.f32.mrf.mxu0
  %v6543 = vadd.f32 %v6500, %v6542
  %v6544 = vpop.f32.mrf.mxu0
  %v6545 = vadd.f32 %v6502, %v6544
  %v6546 = vpop.f32.mrf.mxu0
  %v6547 = vadd.f32 %v6504, %v6546
  %v6548 = vpop.f32.mrf.mxu0
  %v6549 = vadd.f32 %v6506, %v6548
  %6550 = vdwg.mxu0
  %6551 = vmatprep.subr.bf16.mxu0 %v4616
  %6552 = vmatpush1.bf16.msra.mxu0 %v4615
  %6553 = vmatprep.subr.bf16.mxu0 %v4612
  %6554 = vmatpush1.bf16.msra.mxu0 %v4611
  %6555 = vmatprep.subr.bf16.mxu0 %v4608
  %6556 = vmatpush1.bf16.msra.mxu0 %v4607
  %6557 = vmatprep.subr.bf16.mxu0 %v4604
  %6558 = vmatpush1.bf16.msra.mxu0 %v4603
  %6559 = vmatprep.subr.bf16.mxu0 %v4600
  %6560 = vmatpush1.bf16.msra.mxu0 %v4599
  %6561 = vmatprep.subr.bf16.mxu0 %v4596
  %6562 = vmatpush1.bf16.msra.mxu0 %v4595
  %6563 = vmatprep.subr.bf16.mxu0 %v4592
  %6564 = vmatpush1.bf16.msra.mxu0 %v4591
  %6565 = vmatprep.subr.bf16.mxu0 %v4588
  %6566 = vmatpush1.bf16.msra.mxu0 %v4587
  %6567 = vmatprep.subr.bf16.mxu0 %v4648
  %6568 = vmatpush2.bf16.msra.mxu0 %v4647
  %6569 = vmatprep.subr.bf16.mxu0 %v4644
  %6570 = vmatpush2.bf16.msra.mxu0 %v4643
  %6571 = vmatprep.subr.bf16.mxu0 %v4640
  %6572 = vmatpush2.bf16.msra.mxu0 %v4639
  %6573 = vmatprep.subr.bf16.mxu0 %v4636
  %6574 = vmatpush2.bf16.msra.mxu0 %v4635
  %6575 = vmatprep.subr.bf16.mxu0 %v4632
  %6576 = vmatpush2.bf16.msra.mxu0 %v4631
  %6577 = vmatprep.subr.bf16.mxu0 %v4628
  %6578 = vmatpush2.bf16.msra.mxu0 %v4627
  %6579 = vmatprep.subr.bf16.mxu0 %v4624
  %6580 = vmatpush2.bf16.msra.mxu0 %v4623
  %6581 = vmatprep.subr.bf16.mxu0 %v4620
  %6582 = vmatpush2.bf16.msra.mxu0 %v4619
  %6583 = vmatprep.mubr.bf16.mxu0 %v1204
  %6584 = vmatmul.mubr.bf16.gmra.mxu0 %v1203
  %v6585 = vpop.f32.mrf.mxu0
  %v6586 = vadd.f32 %v6543, %v6585
  %v6587 = vpop.f32.mrf.mxu0
  %v6588 = vadd.f32 %v6545, %v6587
  %v6589 = vpop.f32.mrf.mxu0
  %v6590 = vadd.f32 %v6547, %v6589
  %v6591 = vpop.f32.mrf.mxu0
  %v6592 = vadd.f32 %v6549, %v6591
  %6593 = vdwg.mxu0
  %6594 = vmatprep.subr.bf16.mxu0 %v4680
  %6595 = vmatpush1.bf16.msra.mxu0 %v4679
  %6596 = vmatprep.subr.bf16.mxu0 %v4676
  %6597 = vmatpush1.bf16.msra.mxu0 %v4675
  %6598 = vmatprep.subr.bf16.mxu0 %v4672
  %6599 = vmatpush1.bf16.msra.mxu0 %v4671
  %6600 = vmatprep.subr.bf16.mxu0 %v4668
  %6601 = vmatpush1.bf16.msra.mxu0 %v4667
  %6602 = vmatprep.subr.bf16.mxu0 %v4664
  %6603 = vmatpush1.bf16.msra.mxu0 %v4663
  %6604 = vmatprep.subr.bf16.mxu0 %v4660
  %6605 = vmatpush1.bf16.msra.mxu0 %v4659
  %6606 = vmatprep.subr.bf16.mxu0 %v4656
  %6607 = vmatpush1.bf16.msra.mxu0 %v4655
  %6608 = vmatprep.subr.bf16.mxu0 %v4652
  %6609 = vmatpush1.bf16.msra.mxu0 %v4651
  %6610 = vmatprep.subr.bf16.mxu0 %v4712
  %6611 = vmatpush2.bf16.msra.mxu0 %v4711
  %6612 = vmatprep.subr.bf16.mxu0 %v4708
  %6613 = vmatpush2.bf16.msra.mxu0 %v4707
  %6614 = vmatprep.subr.bf16.mxu0 %v4704
  %6615 = vmatpush2.bf16.msra.mxu0 %v4703
  %6616 = vmatprep.subr.bf16.mxu0 %v4700
  %6617 = vmatpush2.bf16.msra.mxu0 %v4699
  %6618 = vmatprep.subr.bf16.mxu0 %v4696
  %6619 = vmatpush2.bf16.msra.mxu0 %v4695
  %6620 = vmatprep.subr.bf16.mxu0 %v4692
  %6621 = vmatpush2.bf16.msra.mxu0 %v4691
  %6622 = vmatprep.subr.bf16.mxu0 %v4688
  %6623 = vmatpush2.bf16.msra.mxu0 %v4687
  %6624 = vmatprep.subr.bf16.mxu0 %v4684
  %6625 = vmatpush2.bf16.msra.mxu0 %v4683
  %6626 = vmatprep.mubr.bf16.mxu0 %v1206
  %6627 = vmatmul.mubr.bf16.gmra.mxu0 %v1205
  %v6628 = vpop.f32.mrf.mxu0
  %v6629 = vadd.f32 %v6586, %v6628
  %v6630 = vpop.f32.mrf.mxu0
  %v6631 = vadd.f32 %v6588, %v6630
  %v6632 = vpop.f32.mrf.mxu0
  %v6633 = vadd.f32 %v6590, %v6632
  %v6634 = vpop.f32.mrf.mxu0
  %v6635 = vadd.f32 %v6592, %v6634
  %6636 = vdwg.mxu0
  %6637 = vmatprep.subr.bf16.mxu0 %v4744
  %6638 = vmatpush1.bf16.msra.mxu0 %v4743
  %6639 = vmatprep.subr.bf16.mxu0 %v4740
  %6640 = vmatpush1.bf16.msra.mxu0 %v4739
  %6641 = vmatprep.subr.bf16.mxu0 %v4736
  %6642 = vmatpush1.bf16.msra.mxu0 %v4735
  %6643 = vmatprep.subr.bf16.mxu0 %v4732
  %6644 = vmatpush1.bf16.msra.mxu0 %v4731
  %6645 = vmatprep.subr.bf16.mxu0 %v4728
  %6646 = vmatpush1.bf16.msra.mxu0 %v4727
  %6647 = vmatprep.subr.bf16.mxu0 %v4724
  %6648 = vmatpush1.bf16.msra.mxu0 %v4723
  %6649 = vmatprep.subr.bf16.mxu0 %v4720
  %6650 = vmatpush1.bf16.msra.mxu0 %v4719
  %6651 = vmatprep.subr.bf16.mxu0 %v4716
  %6652 = vmatpush1.bf16.msra.mxu0 %v4715
  %6653 = vmatprep.subr.bf16.mxu0 %v4776
  %6654 = vmatpush2.bf16.msra.mxu0 %v4775
  %6655 = vmatprep.subr.bf16.mxu0 %v4772
  %6656 = vmatpush2.bf16.msra.mxu0 %v4771
  %6657 = vmatprep.subr.bf16.mxu0 %v4768
  %6658 = vmatpush2.bf16.msra.mxu0 %v4767
  %6659 = vmatprep.subr.bf16.mxu0 %v4764
  %6660 = vmatpush2.bf16.msra.mxu0 %v4763
  %6661 = vmatprep.subr.bf16.mxu0 %v4760
  %6662 = vmatpush2.bf16.msra.mxu0 %v4759
  %6663 = vmatprep.subr.bf16.mxu0 %v4756
  %6664 = vmatpush2.bf16.msra.mxu0 %v4755
  %6665 = vmatprep.subr.bf16.mxu0 %v4752
  %6666 = vmatpush2.bf16.msra.mxu0 %v4751
  %6667 = vmatprep.subr.bf16.mxu0 %v4748
  %6668 = vmatpush2.bf16.msra.mxu0 %v4747
  %6669 = vmatprep.mubr.bf16.mxu0 %v1208
  %6670 = vmatmul.mubr.bf16.gmra.mxu0 %v1207
  %v6671 = vpop.f32.mrf.mxu0
  %v6672 = vadd.f32 %v6629, %v6671
  %v6673 = vpop.f32.mrf.mxu0
  %v6674 = vadd.f32 %v6631, %v6673
  %v6675 = vpop.f32.mrf.mxu0
  %v6676 = vadd.f32 %v6633, %v6675
  %v6677 = vpop.f32.mrf.mxu0
  %v6678 = vadd.f32 %v6635, %v6677
  %6679 = vdwg.mxu0
  %6680 = vmatprep.subr.bf16.mxu0 %v4808
  %6681 = vmatpush1.bf16.msra.mxu0 %v4807
  %6682 = vmatprep.subr.bf16.mxu0 %v4804
  %6683 = vmatpush1.bf16.msra.mxu0 %v4803
  %6684 = vmatprep.subr.bf16.mxu0 %v4800
  %6685 = vmatpush1.bf16.msra.mxu0 %v4799
  %6686 = vmatprep.subr.bf16.mxu0 %v4796
  %6687 = vmatpush1.bf16.msra.mxu0 %v4795
  %6688 = vmatprep.subr.bf16.mxu0 %v4792
  %6689 = vmatpush1.bf16.msra.mxu0 %v4791
  %6690 = vmatprep.subr.bf16.mxu0 %v4788
  %6691 = vmatpush1.bf16.msra.mxu0 %v4787
  %6692 = vmatprep.subr.bf16.mxu0 %v4784
  %6693 = vmatpush1.bf16.msra.mxu0 %v4783
  %6694 = vmatprep.subr.bf16.mxu0 %v4780
  %6695 = vmatpush1.bf16.msra.mxu0 %v4779
  %6696 = vmatprep.subr.bf16.mxu0 %v4840
  %6697 = vmatpush2.bf16.msra.mxu0 %v4839
  %6698 = vmatprep.subr.bf16.mxu0 %v4836
  %6699 = vmatpush2.bf16.msra.mxu0 %v4835
  %6700 = vmatprep.subr.bf16.mxu0 %v4832
  %6701 = vmatpush2.bf16.msra.mxu0 %v4831
  %6702 = vmatprep.subr.bf16.mxu0 %v4828
  %6703 = vmatpush2.bf16.msra.mxu0 %v4827
  %6704 = vmatprep.subr.bf16.mxu0 %v4824
  %6705 = vmatpush2.bf16.msra.mxu0 %v4823
  %6706 = vmatprep.subr.bf16.mxu0 %v4820
  %6707 = vmatpush2.bf16.msra.mxu0 %v4819
  %6708 = vmatprep.subr.bf16.mxu0 %v4816
  %6709 = vmatpush2.bf16.msra.mxu0 %v4815
  %6710 = vmatprep.subr.bf16.mxu0 %v4812
  %6711 = vmatpush2.bf16.msra.mxu0 %v4811
  %6712 = vmatprep.mubr.bf16.mxu0 %v1210
  %6713 = vmatmul.mubr.bf16.gmra.mxu0 %v1209
  %v6714 = vpop.f32.mrf.mxu0
  %v6715 = vadd.f32 %v6672, %v6714
  %v6716 = vpop.f32.mrf.mxu0
  %v6717 = vadd.f32 %v6674, %v6716
  %v6718 = vpop.f32.mrf.mxu0
  %v6719 = vadd.f32 %v6676, %v6718
  %v6720 = vpop.f32.mrf.mxu0
  %v6721 = vadd.f32 %v6678, %v6720
  %6722 = vdwg.mxu0
  %6723 = vmatprep.subr.bf16.mxu0 %v4872
  %6724 = vmatpush1.bf16.msra.mxu0 %v4871
  %6725 = vmatprep.subr.bf16.mxu0 %v4868
  %6726 = vmatpush1.bf16.msra.mxu0 %v4867
  %6727 = vmatprep.subr.bf16.mxu0 %v4864
  %6728 = vmatpush1.bf16.msra.mxu0 %v4863
  %6729 = vmatprep.subr.bf16.mxu0 %v4860
  %6730 = vmatpush1.bf16.msra.mxu0 %v4859
  %6731 = vmatprep.subr.bf16.mxu0 %v4856
  %6732 = vmatpush1.bf16.msra.mxu0 %v4855
  %6733 = vmatprep.subr.bf16.mxu0 %v4852
  %6734 = vmatpush1.bf16.msra.mxu0 %v4851
  %6735 = vmatprep.subr.bf16.mxu0 %v4848
  %6736 = vmatpush1.bf16.msra.mxu0 %v4847
  %6737 = vmatprep.subr.bf16.mxu0 %v4844
  %6738 = vmatpush1.bf16.msra.mxu0 %v4843
  %6739 = vmatprep.subr.bf16.mxu0 %v4904
  %6740 = vmatpush2.bf16.msra.mxu0 %v4903
  %6741 = vmatprep.subr.bf16.mxu0 %v4900
  %6742 = vmatpush2.bf16.msra.mxu0 %v4899
  %6743 = vmatprep.subr.bf16.mxu0 %v4896
  %6744 = vmatpush2.bf16.msra.mxu0 %v4895
  %6745 = vmatprep.subr.bf16.mxu0 %v4892
  %6746 = vmatpush2.bf16.msra.mxu0 %v4891
  %6747 = vmatprep.subr.bf16.mxu0 %v4888
  %6748 = vmatpush2.bf16.msra.mxu0 %v4887
  %6749 = vmatprep.subr.bf16.mxu0 %v4884
  %6750 = vmatpush2.bf16.msra.mxu0 %v4883
  %6751 = vmatprep.subr.bf16.mxu0 %v4880
  %6752 = vmatpush2.bf16.msra.mxu0 %v4879
  %6753 = vmatprep.subr.bf16.mxu0 %v4876
  %6754 = vmatpush2.bf16.msra.mxu0 %v4875
  %6755 = vmatprep.mubr.bf16.mxu0 %v1212
  %6756 = vmatmul.mubr.bf16.gmra.mxu0 %v1211
  %v6757 = vpop.f32.mrf.mxu0
  %v6758 = vadd.f32 %v6715, %v6757
  %v6759 = vpop.f32.mrf.mxu0
  %v6760 = vadd.f32 %v6717, %v6759
  %v6761 = vpop.f32.mrf.mxu0
  %v6762 = vadd.f32 %v6719, %v6761
  %v6763 = vpop.f32.mrf.mxu0
  %v6764 = vadd.f32 %v6721, %v6763
  %6765 = vdwg.mxu0
  %6766 = vmatprep.subr.bf16.mxu0 %v4936
  %6767 = vmatpush1.bf16.msra.mxu0 %v4935
  %6768 = vmatprep.subr.bf16.mxu0 %v4932
  %6769 = vmatpush1.bf16.msra.mxu0 %v4931
  %6770 = vmatprep.subr.bf16.mxu0 %v4928
  %6771 = vmatpush1.bf16.msra.mxu0 %v4927
  %6772 = vmatprep.subr.bf16.mxu0 %v4924
  %6773 = vmatpush1.bf16.msra.mxu0 %v4923
  %6774 = vmatprep.subr.bf16.mxu0 %v4920
  %6775 = vmatpush1.bf16.msra.mxu0 %v4919
  %6776 = vmatprep.subr.bf16.mxu0 %v4916
  %6777 = vmatpush1.bf16.msra.mxu0 %v4915
  %6778 = vmatprep.subr.bf16.mxu0 %v4912
  %6779 = vmatpush1.bf16.msra.mxu0 %v4911
  %6780 = vmatprep.subr.bf16.mxu0 %v4908
  %6781 = vmatpush1.bf16.msra.mxu0 %v4907
  %6782 = vmatprep.subr.bf16.mxu0 %v4968
  %6783 = vmatpush2.bf16.msra.mxu0 %v4967
  %6784 = vmatprep.subr.bf16.mxu0 %v4964
  %6785 = vmatpush2.bf16.msra.mxu0 %v4963
  %6786 = vmatprep.subr.bf16.mxu0 %v4960
  %6787 = vmatpush2.bf16.msra.mxu0 %v4959
  %6788 = vmatprep.subr.bf16.mxu0 %v4956
  %6789 = vmatpush2.bf16.msra.mxu0 %v4955
  %6790 = vmatprep.subr.bf16.mxu0 %v4952
  %6791 = vmatpush2.bf16.msra.mxu0 %v4951
  %6792 = vmatprep.subr.bf16.mxu0 %v4948
  %6793 = vmatpush2.bf16.msra.mxu0 %v4947
  %6794 = vmatprep.subr.bf16.mxu0 %v4944
  %6795 = vmatpush2.bf16.msra.mxu0 %v4943
  %6796 = vmatprep.subr.bf16.mxu0 %v4940
  %6797 = vmatpush2.bf16.msra.mxu0 %v4939
  %6798 = vmatprep.mubr.bf16.mxu0 %v1214
  %6799 = vmatmul.mubr.bf16.gmra.mxu0 %v1213
  %v6800 = vpop.f32.mrf.mxu0
  %v6801 = vadd.f32 %v6758, %v6800
  %v6802 = vpop.f32.mrf.mxu0
  %v6803 = vadd.f32 %v6760, %v6802
  %v6804 = vpop.f32.mrf.mxu0
  %v6805 = vadd.f32 %v6762, %v6804
  %v6806 = vpop.f32.mrf.mxu0
  %v6807 = vadd.f32 %v6764, %v6806
  %6808 = vdwg.mxu0
  %6809 = vmatprep.subr.bf16.mxu0 %v5000
  %6810 = vmatpush1.bf16.msra.mxu0 %v4999
  %6811 = vmatprep.subr.bf16.mxu0 %v4996
  %6812 = vmatpush1.bf16.msra.mxu0 %v4995
  %6813 = vmatprep.subr.bf16.mxu0 %v4992
  %6814 = vmatpush1.bf16.msra.mxu0 %v4991
  %6815 = vmatprep.subr.bf16.mxu0 %v4988
  %6816 = vmatpush1.bf16.msra.mxu0 %v4987
  %6817 = vmatprep.subr.bf16.mxu0 %v4984
  %6818 = vmatpush1.bf16.msra.mxu0 %v4983
  %6819 = vmatprep.subr.bf16.mxu0 %v4980
  %6820 = vmatpush1.bf16.msra.mxu0 %v4979
  %6821 = vmatprep.subr.bf16.mxu0 %v4976
  %6822 = vmatpush1.bf16.msra.mxu0 %v4975
  %6823 = vmatprep.subr.bf16.mxu0 %v4972
  %6824 = vmatpush1.bf16.msra.mxu0 %v4971
  %6825 = vmatprep.subr.bf16.mxu0 %v5032
  %6826 = vmatpush2.bf16.msra.mxu0 %v5031
  %6827 = vmatprep.subr.bf16.mxu0 %v5028
  %6828 = vmatpush2.bf16.msra.mxu0 %v5027
  %6829 = vmatprep.subr.bf16.mxu0 %v5024
  %6830 = vmatpush2.bf16.msra.mxu0 %v5023
  %6831 = vmatprep.subr.bf16.mxu0 %v5020
  %6832 = vmatpush2.bf16.msra.mxu0 %v5019
  %6833 = vmatprep.subr.bf16.mxu0 %v5016
  %6834 = vmatpush2.bf16.msra.mxu0 %v5015
  %6835 = vmatprep.subr.bf16.mxu0 %v5012
  %6836 = vmatpush2.bf16.msra.mxu0 %v5011
  %6837 = vmatprep.subr.bf16.mxu0 %v5008
  %6838 = vmatpush2.bf16.msra.mxu0 %v5007
  %6839 = vmatprep.subr.bf16.mxu0 %v5004
  %6840 = vmatpush2.bf16.msra.mxu0 %v5003
  %6841 = vmatprep.mubr.bf16.mxu0 %v1216
  %6842 = vmatmul.mubr.bf16.gmra.mxu0 %v1215
  %v6843 = vpop.f32.mrf.mxu0
  %v6844 = vadd.f32 %v6801, %v6843
  %v6845 = vpop.f32.mrf.mxu0
  %v6846 = vadd.f32 %v6803, %v6845
  %v6847 = vpop.f32.mrf.mxu0
  %v6848 = vadd.f32 %v6805, %v6847
  %v6849 = vpop.f32.mrf.mxu0
  %v6850 = vadd.f32 %v6807, %v6849
  %6851 = vdwg.mxu0
  %6852 = vmatprep.subr.bf16.mxu0 %v5064
  %6853 = vmatpush1.bf16.msra.mxu0 %v5063
  %6854 = vmatprep.subr.bf16.mxu0 %v5060
  %6855 = vmatpush1.bf16.msra.mxu0 %v5059
  %6856 = vmatprep.subr.bf16.mxu0 %v5056
  %6857 = vmatpush1.bf16.msra.mxu0 %v5055
  %6858 = vmatprep.subr.bf16.mxu0 %v5052
  %6859 = vmatpush1.bf16.msra.mxu0 %v5051
  %6860 = vmatprep.subr.bf16.mxu0 %v5048
  %6861 = vmatpush1.bf16.msra.mxu0 %v5047
  %6862 = vmatprep.subr.bf16.mxu0 %v5044
  %6863 = vmatpush1.bf16.msra.mxu0 %v5043
  %6864 = vmatprep.subr.bf16.mxu0 %v5040
  %6865 = vmatpush1.bf16.msra.mxu0 %v5039
  %6866 = vmatprep.subr.bf16.mxu0 %v5036
  %6867 = vmatpush1.bf16.msra.mxu0 %v5035
  %6868 = vmatprep.subr.bf16.mxu0 %v5096
  %6869 = vmatpush2.bf16.msra.mxu0 %v5095
  %6870 = vmatprep.subr.bf16.mxu0 %v5092
  %6871 = vmatpush2.bf16.msra.mxu0 %v5091
  %6872 = vmatprep.subr.bf16.mxu0 %v5088
  %6873 = vmatpush2.bf16.msra.mxu0 %v5087
  %6874 = vmatprep.subr.bf16.mxu0 %v5084
  %6875 = vmatpush2.bf16.msra.mxu0 %v5083
  %6876 = vmatprep.subr.bf16.mxu0 %v5080
  %6877 = vmatpush2.bf16.msra.mxu0 %v5079
  %6878 = vmatprep.subr.bf16.mxu0 %v5076
  %6879 = vmatpush2.bf16.msra.mxu0 %v5075
  %6880 = vmatprep.subr.bf16.mxu0 %v5072
  %6881 = vmatpush2.bf16.msra.mxu0 %v5071
  %6882 = vmatprep.subr.bf16.mxu0 %v5068
  %6883 = vmatpush2.bf16.msra.mxu0 %v5067
  %6884 = vmatprep.mubr.bf16.mxu0 %v1218
  %6885 = vmatmul.mubr.bf16.gmra.mxu0 %v1217
  %v6886 = vpop.f32.mrf.mxu0
  %v6887 = vadd.f32 %v6844, %v6886
  %v6888 = vpop.f32.mrf.mxu0
  %v6889 = vadd.f32 %v6846, %v6888
  %v6890 = vpop.f32.mrf.mxu0
  %v6891 = vadd.f32 %v6848, %v6890
  %v6892 = vpop.f32.mrf.mxu0
  %v6893 = vadd.f32 %v6850, %v6892
  %6894 = vdwg.mxu0
  %6895 = vmatprep.subr.bf16.mxu0 %v5128
  %6896 = vmatpush1.bf16.msra.mxu0 %v5127
  %6897 = vmatprep.subr.bf16.mxu0 %v5124
  %6898 = vmatpush1.bf16.msra.mxu0 %v5123
  %6899 = vmatprep.subr.bf16.mxu0 %v5120
  %6900 = vmatpush1.bf16.msra.mxu0 %v5119
  %6901 = vmatprep.subr.bf16.mxu0 %v5116
  %6902 = vmatpush1.bf16.msra.mxu0 %v5115
  %6903 = vmatprep.subr.bf16.mxu0 %v5112
  %6904 = vmatpush1.bf16.msra.mxu0 %v5111
  %6905 = vmatprep.subr.bf16.mxu0 %v5108
  %6906 = vmatpush1.bf16.msra.mxu0 %v5107
  %6907 = vmatprep.subr.bf16.mxu0 %v5104
  %6908 = vmatpush1.bf16.msra.mxu0 %v5103
  %6909 = vmatprep.subr.bf16.mxu0 %v5100
  %6910 = vmatpush1.bf16.msra.mxu0 %v5099
  %6911 = vmatprep.subr.bf16.mxu0 %v5160
  %6912 = vmatpush2.bf16.msra.mxu0 %v5159
  %6913 = vmatprep.subr.bf16.mxu0 %v5156
  %6914 = vmatpush2.bf16.msra.mxu0 %v5155
  %6915 = vmatprep.subr.bf16.mxu0 %v5152
  %6916 = vmatpush2.bf16.msra.mxu0 %v5151
  %6917 = vmatprep.subr.bf16.mxu0 %v5148
  %6918 = vmatpush2.bf16.msra.mxu0 %v5147
  %6919 = vmatprep.subr.bf16.mxu0 %v5144
  %6920 = vmatpush2.bf16.msra.mxu0 %v5143
  %6921 = vmatprep.subr.bf16.mxu0 %v5140
  %6922 = vmatpush2.bf16.msra.mxu0 %v5139
  %6923 = vmatprep.subr.bf16.mxu0 %v5136
  %6924 = vmatpush2.bf16.msra.mxu0 %v5135
  %6925 = vmatprep.subr.bf16.mxu0 %v5132
  %6926 = vmatpush2.bf16.msra.mxu0 %v5131
  %6927 = vmatprep.mubr.bf16.mxu0 %v1220
  %6928 = vmatmul.mubr.bf16.gmra.mxu0 %v1219
  %v6929 = vpop.f32.mrf.mxu0
  %v6930 = vadd.f32 %v6887, %v6929
  %v6931 = vpop.f32.mrf.mxu0
  %v6932 = vadd.f32 %v6889, %v6931
  %v6933 = vpop.f32.mrf.mxu0
  %v6934 = vadd.f32 %v6891, %v6933
  %v6935 = vpop.f32.mrf.mxu0
  %v6936 = vadd.f32 %v6893, %v6935
  %6937 = vdwg.mxu0
  %6938 = vmatprep.subr.bf16.mxu0 %v5192
  %6939 = vmatpush1.bf16.msra.mxu0 %v5191
  %6940 = vmatprep.subr.bf16.mxu0 %v5188
  %6941 = vmatpush1.bf16.msra.mxu0 %v5187
  %6942 = vmatprep.subr.bf16.mxu0 %v5184
  %6943 = vmatpush1.bf16.msra.mxu0 %v5183
  %6944 = vmatprep.subr.bf16.mxu0 %v5180
  %6945 = vmatpush1.bf16.msra.mxu0 %v5179
  %6946 = vmatprep.subr.bf16.mxu0 %v5176
  %6947 = vmatpush1.bf16.msra.mxu0 %v5175
  %6948 = vmatprep.subr.bf16.mxu0 %v5172
  %6949 = vmatpush1.bf16.msra.mxu0 %v5171
  %6950 = vmatprep.subr.bf16.mxu0 %v5168
  %6951 = vmatpush1.bf16.msra.mxu0 %v5167
  %6952 = vmatprep.subr.bf16.mxu0 %v5164
  %6953 = vmatpush1.bf16.msra.mxu0 %v5163
  %6954 = vmatprep.subr.bf16.mxu0 %v5224
  %6955 = vmatpush2.bf16.msra.mxu0 %v5223
  %6956 = vmatprep.subr.bf16.mxu0 %v5220
  %6957 = vmatpush2.bf16.msra.mxu0 %v5219
  %6958 = vmatprep.subr.bf16.mxu0 %v5216
  %6959 = vmatpush2.bf16.msra.mxu0 %v5215
  %6960 = vmatprep.subr.bf16.mxu0 %v5212
  %6961 = vmatpush2.bf16.msra.mxu0 %v5211
  %6962 = vmatprep.subr.bf16.mxu0 %v5208
  %6963 = vmatpush2.bf16.msra.mxu0 %v5207
  %6964 = vmatprep.subr.bf16.mxu0 %v5204
  %6965 = vmatpush2.bf16.msra.mxu0 %v5203
  %6966 = vmatprep.subr.bf16.mxu0 %v5200
  %6967 = vmatpush2.bf16.msra.mxu0 %v5199
  %6968 = vmatprep.subr.bf16.mxu0 %v5196
  %6969 = vmatpush2.bf16.msra.mxu0 %v5195
  %6970 = vmatprep.mubr.bf16.mxu0 %v1222
  %6971 = vmatmul.mubr.bf16.gmra.mxu0 %v1221
  %v6972 = vpop.f32.mrf.mxu0
  %v6973 = vadd.f32 %v6930, %v6972
  %v6974 = vpop.f32.mrf.mxu0
  %v6975 = vadd.f32 %v6932, %v6974
  %v6976 = vpop.f32.mrf.mxu0
  %v6977 = vadd.f32 %v6934, %v6976
  %v6978 = vpop.f32.mrf.mxu0
  %v6979 = vadd.f32 %v6936, %v6978
  %6980 = vdwg.mxu0
  %6981 = vmatprep.subr.bf16.mxu0 %v5256
  %6982 = vmatpush1.bf16.msra.mxu0 %v5255
  %6983 = vmatprep.subr.bf16.mxu0 %v5252
  %6984 = vmatpush1.bf16.msra.mxu0 %v5251
  %6985 = vmatprep.subr.bf16.mxu0 %v5248
  %6986 = vmatpush1.bf16.msra.mxu0 %v5247
  %6987 = vmatprep.subr.bf16.mxu0 %v5244
  %6988 = vmatpush1.bf16.msra.mxu0 %v5243
  %6989 = vmatprep.subr.bf16.mxu0 %v5240
  %6990 = vmatpush1.bf16.msra.mxu0 %v5239
  %6991 = vmatprep.subr.bf16.mxu0 %v5236
  %6992 = vmatpush1.bf16.msra.mxu0 %v5235
  %6993 = vmatprep.subr.bf16.mxu0 %v5232
  %6994 = vmatpush1.bf16.msra.mxu0 %v5231
  %6995 = vmatprep.subr.bf16.mxu0 %v5228
  %6996 = vmatpush1.bf16.msra.mxu0 %v5227
  %6997 = vmatprep.subr.bf16.mxu0 %v5288
  %6998 = vmatpush2.bf16.msra.mxu0 %v5287
  %6999 = vmatprep.subr.bf16.mxu0 %v5284
  %7000 = vmatpush2.bf16.msra.mxu0 %v5283
  %7001 = vmatprep.subr.bf16.mxu0 %v5280
  %7002 = vmatpush2.bf16.msra.mxu0 %v5279
  %7003 = vmatprep.subr.bf16.mxu0 %v5276
  %7004 = vmatpush2.bf16.msra.mxu0 %v5275
  %7005 = vmatprep.subr.bf16.mxu0 %v5272
  %7006 = vmatpush2.bf16.msra.mxu0 %v5271
  %7007 = vmatprep.subr.bf16.mxu0 %v5268
  %7008 = vmatpush2.bf16.msra.mxu0 %v5267
  %7009 = vmatprep.subr.bf16.mxu0 %v5264
  %7010 = vmatpush2.bf16.msra.mxu0 %v5263
  %7011 = vmatprep.subr.bf16.mxu0 %v5260
  %7012 = vmatpush2.bf16.msra.mxu0 %v5259
  %7013 = vmatprep.mubr.bf16.mxu0 %v1224
  %7014 = vmatmul.mubr.bf16.gmra.mxu0 %v1223
  %v7015 = vpop.f32.mrf.mxu0
  %v7016 = vadd.f32 %v6973, %v7015
  %v7017 = vpop.f32.mrf.mxu0
  %v7018 = vadd.f32 %v6975, %v7017
  %v7019 = vpop.f32.mrf.mxu0
  %v7020 = vadd.f32 %v6977, %v7019
  %v7021 = vpop.f32.mrf.mxu0
  %v7022 = vadd.f32 %v6979, %v7021
  %7023 = vdwg.mxu0
  %7024 = vmatprep.subr.bf16.mxu0 %v5320
  %7025 = vmatpush1.bf16.msra.mxu0 %v5319
  %7026 = vmatprep.subr.bf16.mxu0 %v5316
  %7027 = vmatpush1.bf16.msra.mxu0 %v5315
  %7028 = vmatprep.subr.bf16.mxu0 %v5312
  %7029 = vmatpush1.bf16.msra.mxu0 %v5311
  %7030 = vmatprep.subr.bf16.mxu0 %v5308
  %7031 = vmatpush1.bf16.msra.mxu0 %v5307
  %7032 = vmatprep.subr.bf16.mxu0 %v5304
  %7033 = vmatpush1.bf16.msra.mxu0 %v5303
  %7034 = vmatprep.subr.bf16.mxu0 %v5300
  %7035 = vmatpush1.bf16.msra.mxu0 %v5299
  %7036 = vmatprep.subr.bf16.mxu0 %v5296
  %7037 = vmatpush1.bf16.msra.mxu0 %v5295
  %7038 = vmatprep.subr.bf16.mxu0 %v5292
  %7039 = vmatpush1.bf16.msra.mxu0 %v5291
  %7040 = vmatprep.subr.bf16.mxu0 %v5352
  %7041 = vmatpush2.bf16.msra.mxu0 %v5351
  %7042 = vmatprep.subr.bf16.mxu0 %v5348
  %7043 = vmatpush2.bf16.msra.mxu0 %v5347
  %7044 = vmatprep.subr.bf16.mxu0 %v5344
  %7045 = vmatpush2.bf16.msra.mxu0 %v5343
  %7046 = vmatprep.subr.bf16.mxu0 %v5340
  %7047 = vmatpush2.bf16.msra.mxu0 %v5339
  %7048 = vmatprep.subr.bf16.mxu0 %v5336
  %7049 = vmatpush2.bf16.msra.mxu0 %v5335
  %7050 = vmatprep.subr.bf16.mxu0 %v5332
  %7051 = vmatpush2.bf16.msra.mxu0 %v5331
  %7052 = vmatprep.subr.bf16.mxu0 %v5328
  %7053 = vmatpush2.bf16.msra.mxu0 %v5327
  %7054 = vmatprep.subr.bf16.mxu0 %v5324
  %7055 = vmatpush2.bf16.msra.mxu0 %v5323
  %7056 = vmatprep.mubr.bf16.mxu0 %v1226
  %7057 = vmatmul.mubr.bf16.gmra.mxu0 %v1225
  %v7058 = vpop.f32.mrf.mxu0
  %v7059 = vadd.f32 %v7016, %v7058
  %v7060 = vpop.f32.mrf.mxu0
  %v7061 = vadd.f32 %v7018, %v7060
  %v7062 = vpop.f32.mrf.mxu0
  %v7063 = vadd.f32 %v7020, %v7062
  %v7064 = vpop.f32.mrf.mxu0
  %v7065 = vadd.f32 %v7022, %v7064
  %7066 = vdwg.mxu0
  %7067 = vmatprep.subr.bf16.mxu0 %v4362
  %7068 = vmatpush1.bf16.msra.mxu0 %v4361
  %7069 = vmatprep.subr.bf16.mxu0 %v4358
  %7070 = vmatpush1.bf16.msra.mxu0 %v4357
  %7071 = vmatprep.subr.bf16.mxu0 %v4354
  %7072 = vmatpush1.bf16.msra.mxu0 %v4353
  %7073 = vmatprep.subr.bf16.mxu0 %v4350
  %7074 = vmatpush1.bf16.msra.mxu0 %v4349
  %7075 = vmatprep.subr.bf16.mxu0 %v4346
  %7076 = vmatpush1.bf16.msra.mxu0 %v4345
  %7077 = vmatprep.subr.bf16.mxu0 %v4342
  %7078 = vmatpush1.bf16.msra.mxu0 %v4341
  %7079 = vmatprep.subr.bf16.mxu0 %v4338
  %7080 = vmatpush1.bf16.msra.mxu0 %v4337
  %7081 = vmatprep.subr.bf16.mxu0 %v4334
  %7082 = vmatpush1.bf16.msra.mxu0 %v4333
  %7083 = vmatprep.subr.bf16.mxu0 %v4394
  %7084 = vmatpush2.bf16.msra.mxu0 %v4393
  %7085 = vmatprep.subr.bf16.mxu0 %v4390
  %7086 = vmatpush2.bf16.msra.mxu0 %v4389
  %7087 = vmatprep.subr.bf16.mxu0 %v4386
  %7088 = vmatpush2.bf16.msra.mxu0 %v4385
  %7089 = vmatprep.subr.bf16.mxu0 %v4382
  %7090 = vmatpush2.bf16.msra.mxu0 %v4381
  %7091 = vmatprep.subr.bf16.mxu0 %v4378
  %7092 = vmatpush2.bf16.msra.mxu0 %v4377
  %7093 = vmatprep.subr.bf16.mxu0 %v4374
  %7094 = vmatpush2.bf16.msra.mxu0 %v4373
  %7095 = vmatprep.subr.bf16.mxu0 %v4370
  %7096 = vmatpush2.bf16.msra.mxu0 %v4369
  %7097 = vmatprep.subr.bf16.mxu0 %v4366
  %7098 = vmatpush2.bf16.msra.mxu0 %v4365
  %7099 = vmatprep.mubr.bf16.mxu0 %v1196
  %7100 = vmatmul.mubr.bf16.gmra.mxu0 %v1195
  %v7101 = vpop.f32.mrf.mxu0
  %v7102 = vadd.f32 %v1090, %v7101
  %v7103 = vpop.f32.mrf.mxu0
  %v7104 = vadd.f32 %v1094, %v7103
  %v7105 = vpop.f32.mrf.mxu0
  %v7106 = vadd.f32 %v1090, %v7105
  %v7107 = vpop.f32.mrf.mxu0
  %v7108 = vadd.f32 %v1094, %v7107
  %7109 = vdwg.mxu0
  %7110 = vmatprep.subr.bf16.mxu0 %v4426
  %7111 = vmatpush1.bf16.msra.mxu0 %v4425
  %7112 = vmatprep.subr.bf16.mxu0 %v4422
  %7113 = vmatpush1.bf16.msra.mxu0 %v4421
  %7114 = vmatprep.subr.bf16.mxu0 %v4418
  %7115 = vmatpush1.bf16.msra.mxu0 %v4417
  %7116 = vmatprep.subr.bf16.mxu0 %v4414
  %7117 = vmatpush1.bf16.msra.mxu0 %v4413
  %7118 = vmatprep.subr.bf16.mxu0 %v4410
  %7119 = vmatpush1.bf16.msra.mxu0 %v4409
  %7120 = vmatprep.subr.bf16.mxu0 %v4406
  %7121 = vmatpush1.bf16.msra.mxu0 %v4405
  %7122 = vmatprep.subr.bf16.mxu0 %v4402
  %7123 = vmatpush1.bf16.msra.mxu0 %v4401
  %7124 = vmatprep.subr.bf16.mxu0 %v4398
  %7125 = vmatpush1.bf16.msra.mxu0 %v4397
  %7126 = vmatprep.subr.bf16.mxu0 %v4458
  %7127 = vmatpush2.bf16.msra.mxu0 %v4457
  %7128 = vmatprep.subr.bf16.mxu0 %v4454
  %7129 = vmatpush2.bf16.msra.mxu0 %v4453
  %7130 = vmatprep.subr.bf16.mxu0 %v4450
  %7131 = vmatpush2.bf16.msra.mxu0 %v4449
  %7132 = vmatprep.subr.bf16.mxu0 %v4446
  %7133 = vmatpush2.bf16.msra.mxu0 %v4445
  %7134 = vmatprep.subr.bf16.mxu0 %v4442
  %7135 = vmatpush2.bf16.msra.mxu0 %v4441
  %7136 = vmatprep.subr.bf16.mxu0 %v4438
  %7137 = vmatpush2.bf16.msra.mxu0 %v4437
  %7138 = vmatprep.subr.bf16.mxu0 %v4434
  %7139 = vmatpush2.bf16.msra.mxu0 %v4433
  %7140 = vmatprep.subr.bf16.mxu0 %v4430
  %7141 = vmatpush2.bf16.msra.mxu0 %v4429
  %7142 = vmatprep.mubr.bf16.mxu0 %v1198
  %7143 = vmatmul.mubr.bf16.gmra.mxu0 %v1197
  %v7144 = vpop.f32.mrf.mxu0
  %v7145 = vadd.f32 %v7102, %v7144
  %v7146 = vpop.f32.mrf.mxu0
  %v7147 = vadd.f32 %v7104, %v7146
  %v7148 = vpop.f32.mrf.mxu0
  %v7149 = vadd.f32 %v7106, %v7148
  %v7150 = vpop.f32.mrf.mxu0
  %v7151 = vadd.f32 %v7108, %v7150
  %7152 = vdwg.mxu0
  %7153 = vmatprep.subr.bf16.mxu0 %v4490
  %7154 = vmatpush1.bf16.msra.mxu0 %v4489
  %7155 = vmatprep.subr.bf16.mxu0 %v4486
  %7156 = vmatpush1.bf16.msra.mxu0 %v4485
  %7157 = vmatprep.subr.bf16.mxu0 %v4482
  %7158 = vmatpush1.bf16.msra.mxu0 %v4481
  %7159 = vmatprep.subr.bf16.mxu0 %v4478
  %7160 = vmatpush1.bf16.msra.mxu0 %v4477
  %7161 = vmatprep.subr.bf16.mxu0 %v4474
  %7162 = vmatpush1.bf16.msra.mxu0 %v4473
  %7163 = vmatprep.subr.bf16.mxu0 %v4470
  %7164 = vmatpush1.bf16.msra.mxu0 %v4469
  %7165 = vmatprep.subr.bf16.mxu0 %v4466
  %7166 = vmatpush1.bf16.msra.mxu0 %v4465
  %7167 = vmatprep.subr.bf16.mxu0 %v4462
  %7168 = vmatpush1.bf16.msra.mxu0 %v4461
  %7169 = vmatprep.subr.bf16.mxu0 %v4522
  %7170 = vmatpush2.bf16.msra.mxu0 %v4521
  %7171 = vmatprep.subr.bf16.mxu0 %v4518
  %7172 = vmatpush2.bf16.msra.mxu0 %v4517
  %7173 = vmatprep.subr.bf16.mxu0 %v4514
  %7174 = vmatpush2.bf16.msra.mxu0 %v4513
  %7175 = vmatprep.subr.bf16.mxu0 %v4510
  %7176 = vmatpush2.bf16.msra.mxu0 %v4509
  %7177 = vmatprep.subr.bf16.mxu0 %v4506
  %7178 = vmatpush2.bf16.msra.mxu0 %v4505
  %7179 = vmatprep.subr.bf16.mxu0 %v4502
  %7180 = vmatpush2.bf16.msra.mxu0 %v4501
  %7181 = vmatprep.subr.bf16.mxu0 %v4498
  %7182 = vmatpush2.bf16.msra.mxu0 %v4497
  %7183 = vmatprep.subr.bf16.mxu0 %v4494
  %7184 = vmatpush2.bf16.msra.mxu0 %v4493
  %7185 = vmatprep.mubr.bf16.mxu0 %v1200
  %7186 = vmatmul.mubr.bf16.gmra.mxu0 %v1199
  %v7187 = vpop.f32.mrf.mxu0
  %v7188 = vadd.f32 %v7145, %v7187
  %v7189 = vpop.f32.mrf.mxu0
  %v7190 = vadd.f32 %v7147, %v7189
  %v7191 = vpop.f32.mrf.mxu0
  %v7192 = vadd.f32 %v7149, %v7191
  %v7193 = vpop.f32.mrf.mxu0
  %v7194 = vadd.f32 %v7151, %v7193
  %7195 = vdwg.mxu0
  %7196 = vmatprep.subr.bf16.mxu0 %v4554
  %7197 = vmatpush1.bf16.msra.mxu0 %v4553
  %7198 = vmatprep.subr.bf16.mxu0 %v4550
  %7199 = vmatpush1.bf16.msra.mxu0 %v4549
  %7200 = vmatprep.subr.bf16.mxu0 %v4546
  %7201 = vmatpush1.bf16.msra.mxu0 %v4545
  %7202 = vmatprep.subr.bf16.mxu0 %v4542
  %7203 = vmatpush1.bf16.msra.mxu0 %v4541
  %7204 = vmatprep.subr.bf16.mxu0 %v4538
  %7205 = vmatpush1.bf16.msra.mxu0 %v4537
  %7206 = vmatprep.subr.bf16.mxu0 %v4534
  %7207 = vmatpush1.bf16.msra.mxu0 %v4533
  %7208 = vmatprep.subr.bf16.mxu0 %v4530
  %7209 = vmatpush1.bf16.msra.mxu0 %v4529
  %7210 = vmatprep.subr.bf16.mxu0 %v4526
  %7211 = vmatpush1.bf16.msra.mxu0 %v4525
  %7212 = vmatprep.subr.bf16.mxu0 %v4586
  %7213 = vmatpush2.bf16.msra.mxu0 %v4585
  %7214 = vmatprep.subr.bf16.mxu0 %v4582
  %7215 = vmatpush2.bf16.msra.mxu0 %v4581
  %7216 = vmatprep.subr.bf16.mxu0 %v4578
  %7217 = vmatpush2.bf16.msra.mxu0 %v4577
  %7218 = vmatprep.subr.bf16.mxu0 %v4574
  %7219 = vmatpush2.bf16.msra.mxu0 %v4573
  %7220 = vmatprep.subr.bf16.mxu0 %v4570
  %7221 = vmatpush2.bf16.msra.mxu0 %v4569
  %7222 = vmatprep.subr.bf16.mxu0 %v4566
  %7223 = vmatpush2.bf16.msra.mxu0 %v4565
  %7224 = vmatprep.subr.bf16.mxu0 %v4562
  %7225 = vmatpush2.bf16.msra.mxu0 %v4561
  %7226 = vmatprep.subr.bf16.mxu0 %v4558
  %7227 = vmatpush2.bf16.msra.mxu0 %v4557
  %7228 = vmatprep.mubr.bf16.mxu0 %v1202
  %7229 = vmatmul.mubr.bf16.gmra.mxu0 %v1201
  %v7230 = vpop.f32.mrf.mxu0
  %v7231 = vadd.f32 %v7188, %v7230
  %v7232 = vpop.f32.mrf.mxu0
  %v7233 = vadd.f32 %v7190, %v7232
  %v7234 = vpop.f32.mrf.mxu0
  %v7235 = vadd.f32 %v7192, %v7234
  %v7236 = vpop.f32.mrf.mxu0
  %v7237 = vadd.f32 %v7194, %v7236
  %7238 = vdwg.mxu0
  %7239 = vmatprep.subr.bf16.mxu0 %v4618
  %7240 = vmatpush1.bf16.msra.mxu0 %v4617
  %7241 = vmatprep.subr.bf16.mxu0 %v4614
  %7242 = vmatpush1.bf16.msra.mxu0 %v4613
  %7243 = vmatprep.subr.bf16.mxu0 %v4610
  %7244 = vmatpush1.bf16.msra.mxu0 %v4609
  %7245 = vmatprep.subr.bf16.mxu0 %v4606
  %7246 = vmatpush1.bf16.msra.mxu0 %v4605
  %7247 = vmatprep.subr.bf16.mxu0 %v4602
  %7248 = vmatpush1.bf16.msra.mxu0 %v4601
  %7249 = vmatprep.subr.bf16.mxu0 %v4598
  %7250 = vmatpush1.bf16.msra.mxu0 %v4597
  %7251 = vmatprep.subr.bf16.mxu0 %v4594
  %7252 = vmatpush1.bf16.msra.mxu0 %v4593
  %7253 = vmatprep.subr.bf16.mxu0 %v4590
  %7254 = vmatpush1.bf16.msra.mxu0 %v4589
  %7255 = vmatprep.subr.bf16.mxu0 %v4650
  %7256 = vmatpush2.bf16.msra.mxu0 %v4649
  %7257 = vmatprep.subr.bf16.mxu0 %v4646
  %7258 = vmatpush2.bf16.msra.mxu0 %v4645
  %7259 = vmatprep.subr.bf16.mxu0 %v4642
  %7260 = vmatpush2.bf16.msra.mxu0 %v4641
  %7261 = vmatprep.subr.bf16.mxu0 %v4638
  %7262 = vmatpush2.bf16.msra.mxu0 %v4637
  %7263 = vmatprep.subr.bf16.mxu0 %v4634
  %7264 = vmatpush2.bf16.msra.mxu0 %v4633
  %7265 = vmatprep.subr.bf16.mxu0 %v4630
  %7266 = vmatpush2.bf16.msra.mxu0 %v4629
  %7267 = vmatprep.subr.bf16.mxu0 %v4626
  %7268 = vmatpush2.bf16.msra.mxu0 %v4625
  %7269 = vmatprep.subr.bf16.mxu0 %v4622
  %7270 = vmatpush2.bf16.msra.mxu0 %v4621
  %7271 = vmatprep.mubr.bf16.mxu0 %v1204
  %7272 = vmatmul.mubr.bf16.gmra.mxu0 %v1203
  %v7273 = vpop.f32.mrf.mxu0
  %v7274 = vadd.f32 %v7231, %v7273
  %v7275 = vpop.f32.mrf.mxu0
  %v7276 = vadd.f32 %v7233, %v7275
  %v7277 = vpop.f32.mrf.mxu0
  %v7278 = vadd.f32 %v7235, %v7277
  %v7279 = vpop.f32.mrf.mxu0
  %v7280 = vadd.f32 %v7237, %v7279
  %7281 = vdwg.mxu0
  %7282 = vmatprep.subr.bf16.mxu0 %v4682
  %7283 = vmatpush1.bf16.msra.mxu0 %v4681
  %7284 = vmatprep.subr.bf16.mxu0 %v4678
  %7285 = vmatpush1.bf16.msra.mxu0 %v4677
  %7286 = vmatprep.subr.bf16.mxu0 %v4674
  %7287 = vmatpush1.bf16.msra.mxu0 %v4673
  %7288 = vmatprep.subr.bf16.mxu0 %v4670
  %7289 = vmatpush1.bf16.msra.mxu0 %v4669
  %7290 = vmatprep.subr.bf16.mxu0 %v4666
  %7291 = vmatpush1.bf16.msra.mxu0 %v4665
  %7292 = vmatprep.subr.bf16.mxu0 %v4662
  %7293 = vmatpush1.bf16.msra.mxu0 %v4661
  %7294 = vmatprep.subr.bf16.mxu0 %v4658
  %7295 = vmatpush1.bf16.msra.mxu0 %v4657
  %7296 = vmatprep.subr.bf16.mxu0 %v4654
  %7297 = vmatpush1.bf16.msra.mxu0 %v4653
  %7298 = vmatprep.subr.bf16.mxu0 %v4714
  %7299 = vmatpush2.bf16.msra.mxu0 %v4713
  %7300 = vmatprep.subr.bf16.mxu0 %v4710
  %7301 = vmatpush2.bf16.msra.mxu0 %v4709
  %7302 = vmatprep.subr.bf16.mxu0 %v4706
  %7303 = vmatpush2.bf16.msra.mxu0 %v4705
  %7304 = vmatprep.subr.bf16.mxu0 %v4702
  %7305 = vmatpush2.bf16.msra.mxu0 %v4701
  %7306 = vmatprep.subr.bf16.mxu0 %v4698
  %7307 = vmatpush2.bf16.msra.mxu0 %v4697
  %7308 = vmatprep.subr.bf16.mxu0 %v4694
  %7309 = vmatpush2.bf16.msra.mxu0 %v4693
  %7310 = vmatprep.subr.bf16.mxu0 %v4690
  %7311 = vmatpush2.bf16.msra.mxu0 %v4689
  %7312 = vmatprep.subr.bf16.mxu0 %v4686
  %7313 = vmatpush2.bf16.msra.mxu0 %v4685
  %7314 = vmatprep.mubr.bf16.mxu0 %v1206
  %7315 = vmatmul.mubr.bf16.gmra.mxu0 %v1205
  %v7316 = vpop.f32.mrf.mxu0
  %v7317 = vadd.f32 %v7274, %v7316
  %v7318 = vpop.f32.mrf.mxu0
  %v7319 = vadd.f32 %v7276, %v7318
  %v7320 = vpop.f32.mrf.mxu0
  %v7321 = vadd.f32 %v7278, %v7320
  %v7322 = vpop.f32.mrf.mxu0
  %v7323 = vadd.f32 %v7280, %v7322
  %7324 = vdwg.mxu0
  %7325 = vmatprep.subr.bf16.mxu0 %v4746
  %7326 = vmatpush1.bf16.msra.mxu0 %v4745
  %7327 = vmatprep.subr.bf16.mxu0 %v4742
  %7328 = vmatpush1.bf16.msra.mxu0 %v4741
  %7329 = vmatprep.subr.bf16.mxu0 %v4738
  %7330 = vmatpush1.bf16.msra.mxu0 %v4737
  %7331 = vmatprep.subr.bf16.mxu0 %v4734
  %7332 = vmatpush1.bf16.msra.mxu0 %v4733
  %7333 = vmatprep.subr.bf16.mxu0 %v4730
  %7334 = vmatpush1.bf16.msra.mxu0 %v4729
  %7335 = vmatprep.subr.bf16.mxu0 %v4726
  %7336 = vmatpush1.bf16.msra.mxu0 %v4725
  %7337 = vmatprep.subr.bf16.mxu0 %v4722
  %7338 = vmatpush1.bf16.msra.mxu0 %v4721
  %7339 = vmatprep.subr.bf16.mxu0 %v4718
  %7340 = vmatpush1.bf16.msra.mxu0 %v4717
  %7341 = vmatprep.subr.bf16.mxu0 %v4778
  %7342 = vmatpush2.bf16.msra.mxu0 %v4777
  %7343 = vmatprep.subr.bf16.mxu0 %v4774
  %7344 = vmatpush2.bf16.msra.mxu0 %v4773
  %7345 = vmatprep.subr.bf16.mxu0 %v4770
  %7346 = vmatpush2.bf16.msra.mxu0 %v4769
  %7347 = vmatprep.subr.bf16.mxu0 %v4766
  %7348 = vmatpush2.bf16.msra.mxu0 %v4765
  %7349 = vmatprep.subr.bf16.mxu0 %v4762
  %7350 = vmatpush2.bf16.msra.mxu0 %v4761
  %7351 = vmatprep.subr.bf16.mxu0 %v4758
  %7352 = vmatpush2.bf16.msra.mxu0 %v4757
  %7353 = vmatprep.subr.bf16.mxu0 %v4754
  %7354 = vmatpush2.bf16.msra.mxu0 %v4753
  %7355 = vmatprep.subr.bf16.mxu0 %v4750
  %7356 = vmatpush2.bf16.msra.mxu0 %v4749
  %7357 = vmatprep.mubr.bf16.mxu0 %v1208
  %7358 = vmatmul.mubr.bf16.gmra.mxu0 %v1207
  %v7359 = vpop.f32.mrf.mxu0
  %v7360 = vadd.f32 %v7317, %v7359
  %v7361 = vpop.f32.mrf.mxu0
  %v7362 = vadd.f32 %v7319, %v7361
  %v7363 = vpop.f32.mrf.mxu0
  %v7364 = vadd.f32 %v7321, %v7363
  %v7365 = vpop.f32.mrf.mxu0
  %v7366 = vadd.f32 %v7323, %v7365
  %7367 = vdwg.mxu0
  %7368 = vmatprep.subr.bf16.mxu0 %v4810
  %7369 = vmatpush1.bf16.msra.mxu0 %v4809
  %7370 = vmatprep.subr.bf16.mxu0 %v4806
  %7371 = vmatpush1.bf16.msra.mxu0 %v4805
  %7372 = vmatprep.subr.bf16.mxu0 %v4802
  %7373 = vmatpush1.bf16.msra.mxu0 %v4801
  %7374 = vmatprep.subr.bf16.mxu0 %v4798
  %7375 = vmatpush1.bf16.msra.mxu0 %v4797
  %7376 = vmatprep.subr.bf16.mxu0 %v4794
  %7377 = vmatpush1.bf16.msra.mxu0 %v4793
  %7378 = vmatprep.subr.bf16.mxu0 %v4790
  %7379 = vmatpush1.bf16.msra.mxu0 %v4789
  %7380 = vmatprep.subr.bf16.mxu0 %v4786
  %7381 = vmatpush1.bf16.msra.mxu0 %v4785
  %7382 = vmatprep.subr.bf16.mxu0 %v4782
  %7383 = vmatpush1.bf16.msra.mxu0 %v4781
  %7384 = vmatprep.subr.bf16.mxu0 %v4842
  %7385 = vmatpush2.bf16.msra.mxu0 %v4841
  %7386 = vmatprep.subr.bf16.mxu0 %v4838
  %7387 = vmatpush2.bf16.msra.mxu0 %v4837
  %7388 = vmatprep.subr.bf16.mxu0 %v4834
  %7389 = vmatpush2.bf16.msra.mxu0 %v4833
  %7390 = vmatprep.subr.bf16.mxu0 %v4830
  %7391 = vmatpush2.bf16.msra.mxu0 %v4829
  %7392 = vmatprep.subr.bf16.mxu0 %v4826
  %7393 = vmatpush2.bf16.msra.mxu0 %v4825
  %7394 = vmatprep.subr.bf16.mxu0 %v4822
  %7395 = vmatpush2.bf16.msra.mxu0 %v4821
  %7396 = vmatprep.subr.bf16.mxu0 %v4818
  %7397 = vmatpush2.bf16.msra.mxu0 %v4817
  %7398 = vmatprep.subr.bf16.mxu0 %v4814
  %7399 = vmatpush2.bf16.msra.mxu0 %v4813
  %7400 = vmatprep.mubr.bf16.mxu0 %v1210
  %7401 = vmatmul.mubr.bf16.gmra.mxu0 %v1209
  %v7402 = vpop.f32.mrf.mxu0
  %v7403 = vadd.f32 %v7360, %v7402
  %v7404 = vpop.f32.mrf.mxu0
  %v7405 = vadd.f32 %v7362, %v7404
  %v7406 = vpop.f32.mrf.mxu0
  %v7407 = vadd.f32 %v7364, %v7406
  %v7408 = vpop.f32.mrf.mxu0
  %v7409 = vadd.f32 %v7366, %v7408
  %7410 = vdwg.mxu0
  %7411 = vmatprep.subr.bf16.mxu0 %v4874
  %7412 = vmatpush1.bf16.msra.mxu0 %v4873
  %7413 = vmatprep.subr.bf16.mxu0 %v4870
  %7414 = vmatpush1.bf16.msra.mxu0 %v4869
  %7415 = vmatprep.subr.bf16.mxu0 %v4866
  %7416 = vmatpush1.bf16.msra.mxu0 %v4865
  %7417 = vmatprep.subr.bf16.mxu0 %v4862
  %7418 = vmatpush1.bf16.msra.mxu0 %v4861
  %7419 = vmatprep.subr.bf16.mxu0 %v4858
  %7420 = vmatpush1.bf16.msra.mxu0 %v4857
  %7421 = vmatprep.subr.bf16.mxu0 %v4854
  %7422 = vmatpush1.bf16.msra.mxu0 %v4853
  %7423 = vmatprep.subr.bf16.mxu0 %v4850
  %7424 = vmatpush1.bf16.msra.mxu0 %v4849
  %7425 = vmatprep.subr.bf16.mxu0 %v4846
  %7426 = vmatpush1.bf16.msra.mxu0 %v4845
  %7427 = vmatprep.subr.bf16.mxu0 %v4906
  %7428 = vmatpush2.bf16.msra.mxu0 %v4905
  %7429 = vmatprep.subr.bf16.mxu0 %v4902
  %7430 = vmatpush2.bf16.msra.mxu0 %v4901
  %7431 = vmatprep.subr.bf16.mxu0 %v4898
  %7432 = vmatpush2.bf16.msra.mxu0 %v4897
  %7433 = vmatprep.subr.bf16.mxu0 %v4894
  %7434 = vmatpush2.bf16.msra.mxu0 %v4893
  %7435 = vmatprep.subr.bf16.mxu0 %v4890
  %7436 = vmatpush2.bf16.msra.mxu0 %v4889
  %7437 = vmatprep.subr.bf16.mxu0 %v4886
  %7438 = vmatpush2.bf16.msra.mxu0 %v4885
  %7439 = vmatprep.subr.bf16.mxu0 %v4882
  %7440 = vmatpush2.bf16.msra.mxu0 %v4881
  %7441 = vmatprep.subr.bf16.mxu0 %v4878
  %7442 = vmatpush2.bf16.msra.mxu0 %v4877
  %7443 = vmatprep.mubr.bf16.mxu0 %v1212
  %7444 = vmatmul.mubr.bf16.gmra.mxu0 %v1211
  %v7445 = vpop.f32.mrf.mxu0
  %v7446 = vadd.f32 %v7403, %v7445
  %v7447 = vpop.f32.mrf.mxu0
  %v7448 = vadd.f32 %v7405, %v7447
  %v7449 = vpop.f32.mrf.mxu0
  %v7450 = vadd.f32 %v7407, %v7449
  %v7451 = vpop.f32.mrf.mxu0
  %v7452 = vadd.f32 %v7409, %v7451
  %7453 = vdwg.mxu0
  %7454 = vmatprep.subr.bf16.mxu0 %v4938
  %7455 = vmatpush1.bf16.msra.mxu0 %v4937
  %7456 = vmatprep.subr.bf16.mxu0 %v4934
  %7457 = vmatpush1.bf16.msra.mxu0 %v4933
  %7458 = vmatprep.subr.bf16.mxu0 %v4930
  %7459 = vmatpush1.bf16.msra.mxu0 %v4929
  %7460 = vmatprep.subr.bf16.mxu0 %v4926
  %7461 = vmatpush1.bf16.msra.mxu0 %v4925
  %7462 = vmatprep.subr.bf16.mxu0 %v4922
  %7463 = vmatpush1.bf16.msra.mxu0 %v4921
  %7464 = vmatprep.subr.bf16.mxu0 %v4918
  %7465 = vmatpush1.bf16.msra.mxu0 %v4917
  %7466 = vmatprep.subr.bf16.mxu0 %v4914
  %7467 = vmatpush1.bf16.msra.mxu0 %v4913
  %7468 = vmatprep.subr.bf16.mxu0 %v4910
  %7469 = vmatpush1.bf16.msra.mxu0 %v4909
  %7470 = vmatprep.subr.bf16.mxu0 %v4970
  %7471 = vmatpush2.bf16.msra.mxu0 %v4969
  %7472 = vmatprep.subr.bf16.mxu0 %v4966
  %7473 = vmatpush2.bf16.msra.mxu0 %v4965
  %7474 = vmatprep.subr.bf16.mxu0 %v4962
  %7475 = vmatpush2.bf16.msra.mxu0 %v4961
  %7476 = vmatprep.subr.bf16.mxu0 %v4958
  %7477 = vmatpush2.bf16.msra.mxu0 %v4957
  %7478 = vmatprep.subr.bf16.mxu0 %v4954
  %7479 = vmatpush2.bf16.msra.mxu0 %v4953
  %7480 = vmatprep.subr.bf16.mxu0 %v4950
  %7481 = vmatpush2.bf16.msra.mxu0 %v4949
  %7482 = vmatprep.subr.bf16.mxu0 %v4946
  %7483 = vmatpush2.bf16.msra.mxu0 %v4945
  %7484 = vmatprep.subr.bf16.mxu0 %v4942
  %7485 = vmatpush2.bf16.msra.mxu0 %v4941
  %7486 = vmatprep.mubr.bf16.mxu0 %v1214
  %7487 = vmatmul.mubr.bf16.gmra.mxu0 %v1213
  %v7488 = vpop.f32.mrf.mxu0
  %v7489 = vadd.f32 %v7446, %v7488
  %v7490 = vpop.f32.mrf.mxu0
  %v7491 = vadd.f32 %v7448, %v7490
  %v7492 = vpop.f32.mrf.mxu0
  %v7493 = vadd.f32 %v7450, %v7492
  %v7494 = vpop.f32.mrf.mxu0
  %v7495 = vadd.f32 %v7452, %v7494
  %7496 = vdwg.mxu0
  %7497 = vmatprep.subr.bf16.mxu0 %v5002
  %7498 = vmatpush1.bf16.msra.mxu0 %v5001
  %7499 = vmatprep.subr.bf16.mxu0 %v4998
  %7500 = vmatpush1.bf16.msra.mxu0 %v4997
  %7501 = vmatprep.subr.bf16.mxu0 %v4994
  %7502 = vmatpush1.bf16.msra.mxu0 %v4993
  %7503 = vmatprep.subr.bf16.mxu0 %v4990
  %7504 = vmatpush1.bf16.msra.mxu0 %v4989
  %7505 = vmatprep.subr.bf16.mxu0 %v4986
  %7506 = vmatpush1.bf16.msra.mxu0 %v4985
  %7507 = vmatprep.subr.bf16.mxu0 %v4982
  %7508 = vmatpush1.bf16.msra.mxu0 %v4981
  %7509 = vmatprep.subr.bf16.mxu0 %v4978
  %7510 = vmatpush1.bf16.msra.mxu0 %v4977
  %7511 = vmatprep.subr.bf16.mxu0 %v4974
  %7512 = vmatpush1.bf16.msra.mxu0 %v4973
  %7513 = vmatprep.subr.bf16.mxu0 %v5034
  %7514 = vmatpush2.bf16.msra.mxu0 %v5033
  %7515 = vmatprep.subr.bf16.mxu0 %v5030
  %7516 = vmatpush2.bf16.msra.mxu0 %v5029
  %7517 = vmatprep.subr.bf16.mxu0 %v5026
  %7518 = vmatpush2.bf16.msra.mxu0 %v5025
  %7519 = vmatprep.subr.bf16.mxu0 %v5022
  %7520 = vmatpush2.bf16.msra.mxu0 %v5021
  %7521 = vmatprep.subr.bf16.mxu0 %v5018
  %7522 = vmatpush2.bf16.msra.mxu0 %v5017
  %7523 = vmatprep.subr.bf16.mxu0 %v5014
  %7524 = vmatpush2.bf16.msra.mxu0 %v5013
  %7525 = vmatprep.subr.bf16.mxu0 %v5010
  %7526 = vmatpush2.bf16.msra.mxu0 %v5009
  %7527 = vmatprep.subr.bf16.mxu0 %v5006
  %7528 = vmatpush2.bf16.msra.mxu0 %v5005
  %7529 = vmatprep.mubr.bf16.mxu0 %v1216
  %7530 = vmatmul.mubr.bf16.gmra.mxu0 %v1215
  %v7531 = vpop.f32.mrf.mxu0
  %v7532 = vadd.f32 %v7489, %v7531
  %v7533 = vpop.f32.mrf.mxu0
  %v7534 = vadd.f32 %v7491, %v7533
  %v7535 = vpop.f32.mrf.mxu0
  %v7536 = vadd.f32 %v7493, %v7535
  %v7537 = vpop.f32.mrf.mxu0
  %v7538 = vadd.f32 %v7495, %v7537
  %7539 = vdwg.mxu0
  %7540 = vmatprep.subr.bf16.mxu0 %v5066
  %7541 = vmatpush1.bf16.msra.mxu0 %v5065
  %7542 = vmatprep.subr.bf16.mxu0 %v5062
  %7543 = vmatpush1.bf16.msra.mxu0 %v5061
  %7544 = vmatprep.subr.bf16.mxu0 %v5058
  %7545 = vmatpush1.bf16.msra.mxu0 %v5057
  %7546 = vmatprep.subr.bf16.mxu0 %v5054
  %7547 = vmatpush1.bf16.msra.mxu0 %v5053
  %7548 = vmatprep.subr.bf16.mxu0 %v5050
  %7549 = vmatpush1.bf16.msra.mxu0 %v5049
  %7550 = vmatprep.subr.bf16.mxu0 %v5046
  %7551 = vmatpush1.bf16.msra.mxu0 %v5045
  %7552 = vmatprep.subr.bf16.mxu0 %v5042
  %7553 = vmatpush1.bf16.msra.mxu0 %v5041
  %7554 = vmatprep.subr.bf16.mxu0 %v5038
  %7555 = vmatpush1.bf16.msra.mxu0 %v5037
  %7556 = vmatprep.subr.bf16.mxu0 %v5098
  %7557 = vmatpush2.bf16.msra.mxu0 %v5097
  %7558 = vmatprep.subr.bf16.mxu0 %v5094
  %7559 = vmatpush2.bf16.msra.mxu0 %v5093
  %7560 = vmatprep.subr.bf16.mxu0 %v5090
  %7561 = vmatpush2.bf16.msra.mxu0 %v5089
  %7562 = vmatprep.subr.bf16.mxu0 %v5086
  %7563 = vmatpush2.bf16.msra.mxu0 %v5085
  %7564 = vmatprep.subr.bf16.mxu0 %v5082
  %7565 = vmatpush2.bf16.msra.mxu0 %v5081
  %7566 = vmatprep.subr.bf16.mxu0 %v5078
  %7567 = vmatpush2.bf16.msra.mxu0 %v5077
  %7568 = vmatprep.subr.bf16.mxu0 %v5074
  %7569 = vmatpush2.bf16.msra.mxu0 %v5073
  %7570 = vmatprep.subr.bf16.mxu0 %v5070
  %7571 = vmatpush2.bf16.msra.mxu0 %v5069
  %7572 = vmatprep.mubr.bf16.mxu0 %v1218
  %7573 = vmatmul.mubr.bf16.gmra.mxu0 %v1217
  %v7574 = vpop.f32.mrf.mxu0
  %v7575 = vadd.f32 %v7532, %v7574
  %v7576 = vpop.f32.mrf.mxu0
  %v7577 = vadd.f32 %v7534, %v7576
  %v7578 = vpop.f32.mrf.mxu0
  %v7579 = vadd.f32 %v7536, %v7578
  %v7580 = vpop.f32.mrf.mxu0
  %v7581 = vadd.f32 %v7538, %v7580
  %7582 = vdwg.mxu0
  %7583 = vmatprep.subr.bf16.mxu0 %v5130
  %7584 = vmatpush1.bf16.msra.mxu0 %v5129
  %7585 = vmatprep.subr.bf16.mxu0 %v5126
  %7586 = vmatpush1.bf16.msra.mxu0 %v5125
  %7587 = vmatprep.subr.bf16.mxu0 %v5122
  %7588 = vmatpush1.bf16.msra.mxu0 %v5121
  %7589 = vmatprep.subr.bf16.mxu0 %v5118
  %7590 = vmatpush1.bf16.msra.mxu0 %v5117
  %7591 = vmatprep.subr.bf16.mxu0 %v5114
  %7592 = vmatpush1.bf16.msra.mxu0 %v5113
  %7593 = vmatprep.subr.bf16.mxu0 %v5110
  %7594 = vmatpush1.bf16.msra.mxu0 %v5109
  %7595 = vmatprep.subr.bf16.mxu0 %v5106
  %7596 = vmatpush1.bf16.msra.mxu0 %v5105
  %7597 = vmatprep.subr.bf16.mxu0 %v5102
  %7598 = vmatpush1.bf16.msra.mxu0 %v5101
  %7599 = vmatprep.subr.bf16.mxu0 %v5162
  %7600 = vmatpush2.bf16.msra.mxu0 %v5161
  %7601 = vmatprep.subr.bf16.mxu0 %v5158
  %7602 = vmatpush2.bf16.msra.mxu0 %v5157
  %7603 = vmatprep.subr.bf16.mxu0 %v5154
  %7604 = vmatpush2.bf16.msra.mxu0 %v5153
  %7605 = vmatprep.subr.bf16.mxu0 %v5150
  %7606 = vmatpush2.bf16.msra.mxu0 %v5149
  %7607 = vmatprep.subr.bf16.mxu0 %v5146
  %7608 = vmatpush2.bf16.msra.mxu0 %v5145
  %7609 = vmatprep.subr.bf16.mxu0 %v5142
  %7610 = vmatpush2.bf16.msra.mxu0 %v5141
  %7611 = vmatprep.subr.bf16.mxu0 %v5138
  %7612 = vmatpush2.bf16.msra.mxu0 %v5137
  %7613 = vmatprep.subr.bf16.mxu0 %v5134
  %7614 = vmatpush2.bf16.msra.mxu0 %v5133
  %7615 = vmatprep.mubr.bf16.mxu0 %v1220
  %7616 = vmatmul.mubr.bf16.gmra.mxu0 %v1219
  %v7617 = vpop.f32.mrf.mxu0
  %v7618 = vadd.f32 %v7575, %v7617
  %v7619 = vpop.f32.mrf.mxu0
  %v7620 = vadd.f32 %v7577, %v7619
  %v7621 = vpop.f32.mrf.mxu0
  %v7622 = vadd.f32 %v7579, %v7621
  %v7623 = vpop.f32.mrf.mxu0
  %v7624 = vadd.f32 %v7581, %v7623
  %7625 = vdwg.mxu0
  %7626 = vmatprep.subr.bf16.mxu0 %v5194
  %7627 = vmatpush1.bf16.msra.mxu0 %v5193
  %7628 = vmatprep.subr.bf16.mxu0 %v5190
  %7629 = vmatpush1.bf16.msra.mxu0 %v5189
  %7630 = vmatprep.subr.bf16.mxu0 %v5186
  %7631 = vmatpush1.bf16.msra.mxu0 %v5185
  %7632 = vmatprep.subr.bf16.mxu0 %v5182
  %7633 = vmatpush1.bf16.msra.mxu0 %v5181
  %7634 = vmatprep.subr.bf16.mxu0 %v5178
  %7635 = vmatpush1.bf16.msra.mxu0 %v5177
  %7636 = vmatprep.subr.bf16.mxu0 %v5174
  %7637 = vmatpush1.bf16.msra.mxu0 %v5173
  %7638 = vmatprep.subr.bf16.mxu0 %v5170
  %7639 = vmatpush1.bf16.msra.mxu0 %v5169
  %7640 = vmatprep.subr.bf16.mxu0 %v5166
  %7641 = vmatpush1.bf16.msra.mxu0 %v5165
  %7642 = vmatprep.subr.bf16.mxu0 %v5226
  %7643 = vmatpush2.bf16.msra.mxu0 %v5225
  %7644 = vmatprep.subr.bf16.mxu0 %v5222
  %7645 = vmatpush2.bf16.msra.mxu0 %v5221
  %7646 = vmatprep.subr.bf16.mxu0 %v5218
  %7647 = vmatpush2.bf16.msra.mxu0 %v5217
  %7648 = vmatprep.subr.bf16.mxu0 %v5214
  %7649 = vmatpush2.bf16.msra.mxu0 %v5213
  %7650 = vmatprep.subr.bf16.mxu0 %v5210
  %7651 = vmatpush2.bf16.msra.mxu0 %v5209
  %7652 = vmatprep.subr.bf16.mxu0 %v5206
  %7653 = vmatpush2.bf16.msra.mxu0 %v5205
  %7654 = vmatprep.subr.bf16.mxu0 %v5202
  %7655 = vmatpush2.bf16.msra.mxu0 %v5201
  %7656 = vmatprep.subr.bf16.mxu0 %v5198
  %7657 = vmatpush2.bf16.msra.mxu0 %v5197
  %7658 = vmatprep.mubr.bf16.mxu0 %v1222
  %7659 = vmatmul.mubr.bf16.gmra.mxu0 %v1221
  %v7660 = vpop.f32.mrf.mxu0
  %v7661 = vadd.f32 %v7618, %v7660
  %v7662 = vpop.f32.mrf.mxu0
  %v7663 = vadd.f32 %v7620, %v7662
  %v7664 = vpop.f32.mrf.mxu0
  %v7665 = vadd.f32 %v7622, %v7664
  %v7666 = vpop.f32.mrf.mxu0
  %v7667 = vadd.f32 %v7624, %v7666
  %7668 = vdwg.mxu0
  %7669 = vmatprep.subr.bf16.mxu0 %v5258
  %7670 = vmatpush1.bf16.msra.mxu0 %v5257
  %7671 = vmatprep.subr.bf16.mxu0 %v5254
  %7672 = vmatpush1.bf16.msra.mxu0 %v5253
  %7673 = vmatprep.subr.bf16.mxu0 %v5250
  %7674 = vmatpush1.bf16.msra.mxu0 %v5249
  %7675 = vmatprep.subr.bf16.mxu0 %v5246
  %7676 = vmatpush1.bf16.msra.mxu0 %v5245
  %7677 = vmatprep.subr.bf16.mxu0 %v5242
  %7678 = vmatpush1.bf16.msra.mxu0 %v5241
  %7679 = vmatprep.subr.bf16.mxu0 %v5238
  %7680 = vmatpush1.bf16.msra.mxu0 %v5237
  %7681 = vmatprep.subr.bf16.mxu0 %v5234
  %7682 = vmatpush1.bf16.msra.mxu0 %v5233
  %7683 = vmatprep.subr.bf16.mxu0 %v5230
  %7684 = vmatpush1.bf16.msra.mxu0 %v5229
  %7685 = vmatprep.subr.bf16.mxu0 %v5290
  %7686 = vmatpush2.bf16.msra.mxu0 %v5289
  %7687 = vmatprep.subr.bf16.mxu0 %v5286
  %7688 = vmatpush2.bf16.msra.mxu0 %v5285
  %7689 = vmatprep.subr.bf16.mxu0 %v5282
  %7690 = vmatpush2.bf16.msra.mxu0 %v5281
  %7691 = vmatprep.subr.bf16.mxu0 %v5278
  %7692 = vmatpush2.bf16.msra.mxu0 %v5277
  %7693 = vmatprep.subr.bf16.mxu0 %v5274
  %7694 = vmatpush2.bf16.msra.mxu0 %v5273
  %7695 = vmatprep.subr.bf16.mxu0 %v5270
  %7696 = vmatpush2.bf16.msra.mxu0 %v5269
  %7697 = vmatprep.subr.bf16.mxu0 %v5266
  %7698 = vmatpush2.bf16.msra.mxu0 %v5265
  %7699 = vmatprep.subr.bf16.mxu0 %v5262
  %7700 = vmatpush2.bf16.msra.mxu0 %v5261
  %7701 = vmatprep.mubr.bf16.mxu0 %v1224
  %7702 = vmatmul.mubr.bf16.gmra.mxu0 %v1223
  %v7703 = vpop.f32.mrf.mxu0
  %v7704 = vadd.f32 %v7661, %v7703
  %v7705 = vpop.f32.mrf.mxu0
  %v7706 = vadd.f32 %v7663, %v7705
  %v7707 = vpop.f32.mrf.mxu0
  %v7708 = vadd.f32 %v7665, %v7707
  %v7709 = vpop.f32.mrf.mxu0
  %v7710 = vadd.f32 %v7667, %v7709
  %7711 = vdwg.mxu0
  %7712 = vmatprep.subr.bf16.mxu0 %v5322
  %7713 = vmatpush1.bf16.msra.mxu0 %v5321
  %7714 = vmatprep.subr.bf16.mxu0 %v5318
  %7715 = vmatpush1.bf16.msra.mxu0 %v5317
  %7716 = vmatprep.subr.bf16.mxu0 %v5314
  %7717 = vmatpush1.bf16.msra.mxu0 %v5313
  %7718 = vmatprep.subr.bf16.mxu0 %v5310
  %7719 = vmatpush1.bf16.msra.mxu0 %v5309
  %7720 = vmatprep.subr.bf16.mxu0 %v5306
  %7721 = vmatpush1.bf16.msra.mxu0 %v5305
  %7722 = vmatprep.subr.bf16.mxu0 %v5302
  %7723 = vmatpush1.bf16.msra.mxu0 %v5301
  %7724 = vmatprep.subr.bf16.mxu0 %v5298
  %7725 = vmatpush1.bf16.msra.mxu0 %v5297
  %7726 = vmatprep.subr.bf16.mxu0 %v5294
  %7727 = vmatpush1.bf16.msra.mxu0 %v5293
  %7728 = vmatprep.subr.bf16.mxu0 %v5354
  %7729 = vmatpush2.bf16.msra.mxu0 %v5353
  %7730 = vmatprep.subr.bf16.mxu0 %v5350
  %7731 = vmatpush2.bf16.msra.mxu0 %v5349
  %7732 = vmatprep.subr.bf16.mxu0 %v5346
  %7733 = vmatpush2.bf16.msra.mxu0 %v5345
  %7734 = vmatprep.subr.bf16.mxu0 %v5342
  %7735 = vmatpush2.bf16.msra.mxu0 %v5341
  %7736 = vmatprep.subr.bf16.mxu0 %v5338
  %7737 = vmatpush2.bf16.msra.mxu0 %v5337
  %7738 = vmatprep.subr.bf16.mxu0 %v5334
  %7739 = vmatpush2.bf16.msra.mxu0 %v5333
  %7740 = vmatprep.subr.bf16.mxu0 %v5330
  %7741 = vmatpush2.bf16.msra.mxu0 %v5329
  %7742 = vmatprep.subr.bf16.mxu0 %v5326
  %7743 = vmatpush2.bf16.msra.mxu0 %v5325
  %7744 = vmatprep.mubr.bf16.mxu0 %v1226
  %7745 = vmatmul.mubr.bf16.gmra.mxu0 %v1225
  %v7746 = vpop.f32.mrf.mxu0
  %v7747 = vadd.f32 %v7704, %v7746
  %v7748 = vpop.f32.mrf.mxu0
  %v7749 = vadd.f32 %v7706, %v7748
  %v7750 = vpop.f32.mrf.mxu0
  %v7751 = vadd.f32 %v7708, %v7750
  %v7752 = vpop.f32.mrf.mxu0
  %v7753 = vadd.f32 %v7710, %v7752
  %7754 = vdwg.mxu0
  %v7755 = vmax.f32 %v7059, 0.0
  %v7756 = vmax.f32 %v7061, 0.0
  %v7757 = vmax.f32 %v7747, 0.0
  %v7758 = vmax.f32 %v7749, 0.0
  %v7759 = vmax.f32 %v7063, 0.0
  %v7760 = vmax.f32 %v7065, 0.0
  %v7761 = vmax.f32 %v7751, 0.0
  %v7762 = vmax.f32 %v7753, 0.0
  %v7763 = vpack.c.bf16 %v7759, %v7755
  %v7764 = vpack.c.bf16 %v7760, %v7756
  %v7765 = vpack.c.bf16 %v7761, %v7757
  %v7766 = vpack.c.bf16 %v7762, %v7758
  %v7767 = vld [vmem:[%s3] sm:$0xf]
  %v7768 = vld [vmem:[%s3 + $0x4] sm:$0xf]
  %v7769 = vld [vmem:[%s3 + $0x8] sm:$0xf]
  %v7770 = vld [vmem:[%s3 + $0xc] sm:$0xf]
  %v7771 = vld [vmem:[%s3 + $0x10] sm:$0xf]
  %v7772 = vld [vmem:[%s3 + $0x14] sm:$0xf]
  %v7773 = vld [vmem:[%s3 + $0x18] sm:$0xf]
  %v7774 = vld [vmem:[%s3 + $0x1c] sm:$0xf]
  %v7775 = vld [vmem:[%s3 + $0x20] sm:$0xf]
  %v7776 = vld [vmem:[%s3 + $0x24] sm:$0xf]
  %v7777 = vld [vmem:[%s3 + $0x28] sm:$0xf]
  %v7778 = vld [vmem:[%s3 + $0x2c] sm:$0xf]
  %v7779 = vld [vmem:[%s3 + $0x30] sm:$0xf]
  %v7780 = vld [vmem:[%s3 + $0x34] sm:$0xf]
  %v7781 = vld [vmem:[%s3 + $0x38] sm:$0xf]
  %v7782 = vld [vmem:[%s3 + $0x3c] sm:$0xf]
  %v7783 = vld [vmem:[%s3 + $0x40] sm:$0xf]
  %v7784 = vld [vmem:[%s3 + $0x44] sm:$0xf]
  %v7785 = vld [vmem:[%s3 + $0x48] sm:$0xf]
  %v7786 = vld [vmem:[%s3 + $0x4c] sm:$0xf]
  %v7787 = vld [vmem:[%s3 + $0x50] sm:$0xf]
  %v7788 = vld [vmem:[%s3 + $0x54] sm:$0xf]
  %v7789 = vld [vmem:[%s3 + $0x58] sm:$0xf]
  %v7790 = vld [vmem:[%s3 + $0x5c] sm:$0xf]
  %v7791 = vld [vmem:[%s3 + $0x60] sm:$0xf]
  %v7792 = vld [vmem:[%s3 + $0x64] sm:$0xf]
  %v7793 = vld [vmem:[%s3 + $0x68] sm:$0xf]
  %v7794 = vld [vmem:[%s3 + $0x6c] sm:$0xf]
  %v7795 = vld [vmem:[%s3 + $0x70] sm:$0xf]
  %v7796 = vld [vmem:[%s3 + $0x74] sm:$0xf]
  %v7797 = vld [vmem:[%s3 + $0x78] sm:$0xf]
  %v7798 = vld [vmem:[%s3 + $0x7c] sm:$0xf]
  %v7799 = vld [vmem:[%s3 + $0x80] sm:$0xf]
  %v7800 = vld [vmem:[%s3 + $0x84] sm:$0xf]
  %v7801 = vld [vmem:[%s3 + $0x88] sm:$0xf]
  %v7802 = vld [vmem:[%s3 + $0x8c] sm:$0xf]
  %v7803 = vld [vmem:[%s3 + $0x90] sm:$0xf]
  %v7804 = vld [vmem:[%s3 + $0x94] sm:$0xf]
  %v7805 = vld [vmem:[%s3 + $0x98] sm:$0xf]
  %v7806 = vld [vmem:[%s3 + $0x9c] sm:$0xf]
  %v7807 = vld [vmem:[%s3 + $0xa0] sm:$0xf]
  %v7808 = vld [vmem:[%s3 + $0xa4] sm:$0xf]
  %v7809 = vld [vmem:[%s3 + $0xa8] sm:$0xf]
  %v7810 = vld [vmem:[%s3 + $0xac] sm:$0xf]
  %v7811 = vld [vmem:[%s3 + $0xb0] sm:$0xf]
  %v7812 = vld [vmem:[%s3 + $0xb4] sm:$0xf]
  %v7813 = vld [vmem:[%s3 + $0xb8] sm:$0xf]
  %v7814 = vld [vmem:[%s3 + $0xbc] sm:$0xf]
  %v7815 = vld [vmem:[%s3 + $0xc0] sm:$0xf]
  %v7816 = vld [vmem:[%s3 + $0xc4] sm:$0xf]
  %v7817 = vld [vmem:[%s3 + $0xc8] sm:$0xf]
  %v7818 = vld [vmem:[%s3 + $0xcc] sm:$0xf]
  %v7819 = vld [vmem:[%s3 + $0xd0] sm:$0xf]
  %v7820 = vld [vmem:[%s3 + $0xd4] sm:$0xf]
  %v7821 = vld [vmem:[%s3 + $0xd8] sm:$0xf]
  %v7822 = vld [vmem:[%s3 + $0xdc] sm:$0xf]
  %v7823 = vld [vmem:[%s3 + $0xe0] sm:$0xf]
  %v7824 = vld [vmem:[%s3 + $0xe4] sm:$0xf]
  %v7825 = vld [vmem:[%s3 + $0xe8] sm:$0xf]
  %v7826 = vld [vmem:[%s3 + $0xec] sm:$0xf]
  %v7827 = vld [vmem:[%s3 + $0xf0] sm:$0xf]
  %v7828 = vld [vmem:[%s3 + $0xf4] sm:$0xf]
  %v7829 = vld [vmem:[%s3 + $0xf8] sm:$0xf]
  %v7830 = vld [vmem:[%s3 + $0xfc] sm:$0xf]
  %v7831 = vld [vmem:[%s4] sm:$0x1]
  %v7833 = vlaneseq
  %v7834 = vshrl.u32 %v7833, 7
  %v7835 = vsub.s32 0, %v7834
  %v7836 = vrot.slane %v7831, %v7835
  %v7902 = vunpack.c.l.b16 %v7767
  %v7903 = vunpack.c.l.b16 %v7768
  %v7904 = vunpack.c.l.b16 %v7769
  %v7905 = vunpack.c.l.b16 %v7770
  %v7906 = vunpack.c.l.b16 %v7771
  %v7907 = vunpack.c.l.b16 %v7772
  %v7908 = vunpack.c.l.b16 %v7773
  %v7909 = vunpack.c.l.b16 %v7774
  %v7910 = vunpack.c.l.b16 %v7775
  %v7911 = vunpack.c.l.b16 %v7776
  %v7912 = vunpack.c.l.b16 %v7777
  %v7913 = vunpack.c.l.b16 %v7778
  %v7914 = vunpack.c.l.b16 %v7779
  %v7915 = vunpack.c.l.b16 %v7780
  %v7916 = vunpack.c.l.b16 %v7781
  %v7917 = vunpack.c.l.b16 %v7782
  %v7918 = vunpack.c.l.b16 %v7783
  %v7919 = vunpack.c.l.b16 %v7784
  %v7920 = vunpack.c.l.b16 %v7785
  %v7921 = vunpack.c.l.b16 %v7786
  %v7922 = vunpack.c.l.b16 %v7787
  %v7923 = vunpack.c.l.b16 %v7788
  %v7924 = vunpack.c.l.b16 %v7789
  %v7925 = vunpack.c.l.b16 %v7790
  %v7926 = vunpack.c.l.b16 %v7791
  %v7927 = vunpack.c.l.b16 %v7792
  %v7928 = vunpack.c.l.b16 %v7793
  %v7929 = vunpack.c.l.b16 %v7794
  %v7930 = vunpack.c.l.b16 %v7795
  %v7931 = vunpack.c.l.b16 %v7796
  %v7932 = vunpack.c.l.b16 %v7797
  %v7933 = vunpack.c.l.b16 %v7798
  %v7934 = vunpack.c.l.b16 %v7799
  %v7935 = vunpack.c.l.b16 %v7800
  %v7936 = vunpack.c.l.b16 %v7801
  %v7937 = vunpack.c.l.b16 %v7802
  %v7938 = vunpack.c.l.b16 %v7803
  %v7939 = vunpack.c.l.b16 %v7804
  %v7940 = vunpack.c.l.b16 %v7805
  %v7941 = vunpack.c.l.b16 %v7806
  %v7942 = vunpack.c.l.b16 %v7807
  %v7943 = vunpack.c.l.b16 %v7808
  %v7944 = vunpack.c.l.b16 %v7809
  %v7945 = vunpack.c.l.b16 %v7810
  %v7946 = vunpack.c.l.b16 %v7811
  %v7947 = vunpack.c.l.b16 %v7812
  %v7948 = vunpack.c.l.b16 %v7813
  %v7949 = vunpack.c.l.b16 %v7814
  %v7950 = vunpack.c.l.b16 %v7815
  %v7951 = vunpack.c.l.b16 %v7816
  %v7952 = vunpack.c.l.b16 %v7817
  %v7953 = vunpack.c.l.b16 %v7818
  %v7954 = vunpack.c.l.b16 %v7819
  %v7955 = vunpack.c.l.b16 %v7820
  %v7956 = vunpack.c.l.b16 %v7821
  %v7957 = vunpack.c.l.b16 %v7822
  %v7958 = vunpack.c.l.b16 %v7823
  %v7959 = vunpack.c.l.b16 %v7824
  %v7960 = vunpack.c.l.b16 %v7825
  %v7961 = vunpack.c.l.b16 %v7826
  %v7962 = vunpack.c.l.b16 %v7827
  %v7963 = vunpack.c.l.b16 %v7828
  %v7964 = vunpack.c.l.b16 %v7829
  %v7965 = vunpack.c.l.b16 %v7830
  %v7966 = vpack.c.b16 %v7903, %v7902
  %v7967 = vpack.c.b16 %v7905, %v7904
  %v7968 = vpack.c.b16 %v7907, %v7906
  %v7969 = vpack.c.b16 %v7909, %v7908
  %v7970 = vpack.c.b16 %v7911, %v7910
  %v7971 = vpack.c.b16 %v7913, %v7912
  %v7972 = vpack.c.b16 %v7915, %v7914
  %v7973 = vpack.c.b16 %v7917, %v7916
  %v7974 = vpack.c.b16 %v7919, %v7918
  %v7975 = vpack.c.b16 %v7921, %v7920
  %v7976 = vpack.c.b16 %v7923, %v7922
  %v7977 = vpack.c.b16 %v7925, %v7924
  %v7978 = vpack.c.b16 %v7927, %v7926
  %v7979 = vpack.c.b16 %v7929, %v7928
  %v7980 = vpack.c.b16 %v7931, %v7930
  %v7981 = vpack.c.b16 %v7933, %v7932
  %v7982 = vpack.c.b16 %v7935, %v7934
  %v7983 = vpack.c.b16 %v7937, %v7936
  %v7984 = vpack.c.b16 %v7939, %v7938
  %v7985 = vpack.c.b16 %v7941, %v7940
  %v7986 = vpack.c.b16 %v7943, %v7942
  %v7987 = vpack.c.b16 %v7945, %v7944
  %v7988 = vpack.c.b16 %v7947, %v7946
  %v7989 = vpack.c.b16 %v7949, %v7948
  %v7990 = vpack.c.b16 %v7951, %v7950
  %v7991 = vpack.c.b16 %v7953, %v7952
  %v7992 = vpack.c.b16 %v7955, %v7954
  %v7993 = vpack.c.b16 %v7957, %v7956
  %v7994 = vpack.c.b16 %v7959, %v7958
  %v7995 = vpack.c.b16 %v7961, %v7960
  %v7996 = vpack.c.b16 %v7963, %v7962
  %v7997 = vpack.c.b16 %v7965, %v7964
  %8030 = vmatprep.subr.bf16.mxu0 0
  %8031 = vmatpush1.bf16.msra.mxu0 %v7973
  %8032 = vmatprep.subr.bf16.mxu0 0
  %8033 = vmatpush1.bf16.msra.mxu0 %v7972
  %8034 = vmatprep.subr.bf16.mxu0 0
  %8035 = vmatpush1.bf16.msra.mxu0 %v7971
  %8036 = vmatprep.subr.bf16.mxu0 0
  %8037 = vmatpush1.bf16.msra.mxu0 %v7970
  %8038 = vmatprep.subr.bf16.mxu0 0
  %8039 = vmatpush1.bf16.msra.mxu0 %v7969
  %8040 = vmatprep.subr.bf16.mxu0 0
  %8041 = vmatpush1.bf16.msra.mxu0 %v7968
  %8042 = vmatprep.subr.bf16.mxu0 0
  %8043 = vmatpush1.bf16.msra.mxu0 %v7967
  %8044 = vmatprep.subr.bf16.mxu0 0
  %8045 = vmatpush1.bf16.msra.mxu0 %v7966
  %8046 = vmatprep.subr.bf16.mxu0 0
  %8047 = vmatpush2.bf16.msra.mxu0 %v7981
  %8048 = vmatprep.subr.bf16.mxu0 0
  %8049 = vmatpush2.bf16.msra.mxu0 %v7980
  %8050 = vmatprep.subr.bf16.mxu0 0
  %8051 = vmatpush2.bf16.msra.mxu0 %v7979
  %8052 = vmatprep.subr.bf16.mxu0 0
  %8053 = vmatpush2.bf16.msra.mxu0 %v7978
  %8054 = vmatprep.subr.bf16.mxu0 0
  %8055 = vmatpush2.bf16.msra.mxu0 %v7977
  %8056 = vmatprep.subr.bf16.mxu0 0
  %8057 = vmatpush2.bf16.msra.mxu0 %v7976
  %8058 = vmatprep.subr.bf16.mxu0 0
  %8059 = vmatpush2.bf16.msra.mxu0 %v7975
  %8060 = vmatprep.subr.bf16.mxu0 0
  %8061 = vmatpush2.bf16.msra.mxu0 %v7974
  %8062 = vmatprep.mubr.bf16.mxu0 %v7764
  %8063 = vmatmul.mubr.bf16.gmra.mxu0 %v7763
  %v8064 = vpop.f32.mrf.mxu0
  %v8065 = vadd.f32 %v7836, %v8064
  %v8066 = vpop.f32.mrf.mxu0
  %v8067 = vpop.f32.mrf.mxu0
  %v8068 = vadd.f32 %v7836, %v8067
  %v8069 = vpop.f32.mrf.mxu0
  %8070 = vdwg.mxu0
  %8071 = vmatprep.subr.bf16.mxu0 0
  %8072 = vmatpush1.bf16.msra.mxu0 %v7989
  %8073 = vmatprep.subr.bf16.mxu0 0
  %8074 = vmatpush1.bf16.msra.mxu0 %v7988
  %8075 = vmatprep.subr.bf16.mxu0 0
  %8076 = vmatpush1.bf16.msra.mxu0 %v7987
  %8077 = vmatprep.subr.bf16.mxu0 0
  %8078 = vmatpush1.bf16.msra.mxu0 %v7986
  %8079 = vmatprep.subr.bf16.mxu0 0
  %8080 = vmatpush1.bf16.msra.mxu0 %v7985
  %8081 = vmatprep.subr.bf16.mxu0 0
  %8082 = vmatpush1.bf16.msra.mxu0 %v7984
  %8083 = vmatprep.subr.bf16.mxu0 0
  %8084 = vmatpush1.bf16.msra.mxu0 %v7983
  %8085 = vmatprep.subr.bf16.mxu0 0
  %8086 = vmatpush1.bf16.msra.mxu0 %v7982
  %8087 = vmatprep.subr.bf16.mxu0 0
  %8088 = vmatpush2.bf16.msra.mxu0 %v7997
  %8089 = vmatprep.subr.bf16.mxu0 0
  %8090 = vmatpush2.bf16.msra.mxu0 %v7996
  %8091 = vmatprep.subr.bf16.mxu0 0
  %8092 = vmatpush2.bf16.msra.mxu0 %v7995
  %8093 = vmatprep.subr.bf16.mxu0 0
  %8094 = vmatpush2.bf16.msra.mxu0 %v7994
  %8095 = vmatprep.subr.bf16.mxu0 0
  %8096 = vmatpush2.bf16.msra.mxu0 %v7993
  %8097 = vmatprep.subr.bf16.mxu0 0
  %8098 = vmatpush2.bf16.msra.mxu0 %v7992
  %8099 = vmatprep.subr.bf16.mxu0 0
  %8100 = vmatpush2.bf16.msra.mxu0 %v7991
  %8101 = vmatprep.subr.bf16.mxu0 0
  %8102 = vmatpush2.bf16.msra.mxu0 %v7990
  %8103 = vmatprep.mubr.bf16.mxu0 %v7766
  %8104 = vmatmul.mubr.bf16.gmra.mxu0 %v7765
  %v8105 = vpop.f32.mrf.mxu0
  %v8106 = vadd.f32 %v8065, %v8105
  %v8107 = vpop.f32.mrf.mxu0
  %v8108 = vpop.f32.mrf.mxu0
  %v8109 = vadd.f32 %v8068, %v8108
  %v8110 = vpop.f32.mrf.mxu0
  %8111 = vdwg.mxu0
  %8112 = vst [vmem:[%s5] sm:$0xff] %v8106
  %8113 = vst [vmem:[%s5 + $0x8] sm:$0xff] %v8109
  // Predicated region
  $region22: #{lenet5_forward.3} parent=0 // pred_check
    _
  $region23: #{lenet5_forward.3} parent=0 // pred_check_branch
    %8115 = sbr.rel (0) target = $region25
  $region24: #{lenet5_forward.3} parent=0 // pred_region
    _
  $region25: #{lenet5_forward.3} parent=0 // pred_fallthru
    _
  // Predicated region
  $region26: #{lenet5_forward.3} parent=0 // pred_check
    _
  $region27: #{lenet5_forward.3} parent=0 // pred_check_branch
    %8117 = sbr.rel (0) target = $region29
  $region28: #{lenet5_forward.3} parent=0 // pred_region
    _
  $region29: #{lenet5_forward.3} parent=0 // pred_fallthru
    _

</llo_original>
